<compile_context>
chip_gen: v5e
topology: v5e:2x2
jax: 0.10.0
libtpu: 0.0.40
codegen_flags: <defaults>
</compile_context>

<pallas_src>
import functools

import jax
import jax.numpy as jnp
from jax.experimental import pallas as pl
from jax.experimental.pallas import tpu as pltpu


def _round_up(x, m):
    return (x + m - 1) // m * m


def _vmem_limit(tm, tn, tk, out_bytes):
    """VMEM limit derived from the actual (double-buffered) tile footprint."""
    need = 2 * (tm * tk + tk * tn) * 2      # bf16 LHS/RHS tiles, double-buffered
    need += 2 * tm * tn * out_bytes         # output tile, double-buffered
    need += tm * tn * 4                     # f32 accumulator scratch
    need += 2 * 2 * tn * 4                  # scale/shift tiles
    limit = max(2 * need, 8 * 1024 * 1024)  # headroom for the compiler
    return min(limit, 48 * 1024 * 1024)     # stay well under v7x's 64 MiB VMEM


# ---------------------------------------------------------------------------
# Kernel 1: tiled (M, OC, K) matmul with fused scale/shift + activation.
# ---------------------------------------------------------------------------
def _conv_mm_kernel(p_ref, w_ref, scale_ref, shift_ref, o_ref, acc_ref, *,
                    activation, alpha):
    k = pl.program_id(2)

    @pl.when(k == 0)
    def _():
        acc_ref[...] = jnp.zeros_like(acc_ref)

    acc_ref[...] += jnp.dot(p_ref[...], w_ref[...],
                            preferred_element_type=jnp.float32)

    @pl.when(k == pl.num_programs(2) - 1)
    def _():
        y = acc_ref[...] * scale_ref[...] + shift_ref[...]
        if activation == "leaky":
            y = jnp.where(y >= 0.0, y, alpha * y)
        else:  # sigmoid
            y = 1.0 / (1.0 + jnp.exp(-y))
        o_ref[...] = y.astype(o_ref.dtype)


# ---------------------------------------------------------------------------
# Kernel 2: OC == 1 projection (final layer).  Avoids the 128x lane padding:
# VPU elementwise multiply + XLU lane reduction, K streamed over the grid.
# ---------------------------------------------------------------------------
def _conv_oc1_kernel(p_ref, w_ref, bias_ref, o_ref, acc_ref):
    k = pl.program_id(1)

    @pl.when(k == 0)
    def _():
        acc_ref[...] = jnp.zeros_like(acc_ref)

    prod = p_ref[...].astype(jnp.float32) * w_ref[...].astype(jnp.float32)
    acc_ref[...] += jnp.sum(prod, axis=-1, keepdims=True)

    @pl.when(k == pl.num_programs(1) - 1)
    def _():
        y = acc_ref[...] + bias_ref[...]
        o_ref[...] = (1.0 / (1.0 + jnp.exp(-y))).astype(o_ref.dtype)


# ---------------------------------------------------------------------------
# im2col glue (plain JAX, bf16)
# ---------------------------------------------------------------------------
def _im2col(x, kh_size, kw_size, stride, padding):
    N, C, H, W = x.shape
    OH = (H + 2 * padding - kh_size) // stride + 1
    OW = (W + 2 * padding - kw_size) // stride + 1
    xp = jnp.pad(x, ((0, 0), (0, 0), (padding, padding), (padding, padding)))
    cols = []
    for kh in range(kh_size):
        for kw in range(kw_size):
            cols.append(xp[:, :,
                           kh:kh + stride * (OH - 1) + 1:stride,
                           kw:kw + stride * (OW - 1) + 1:stride])
    patches = jnp.stack(cols, axis=2)          # (N, C, KH*KW, OH, OW)
    patches = patches.transpose(0, 3, 4, 1, 2)  # (N, OH, OW, C, KH*KW)
    return patches.reshape(N * OH * OW, C * kh_size * kw_size), OH, OW


def conv2d_fused(x, w, scale, shift, *, stride, padding, activation,
                 alpha=0.2, out_dtype=jnp.bfloat16):
    """activation(scale * conv2d(x, w, stride, padding) + shift).

    x: (N, C, H, W), w: (OC, C, KH, KW) f32, scale/shift: (OC,) f32.
    """
    N, C, H, W = x.shape
    OC, _, KH, KW = w.shape

    xb = x.astype(jnp.bfloat16)
    patches, OH, OW = _im2col(xb, KH, KW, stride, padding)
    M, K = patches.shape

    # ---- tile sizes: lane/sublane aligned, 256-wide where the layer allows
    TM = 256 if M >= 256 else _round_up(M, 8)
    Mp = _round_up(M, TM)
    Kp0 = _round_up(K, 128)
    TK = min(2048, Kp0)
    Kp = _round_up(Kp0, TK)
    out_bytes = jnp.dtype(out_dtype).itemsize

    if OC == 1:
        # Final 512 -> 1 projection: fold scale into the weight row, stream K.
        p_pad = jnp.pad(patches, ((0, Mp - M), (0, Kp - K)))
        w_row = (w.reshape(1, K).astype(jnp.float32) * scale[0])
        w_row = jnp.pad(w_row, ((0, 0), (0, Kp - K))).astype(jnp.bfloat16)
        bias = shift.reshape(1, 1).astype(jnp.float32)

        out = pl.pallas_call(
            _conv_oc1_kernel,
            out_shape=jax.ShapeDtypeStruct((Mp, 1), out_dtype),
            grid=(Mp // TM, Kp // TK),
            in_specs=[
                pl.BlockSpec((TM, TK), lambda i, k: (i, k)),
                pl.BlockSpec((1, TK), lambda i, k: (0, k)),
                pl.BlockSpec((1, 1), lambda i, k: (0, 0)),
            ],
            out_specs=pl.BlockSpec((TM, 1), lambda i, k: (i, 0)),
            scratch_shapes=[pltpu.VMEM((TM, 1), jnp.float32)],
            compiler_params=pltpu.CompilerParams(
                dimension_semantics=("parallel", "arbitrary"),
                vmem_limit_bytes=_vmem_limit(TM, 1, TK, out_bytes)),
        )(p_pad, w_row, bias)
        return out[:M, :].reshape(N, OH, OW, 1).transpose(0, 3, 1, 2)

    # ---- general path: tiled MXU matmul ---------------------------------
    OCp = _round_up(OC, 128)
    TN = 256 if OCp % 256 == 0 else 128

    wmat = w.reshape(OC, K).T.astype(jnp.bfloat16)  # (K, OC)
    p_pad = jnp.pad(patches, ((0, Mp - M), (0, Kp - K)))
    w_pad = jnp.pad(wmat, ((0, Kp - K), (0, OCp - OC)))
    s_pad = jnp.pad(scale.astype(jnp.float32), (0, OCp - OC)).reshape(1, OCp)
    b_pad = jnp.pad(shift.astype(jnp.float32), (0, OCp - OC)).reshape(1, OCp)

    kern = functools.partial(_conv_mm_kernel, activation=activation, alpha=alpha)
    out = pl.pallas_call(
        kern,
        out_shape=jax.ShapeDtypeStruct((Mp, OCp), out_dtype),
        grid=(Mp // TM, OCp // TN, Kp // TK),
        in_specs=[
            pl.BlockSpec((TM, TK), lambda i, j, k: (i, k)),
            pl.BlockSpec((TK, TN), lambda i, j, k: (k, j)),
            pl.BlockSpec((1, TN), lambda i, j, k: (0, j)),
            pl.BlockSpec((1, TN), lambda i, j, k: (0, j)),
        ],
        out_specs=pl.BlockSpec((TM, TN), lambda i, j, k: (i, j)),
        scratch_shapes=[pltpu.VMEM((TM, TN), jnp.float32)],
        compiler_params=pltpu.CompilerParams(
            dimension_semantics=("parallel", "parallel", "arbitrary"),
            vmem_limit_bytes=_vmem_limit(TM, TN, TK, out_bytes)),
    )(p_pad, w_pad, s_pad, b_pad)

    out = out[:M, :OC].reshape(N, OH, OW, OC).transpose(0, 3, 1, 2)
    return out


def init_params(key, in_channels=2):
    """Deterministic synthetic parameters matching the nn.Module shapes."""
    specs = [(in_channels, 64), (64, 128), (128, 256), (256, 512), (512, 1)]
    bn_layers = {1, 2, 3}  # layers followed by BatchNorm2d
    params = []
    for i, (cin, cout) in enumerate(specs):
        key, kw, kb, kg, kbe, km, kv = jax.random.split(key, 7)
        layer = {
            "w": 0.05 * jax.random.normal(kw, (cout, cin, 4, 4), jnp.float32),
            "b": 0.01 * jax.random.normal(kb, (cout,), jnp.float32),
        }
        if i in bn_layers:
            layer["gamma"] = 1.0 + 0.1 * jax.random.normal(kg, (cout,), jnp.float32)
            layer["beta"] = 0.1 * jax.random.normal(kbe, (cout,), jnp.float32)
            layer["mean"] = 0.1 * jax.random.normal(km, (cout,), jnp.float32)
            layer["var"] = 0.5 + jnp.abs(jax.random.normal(kv, (cout,), jnp.float32))
        params.append(layer)
    return params


def discriminator_forward(params, x):
    # TODO(synk): Dropout(0.3) is stochastic in train mode; eval-mode
    # (identity) semantics are implemented here.
    strides = [2, 2, 2, 1, 1]
    acts = ["leaky", "leaky", "leaky", "leaky", "sigmoid"]
    eps = 1e-5
    n_layers = len(params)
    h = x
    for i, layer in enumerate(params):
        if "gamma" in layer:
            inv = layer["gamma"] / jnp.sqrt(layer["var"] + eps)
            scale = inv
            shift = (layer["b"] - layer["mean"]) * inv + layer["beta"]
        else:
            scale = jnp.ones_like(layer["b"])
            shift = layer["b"]
        out_dtype = jnp.float32 if i == n_layers - 1 else jnp.bfloat16
        h = conv2d_fused(h, layer["w"], scale, shift,
                         stride=strides[i], padding=1, activation=acts[i],
                         out_dtype=out_dtype)
    return h


if __name__ == "__main__":
    key = jax.random.PRNGKey(0)
    kp, kx = jax.random.split(key)
    params = init_params(kp, in_channels=2)
    # Smallest spatial size that survives all 5 conv layers: 32
    # 32 -s2-> 16 -s2-> 8 -s2-> 4 -s1-> 3 -s1-> 2
    x = jax.random.normal(kx, (2, 2, 32, 32), jnp.float32)

    fwd = jax.jit(discriminator_forward)
    out = fwd(params, x)
    out = jax.block_until_ready(out)
    assert out.shape == (2, 1, 2, 2), out.shape
    assert bool(jnp.all((out >= 0.0) & (out <= 1.0)))  # sigmoid output range
    print("KERNEL_OK")
</pallas_src>

<mosaic_0001>
module attributes {stable_mosaic.version = 11 : i64} {
  func.func @_conv_mm_kernel(%arg0: i32, %arg1: i32, %arg2: i32, %arg3: memref<256x128xbf16, #tpu.memory_space<vmem>>, %arg4: memref<128x128xbf16, #tpu.memory_space<vmem>>, %arg5: memref<1x128xf32, #tpu.memory_space<vmem>>, %arg6: memref<1x128xf32, #tpu.memory_space<vmem>>, %arg7: memref<256x128xbf16, #tpu.memory_space<vmem>>, %arg8: memref<256x128xf32, #tpu.memory_space<vmem>>) attributes {dimension_semantics = [#tpu.dimension_semantics<parallel>, #tpu.dimension_semantics<parallel>, #tpu.dimension_semantics<arbitrary>], iteration_bounds = array<i64: 2, 1, 1>, scalar_prefetch = 0 : i64, scratch_operands = 1 : i64, tpu.core_type = #tpu.core_type<tc>, window_params = [{transform_indices = @transform_0, window_bounds = array<i64: 256, 128>}, {transform_indices = @transform_1, window_bounds = array<i64: 128, 128>}, {transform_indices = @transform_2, window_bounds = array<i64: 1, 128>}, {transform_indices = @transform_3, window_bounds = array<i64: 1, 128>}, {transform_indices = @transform_4, window_bounds = array<i64: 256, 128>}]} {
    %c0_i32 = arith.constant 0 : i32
    %0 = arith.cmpi eq, %arg2, %c0_i32 : i32
    %1 = arith.extui %0 : i1 to i32
    %c0_i32_0 = arith.constant 0 : i32
    %2 = arith.cmpi ne, %1, %c0_i32_0 : i32
    scf.if %2 {
      %cst_10 = arith.constant 0.000000e+00 : f32
      %12 = vector.broadcast %cst_10 : f32 to vector<256x128xf32>
      %c0_11 = arith.constant 0 : index
      %c0_12 = arith.constant 0 : index
      %13 = vector.load %arg8[%c0_11, %c0_12] : memref<256x128xf32, #tpu.memory_space<vmem>>, vector<256x128xf32>
      tpu.vector_store %arg8[%c0_11, %c0_12], %12 {strides = array<i32>} : memref<256x128xf32, #tpu.memory_space<vmem>>, vector<256x128xf32>,
    } else {
    }
    %c0 = arith.constant 0 : index
    %c0_1 = arith.constant 0 : index
    %3 = vector.load %arg8[%c0, %c0_1] : memref<256x128xf32, #tpu.memory_space<vmem>>, vector<256x128xf32>
    %c0_2 = arith.constant 0 : index
    %c0_3 = arith.constant 0 : index
    %4 = vector.load %arg3[%c0_2, %c0_3] : memref<256x128xbf16, #tpu.memory_space<vmem>>, vector<256x128xbf16>
    %c0_4 = arith.constant 0 : index
    %c0_5 = arith.constant 0 : index
    %5 = vector.load %arg4[%c0_4, %c0_5] : memref<128x128xbf16, #tpu.memory_space<vmem>>, vector<128x128xbf16>
    %cst = arith.constant dense<0.000000e+00> : vector<256x128xf32>
    %6 = tpu.matmul %4, %5, %cst {dimension_numbers = #tpu.dot_dimension_numbers<[1], [0], [0], [1], [0, 0, 1, 1], [], []>} : vector<256x128xbf16>, vector<128x128xbf16>, vector<256x128xf32> -> vector<256x128xf32>
    %7 = arith.addf %3, %6 : vector<256x128xf32>
    %c0_6 = arith.constant 0 : index
    %c0_7 = arith.constant 0 : index
    %8 = vector.load %arg8[%c0_6, %c0_7] : memref<256x128xf32, #tpu.memory_space<vmem>>, vector<256x128xf32>
    tpu.vector_store %arg8[%c0_6, %c0_7], %7 {strides = array<i32>} : memref<256x128xf32, #tpu.memory_space<vmem>>, vector<256x128xf32>,
    %c0_i32_8 = arith.constant 0 : i32
    %9 = arith.cmpi eq, %arg2, %c0_i32_8 : i32
    %10 = arith.extui %9 : i1 to i32
    %c0_i32_9 = arith.constant 0 : i32
    %11 = arith.cmpi ne, %10, %c0_i32_9 : i32
    scf.if %11 {
      %c0_10 = arith.constant 0 : index
      %c0_11 = arith.constant 0 : index
      %12 = vector.load %arg8[%c0_10, %c0_11] : memref<256x128xf32, #tpu.memory_space<vmem>>, vector<256x128xf32>
      %c0_12 = arith.constant 0 : index
      %c0_13 = arith.constant 0 : index
      %13 = vector.load %arg5[%c0_12, %c0_13] : memref<1x128xf32, #tpu.memory_space<vmem>>, vector<1x128xf32>
      %14 = vector.broadcast %13 : vector<1x128xf32> to vector<256x128xf32>
      %15 = arith.mulf %12, %14 : vector<256x128xf32>
      %c0_14 = arith.constant 0 : index
      %c0_15 = arith.constant 0 : index
      %16 = vector.load %arg6[%c0_14, %c0_15] : memref<1x128xf32, #tpu.memory_space<vmem>>, vector<1x128xf32>
      %17 = vector.broadcast %16 : vector<1x128xf32> to vector<256x128xf32>
      %18 = arith.addf %15, %17 : vector<256x128xf32>
      %cst_16 = arith.constant 0.000000e+00 : f32
      %19 = vector.broadcast %cst_16 : f32 to vector<256x128xf32>
      %20 = arith.cmpf oge, %18, %19 : vector<256x128xf32>
      %cst_17 = arith.constant 2.000000e-01 : f32
      %21 = vector.broadcast %cst_17 : f32 to vector<256x128xf32>
      %22 = arith.mulf %21, %18 : vector<256x128xf32>
      %23 = arith.select %20, %18, %22 : vector<256x128xi1>, vector<256x128xf32>
      %24 = arith.truncf %23 : vector<256x128xf32> to vector<256x128xbf16>
      %c0_18 = arith.constant 0 : index
      %c0_19 = arith.constant 0 : index
      %25 = vector.load %arg7[%c0_18, %c0_19] : memref<256x128xbf16, #tpu.memory_space<vmem>>, vector<256x128xbf16>
      tpu.vector_store %arg7[%c0_18, %c0_19], %24 {strides = array<i32>} : memref<256x128xbf16, #tpu.memory_space<vmem>>, vector<256x128xbf16>,
    } else {
    }
    return
  }
  func.func @transform_0(%arg0: i32, %arg1: i32, %arg2: i32) -> (i32, i32) {
    %c0_i32 = arith.constant 0 : i32
    return %arg0, %arg2 : i32, i32
  }
  func.func @transform_1(%arg0: i32, %arg1: i32, %arg2: i32) -> (i32, i32) {
    %c0_i32 = arith.constant 0 : i32
    return %arg2, %arg1 : i32, i32
  }
  func.func @transform_2(%arg0: i32, %arg1: i32, %arg2: i32) -> (i32, i32) {
    %c0_i32 = arith.constant 0 : i32
    %c0_i32_0 = arith.constant 0 : i32
    return %c0_i32, %arg1 : i32, i32
  }
  func.func @transform_3(%arg0: i32, %arg1: i32, %arg2: i32) -> (i32, i32) {
    %c0_i32 = arith.constant 0 : i32
    %c0_i32_0 = arith.constant 0 : i32
    return %c0_i32, %arg1 : i32, i32
  }
  func.func @transform_4(%arg0: i32, %arg1: i32, %arg2: i32) -> (i32, i32) {
    %c0_i32 = arith.constant 0 : i32
    return %arg0, %arg1 : i32, i32
  }
}

module attributes {stable_mosaic.version = 11 : i64} {
  func.func @_conv_mm_kernel(%arg0: i32, %arg1: i32, %arg2: i32, %arg3: memref<128x1024xbf16, #tpu.memory_space<vmem>>, %arg4: memref<1024x128xbf16, #tpu.memory_space<vmem>>, %arg5: memref<1x128xf32, #tpu.memory_space<vmem>>, %arg6: memref<1x128xf32, #tpu.memory_space<vmem>>, %arg7: memref<128x128xbf16, #tpu.memory_space<vmem>>, %arg8: memref<128x128xf32, #tpu.memory_space<vmem>>) attributes {dimension_semantics = [#tpu.dimension_semantics<parallel>, #tpu.dimension_semantics<parallel>, #tpu.dimension_semantics<arbitrary>], iteration_bounds = array<i64: 1, 1, 1>, scalar_prefetch = 0 : i64, scratch_operands = 1 : i64, tpu.core_type = #tpu.core_type<tc>, window_params = [{transform_indices = @transform_0, window_bounds = array<i64: 128, 1024>}, {transform_indices = @transform_1, window_bounds = array<i64: 1024, 128>}, {transform_indices = @transform_2, window_bounds = array<i64: 1, 128>}, {transform_indices = @transform_3, window_bounds = array<i64: 1, 128>}, {transform_indices = @transform_4, window_bounds = array<i64: 128, 128>}]} {
    %c0_i32 = arith.constant 0 : i32
    %0 = arith.cmpi eq, %arg2, %c0_i32 : i32
    %1 = arith.extui %0 : i1 to i32
    %c0_i32_0 = arith.constant 0 : i32
    %2 = arith.cmpi ne, %1, %c0_i32_0 : i32
    scf.if %2 {
      %cst_10 = arith.constant 0.000000e+00 : f32
      %12 = vector.broadcast %cst_10 : f32 to vector<128x128xf32>
      %c0_11 = arith.constant 0 : index
      %c0_12 = arith.constant 0 : index
      %13 = vector.load %arg8[%c0_11, %c0_12] : memref<128x128xf32, #tpu.memory_space<vmem>>, vector<128x128xf32>
      tpu.vector_store %arg8[%c0_11, %c0_12], %12 {strides = array<i32>} : memref<128x128xf32, #tpu.memory_space<vmem>>, vector<128x128xf32>,
    } else {
    }
    %c0 = arith.constant 0 : index
    %c0_1 = arith.constant 0 : index
    %3 = vector.load %arg8[%c0, %c0_1] : memref<128x128xf32, #tpu.memory_space<vmem>>, vector<128x128xf32>
    %c0_2 = arith.constant 0 : index
    %c0_3 = arith.constant 0 : index
    %4 = vector.load %arg3[%c0_2, %c0_3] : memref<128x1024xbf16, #tpu.memory_space<vmem>>, vector<128x1024xbf16>
    %c0_4 = arith.constant 0 : index
    %c0_5 = arith.constant 0 : index
    %5 = vector.load %arg4[%c0_4, %c0_5] : memref<1024x128xbf16, #tpu.memory_space<vmem>>, vector<1024x128xbf16>
    %cst = arith.constant dense<0.000000e+00> : vector<128x128xf32>
    %6 = tpu.matmul %4, %5, %cst {dimension_numbers = #tpu.dot_dimension_numbers<[1], [0], [0], [1], [0, 0, 1, 1], [], []>} : vector<128x1024xbf16>, vector<1024x128xbf16>, vector<128x128xf32> -> vector<128x128xf32>
    %7 = arith.addf %3, %6 : vector<128x128xf32>
    %c0_6 = arith.constant 0 : index
    %c0_7 = arith.constant 0 : index
    %8 = vector.load %arg8[%c0_6, %c0_7] : memref<128x128xf32, #tpu.memory_space<vmem>>, vector<128x128xf32>
    tpu.vector_store %arg8[%c0_6, %c0_7], %7 {strides = array<i32>} : memref<128x128xf32, #tpu.memory_space<vmem>>, vector<128x128xf32>,
    %c0_i32_8 = arith.constant 0 : i32
    %9 = arith.cmpi eq, %arg2, %c0_i32_8 : i32
    %10 = arith.extui %9 : i1 to i32
    %c0_i32_9 = arith.constant 0 : i32
    %11 = arith.cmpi ne, %10, %c0_i32_9 : i32
    scf.if %11 {
      %c0_10 = arith.constant 0 : index
      %c0_11 = arith.constant 0 : index
      %12 = vector.load %arg8[%c0_10, %c0_11] : memref<128x128xf32, #tpu.memory_space<vmem>>, vector<128x128xf32>
      %c0_12 = arith.constant 0 : index
      %c0_13 = arith.constant 0 : index
      %13 = vector.load %arg5[%c0_12, %c0_13] : memref<1x128xf32, #tpu.memory_space<vmem>>, vector<1x128xf32>
      %14 = vector.broadcast %13 : vector<1x128xf32> to vector<128x128xf32>
      %15 = arith.mulf %12, %14 : vector<128x128xf32>
      %c0_14 = arith.constant 0 : index
      %c0_15 = arith.constant 0 : index
      %16 = vector.load %arg6[%c0_14, %c0_15] : memref<1x128xf32, #tpu.memory_space<vmem>>, vector<1x128xf32>
      %17 = vector.broadcast %16 : vector<1x128xf32> to vector<128x128xf32>
      %18 = arith.addf %15, %17 : vector<128x128xf32>
      %cst_16 = arith.constant 0.000000e+00 : f32
      %19 = vector.broadcast %cst_16 : f32 to vector<128x128xf32>
      %20 = arith.cmpf oge, %18, %19 : vector<128x128xf32>
      %cst_17 = arith.constant 2.000000e-01 : f32
      %21 = vector.broadcast %cst_17 : f32 to vector<128x128xf32>
      %22 = arith.mulf %21, %18 : vector<128x128xf32>
      %23 = arith.select %20, %18, %22 : vector<128x128xi1>, vector<128x128xf32>
      %24 = arith.truncf %23 : vector<128x128xf32> to vector<128x128xbf16>
      %c0_18 = arith.constant 0 : index
      %c0_19 = arith.constant 0 : index
      %25 = vector.load %arg7[%c0_18, %c0_19] : memref<128x128xbf16, #tpu.memory_space<vmem>>, vector<128x128xbf16>
      tpu.vector_store %arg7[%c0_18, %c0_19], %24 {strides = array<i32>} : memref<128x128xbf16, #tpu.memory_space<vmem>>, vector<128x128xbf16>,
    } else {
    }
    return
  }
  func.func @transform_0(%arg0: i32, %arg1: i32, %arg2: i32) -> (i32, i32) {
    %c0_i32 = arith.constant 0 : i32
    return %arg0, %arg2 : i32, i32
  }
  func.func @transform_1(%arg0: i32, %arg1: i32, %arg2: i32) -> (i32, i32) {
    %c0_i32 = arith.constant 0 : i32
    return %arg2, %arg1 : i32, i32
  }
  func.func @transform_2(%arg0: i32, %arg1: i32, %arg2: i32) -> (i32, i32) {
    %c0_i32 = arith.constant 0 : i32
    %c0_i32_0 = arith.constant 0 : i32
    return %c0_i32, %arg1 : i32, i32
  }
  func.func @transform_3(%arg0: i32, %arg1: i32, %arg2: i32) -> (i32, i32) {
    %c0_i32 = arith.constant 0 : i32
    %c0_i32_0 = arith.constant 0 : i32
    return %c0_i32, %arg1 : i32, i32
  }
  func.func @transform_4(%arg0: i32, %arg1: i32, %arg2: i32) -> (i32, i32) {
    %c0_i32 = arith.constant 0 : i32
    return %arg0, %arg1 : i32, i32
  }
}

module attributes {stable_mosaic.version = 11 : i64} {
  func.func @_conv_mm_kernel(%arg0: i32, %arg1: i32, %arg2: i32, %arg3: memref<32x2048xbf16, #tpu.memory_space<vmem>>, %arg4: memref<2048x256xbf16, #tpu.memory_space<vmem>>, %arg5: memref<1x256xf32, #tpu.memory_space<vmem>>, %arg6: memref<1x256xf32, #tpu.memory_space<vmem>>, %arg7: memref<32x256xbf16, #tpu.memory_space<vmem>>, %arg8: memref<32x256xf32, #tpu.memory_space<vmem>>) attributes {dimension_semantics = [#tpu.dimension_semantics<parallel>, #tpu.dimension_semantics<parallel>, #tpu.dimension_semantics<arbitrary>], iteration_bounds = array<i64: 1, 1, 1>, scalar_prefetch = 0 : i64, scratch_operands = 1 : i64, tpu.core_type = #tpu.core_type<tc>, window_params = [{transform_indices = @transform_0, window_bounds = array<i64: 32, 2048>}, {transform_indices = @transform_1, window_bounds = array<i64: 2048, 256>}, {transform_indices = @transform_2, window_bounds = array<i64: 1, 256>}, {transform_indices = @transform_3, window_bounds = array<i64: 1, 256>}, {transform_indices = @transform_4, window_bounds = array<i64: 32, 256>}]} {
    %c0_i32 = arith.constant 0 : i32
    %0 = arith.cmpi eq, %arg2, %c0_i32 : i32
    %1 = arith.extui %0 : i1 to i32
    %c0_i32_0 = arith.constant 0 : i32
    %2 = arith.cmpi ne, %1, %c0_i32_0 : i32
    scf.if %2 {
      %cst_10 = arith.constant 0.000000e+00 : f32
      %12 = vector.broadcast %cst_10 : f32 to vector<32x256xf32>
      %c0_11 = arith.constant 0 : index
      %c0_12 = arith.constant 0 : index
      %13 = vector.load %arg8[%c0_11, %c0_12] : memref<32x256xf32, #tpu.memory_space<vmem>>, vector<32x256xf32>
      tpu.vector_store %arg8[%c0_11, %c0_12], %12 {strides = array<i32>} : memref<32x256xf32, #tpu.memory_space<vmem>>, vector<32x256xf32>,
    } else {
    }
    %c0 = arith.constant 0 : index
    %c0_1 = arith.constant 0 : index
    %3 = vector.load %arg8[%c0, %c0_1] : memref<32x256xf32, #tpu.memory_space<vmem>>, vector<32x256xf32>
    %c0_2 = arith.constant 0 : index
    %c0_3 = arith.constant 0 : index
    %4 = vector.load %arg3[%c0_2, %c0_3] : memref<32x2048xbf16, #tpu.memory_space<vmem>>, vector<32x2048xbf16>
    %c0_4 = arith.constant 0 : index
    %c0_5 = arith.constant 0 : index
    %5 = vector.load %arg4[%c0_4, %c0_5] : memref<2048x256xbf16, #tpu.memory_space<vmem>>, vector<2048x256xbf16>
    %cst = arith.constant dense<0.000000e+00> : vector<32x256xf32>
    %6 = tpu.matmul %4, %5, %cst {dimension_numbers = #tpu.dot_dimension_numbers<[1], [0], [0], [1], [0, 0, 1, 1], [], []>} : vector<32x2048xbf16>, vector<2048x256xbf16>, vector<32x256xf32> -> vector<32x256xf32>
    %7 = arith.addf %3, %6 : vector<32x256xf32>
    %c0_6 = arith.constant 0 : index
    %c0_7 = arith.constant 0 : index
    %8 = vector.load %arg8[%c0_6, %c0_7] : memref<32x256xf32, #tpu.memory_space<vmem>>, vector<32x256xf32>
    tpu.vector_store %arg8[%c0_6, %c0_7], %7 {strides = array<i32>} : memref<32x256xf32, #tpu.memory_space<vmem>>, vector<32x256xf32>,
    %c0_i32_8 = arith.constant 0 : i32
    %9 = arith.cmpi eq, %arg2, %c0_i32_8 : i32
    %10 = arith.extui %9 : i1 to i32
    %c0_i32_9 = arith.constant 0 : i32
    %11 = arith.cmpi ne, %10, %c0_i32_9 : i32
    scf.if %11 {
      %c0_10 = arith.constant 0 : index
      %c0_11 = arith.constant 0 : index
      %12 = vector.load %arg8[%c0_10, %c0_11] : memref<32x256xf32, #tpu.memory_space<vmem>>, vector<32x256xf32>
      %c0_12 = arith.constant 0 : index
      %c0_13 = arith.constant 0 : index
      %13 = vector.load %arg5[%c0_12, %c0_13] : memref<1x256xf32, #tpu.memory_space<vmem>>, vector<1x256xf32>
      %14 = vector.broadcast %13 : vector<1x256xf32> to vector<32x256xf32>
      %15 = arith.mulf %12, %14 : vector<32x256xf32>
      %c0_14 = arith.constant 0 : index
      %c0_15 = arith.constant 0 : index
      %16 = vector.load %arg6[%c0_14, %c0_15] : memref<1x256xf32, #tpu.memory_space<vmem>>, vector<1x256xf32>
      %17 = vector.broadcast %16 : vector<1x256xf32> to vector<32x256xf32>
      %18 = arith.addf %15, %17 : vector<32x256xf32>
      %cst_16 = arith.constant 0.000000e+00 : f32
      %19 = vector.broadcast %cst_16 : f32 to vector<32x256xf32>
      %20 = arith.cmpf oge, %18, %19 : vector<32x256xf32>
      %cst_17 = arith.constant 2.000000e-01 : f32
      %21 = vector.broadcast %cst_17 : f32 to vector<32x256xf32>
      %22 = arith.mulf %21, %18 : vector<32x256xf32>
      %23 = arith.select %20, %18, %22 : vector<32x256xi1>, vector<32x256xf32>
      %24 = arith.truncf %23 : vector<32x256xf32> to vector<32x256xbf16>
      %c0_18 = arith.constant 0 : index
      %c0_19 = arith.constant 0 : index
      %25 = vector.load %arg7[%c0_18, %c0_19] : memref<32x256xbf16, #tpu.memory_space<vmem>>, vector<32x256xbf16>
      tpu.vector_store %arg7[%c0_18, %c0_19], %24 {strides = array<i32>} : memref<32x256xbf16, #tpu.memory_space<vmem>>, vector<32x256xbf16>,
    } else {
    }
    return
  }
  func.func @transform_0(%arg0: i32, %arg1: i32, %arg2: i32) -> (i32, i32) {
    %c0_i32 = arith.constant 0 : i32
    return %arg0, %arg2 : i32, i32
  }
  func.func @transform_1(%arg0: i32, %arg1: i32, %arg2: i32) -> (i32, i32) {
    %c0_i32 = arith.constant 0 : i32
    return %arg2, %arg1 : i32, i32
  }
  func.func @transform_2(%arg0: i32, %arg1: i32, %arg2: i32) -> (i32, i32) {
    %c0_i32 = arith.constant 0 : i32
    %c0_i32_0 = arith.constant 0 : i32
    return %c0_i32, %arg1 : i32, i32
  }
  func.func @transform_3(%arg0: i32, %arg1: i32, %arg2: i32) -> (i32, i32) {
    %c0_i32 = arith.constant 0 : i32
    %c0_i32_0 = arith.constant 0 : i32
    return %c0_i32, %arg1 : i32, i32
  }
  func.func @transform_4(%arg0: i32, %arg1: i32, %arg2: i32) -> (i32, i32) {
    %c0_i32 = arith.constant 0 : i32
    return %arg0, %arg1 : i32, i32
  }
}

module attributes {stable_mosaic.version = 11 : i64} {
  func.func @_conv_mm_kernel(%arg0: i32, %arg1: i32, %arg2: i32, %arg3: memref<24x2048xbf16, #tpu.memory_space<vmem>>, %arg4: memref<2048x256xbf16, #tpu.memory_space<vmem>>, %arg5: memref<1x256xf32, #tpu.memory_space<vmem>>, %arg6: memref<1x256xf32, #tpu.memory_space<vmem>>, %arg7: memref<24x256xbf16, #tpu.memory_space<vmem>>, %arg8: memref<24x256xf32, #tpu.memory_space<vmem>>) attributes {dimension_semantics = [#tpu.dimension_semantics<parallel>, #tpu.dimension_semantics<parallel>, #tpu.dimension_semantics<arbitrary>], iteration_bounds = array<i64: 1, 2, 2>, scalar_prefetch = 0 : i64, scratch_operands = 1 : i64, tpu.core_type = #tpu.core_type<tc>, window_params = [{transform_indices = @transform_0, window_bounds = array<i64: 24, 2048>}, {transform_indices = @transform_1, window_bounds = array<i64: 2048, 256>}, {transform_indices = @transform_2, window_bounds = array<i64: 1, 256>}, {transform_indices = @transform_3, window_bounds = array<i64: 1, 256>}, {transform_indices = @transform_4, window_bounds = array<i64: 24, 256>}]} {
    %c0_i32 = arith.constant 0 : i32
    %0 = arith.cmpi eq, %arg2, %c0_i32 : i32
    %1 = arith.extui %0 : i1 to i32
    %c0_i32_0 = arith.constant 0 : i32
    %2 = arith.cmpi ne, %1, %c0_i32_0 : i32
    scf.if %2 {
      %cst_9 = arith.constant 0.000000e+00 : f32
      %12 = vector.broadcast %cst_9 : f32 to vector<24x256xf32>
      %c0_10 = arith.constant 0 : index
      %c0_11 = arith.constant 0 : index
      %13 = vector.load %arg8[%c0_10, %c0_11] : memref<24x256xf32, #tpu.memory_space<vmem>>, vector<24x256xf32>
      tpu.vector_store %arg8[%c0_10, %c0_11], %12 {strides = array<i32>} : memref<24x256xf32, #tpu.memory_space<vmem>>, vector<24x256xf32>,
    } else {
    }
    %c0 = arith.constant 0 : index
    %c0_1 = arith.constant 0 : index
    %3 = vector.load %arg8[%c0, %c0_1] : memref<24x256xf32, #tpu.memory_space<vmem>>, vector<24x256xf32>
    %c0_2 = arith.constant 0 : index
    %c0_3 = arith.constant 0 : index
    %4 = vector.load %arg3[%c0_2, %c0_3] : memref<24x2048xbf16, #tpu.memory_space<vmem>>, vector<24x2048xbf16>
    %c0_4 = arith.constant 0 : index
    %c0_5 = arith.constant 0 : index
    %5 = vector.load %arg4[%c0_4, %c0_5] : memref<2048x256xbf16, #tpu.memory_space<vmem>>, vector<2048x256xbf16>
    %cst = arith.constant dense<0.000000e+00> : vector<24x256xf32>
    %6 = tpu.matmul %4, %5, %cst {dimension_numbers = #tpu.dot_dimension_numbers<[1], [0], [0], [1], [0, 0, 1, 1], [], []>} : vector<24x2048xbf16>, vector<2048x256xbf16>, vector<24x256xf32> -> vector<24x256xf32>
    %7 = arith.addf %3, %6 : vector<24x256xf32>
    %c0_6 = arith.constant 0 : index
    %c0_7 = arith.constant 0 : index
    %8 = vector.load %arg8[%c0_6, %c0_7] : memref<24x256xf32, #tpu.memory_space<vmem>>, vector<24x256xf32>
    tpu.vector_store %arg8[%c0_6, %c0_7], %7 {strides = array<i32>} : memref<24x256xf32, #tpu.memory_space<vmem>>, vector<24x256xf32>,
    %c1_i32 = arith.constant 1 : i32
    %9 = arith.cmpi eq, %arg2, %c1_i32 : i32
    %10 = arith.extui %9 : i1 to i32
    %c0_i32_8 = arith.constant 0 : i32
    %11 = arith.cmpi ne, %10, %c0_i32_8 : i32
    scf.if %11 {
      %c0_9 = arith.constant 0 : index
      %c0_10 = arith.constant 0 : index
      %12 = vector.load %arg8[%c0_9, %c0_10] : memref<24x256xf32, #tpu.memory_space<vmem>>, vector<24x256xf32>
      %c0_11 = arith.constant 0 : index
      %c0_12 = arith.constant 0 : index
      %13 = vector.load %arg5[%c0_11, %c0_12] : memref<1x256xf32, #tpu.memory_space<vmem>>, vector<1x256xf32>
      %14 = vector.broadcast %13 : vector<1x256xf32> to vector<24x256xf32>
      %15 = arith.mulf %12, %14 : vector<24x256xf32>
      %c0_13 = arith.constant 0 : index
      %c0_14 = arith.constant 0 : index
      %16 = vector.load %arg6[%c0_13, %c0_14] : memref<1x256xf32, #tpu.memory_space<vmem>>, vector<1x256xf32>
      %17 = vector.broadcast %16 : vector<1x256xf32> to vector<24x256xf32>
      %18 = arith.addf %15, %17 : vector<24x256xf32>
      %cst_15 = arith.constant 0.000000e+00 : f32
      %19 = vector.broadcast %cst_15 : f32 to vector<24x256xf32>
      %20 = arith.cmpf oge, %18, %19 : vector<24x256xf32>
      %cst_16 = arith.constant 2.000000e-01 : f32
      %21 = vector.broadcast %cst_16 : f32 to vector<24x256xf32>
      %22 = arith.mulf %21, %18 : vector<24x256xf32>
      %23 = arith.select %20, %18, %22 : vector<24x256xi1>, vector<24x256xf32>
      %24 = arith.truncf %23 : vector<24x256xf32> to vector<24x256xbf16>
      %c0_17 = arith.constant 0 : index
      %c0_18 = arith.constant 0 : index
      %25 = vector.load %arg7[%c0_17, %c0_18] : memref<24x256xbf16, #tpu.memory_space<vmem>>, vector<24x256xbf16>
      tpu.vector_store %arg7[%c0_17, %c0_18], %24 {strides = array<i32>} : memref<24x256xbf16, #tpu.memory_space<vmem>>, vector<24x256xbf16>,
    } else {
    }
    return
  }
  func.func @transform_0(%arg0: i32, %arg1: i32, %arg2: i32) -> (i32, i32) {
    %c0_i32 = arith.constant 0 : i32
    return %arg0, %arg2 : i32, i32
  }
  func.func @transform_1(%arg0: i32, %arg1: i32, %arg2: i32) -> (i32, i32) {
    %c0_i32 = arith.constant 0 : i32
    return %arg2, %arg1 : i32, i32
  }
  func.func @transform_2(%arg0: i32, %arg1: i32, %arg2: i32) -> (i32, i32) {
    %c0_i32 = arith.constant 0 : i32
    %c0_i32_0 = arith.constant 0 : i32
    return %c0_i32, %arg1 : i32, i32
  }
  func.func @transform_3(%arg0: i32, %arg1: i32, %arg2: i32) -> (i32, i32) {
    %c0_i32 = arith.constant 0 : i32
    %c0_i32_0 = arith.constant 0 : i32
    return %c0_i32, %arg1 : i32, i32
  }
  func.func @transform_4(%arg0: i32, %arg1: i32, %arg2: i32) -> (i32, i32) {
    %c0_i32 = arith.constant 0 : i32
    return %arg0, %arg1 : i32, i32
  }
}

module attributes {stable_mosaic.version = 11 : i64} {
  func.func @_conv_oc1_kernel(%arg0: i32, %arg1: i32, %arg2: memref<8x2048xbf16, #tpu.memory_space<vmem>>, %arg3: memref<1x2048xbf16, #tpu.memory_space<vmem>>, %arg4: memref<1x1xf32, #tpu.memory_space<vmem>>, %arg5: memref<8x1xf32, #tpu.memory_space<vmem>>, %arg6: memref<8x1xf32, #tpu.memory_space<vmem>>) attributes {dimension_semantics = [#tpu.dimension_semantics<parallel>, #tpu.dimension_semantics<arbitrary>], iteration_bounds = array<i64: 1, 4>, scalar_prefetch = 0 : i64, scratch_operands = 1 : i64, tpu.core_type = #tpu.core_type<tc>, window_params = [{transform_indices = @transform_0, window_bounds = array<i64: 8, 2048>}, {transform_indices = @transform_1, window_bounds = array<i64: 1, 2048>}, {pipeline_mode = #tpu.pipeline_mode<synchronous>, transform_indices = @transform_2, window_bounds = array<i64: 1, 1>}, {transform_indices = @transform_3, window_bounds = array<i64: 8, 1>}]} {
    %c0_i32 = arith.constant 0 : i32
    %0 = arith.cmpi eq, %arg1, %c0_i32 : i32
    %1 = arith.extui %0 : i1 to i32
    %c0_i32_0 = arith.constant 0 : i32
    %2 = arith.cmpi ne, %1, %c0_i32_0 : i32
    scf.if %2 {
      %cst_9 = arith.constant 0.000000e+00 : f32
      %17 = vector.broadcast %cst_9 : f32 to vector<8x1xf32>
      %c0_10 = arith.constant 0 : index
      %c0_11 = arith.constant 0 : index
      %18 = vector.load %arg6[%c0_10, %c0_11] : memref<8x1xf32, #tpu.memory_space<vmem>>, vector<8x1xf32>
      tpu.vector_store %arg6[%c0_10, %c0_11], %17 {strides = array<i32>} : memref<8x1xf32, #tpu.memory_space<vmem>>, vector<8x1xf32>,
    } else {
    }
    %c0 = arith.constant 0 : index
    %c0_1 = arith.constant 0 : index
    %3 = vector.load %arg2[%c0, %c0_1] : memref<8x2048xbf16, #tpu.memory_space<vmem>>, vector<8x2048xbf16>
    %4 = arith.extf %3 : vector<8x2048xbf16> to vector<8x2048xf32>
    %c0_2 = arith.constant 0 : index
    %c0_3 = arith.constant 0 : index
    %5 = vector.load %arg3[%c0_2, %c0_3] : memref<1x2048xbf16, #tpu.memory_space<vmem>>, vector<1x2048xbf16>
    %6 = arith.extf %5 : vector<1x2048xbf16> to vector<1x2048xf32>
    %7 = vector.broadcast %6 : vector<1x2048xf32> to vector<8x2048xf32>
    %8 = arith.mulf %4, %7 : vector<8x2048xf32>
    %c0_4 = arith.constant 0 : index
    %c0_5 = arith.constant 0 : index
    %9 = vector.load %arg6[%c0_4, %c0_5] : memref<8x1xf32, #tpu.memory_space<vmem>>, vector<8x1xf32>
    %cst = arith.constant dense<0.000000e+00> : vector<8xf32>
    %10 = vector.multi_reduction <add>, %8, %cst [1] : vector<8x2048xf32> to vector<8xf32>
    %11 = vector.shape_cast %10 : vector<8xf32> to vector<8x1xf32>
    %12 = arith.addf %9, %11 : vector<8x1xf32>
    %c0_6 = arith.constant 0 : index
    %c0_7 = arith.constant 0 : index
    %13 = vector.load %arg6[%c0_6, %c0_7] : memref<8x1xf32, #tpu.memory_space<vmem>>, vector<8x1xf32>
    tpu.vector_store %arg6[%c0_6, %c0_7], %12 {strides = array<i32>} : memref<8x1xf32, #tpu.memory_space<vmem>>, vector<8x1xf32>,
    %c3_i32 = arith.constant 3 : i32
    %14 = arith.cmpi eq, %arg1, %c3_i32 : i32
    %15 = arith.extui %14 : i1 to i32
    %c0_i32_8 = arith.constant 0 : i32
    %16 = arith.cmpi ne, %15, %c0_i32_8 : i32
    scf.if %16 {
      %c0_9 = arith.constant 0 : index
      %c0_10 = arith.constant 0 : index
      %17 = vector.load %arg6[%c0_9, %c0_10] : memref<8x1xf32, #tpu.memory_space<vmem>>, vector<8x1xf32>
      %c0_11 = arith.constant 0 : index
      %c0_12 = arith.constant 0 : index
      %18 = vector.load %arg4[%c0_11, %c0_12] : memref<1x1xf32, #tpu.memory_space<vmem>>, vector<1x1xf32>
      %19 = vector.broadcast %18 : vector<1x1xf32> to vector<8x1xf32>
      %20 = arith.addf %17, %19 : vector<8x1xf32>
      %cst_13 = arith.constant 0.000000e+00 : f32
      %21 = vector.broadcast %cst_13 : f32 to vector<8x1xf32>
      %22 = arith.subf %21, %20 : vector<8x1xf32>
      %23 = math.exp %22 : vector<8x1xf32>
      %cst_14 = arith.constant 1.000000e+00 : f32
      %24 = vector.broadcast %cst_14 : f32 to vector<8x1xf32>
      %25 = arith.addf %24, %23 : vector<8x1xf32>
      %cst_15 = arith.constant 1.000000e+00 : f32
      %26 = vector.broadcast %cst_15 : f32 to vector<8x1xf32>
      %27 = arith.divf %26, %25 : vector<8x1xf32>
      %c0_16 = arith.constant 0 : index
      %c0_17 = arith.constant 0 : index
      %28 = vector.load %arg5[%c0_16, %c0_17] : memref<8x1xf32, #tpu.memory_space<vmem>>, vector<8x1xf32>
      tpu.vector_store %arg5[%c0_16, %c0_17], %27 {strides = array<i32>} : memref<8x1xf32, #tpu.memory_space<vmem>>, vector<8x1xf32>,
    } else {
    }
    return
  }
  func.func @transform_0(%arg0: i32, %arg1: i32) -> (i32, i32) {
    %c0_i32 = arith.constant 0 : i32
    return %arg0, %arg1 : i32, i32
  }
  func.func @transform_1(%arg0: i32, %arg1: i32) -> (i32, i32) {
    %c0_i32 = arith.constant 0 : i32
    %c0_i32_0 = arith.constant 0 : i32
    return %c0_i32, %arg1 : i32, i32
  }
  func.func @transform_2(%arg0: i32, %arg1: i32) -> (i32, i32) {
    %c0_i32 = arith.constant 0 : i32
    %c0_i32_0 = arith.constant 0 : i32
    %c0_i32_1 = arith.constant 0 : i32
    return %c0_i32, %c0_i32_0 : i32, i32
  }
  func.func @transform_3(%arg0: i32, %arg1: i32) -> (i32, i32) {
    %c0_i32 = arith.constant 0 : i32
    %c0_i32_0 = arith.constant 0 : i32
    return %arg0, %c0_i32 : i32, i32
  }
}

</mosaic_0001>

<llo_original>
// kernel: discriminator_forward.5
$region0: #{discriminator_forward.5}
  #allocation0 [shape = 'u32[]', space=smem, size = 0x4, offset = 0x4, fixed_abs, tag = 'smem constant byte address 0x4 - core index']
  #allocation1 [shape = 'u32[72,128]{1,0:T(1,128)}', space=vmem, size = 0x9000, scoped, tag = 'internal scratch']
  #allocation2 [shape = 'f32[256,128]{1,0:T(8,128)}', space=vmem, size = 0x20000, scoped, tag = 'scratch operand']
  %s0 = inlined_call_operand.vmem [shape: bf16[512,128], index: 0, kind: input, shape index: {}]
  %s1 = inlined_call_operand.vmem [shape: bf16[128,128], index: 1, kind: input, shape index: {}]
  %s2 = inlined_call_operand.vmem [shape: f32[1,128], index: 2, kind: input, shape index: {}]
  %s3 = inlined_call_operand.vmem [shape: f32[1,128], index: 3, kind: input, shape index: {}]
  %s4 = inlined_call_operand.vmem [shape: bf16[512,128], index: 4, kind: output, shape index: {}]
  %s5 = sld [smem:[#allocation0]]
  $region57: #{discriminator_forward.5} parent=0
    _
  %s7 = ssub.s32 1, %s5
  %s8 = scalar_select 0, %s7, %s5
  loop: start=0, step=1, limit=4
  $region2: #{discriminator_forward.5} parent=0 // loop_pre_header
    _
  $region3: #{discriminator_forward.5} parent=0 // loop_header
    %s10 = sphi 0, %s14
    %p11 = scmp.ge.s32.totalorder %s10, 4
    %s17 = sphi 0, %s36
    %s18 = sphi 0, %s32
    %s19 = sphi 0, %s28
    %s20 = sphi 0, %s17
    %s21 = sphi 0, %s18
    %s22 = sphi 0, %s19
    %s23 = sphi 0, %s20
    %s24 = sphi 0, %s21
    %s25 = sphi 0, %s22
    %s41 = sphi 0, %s43
    %s44 = sphi 0, %s41
    %s45 = sphi 0, %s44
    %s61 = sphi 0, %s45
    %s69 = sphi 0, %s71
    %s72 = sphi 0, %s69
    %s73 = sphi 0, %s72
    %s89 = sphi 0, %s73
    %s95 = sphi 0, %s97
    %s98 = sphi 0, %s95
    %s99 = sphi 0, %s98
    %s115 = sphi 0, %s99
    %s121 = sphi 0, %s123
    %s124 = sphi 0, %s121
    %s125 = sphi 0, %s124
    %s141 = sphi 0, %s125
    %s149 = sphi 0, %s151
    %s152 = sphi 0, %s149
    %s153 = sphi 0, %s152
    %s169 = sphi 0, %s153
  $region4: #{discriminator_forward.5} parent=0 // loop_header_branch
    %13 = sbr.rel (%p11) target = $region8
  $region5: #{discriminator_forward.5} parent=0 // loop_body
    %s15 = ssub.s32 %s10, 1
    %s16 = ssub.s32 %s10, 2
    %s26 = sadd.s32 1, %s19
    %p27 = scmp.ge.s32.totalorder %s26, 1
    %s28 = scalar_select %p27, 0, %s26
    %s29 = sadd.s32 1, %s18
    %s30 = scalar_select %p27, %s29, %s18
    %p31 = scmp.ge.s32.totalorder %s30, 1
    %s32 = scalar_select %p31, 0, %s30
    %s33 = sadd.s32 1, %s17
    %s34 = scalar_select %p31, %s33, %s17
    %p35 = scmp.ge.s32.totalorder %s34, 2
    %s36 = scalar_select %p35, 0, %s34
    %s37 = ssub.s32 %s17, %s36
    %s38 = ssub.s32 %s19, %s28
    %s39 = sor.u32 %s37, %s38
    %p40 = scmp.eq.s32.totalorder %s39, 0
    %s42 = sadd.s32 %s41, 1
    %s43 = scalar_select %p40, %s41, %s42
    %p46 = pneg %p40
    %p47 = scmp.eq.s32.totalorder %s10, 1
    %p48 = por %p46, %p47
    %p49 = scmp.ne.s32.totalorder %s41, %s44
    %p50 = scmp.eq.s32.totalorder %s10, 0
    %p51 = por %p49, %p50
    %p52 = scmp.ne.s32.totalorder %s41, %s44
    %p53 = scmp.eq.s32.totalorder %s15, 1
    %p54 = por %p52, %p53
    %p55 = scmp.ne.s32.totalorder %s44, %s45
    %p56 = scmp.eq.s32.totalorder %s15, 0
    %p57 = por %p55, %p56
    %p58 = scmp.ne.s32.totalorder %s44, %s45
    %p59 = scmp.eq.s32.totalorder %s16, 1
    %p60 = por %p58, %p59
    %p62 = scmp.ne.s32.totalorder %s45, %s61
    %p63 = scmp.eq.s32.totalorder %s16, 0
    %p64 = por %p62, %p63
    %s65 = ssub.s32 %s19, %s28
    %s66 = ssub.s32 %s18, %s32
    %s67 = sor.u32 %s65, %s66
    %p68 = scmp.eq.s32.totalorder %s67, 0
    %s70 = sadd.s32 %s69, 1
    %s71 = scalar_select %p68, %s69, %s70
    %p74 = pneg %p68
    %p75 = scmp.eq.s32.totalorder %s10, 1
    %p76 = por %p74, %p75
    %p77 = scmp.ne.s32.totalorder %s69, %s72
    %p78 = scmp.eq.s32.totalorder %s10, 0
    %p79 = por %p77, %p78
    %p80 = scmp.ne.s32.totalorder %s69, %s72
    %p81 = scmp.eq.s32.totalorder %s15, 1
    %p82 = por %p80, %p81
    %p83 = scmp.ne.s32.totalorder %s72, %s73
    %p84 = scmp.eq.s32.totalorder %s15, 0
    %p85 = por %p83, %p84
    %p86 = scmp.ne.s32.totalorder %s72, %s73
    %p87 = scmp.eq.s32.totalorder %s16, 1
    %p88 = por %p86, %p87
    %p90 = scmp.ne.s32.totalorder %s73, %s89
    %p91 = scmp.eq.s32.totalorder %s16, 0
    %p92 = por %p90, %p91
    %s93 = ssub.s32 %s18, %s32
    %p94 = scmp.eq.s32.totalorder %s93, 0
    %s96 = sadd.s32 %s95, 1
    %s97 = scalar_select %p94, %s95, %s96
    %p100 = pneg %p94
    %p101 = scmp.eq.s32.totalorder %s10, 1
    %p102 = por %p100, %p101
    %p103 = scmp.ne.s32.totalorder %s95, %s98
    %p104 = scmp.eq.s32.totalorder %s10, 0
    %p105 = por %p103, %p104
    %p106 = scmp.ne.s32.totalorder %s95, %s98
    %p107 = scmp.eq.s32.totalorder %s15, 1
    %p108 = por %p106, %p107
    %p109 = scmp.ne.s32.totalorder %s98, %s99
    %p110 = scmp.eq.s32.totalorder %s15, 0
    %p111 = por %p109, %p110
    %p112 = scmp.ne.s32.totalorder %s98, %s99
    %p113 = scmp.eq.s32.totalorder %s16, 1
    %p114 = por %p112, %p113
    %p116 = scmp.ne.s32.totalorder %s99, %s115
    %p117 = scmp.eq.s32.totalorder %s16, 0
    %p118 = por %p116, %p117
    %s119 = ssub.s32 %s18, %s32
    %p120 = scmp.eq.s32.totalorder %s119, 0
    %s122 = sadd.s32 %s121, 1
    %s123 = scalar_select %p120, %s121, %s122
    %p126 = pneg %p120
    %p127 = scmp.eq.s32.totalorder %s10, 1
    %p128 = por %p126, %p127
    %p129 = scmp.ne.s32.totalorder %s121, %s124
    %p130 = scmp.eq.s32.totalorder %s10, 0
    %p131 = por %p129, %p130
    %p132 = scmp.ne.s32.totalorder %s121, %s124
    %p133 = scmp.eq.s32.totalorder %s15, 1
    %p134 = por %p132, %p133
    %p135 = scmp.ne.s32.totalorder %s124, %s125
    %p136 = scmp.eq.s32.totalorder %s15, 0
    %p137 = por %p135, %p136
    %p138 = scmp.ne.s32.totalorder %s124, %s125
    %p139 = scmp.eq.s32.totalorder %s16, 1
    %p140 = por %p138, %p139
    %p142 = scmp.ne.s32.totalorder %s125, %s141
    %p143 = scmp.eq.s32.totalorder %s16, 0
    %p144 = por %p142, %p143
    %s145 = ssub.s32 %s17, %s36
    %s146 = ssub.s32 %s18, %s32
    %s147 = sor.u32 %s145, %s146
    %p148 = scmp.eq.s32.totalorder %s147, 0
    %s150 = sadd.s32 %s149, 1
    %s151 = scalar_select %p148, %s149, %s150
    %p154 = pneg %p148
    %p155 = scmp.eq.s32.totalorder %s10, 1
    %p156 = por %p154, %p155
    %p157 = scmp.ne.s32.totalorder %s149, %s152
    %p158 = scmp.eq.s32.totalorder %s10, 0
    %p159 = por %p157, %p158
    %p160 = scmp.ne.s32.totalorder %s149, %s152
    %p161 = scmp.eq.s32.totalorder %s15, 1
    %p162 = por %p160, %p161
    %p163 = scmp.ne.s32.totalorder %s152, %s153
    %p164 = scmp.eq.s32.totalorder %s15, 0
    %p165 = por %p163, %p164
    %p166 = scmp.ne.s32.totalorder %s152, %s153
    %p167 = scmp.eq.s32.totalorder %s16, 1
    %p168 = por %p166, %p167
    %p170 = scmp.ne.s32.totalorder %s153, %s169
    %p171 = scmp.eq.s32.totalorder %s16, 0
    %p172 = por %p170, %p171
    %p173 = scmp.le.s32.totalorder 1, %s10
    %p174 = scmp.lt.s32.totalorder %s10, 3
    %p175 = pnand %p173, %p174
    %p176 = pneg %p175
    // Predicated region
    $region9: #{discriminator_forward.5} parent=5 // pred_check
      _
    $region10: #{discriminator_forward.5} parent=5 // pred_check_branch
      %178 = sbr.rel (%p175) target = $region12
    $region11: #{discriminator_forward.5} parent=5 // pred_region
      %s179 = ssub.s32 %s10, 1
      // Predicated region
      $region13: #{discriminator_forward.5} parent=11 // pred_check
        %p180 = pneg %p85
      $region14: #{discriminator_forward.5} parent=11 // pred_check_branch
        %182 = sbr.rel (%p180) target = $region16
      $region15: #{discriminator_forward.5} parent=11 // pred_region
        %s183 = smul.u32 16, %s22
        %p184 = scmp.lt.s32.totalorder %s183, 15
        %s185 = scalar_select %p184, %s183, 15
        %p186 = scmp.lt.s32.totalorder %s21, 0
        %s187 = scalar_select %p186, %s21, 0
        %s188 = sadd.s32 %s187, %s185
        %s189 = smul.addr %s188, 4
        %s190 = scalar_lea.vmem %s1, %s189
        %s191 = smul.u32 16, %s22
      $region16: #{discriminator_forward.5} parent=11 // pred_fallthru
        _
      // Predicated region
      $region17: #{discriminator_forward.5} parent=11 // pred_check
        %p192 = pneg %p111
      $region18: #{discriminator_forward.5} parent=11 // pred_check_branch
        %194 = sbr.rel (%p192) target = $region20
      $region19: #{discriminator_forward.5} parent=11 // pred_region
        %p195 = scmp.lt.s32.totalorder %s21, 0
        %s196 = scalar_select %p195, %s21, 0
        %s197 = scalar_lea.vmem %s2, %s196
      $region20: #{discriminator_forward.5} parent=11 // pred_fallthru
        _
      // Predicated region
      $region21: #{discriminator_forward.5} parent=11 // pred_check
        %p198 = pneg %p137
      $region22: #{discriminator_forward.5} parent=11 // pred_check_branch
        %200 = sbr.rel (%p198) target = $region24
      $region23: #{discriminator_forward.5} parent=11 // pred_region
        %p201 = scmp.lt.s32.totalorder %s21, 0
        %s202 = scalar_select %p201, %s21, 0
        %s203 = scalar_lea.vmem %s3, %s202
      $region24: #{discriminator_forward.5} parent=11 // pred_fallthru
        _
    $region12: #{discriminator_forward.5} parent=5 // pred_fallthru
      _
    %p204 = scmp.lt.s32.totalorder %s10, 2
    // Predicated region
    $region25: #{discriminator_forward.5} parent=5 // pred_check
      %p205 = pneg %p204
    $region26: #{discriminator_forward.5} parent=5 // pred_check_branch
      %207 = sbr.rel (%p205) target = $region28
    $region27: #{discriminator_forward.5} parent=5 // pred_region
      // Predicated region
      $region29: #{discriminator_forward.5} parent=27 // pred_check
        %p208 = pneg %p51
      $region30: #{discriminator_forward.5} parent=27 // pred_check_branch
        %210 = sbr.rel (%p208) target = $region32
      $region31: #{discriminator_forward.5} parent=27 // pred_region
        %s211 = smul.u32 32, %s17
        %p212 = scmp.lt.s32.totalorder %s211, 63
        %s213 = scalar_select %p212, %s211, 63
        %p214 = scmp.lt.s32.totalorder %s19, 0
        %s215 = scalar_select %p214, %s19, 0
        %s216 = sadd.s32 %s215, %s213
        %s217 = smul.addr %s216, 4
        %s218 = scalar_lea.vmem %s0, %s217
        %s219 = smul.u32 32, %s17
      $region32: #{discriminator_forward.5} parent=27 // pred_fallthru
        _
    $region28: #{discriminator_forward.5} parent=5 // pred_fallthru
      _
    %p220 = scmp.le.s32.totalorder 1, %s10
    %p221 = scmp.lt.s32.totalorder %s10, 3
    %p222 = pnand %p220, %p221
    %p223 = pneg %p222
    // Predicated region
    $region33: #{discriminator_forward.5} parent=5 // pred_check
      _
    $region34: #{discriminator_forward.5} parent=5 // pred_check_branch
      %225 = sbr.rel (%p222) target = $region36
    $region35: #{discriminator_forward.5} parent=5 // pred_region
      %s226 = ssub.s32 %s10, 1
      %s227 = smul.u32 32, %s20
      %p228 = scmp.lt.s32.totalorder %s227, 63
      %s229 = scalar_select %p228, %s227, 63
      %p230 = scmp.lt.s32.totalorder %s22, 0
      %s231 = scalar_select %p230, %s22, 0
      %s232 = sadd.s32 %s231, %s229
      %s233 = smul.addr %s232, 4
      %s234 = scalar_lea.vmem %s0, %s233
      %p235 = pneg %p57
      %p236 = pneg %p54
      %s237 = smul.u32 16, %s22
      %p238 = scmp.lt.s32.totalorder %s237, 15
      %s239 = scalar_select %p238, %s237, 15
      %p240 = scmp.lt.s32.totalorder %s21, 0
      %s241 = scalar_select %p240, %s21, 0
      %s242 = sadd.s32 %s241, %s239
      %s243 = smul.addr %s242, 4
      %s244 = scalar_lea.vmem %s1, %s243
      %p245 = pneg %p85
      %p246 = pneg %p82
      %p247 = scmp.lt.s32.totalorder %s21, 0
      %s248 = scalar_select %p247, %s21, 0
      %s249 = scalar_lea.vmem %s2, %s248
      %p250 = pneg %p111
      %p251 = pneg %p108
      %p252 = scmp.lt.s32.totalorder %s21, 0
      %s253 = scalar_select %p252, %s21, 0
      %s254 = scalar_lea.vmem %s3, %s253
      %p255 = pneg %p137
      %p256 = pneg %p134
      %p257 = pneg %p165
      %p258 = pneg %p162
      %s259 = smul.u32 32, %s20
      %p260 = scmp.lt.s32.totalorder %s259, 63
      %s261 = scalar_select %p260, %s259, 63
      %p262 = scmp.lt.s32.totalorder %s21, 0
      %s263 = scalar_select %p262, %s21, 0
      %s264 = sadd.s32 %s263, %s261
      %s265 = smul.addr %s264, 4
      %s266 = scalar_lea.vmem %s4, %s265
      %s267 = smul.u32 32, %s20
      %p268 = scmp.lt.s32.totalorder %s267, 63
      %s269 = scalar_select %p268, %s267, 63
      %p270 = scmp.lt.s32.totalorder %s22, 0
      %s271 = scalar_select %p270, %s22, 0
      %s272 = sadd.s32 %s271, %s269
      %s273 = smul.addr %s272, 4
      %s274 = scalar_lea.vmem %s0, %s273
      %s275 = smul.u32 32, %s20
      %s276 = smul.u32 16, %s22
      %p277 = scmp.lt.s32.totalorder %s276, 15
      %s278 = scalar_select %p277, %s276, 15
      %p279 = scmp.lt.s32.totalorder %s21, 0
      %s280 = scalar_select %p279, %s21, 0
      %s281 = sadd.s32 %s280, %s278
      %s282 = smul.addr %s281, 4
      %s283 = scalar_lea.vmem %s1, %s282
      %s284 = smul.u32 16, %s22
      %p285 = scmp.lt.s32.totalorder %s21, 0
      %s286 = scalar_select %p285, %s21, 0
      %s287 = scalar_lea.vmem %s2, %s286
      %p288 = scmp.lt.s32.totalorder %s21, 0
      %s289 = scalar_select %p288, %s21, 0
      %s290 = scalar_lea.vmem %s3, %s289
      %s291 = smul.u32 32, %s20
      %p292 = scmp.lt.s32.totalorder %s291, 63
      %s293 = scalar_select %p292, %s291, 63
      %p294 = scmp.lt.s32.totalorder %s21, 0
      %s295 = scalar_select %p294, %s21, 0
      %s296 = sadd.s32 %s295, %s293
      %s297 = smul.addr %s296, 4
      %s298 = scalar_lea.vmem %s4, %s297
      %s299 = smul.u32 32, %s20
      %p300 = scmp.eq.s32.totalorder %s22, 0
      // Predicated region
      $region37: #{discriminator_forward.5} parent=35 // pred_check
        %p301 = pneg %p300
      $region38: #{discriminator_forward.5} parent=35 // pred_check_branch
        %303 = sbr.rel (%p301) target = $region40
      $region39: #{discriminator_forward.5} parent=35 // pred_region
        %304 = vst [vmem:[#allocation2] sm:$0xff] 0.0
        %305 = vst [vmem:[#allocation2 + $0x8] sm:$0xff] 0.0
        %306 = vst [vmem:[#allocation2 + $0x10] sm:$0xff] 0.0
        %307 = vst [vmem:[#allocation2 + $0x18] sm:$0xff] 0.0
        %308 = vst [vmem:[#allocation2 + $0x20] sm:$0xff] 0.0
        %309 = vst [vmem:[#allocation2 + $0x28] sm:$0xff] 0.0
        %310 = vst [vmem:[#allocation2 + $0x30] sm:$0xff] 0.0
        %311 = vst [vmem:[#allocation2 + $0x38] sm:$0xff] 0.0
        %312 = vst [vmem:[#allocation2 + $0x40] sm:$0xff] 0.0
        %313 = vst [vmem:[#allocation2 + $0x48] sm:$0xff] 0.0
        %314 = vst [vmem:[#allocation2 + $0x50] sm:$0xff] 0.0
        %315 = vst [vmem:[#allocation2 + $0x58] sm:$0xff] 0.0
        %316 = vst [vmem:[#allocation2 + $0x60] sm:$0xff] 0.0
        %317 = vst [vmem:[#allocation2 + $0x68] sm:$0xff] 0.0
        %318 = vst [vmem:[#allocation2 + $0x70] sm:$0xff] 0.0
        %319 = vst [vmem:[#allocation2 + $0x78] sm:$0xff] 0.0
        %320 = vst [vmem:[#allocation2 + $0x80] sm:$0xff] 0.0
        %321 = vst [vmem:[#allocation2 + $0x88] sm:$0xff] 0.0
        %322 = vst [vmem:[#allocation2 + $0x90] sm:$0xff] 0.0
        %323 = vst [vmem:[#allocation2 + $0x98] sm:$0xff] 0.0
        %324 = vst [vmem:[#allocation2 + $0xa0] sm:$0xff] 0.0
        %325 = vst [vmem:[#allocation2 + $0xa8] sm:$0xff] 0.0
        %326 = vst [vmem:[#allocation2 + $0xb0] sm:$0xff] 0.0
        %327 = vst [vmem:[#allocation2 + $0xb8] sm:$0xff] 0.0
        %328 = vst [vmem:[#allocation2 + $0xc0] sm:$0xff] 0.0
        %329 = vst [vmem:[#allocation2 + $0xc8] sm:$0xff] 0.0
        %330 = vst [vmem:[#allocation2 + $0xd0] sm:$0xff] 0.0
        %331 = vst [vmem:[#allocation2 + $0xd8] sm:$0xff] 0.0
        %332 = vst [vmem:[#allocation2 + $0xe0] sm:$0xff] 0.0
        %333 = vst [vmem:[#allocation2 + $0xe8] sm:$0xff] 0.0
        %334 = vst [vmem:[#allocation2 + $0xf0] sm:$0xff] 0.0
        %335 = vst [vmem:[#allocation2 + $0xf8] sm:$0xff] 0.0
      $region40: #{discriminator_forward.5} parent=35 // pred_fallthru
        _
      %v336 = vld [vmem:[#allocation2] sm:$0xff]
      %v337 = vld [vmem:[#allocation2 + $0x8] sm:$0xff]
      %v338 = vld [vmem:[#allocation2 + $0x10] sm:$0xff]
      %v339 = vld [vmem:[#allocation2 + $0x18] sm:$0xff]
      %v340 = vld [vmem:[#allocation2 + $0x20] sm:$0xff]
      %v341 = vld [vmem:[#allocation2 + $0x28] sm:$0xff]
      %v342 = vld [vmem:[#allocation2 + $0x30] sm:$0xff]
      %v343 = vld [vmem:[#allocation2 + $0x38] sm:$0xff]
      %v344 = vld [vmem:[#allocation2 + $0x40] sm:$0xff]
      %v345 = vld [vmem:[#allocation2 + $0x48] sm:$0xff]
      %v346 = vld [vmem:[#allocation2 + $0x50] sm:$0xff]
      %v347 = vld [vmem:[#allocation2 + $0x58] sm:$0xff]
      %v348 = vld [vmem:[#allocation2 + $0x60] sm:$0xff]
      %v349 = vld [vmem:[#allocation2 + $0x68] sm:$0xff]
      %v350 = vld [vmem:[#allocation2 + $0x70] sm:$0xff]
      %v351 = vld [vmem:[#allocation2 + $0x78] sm:$0xff]
      %v352 = vld [vmem:[#allocation2 + $0x80] sm:$0xff]
      %v353 = vld [vmem:[#allocation2 + $0x88] sm:$0xff]
      %v354 = vld [vmem:[#allocation2 + $0x90] sm:$0xff]
      %v355 = vld [vmem:[#allocation2 + $0x98] sm:$0xff]
      %v356 = vld [vmem:[#allocation2 + $0xa0] sm:$0xff]
      %v357 = vld [vmem:[#allocation2 + $0xa8] sm:$0xff]
      %v358 = vld [vmem:[#allocation2 + $0xb0] sm:$0xff]
      %v359 = vld [vmem:[#allocation2 + $0xb8] sm:$0xff]
      %v360 = vld [vmem:[#allocation2 + $0xc0] sm:$0xff]
      %v361 = vld [vmem:[#allocation2 + $0xc8] sm:$0xff]
      %v362 = vld [vmem:[#allocation2 + $0xd0] sm:$0xff]
      %v363 = vld [vmem:[#allocation2 + $0xd8] sm:$0xff]
      %v364 = vld [vmem:[#allocation2 + $0xe0] sm:$0xff]
      %v365 = vld [vmem:[#allocation2 + $0xe8] sm:$0xff]
      %v366 = vld [vmem:[#allocation2 + $0xf0] sm:$0xff]
      %v367 = vld [vmem:[#allocation2 + $0xf8] sm:$0xff]
      %v368 = vld [vmem:[%s274] sm:$0xf]
      %v369 = vld [vmem:[%s274 + $0x4] sm:$0xf]
      %v370 = vld [vmem:[%s274 + $0x8] sm:$0xf]
      %v371 = vld [vmem:[%s274 + $0xc] sm:$0xf]
      %v372 = vld [vmem:[%s274 + $0x10] sm:$0xf]
      %v373 = vld [vmem:[%s274 + $0x14] sm:$0xf]
      %v374 = vld [vmem:[%s274 + $0x18] sm:$0xf]
      %v375 = vld [vmem:[%s274 + $0x1c] sm:$0xf]
      %v376 = vld [vmem:[%s274 + $0x20] sm:$0xf]
      %v377 = vld [vmem:[%s274 + $0x24] sm:$0xf]
      %v378 = vld [vmem:[%s274 + $0x28] sm:$0xf]
      %v379 = vld [vmem:[%s274 + $0x2c] sm:$0xf]
      %v380 = vld [vmem:[%s274 + $0x30] sm:$0xf]
      %v381 = vld [vmem:[%s274 + $0x34] sm:$0xf]
      %v382 = vld [vmem:[%s274 + $0x38] sm:$0xf]
      %v383 = vld [vmem:[%s274 + $0x3c] sm:$0xf]
      %v384 = vld [vmem:[%s274 + $0x40] sm:$0xf]
      %v385 = vld [vmem:[%s274 + $0x44] sm:$0xf]
      %v386 = vld [vmem:[%s274 + $0x48] sm:$0xf]
      %v387 = vld [vmem:[%s274 + $0x4c] sm:$0xf]
      %v388 = vld [vmem:[%s274 + $0x50] sm:$0xf]
      %v389 = vld [vmem:[%s274 + $0x54] sm:$0xf]
      %v390 = vld [vmem:[%s274 + $0x58] sm:$0xf]
      %v391 = vld [vmem:[%s274 + $0x5c] sm:$0xf]
      %v392 = vld [vmem:[%s274 + $0x60] sm:$0xf]
      %v393 = vld [vmem:[%s274 + $0x64] sm:$0xf]
      %v394 = vld [vmem:[%s274 + $0x68] sm:$0xf]
      %v395 = vld [vmem:[%s274 + $0x6c] sm:$0xf]
      %v396 = vld [vmem:[%s274 + $0x70] sm:$0xf]
      %v397 = vld [vmem:[%s274 + $0x74] sm:$0xf]
      %v398 = vld [vmem:[%s274 + $0x78] sm:$0xf]
      %v399 = vld [vmem:[%s274 + $0x7c] sm:$0xf]
      %v400 = vld [vmem:[%s283] sm:$0xf]
      %v401 = vld [vmem:[%s283 + $0x4] sm:$0xf]
      %v402 = vld [vmem:[%s283 + $0x8] sm:$0xf]
      %v403 = vld [vmem:[%s283 + $0xc] sm:$0xf]
      %v404 = vld [vmem:[%s283 + $0x10] sm:$0xf]
      %v405 = vld [vmem:[%s283 + $0x14] sm:$0xf]
      %v406 = vld [vmem:[%s283 + $0x18] sm:$0xf]
      %v407 = vld [vmem:[%s283 + $0x1c] sm:$0xf]
      %v408 = vld [vmem:[%s283 + $0x20] sm:$0xf]
      %v409 = vld [vmem:[%s283 + $0x24] sm:$0xf]
      %v410 = vld [vmem:[%s283 + $0x28] sm:$0xf]
      %v411 = vld [vmem:[%s283 + $0x2c] sm:$0xf]
      %v412 = vld [vmem:[%s283 + $0x30] sm:$0xf]
      %v413 = vld [vmem:[%s283 + $0x34] sm:$0xf]
      %v414 = vld [vmem:[%s283 + $0x38] sm:$0xf]
      %v415 = vld [vmem:[%s283 + $0x3c] sm:$0xf]
      %v448 = vunpack.c.l.b16 %v368
      %v449 = vunpack.c.l.b16 %v369
      %v450 = vunpack.c.l.b16 %v370
      %v451 = vunpack.c.l.b16 %v371
      %v452 = vunpack.c.l.b16 %v372
      %v453 = vunpack.c.l.b16 %v373
      %v454 = vunpack.c.l.b16 %v374
      %v455 = vunpack.c.l.b16 %v375
      %v456 = vunpack.c.l.b16 %v376
      %v457 = vunpack.c.l.b16 %v377
      %v458 = vunpack.c.l.b16 %v378
      %v459 = vunpack.c.l.b16 %v379
      %v460 = vunpack.c.l.b16 %v380
      %v461 = vunpack.c.l.b16 %v381
      %v462 = vunpack.c.l.b16 %v382
      %v463 = vunpack.c.l.b16 %v383
      %v464 = vunpack.c.l.b16 %v384
      %v465 = vunpack.c.l.b16 %v385
      %v466 = vunpack.c.l.b16 %v386
      %v467 = vunpack.c.l.b16 %v387
      %v468 = vunpack.c.l.b16 %v388
      %v469 = vunpack.c.l.b16 %v389
      %v470 = vunpack.c.l.b16 %v390
      %v471 = vunpack.c.l.b16 %v391
      %v472 = vunpack.c.l.b16 %v392
      %v473 = vunpack.c.l.b16 %v393
      %v474 = vunpack.c.l.b16 %v394
      %v475 = vunpack.c.l.b16 %v395
      %v476 = vunpack.c.l.b16 %v396
      %v477 = vunpack.c.l.b16 %v397
      %v478 = vunpack.c.l.b16 %v398
      %v479 = vunpack.c.l.b16 %v399
      %v480 = vpack.c.b16 %v449, %v448
      %v481 = vpack.c.b16 %v451, %v450
      %v482 = vpack.c.b16 %v453, %v452
      %v483 = vpack.c.b16 %v455, %v454
      %v484 = vpack.c.b16 %v457, %v456
      %v485 = vpack.c.b16 %v459, %v458
      %v486 = vpack.c.b16 %v461, %v460
      %v487 = vpack.c.b16 %v463, %v462
      %v488 = vpack.c.b16 %v465, %v464
      %v489 = vpack.c.b16 %v467, %v466
      %v490 = vpack.c.b16 %v469, %v468
      %v491 = vpack.c.b16 %v471, %v470
      %v492 = vpack.c.b16 %v473, %v472
      %v493 = vpack.c.b16 %v475, %v474
      %v494 = vpack.c.b16 %v477, %v476
      %v495 = vpack.c.b16 %v479, %v478
      %v528 = vunpack.c.l.b16 %v400
      %v529 = vunpack.c.l.b16 %v401
      %v530 = vunpack.c.l.b16 %v402
      %v531 = vunpack.c.l.b16 %v403
      %v532 = vunpack.c.l.b16 %v404
      %v533 = vunpack.c.l.b16 %v405
      %v534 = vunpack.c.l.b16 %v406
      %v535 = vunpack.c.l.b16 %v407
      %v536 = vunpack.c.l.b16 %v408
      %v537 = vunpack.c.l.b16 %v409
      %v538 = vunpack.c.l.b16 %v410
      %v539 = vunpack.c.l.b16 %v411
      %v540 = vunpack.c.l.b16 %v412
      %v541 = vunpack.c.l.b16 %v413
      %v542 = vunpack.c.l.b16 %v414
      %v543 = vunpack.c.l.b16 %v415
      %v544 = vpack.c.b16 %v529, %v528
      %v545 = vpack.c.b16 %v531, %v530
      %v546 = vpack.c.b16 %v533, %v532
      %v547 = vpack.c.b16 %v535, %v534
      %v548 = vpack.c.b16 %v537, %v536
      %v549 = vpack.c.b16 %v539, %v538
      %v550 = vpack.c.b16 %v541, %v540
      %v551 = vpack.c.b16 %v543, %v542
      %560 = vmatpush.bf16.msra.mxu0 %v551
      %561 = vmatpush.bf16.msra.mxu0 %v550
      %562 = vmatpush.bf16.msra.mxu0 %v549
      %563 = vmatpush.bf16.msra.mxu0 %v548
      %564 = vmatpush.bf16.msra.mxu0 %v547
      %565 = vmatpush.bf16.msra.mxu0 %v546
      %566 = vmatpush.bf16.msra.mxu0 %v545
      %567 = vmatpush.bf16.msra.mxu0 %v544
      %568 = vmatmul.bf16.gmra.mxu0 %v480
      %v569 = vpop.f32.mrf.mxu0
      %v570 = vadd.f32 0.0, %v569
      %v571 = vpop.f32.mrf.mxu0
      %v572 = vadd.f32 0.0, %v571
      %573 = vmatmul.bf16.gmra.mxu0 %v481
      %v574 = vpop.f32.mrf.mxu0
      %v575 = vadd.f32 0.0, %v574
      %v576 = vpop.f32.mrf.mxu0
      %v577 = vadd.f32 0.0, %v576
      %578 = vmatmul.bf16.gmra.mxu0 %v482
      %v579 = vpop.f32.mrf.mxu0
      %v580 = vadd.f32 0.0, %v579
      %v581 = vpop.f32.mrf.mxu0
      %v582 = vadd.f32 0.0, %v581
      %583 = vmatmul.bf16.gmra.mxu0 %v483
      %v584 = vpop.f32.mrf.mxu0
      %v585 = vadd.f32 0.0, %v584
      %v586 = vpop.f32.mrf.mxu0
      %v587 = vadd.f32 0.0, %v586
      %588 = vmatmul.bf16.gmra.mxu0 %v484
      %v589 = vpop.f32.mrf.mxu0
      %v590 = vadd.f32 0.0, %v589
      %v591 = vpop.f32.mrf.mxu0
      %v592 = vadd.f32 0.0, %v591
      %593 = vmatmul.bf16.gmra.mxu0 %v485
      %v594 = vpop.f32.mrf.mxu0
      %v595 = vadd.f32 0.0, %v594
      %v596 = vpop.f32.mrf.mxu0
      %v597 = vadd.f32 0.0, %v596
      %598 = vmatmul.bf16.gmra.mxu0 %v486
      %v599 = vpop.f32.mrf.mxu0
      %v600 = vadd.f32 0.0, %v599
      %v601 = vpop.f32.mrf.mxu0
      %v602 = vadd.f32 0.0, %v601
      %603 = vmatmul.bf16.gmra.mxu0 %v487
      %v604 = vpop.f32.mrf.mxu0
      %v605 = vadd.f32 0.0, %v604
      %v606 = vpop.f32.mrf.mxu0
      %v607 = vadd.f32 0.0, %v606
      %608 = vmatmul.bf16.gmra.mxu0 %v488
      %v609 = vpop.f32.mrf.mxu0
      %v610 = vadd.f32 0.0, %v609
      %v611 = vpop.f32.mrf.mxu0
      %v612 = vadd.f32 0.0, %v611
      %613 = vmatmul.bf16.gmra.mxu0 %v489
      %v614 = vpop.f32.mrf.mxu0
      %v615 = vadd.f32 0.0, %v614
      %v616 = vpop.f32.mrf.mxu0
      %v617 = vadd.f32 0.0, %v616
      %618 = vmatmul.bf16.gmra.mxu0 %v490
      %v619 = vpop.f32.mrf.mxu0
      %v620 = vadd.f32 0.0, %v619
      %v621 = vpop.f32.mrf.mxu0
      %v622 = vadd.f32 0.0, %v621
      %623 = vmatmul.bf16.gmra.mxu0 %v491
      %v624 = vpop.f32.mrf.mxu0
      %v625 = vadd.f32 0.0, %v624
      %v626 = vpop.f32.mrf.mxu0
      %v627 = vadd.f32 0.0, %v626
      %628 = vmatmul.bf16.gmra.mxu0 %v492
      %v629 = vpop.f32.mrf.mxu0
      %v630 = vadd.f32 0.0, %v629
      %v631 = vpop.f32.mrf.mxu0
      %v632 = vadd.f32 0.0, %v631
      %633 = vmatmul.bf16.gmra.mxu0 %v493
      %v634 = vpop.f32.mrf.mxu0
      %v635 = vadd.f32 0.0, %v634
      %v636 = vpop.f32.mrf.mxu0
      %v637 = vadd.f32 0.0, %v636
      %638 = vmatmul.bf16.gmra.mxu0 %v494
      %v639 = vpop.f32.mrf.mxu0
      %v640 = vadd.f32 0.0, %v639
      %v641 = vpop.f32.mrf.mxu0
      %v642 = vadd.f32 0.0, %v641
      %643 = vmatmul.bf16.gmra.mxu0 %v495
      %v644 = vpop.f32.mrf.mxu0
      %v645 = vadd.f32 0.0, %v644
      %v646 = vpop.f32.mrf.mxu0
      %v647 = vadd.f32 0.0, %v646
      %648 = vdwg.mxu0
      %v649 = vadd.f32 %v336, %v570
      %v650 = vadd.f32 %v337, %v572
      %v651 = vadd.f32 %v338, %v575
      %v652 = vadd.f32 %v339, %v577
      %v653 = vadd.f32 %v340, %v580
      %v654 = vadd.f32 %v341, %v582
      %v655 = vadd.f32 %v342, %v585
      %v656 = vadd.f32 %v343, %v587
      %v657 = vadd.f32 %v344, %v590
      %v658 = vadd.f32 %v345, %v592
      %v659 = vadd.f32 %v346, %v595
      %v660 = vadd.f32 %v347, %v597
      %v661 = vadd.f32 %v348, %v600
      %v662 = vadd.f32 %v349, %v602
      %v663 = vadd.f32 %v350, %v605
      %v664 = vadd.f32 %v351, %v607
      %v665 = vadd.f32 %v352, %v610
      %v666 = vadd.f32 %v353, %v612
      %v667 = vadd.f32 %v354, %v615
      %v668 = vadd.f32 %v355, %v617
      %v669 = vadd.f32 %v356, %v620
      %v670 = vadd.f32 %v357, %v622
      %v671 = vadd.f32 %v358, %v625
      %v672 = vadd.f32 %v359, %v627
      %v673 = vadd.f32 %v360, %v630
      %v674 = vadd.f32 %v361, %v632
      %v675 = vadd.f32 %v362, %v635
      %v676 = vadd.f32 %v363, %v637
      %v677 = vadd.f32 %v364, %v640
      %v678 = vadd.f32 %v365, %v642
      %v679 = vadd.f32 %v366, %v645
      %v680 = vadd.f32 %v367, %v647
      %681 = vst [vmem:[#allocation2] sm:$0xff] %v649
      %682 = vst [vmem:[#allocation2 + $0x8] sm:$0xff] %v650
      %683 = vst [vmem:[#allocation2 + $0x10] sm:$0xff] %v651
      %684 = vst [vmem:[#allocation2 + $0x18] sm:$0xff] %v652
      %685 = vst [vmem:[#allocation2 + $0x20] sm:$0xff] %v653
      %686 = vst [vmem:[#allocation2 + $0x28] sm:$0xff] %v654
      %687 = vst [vmem:[#allocation2 + $0x30] sm:$0xff] %v655
      %688 = vst [vmem:[#allocation2 + $0x38] sm:$0xff] %v656
      %689 = vst [vmem:[#allocation2 + $0x40] sm:$0xff] %v657
      %690 = vst [vmem:[#allocation2 + $0x48] sm:$0xff] %v658
      %691 = vst [vmem:[#allocation2 + $0x50] sm:$0xff] %v659
      %692 = vst [vmem:[#allocation2 + $0x58] sm:$0xff] %v660
      %693 = vst [vmem:[#allocation2 + $0x60] sm:$0xff] %v661
      %694 = vst [vmem:[#allocation2 + $0x68] sm:$0xff] %v662
      %695 = vst [vmem:[#allocation2 + $0x70] sm:$0xff] %v663
      %696 = vst [vmem:[#allocation2 + $0x78] sm:$0xff] %v664
      %697 = vst [vmem:[#allocation2 + $0x80] sm:$0xff] %v665
      %698 = vst [vmem:[#allocation2 + $0x88] sm:$0xff] %v666
      %699 = vst [vmem:[#allocation2 + $0x90] sm:$0xff] %v667
      %700 = vst [vmem:[#allocation2 + $0x98] sm:$0xff] %v668
      %701 = vst [vmem:[#allocation2 + $0xa0] sm:$0xff] %v669
      %702 = vst [vmem:[#allocation2 + $0xa8] sm:$0xff] %v670
      %703 = vst [vmem:[#allocation2 + $0xb0] sm:$0xff] %v671
      %704 = vst [vmem:[#allocation2 + $0xb8] sm:$0xff] %v672
      %705 = vst [vmem:[#allocation2 + $0xc0] sm:$0xff] %v673
      %706 = vst [vmem:[#allocation2 + $0xc8] sm:$0xff] %v674
      %707 = vst [vmem:[#allocation2 + $0xd0] sm:$0xff] %v675
      %708 = vst [vmem:[#allocation2 + $0xd8] sm:$0xff] %v676
      %709 = vst [vmem:[#allocation2 + $0xe0] sm:$0xff] %v677
      %710 = vst [vmem:[#allocation2 + $0xe8] sm:$0xff] %v678
      %711 = vst [vmem:[#allocation2 + $0xf0] sm:$0xff] %v679
      %712 = vst [vmem:[#allocation2 + $0xf8] sm:$0xff] %v680
      // Predicated region
      $region41: #{discriminator_forward.5} parent=35 // pred_check
        %p713 = pneg %p300
      $region42: #{discriminator_forward.5} parent=35 // pred_check_branch
        %715 = sbr.rel (%p713) target = $region44
      $region43: #{discriminator_forward.5} parent=35 // pred_region
        %v716 = vld [vmem:[#allocation2] sm:$0xff]
        %v717 = vld [vmem:[#allocation2 + $0x8] sm:$0xff]
        %v718 = vld [vmem:[#allocation2 + $0x10] sm:$0xff]
        %v719 = vld [vmem:[#allocation2 + $0x18] sm:$0xff]
        %v720 = vld [vmem:[#allocation2 + $0x20] sm:$0xff]
        %v721 = vld [vmem:[#allocation2 + $0x28] sm:$0xff]
        %v722 = vld [vmem:[#allocation2 + $0x30] sm:$0xff]
        %v723 = vld [vmem:[#allocation2 + $0x38] sm:$0xff]
        %v724 = vld [vmem:[#allocation2 + $0x40] sm:$0xff]
        %v725 = vld [vmem:[#allocation2 + $0x48] sm:$0xff]
        %v726 = vld [vmem:[#allocation2 + $0x50] sm:$0xff]
        %v727 = vld [vmem:[#allocation2 + $0x58] sm:$0xff]
        %v728 = vld [vmem:[#allocation2 + $0x60] sm:$0xff]
        %v729 = vld [vmem:[#allocation2 + $0x68] sm:$0xff]
        %v730 = vld [vmem:[#allocation2 + $0x70] sm:$0xff]
        %v731 = vld [vmem:[#allocation2 + $0x78] sm:$0xff]
        %v732 = vld [vmem:[#allocation2 + $0x80] sm:$0xff]
        %v733 = vld [vmem:[#allocation2 + $0x88] sm:$0xff]
        %v734 = vld [vmem:[#allocation2 + $0x90] sm:$0xff]
        %v735 = vld [vmem:[#allocation2 + $0x98] sm:$0xff]
        %v736 = vld [vmem:[#allocation2 + $0xa0] sm:$0xff]
        %v737 = vld [vmem:[#allocation2 + $0xa8] sm:$0xff]
        %v738 = vld [vmem:[#allocation2 + $0xb0] sm:$0xff]
        %v739 = vld [vmem:[#allocation2 + $0xb8] sm:$0xff]
        %v740 = vld [vmem:[#allocation2 + $0xc0] sm:$0xff]
        %v741 = vld [vmem:[#allocation2 + $0xc8] sm:$0xff]
        %v742 = vld [vmem:[#allocation2 + $0xd0] sm:$0xff]
        %v743 = vld [vmem:[#allocation2 + $0xd8] sm:$0xff]
        %v744 = vld [vmem:[#allocation2 + $0xe0] sm:$0xff]
        %v745 = vld [vmem:[#allocation2 + $0xe8] sm:$0xff]
        %v746 = vld [vmem:[#allocation2 + $0xf0] sm:$0xff]
        %v747 = vld [vmem:[#allocation2 + $0xf8] sm:$0xff]
        %v748 = vld [vmem:[%s287] sm:$0x1]
        %v750 = vperm.slane %v748, 0
        %v752 = vmul.f32 %v716, %v750
        %v753 = vmul.f32 %v717, %v750
        %v754 = vmul.f32 %v718, %v750
        %v755 = vmul.f32 %v719, %v750
        %v756 = vmul.f32 %v720, %v750
        %v757 = vmul.f32 %v721, %v750
        %v758 = vmul.f32 %v722, %v750
        %v759 = vmul.f32 %v723, %v750
        %v760 = vmul.f32 %v724, %v750
        %v761 = vmul.f32 %v725, %v750
        %v762 = vmul.f32 %v726, %v750
        %v763 = vmul.f32 %v727, %v750
        %v764 = vmul.f32 %v728, %v750
        %v765 = vmul.f32 %v729, %v750
        %v766 = vmul.f32 %v730, %v750
        %v767 = vmul.f32 %v731, %v750
        %v768 = vmul.f32 %v732, %v750
        %v769 = vmul.f32 %v733, %v750
        %v770 = vmul.f32 %v734, %v750
        %v771 = vmul.f32 %v735, %v750
        %v772 = vmul.f32 %v736, %v750
        %v773 = vmul.f32 %v737, %v750
        %v774 = vmul.f32 %v738, %v750
        %v775 = vmul.f32 %v739, %v750
        %v776 = vmul.f32 %v740, %v750
        %v777 = vmul.f32 %v741, %v750
        %v778 = vmul.f32 %v742, %v750
        %v779 = vmul.f32 %v743, %v750
        %v780 = vmul.f32 %v744, %v750
        %v781 = vmul.f32 %v745, %v750
        %v782 = vmul.f32 %v746, %v750
        %v783 = vmul.f32 %v747, %v750
        %v784 = vld [vmem:[%s290] sm:$0x1]
        %v786 = vperm.slane %v784, 0
        %v788 = vadd.f32 %v752, %v786
        %v789 = vadd.f32 %v753, %v786
        %v790 = vadd.f32 %v754, %v786
        %v791 = vadd.f32 %v755, %v786
        %v792 = vadd.f32 %v756, %v786
        %v793 = vadd.f32 %v757, %v786
        %v794 = vadd.f32 %v758, %v786
        %v795 = vadd.f32 %v759, %v786
        %v796 = vadd.f32 %v760, %v786
        %v797 = vadd.f32 %v761, %v786
        %v798 = vadd.f32 %v762, %v786
        %v799 = vadd.f32 %v763, %v786
        %v800 = vadd.f32 %v764, %v786
        %v801 = vadd.f32 %v765, %v786
        %v802 = vadd.f32 %v766, %v786
        %v803 = vadd.f32 %v767, %v786
        %v804 = vadd.f32 %v768, %v786
        %v805 = vadd.f32 %v769, %v786
        %v806 = vadd.f32 %v770, %v786
        %v807 = vadd.f32 %v771, %v786
        %v808 = vadd.f32 %v772, %v786
        %v809 = vadd.f32 %v773, %v786
        %v810 = vadd.f32 %v774, %v786
        %v811 = vadd.f32 %v775, %v786
        %v812 = vadd.f32 %v776, %v786
        %v813 = vadd.f32 %v777, %v786
        %v814 = vadd.f32 %v778, %v786
        %v815 = vadd.f32 %v779, %v786
        %v816 = vadd.f32 %v780, %v786
        %v817 = vadd.f32 %v781, %v786
        %v818 = vadd.f32 %v782, %v786
        %v819 = vadd.f32 %v783, %v786
        %vm820 = vcmp.ge.f32.partialorder %v788, 0.0
        %vm821 = vcmp.ge.f32.partialorder %v789, 0.0
        %vm822 = vcmp.ge.f32.partialorder %v790, 0.0
        %vm823 = vcmp.ge.f32.partialorder %v791, 0.0
        %vm824 = vcmp.ge.f32.partialorder %v792, 0.0
        %vm825 = vcmp.ge.f32.partialorder %v793, 0.0
        %vm826 = vcmp.ge.f32.partialorder %v794, 0.0
        %vm827 = vcmp.ge.f32.partialorder %v795, 0.0
        %vm828 = vcmp.ge.f32.partialorder %v796, 0.0
        %vm829 = vcmp.ge.f32.partialorder %v797, 0.0
        %vm830 = vcmp.ge.f32.partialorder %v798, 0.0
        %vm831 = vcmp.ge.f32.partialorder %v799, 0.0
        %vm832 = vcmp.ge.f32.partialorder %v800, 0.0
        %vm833 = vcmp.ge.f32.partialorder %v801, 0.0
        %vm834 = vcmp.ge.f32.partialorder %v802, 0.0
        %vm835 = vcmp.ge.f32.partialorder %v803, 0.0
        %vm836 = vcmp.ge.f32.partialorder %v804, 0.0
        %vm837 = vcmp.ge.f32.partialorder %v805, 0.0
        %vm838 = vcmp.ge.f32.partialorder %v806, 0.0
        %vm839 = vcmp.ge.f32.partialorder %v807, 0.0
        %vm840 = vcmp.ge.f32.partialorder %v808, 0.0
        %vm841 = vcmp.ge.f32.partialorder %v809, 0.0
        %vm842 = vcmp.ge.f32.partialorder %v810, 0.0
        %vm843 = vcmp.ge.f32.partialorder %v811, 0.0
        %vm844 = vcmp.ge.f32.partialorder %v812, 0.0
        %vm845 = vcmp.ge.f32.partialorder %v813, 0.0
        %vm846 = vcmp.ge.f32.partialorder %v814, 0.0
        %vm847 = vcmp.ge.f32.partialorder %v815, 0.0
        %vm848 = vcmp.ge.f32.partialorder %v816, 0.0
        %vm849 = vcmp.ge.f32.partialorder %v817, 0.0
        %vm850 = vcmp.ge.f32.partialorder %v818, 0.0
        %vm851 = vcmp.ge.f32.partialorder %v819, 0.0
        %v852 = vmul.f32 %v788, 0.2
        %v853 = vmul.f32 %v789, 0.2
        %v854 = vmul.f32 %v790, 0.2
        %v855 = vmul.f32 %v791, 0.2
        %v856 = vmul.f32 %v792, 0.2
        %v857 = vmul.f32 %v793, 0.2
        %v858 = vmul.f32 %v794, 0.2
        %v859 = vmul.f32 %v795, 0.2
        %v860 = vmul.f32 %v796, 0.2
        %v861 = vmul.f32 %v797, 0.2
        %v862 = vmul.f32 %v798, 0.2
        %v863 = vmul.f32 %v799, 0.2
        %v864 = vmul.f32 %v800, 0.2
        %v865 = vmul.f32 %v801, 0.2
        %v866 = vmul.f32 %v802, 0.2
        %v867 = vmul.f32 %v803, 0.2
        %v868 = vmul.f32 %v804, 0.2
        %v869 = vmul.f32 %v805, 0.2
        %v870 = vmul.f32 %v806, 0.2
        %v871 = vmul.f32 %v807, 0.2
        %v872 = vmul.f32 %v808, 0.2
        %v873 = vmul.f32 %v809, 0.2
        %v874 = vmul.f32 %v810, 0.2
        %v875 = vmul.f32 %v811, 0.2
        %v876 = vmul.f32 %v812, 0.2
        %v877 = vmul.f32 %v813, 0.2
        %v878 = vmul.f32 %v814, 0.2
        %v879 = vmul.f32 %v815, 0.2
        %v880 = vmul.f32 %v816, 0.2
        %v881 = vmul.f32 %v817, 0.2
        %v882 = vmul.f32 %v818, 0.2
        %v883 = vmul.f32 %v819, 0.2
        %v884 = vsel %vm820, %v788, %v852
        %v885 = vsel %vm821, %v789, %v853
        %v886 = vsel %vm822, %v790, %v854
        %v887 = vsel %vm823, %v791, %v855
        %v888 = vsel %vm824, %v792, %v856
        %v889 = vsel %vm825, %v793, %v857
        %v890 = vsel %vm826, %v794, %v858
        %v891 = vsel %vm827, %v795, %v859
        %v892 = vsel %vm828, %v796, %v860
        %v893 = vsel %vm829, %v797, %v861
        %v894 = vsel %vm830, %v798, %v862
        %v895 = vsel %vm831, %v799, %v863
        %v896 = vsel %vm832, %v800, %v864
        %v897 = vsel %vm833, %v801, %v865
        %v898 = vsel %vm834, %v802, %v866
        %v899 = vsel %vm835, %v803, %v867
        %v900 = vsel %vm836, %v804, %v868
        %v901 = vsel %vm837, %v805, %v869
        %v902 = vsel %vm838, %v806, %v870
        %v903 = vsel %vm839, %v807, %v871
        %v904 = vsel %vm840, %v808, %v872
        %v905 = vsel %vm841, %v809, %v873
        %v906 = vsel %vm842, %v810, %v874
        %v907 = vsel %vm843, %v811, %v875
        %v908 = vsel %vm844, %v812, %v876
        %v909 = vsel %vm845, %v813, %v877
        %v910 = vsel %vm846, %v814, %v878
        %v911 = vsel %vm847, %v815, %v879
        %v912 = vsel %vm848, %v816, %v880
        %v913 = vsel %vm849, %v817, %v881
        %v914 = vsel %vm850, %v818, %v882
        %v915 = vsel %vm851, %v819, %v883
        %v916 = vpack.c.bf16 %v884, %v884
        %v917 = vpack.c.bf16 %v885, %v885
        %v918 = vpack.c.bf16 %v886, %v886
        %v919 = vpack.c.bf16 %v887, %v887
        %v920 = vpack.c.bf16 %v888, %v888
        %v921 = vpack.c.bf16 %v889, %v889
        %v922 = vpack.c.bf16 %v890, %v890
        %v923 = vpack.c.bf16 %v891, %v891
        %v924 = vpack.c.bf16 %v892, %v892
        %v925 = vpack.c.bf16 %v893, %v893
        %v926 = vpack.c.bf16 %v894, %v894
        %v927 = vpack.c.bf16 %v895, %v895
        %v928 = vpack.c.bf16 %v896, %v896
        %v929 = vpack.c.bf16 %v897, %v897
        %v930 = vpack.c.bf16 %v898, %v898
        %v931 = vpack.c.bf16 %v899, %v899
        %v932 = vpack.c.bf16 %v900, %v900
        %v933 = vpack.c.bf16 %v901, %v901
        %v934 = vpack.c.bf16 %v902, %v902
        %v935 = vpack.c.bf16 %v903, %v903
        %v936 = vpack.c.bf16 %v904, %v904
        %v937 = vpack.c.bf16 %v905, %v905
        %v938 = vpack.c.bf16 %v906, %v906
        %v939 = vpack.c.bf16 %v907, %v907
        %v940 = vpack.c.bf16 %v908, %v908
        %v941 = vpack.c.bf16 %v909, %v909
        %v942 = vpack.c.bf16 %v910, %v910
        %v943 = vpack.c.bf16 %v911, %v911
        %v944 = vpack.c.bf16 %v912, %v912
        %v945 = vpack.c.bf16 %v913, %v913
        %v946 = vpack.c.bf16 %v914, %v914
        %v947 = vpack.c.bf16 %v915, %v915
        %948 = vst [vmem:[%s298] sm:$0xf] %v916
        %949 = vst [vmem:[%s298 + $0x4] sm:$0xf] %v917
        %950 = vst [vmem:[%s298 + $0x8] sm:$0xf] %v918
        %951 = vst [vmem:[%s298 + $0xc] sm:$0xf] %v919
        %952 = vst [vmem:[%s298 + $0x10] sm:$0xf] %v920
        %953 = vst [vmem:[%s298 + $0x14] sm:$0xf] %v921
        %954 = vst [vmem:[%s298 + $0x18] sm:$0xf] %v922
        %955 = vst [vmem:[%s298 + $0x1c] sm:$0xf] %v923
        %956 = vst [vmem:[%s298 + $0x20] sm:$0xf] %v924
        %957 = vst [vmem:[%s298 + $0x24] sm:$0xf] %v925
        %958 = vst [vmem:[%s298 + $0x28] sm:$0xf] %v926
        %959 = vst [vmem:[%s298 + $0x2c] sm:$0xf] %v927
        %960 = vst [vmem:[%s298 + $0x30] sm:$0xf] %v928
        %961 = vst [vmem:[%s298 + $0x34] sm:$0xf] %v929
        %962 = vst [vmem:[%s298 + $0x38] sm:$0xf] %v930
        %963 = vst [vmem:[%s298 + $0x3c] sm:$0xf] %v931
        %964 = vst [vmem:[%s298 + $0x40] sm:$0xf] %v932
        %965 = vst [vmem:[%s298 + $0x44] sm:$0xf] %v933
        %966 = vst [vmem:[%s298 + $0x48] sm:$0xf] %v934
        %967 = vst [vmem:[%s298 + $0x4c] sm:$0xf] %v935
        %968 = vst [vmem:[%s298 + $0x50] sm:$0xf] %v936
        %969 = vst [vmem:[%s298 + $0x54] sm:$0xf] %v937
        %970 = vst [vmem:[%s298 + $0x58] sm:$0xf] %v938
        %971 = vst [vmem:[%s298 + $0x5c] sm:$0xf] %v939
        %972 = vst [vmem:[%s298 + $0x60] sm:$0xf] %v940
        %973 = vst [vmem:[%s298 + $0x64] sm:$0xf] %v941
        %974 = vst [vmem:[%s298 + $0x68] sm:$0xf] %v942
        %975 = vst [vmem:[%s298 + $0x6c] sm:$0xf] %v943
        %976 = vst [vmem:[%s298 + $0x70] sm:$0xf] %v944
        %977 = vst [vmem:[%s298 + $0x74] sm:$0xf] %v945
        %978 = vst [vmem:[%s298 + $0x78] sm:$0xf] %v946
        %979 = vst [vmem:[%s298 + $0x7c] sm:$0xf] %v947
      $region44: #{discriminator_forward.5} parent=35 // pred_fallthru
        _
      %s980 = smul.u32 32, %s20
      %p981 = scmp.lt.s32.totalorder %s980, 63
      %s982 = scalar_select %p981, %s980, 63
      %p983 = scmp.lt.s32.totalorder %s21, 0
      %s984 = scalar_select %p983, %s21, 0
      %s985 = sadd.s32 %s984, %s982
      %s986 = smul.addr %s985, 4
      %s987 = scalar_lea.vmem %s4, %s986
      // Predicated region
      $region45: #{discriminator_forward.5} parent=35 // pred_check
        %p988 = pneg %p162
      $region46: #{discriminator_forward.5} parent=35 // pred_check_branch
        %990 = sbr.rel (%p988) target = $region48
      $region47: #{discriminator_forward.5} parent=35 // pred_region
        %s991 = smul.u32 32, %s20
      $region48: #{discriminator_forward.5} parent=35 // pred_fallthru
        _
    $region36: #{discriminator_forward.5} parent=5 // pred_fallthru
      _
    %p992 = scmp.le.s32.totalorder 2, %s10
    // Predicated region
    $region49: #{discriminator_forward.5} parent=5 // pred_check
      %p993 = pneg %p992
    $region50: #{discriminator_forward.5} parent=5 // pred_check_branch
      %995 = sbr.rel (%p993) target = $region52
    $region51: #{discriminator_forward.5} parent=5 // pred_region
      %s996 = ssub.s32 %s10, 2
      // Predicated region
      $region53: #{discriminator_forward.5} parent=51 // pred_check
        %p997 = pneg %p168
      $region54: #{discriminator_forward.5} parent=51 // pred_check_branch
        %999 = sbr.rel (%p997) target = $region56
      $region55: #{discriminator_forward.5} parent=51 // pred_region
        %s1000 = smul.u32 32, %s23
        %p1001 = scmp.lt.s32.totalorder %s1000, 63
        %s1002 = scalar_select %p1001, %s1000, 63
        %p1003 = scmp.lt.s32.totalorder %s24, 0
        %s1004 = scalar_select %p1003, %s24, 0
        %s1005 = sadd.s32 %s1004, %s1002
        %s1006 = smul.addr %s1005, 4
        %s1007 = scalar_lea.vmem %s4, %s1006
      $region56: #{discriminator_forward.5} parent=51 // pred_fallthru
        _
    $region52: #{discriminator_forward.5} parent=5 // pred_fallthru
      _
  $region6: #{discriminator_forward.5} parent=0 // loop_footer
    %s14 = sadd.s32 1, %s10
  $region7: #{discriminator_forward.5} parent=0 // loop_footer_branch
    %9 = sbr.rel target = $region3
  $region8: #{discriminator_forward.5} parent=0 // loop_exit
    _

// kernel: discriminator_forward.6
$region0: #{discriminator_forward.6}
  #allocation0 [shape = 'u32[]', space=smem, size = 0x4, offset = 0x4, fixed_abs, tag = 'smem constant byte address 0x4 - core index']
  #allocation1 [shape = 'u32[72,128]{1,0:T(1,128)}', space=vmem, size = 0x9000, scoped, tag = 'internal scratch']
  #allocation2 [shape = 'f32[128,128]{1,0:T(8,128)}', space=vmem, size = 0x10000, scoped, tag = 'scratch operand']
  %s0 = inlined_call_operand.vmem [shape: bf16[128,1024], index: 0, kind: input, shape index: {}]
  %s1 = inlined_call_operand.vmem [shape: bf16[1024,128], index: 1, kind: input, shape index: {}]
  %s2 = inlined_call_operand.vmem [shape: f32[1,128], index: 2, kind: input, shape index: {}]
  %s3 = inlined_call_operand.vmem [shape: f32[1,128], index: 3, kind: input, shape index: {}]
  %s4 = inlined_call_operand.vmem [shape: bf16[128,128], index: 4, kind: output, shape index: {}]
  %s5 = sld [smem:[#allocation0]]
  $region34: #{discriminator_forward.6} parent=0
    _
  %s7 = ssub.s32 1, %s5
  %s8 = scalar_select 0, %s7, %s5
  // Predicated region
  $region2: #{discriminator_forward.6} parent=0 // pred_check
    _
  $region3: #{discriminator_forward.6} parent=0 // pred_check_branch
    %10 = sbr.rel (0) target = $region5
  $region4: #{discriminator_forward.6} parent=0 // pred_region
    _
  $region5: #{discriminator_forward.6} parent=0 // pred_fallthru
    _
  // Predicated region
  $region6: #{discriminator_forward.6} parent=0 // pred_check
    _
  $region7: #{discriminator_forward.6} parent=0 // pred_check_branch
    %12 = sbr.rel (0) target = $region9
  $region8: #{discriminator_forward.6} parent=0 // pred_region
    _
  $region9: #{discriminator_forward.6} parent=0 // pred_fallthru
    _
  // Predicated region
  $region10: #{discriminator_forward.6} parent=0 // pred_check
    _
  $region11: #{discriminator_forward.6} parent=0 // pred_check_branch
    %14 = sbr.rel (0) target = $region13
  $region12: #{discriminator_forward.6} parent=0 // pred_region
    _
  $region13: #{discriminator_forward.6} parent=0 // pred_fallthru
    _
  // Predicated region
  $region14: #{discriminator_forward.6} parent=0 // pred_check
    _
  $region15: #{discriminator_forward.6} parent=0 // pred_check_branch
    %16 = sbr.rel (0) target = $region17
  $region16: #{discriminator_forward.6} parent=0 // pred_region
    _
  $region17: #{discriminator_forward.6} parent=0 // pred_fallthru
    _
  %p17 = scmp.eq.s32.totalorder 0, 0
  // Predicated region
  $region18: #{discriminator_forward.6} parent=0 // pred_check
    %p18 = pneg %p17
  $region19: #{discriminator_forward.6} parent=0 // pred_check_branch
    %20 = sbr.rel (%p18) target = $region21
  $region20: #{discriminator_forward.6} parent=0 // pred_region
    %21 = vst [vmem:[#allocation2] sm:$0xff] 0.0
    %22 = vst [vmem:[#allocation2 + $0x8] sm:$0xff] 0.0
    %23 = vst [vmem:[#allocation2 + $0x10] sm:$0xff] 0.0
    %24 = vst [vmem:[#allocation2 + $0x18] sm:$0xff] 0.0
    %25 = vst [vmem:[#allocation2 + $0x20] sm:$0xff] 0.0
    %26 = vst [vmem:[#allocation2 + $0x28] sm:$0xff] 0.0
    %27 = vst [vmem:[#allocation2 + $0x30] sm:$0xff] 0.0
    %28 = vst [vmem:[#allocation2 + $0x38] sm:$0xff] 0.0
    %29 = vst [vmem:[#allocation2 + $0x40] sm:$0xff] 0.0
    %30 = vst [vmem:[#allocation2 + $0x48] sm:$0xff] 0.0
    %31 = vst [vmem:[#allocation2 + $0x50] sm:$0xff] 0.0
    %32 = vst [vmem:[#allocation2 + $0x58] sm:$0xff] 0.0
    %33 = vst [vmem:[#allocation2 + $0x60] sm:$0xff] 0.0
    %34 = vst [vmem:[#allocation2 + $0x68] sm:$0xff] 0.0
    %35 = vst [vmem:[#allocation2 + $0x70] sm:$0xff] 0.0
    %36 = vst [vmem:[#allocation2 + $0x78] sm:$0xff] 0.0
  $region21: #{discriminator_forward.6} parent=0 // pred_fallthru
    _
  %v37 = vld [vmem:[#allocation2] sm:$0xff]
  %v38 = vld [vmem:[#allocation2 + $0x8] sm:$0xff]
  %v39 = vld [vmem:[#allocation2 + $0x10] sm:$0xff]
  %v40 = vld [vmem:[#allocation2 + $0x18] sm:$0xff]
  %v41 = vld [vmem:[#allocation2 + $0x20] sm:$0xff]
  %v42 = vld [vmem:[#allocation2 + $0x28] sm:$0xff]
  %v43 = vld [vmem:[#allocation2 + $0x30] sm:$0xff]
  %v44 = vld [vmem:[#allocation2 + $0x38] sm:$0xff]
  %v45 = vld [vmem:[#allocation2 + $0x40] sm:$0xff]
  %v46 = vld [vmem:[#allocation2 + $0x48] sm:$0xff]
  %v47 = vld [vmem:[#allocation2 + $0x50] sm:$0xff]
  %v48 = vld [vmem:[#allocation2 + $0x58] sm:$0xff]
  %v49 = vld [vmem:[#allocation2 + $0x60] sm:$0xff]
  %v50 = vld [vmem:[#allocation2 + $0x68] sm:$0xff]
  %v51 = vld [vmem:[#allocation2 + $0x70] sm:$0xff]
  %v52 = vld [vmem:[#allocation2 + $0x78] sm:$0xff]
  %v53 = vld [vmem:[%s0] sm:$0xff]
  %v54 = vld [vmem:[%s0 + $0x8] sm:$0xff]
  %v55 = vld [vmem:[%s0 + $0x10] sm:$0xff]
  %v56 = vld [vmem:[%s0 + $0x18] sm:$0xff]
  %v57 = vld [vmem:[%s0 + $0x20] sm:$0xff]
  %v58 = vld [vmem:[%s0 + $0x28] sm:$0xff]
  %v59 = vld [vmem:[%s0 + $0x30] sm:$0xff]
  %v60 = vld [vmem:[%s0 + $0x38] sm:$0xff]
  %v61 = vld [vmem:[%s0 + $0x40] sm:$0xff]
  %v62 = vld [vmem:[%s0 + $0x48] sm:$0xff]
  %v63 = vld [vmem:[%s0 + $0x50] sm:$0xff]
  %v64 = vld [vmem:[%s0 + $0x58] sm:$0xff]
  %v65 = vld [vmem:[%s0 + $0x60] sm:$0xff]
  %v66 = vld [vmem:[%s0 + $0x68] sm:$0xff]
  %v67 = vld [vmem:[%s0 + $0x70] sm:$0xff]
  %v68 = vld [vmem:[%s0 + $0x78] sm:$0xff]
  %v69 = vld [vmem:[%s0 + $0x80] sm:$0xff]
  %v70 = vld [vmem:[%s0 + $0x88] sm:$0xff]
  %v71 = vld [vmem:[%s0 + $0x90] sm:$0xff]
  %v72 = vld [vmem:[%s0 + $0x98] sm:$0xff]
  %v73 = vld [vmem:[%s0 + $0xa0] sm:$0xff]
  %v74 = vld [vmem:[%s0 + $0xa8] sm:$0xff]
  %v75 = vld [vmem:[%s0 + $0xb0] sm:$0xff]
  %v76 = vld [vmem:[%s0 + $0xb8] sm:$0xff]
  %v77 = vld [vmem:[%s0 + $0xc0] sm:$0xff]
  %v78 = vld [vmem:[%s0 + $0xc8] sm:$0xff]
  %v79 = vld [vmem:[%s0 + $0xd0] sm:$0xff]
  %v80 = vld [vmem:[%s0 + $0xd8] sm:$0xff]
  %v81 = vld [vmem:[%s0 + $0xe0] sm:$0xff]
  %v82 = vld [vmem:[%s0 + $0xe8] sm:$0xff]
  %v83 = vld [vmem:[%s0 + $0xf0] sm:$0xff]
  %v84 = vld [vmem:[%s0 + $0xf8] sm:$0xff]
  %v85 = vld [vmem:[%s0 + $0x100] sm:$0xff]
  %v86 = vld [vmem:[%s0 + $0x108] sm:$0xff]
  %v87 = vld [vmem:[%s0 + $0x110] sm:$0xff]
  %v88 = vld [vmem:[%s0 + $0x118] sm:$0xff]
  %v89 = vld [vmem:[%s0 + $0x120] sm:$0xff]
  %v90 = vld [vmem:[%s0 + $0x128] sm:$0xff]
  %v91 = vld [vmem:[%s0 + $0x130] sm:$0xff]
  %v92 = vld [vmem:[%s0 + $0x138] sm:$0xff]
  %v93 = vld [vmem:[%s0 + $0x140] sm:$0xff]
  %v94 = vld [vmem:[%s0 + $0x148] sm:$0xff]
  %v95 = vld [vmem:[%s0 + $0x150] sm:$0xff]
  %v96 = vld [vmem:[%s0 + $0x158] sm:$0xff]
  %v97 = vld [vmem:[%s0 + $0x160] sm:$0xff]
  %v98 = vld [vmem:[%s0 + $0x168] sm:$0xff]
  %v99 = vld [vmem:[%s0 + $0x170] sm:$0xff]
  %v100 = vld [vmem:[%s0 + $0x178] sm:$0xff]
  %v101 = vld [vmem:[%s0 + $0x180] sm:$0xff]
  %v102 = vld [vmem:[%s0 + $0x188] sm:$0xff]
  %v103 = vld [vmem:[%s0 + $0x190] sm:$0xff]
  %v104 = vld [vmem:[%s0 + $0x198] sm:$0xff]
  %v105 = vld [vmem:[%s0 + $0x1a0] sm:$0xff]
  %v106 = vld [vmem:[%s0 + $0x1a8] sm:$0xff]
  %v107 = vld [vmem:[%s0 + $0x1b0] sm:$0xff]
  %v108 = vld [vmem:[%s0 + $0x1b8] sm:$0xff]
  %v109 = vld [vmem:[%s0 + $0x1c0] sm:$0xff]
  %v110 = vld [vmem:[%s0 + $0x1c8] sm:$0xff]
  %v111 = vld [vmem:[%s0 + $0x1d0] sm:$0xff]
  %v112 = vld [vmem:[%s0 + $0x1d8] sm:$0xff]
  %v113 = vld [vmem:[%s0 + $0x1e0] sm:$0xff]
  %v114 = vld [vmem:[%s0 + $0x1e8] sm:$0xff]
  %v115 = vld [vmem:[%s0 + $0x1f0] sm:$0xff]
  %v116 = vld [vmem:[%s0 + $0x1f8] sm:$0xff]
  %v117 = vld [vmem:[%s1] sm:$0xf]
  %v118 = vld [vmem:[%s1 + $0x4] sm:$0xf]
  %v119 = vld [vmem:[%s1 + $0x8] sm:$0xf]
  %v120 = vld [vmem:[%s1 + $0xc] sm:$0xf]
  %v121 = vld [vmem:[%s1 + $0x10] sm:$0xf]
  %v122 = vld [vmem:[%s1 + $0x14] sm:$0xf]
  %v123 = vld [vmem:[%s1 + $0x18] sm:$0xf]
  %v124 = vld [vmem:[%s1 + $0x1c] sm:$0xf]
  %v125 = vld [vmem:[%s1 + $0x20] sm:$0xf]
  %v126 = vld [vmem:[%s1 + $0x24] sm:$0xf]
  %v127 = vld [vmem:[%s1 + $0x28] sm:$0xf]
  %v128 = vld [vmem:[%s1 + $0x2c] sm:$0xf]
  %v129 = vld [vmem:[%s1 + $0x30] sm:$0xf]
  %v130 = vld [vmem:[%s1 + $0x34] sm:$0xf]
  %v131 = vld [vmem:[%s1 + $0x38] sm:$0xf]
  %v132 = vld [vmem:[%s1 + $0x3c] sm:$0xf]
  %v133 = vld [vmem:[%s1 + $0x40] sm:$0xf]
  %v134 = vld [vmem:[%s1 + $0x44] sm:$0xf]
  %v135 = vld [vmem:[%s1 + $0x48] sm:$0xf]
  %v136 = vld [vmem:[%s1 + $0x4c] sm:$0xf]
  %v137 = vld [vmem:[%s1 + $0x50] sm:$0xf]
  %v138 = vld [vmem:[%s1 + $0x54] sm:$0xf]
  %v139 = vld [vmem:[%s1 + $0x58] sm:$0xf]
  %v140 = vld [vmem:[%s1 + $0x5c] sm:$0xf]
  %v141 = vld [vmem:[%s1 + $0x60] sm:$0xf]
  %v142 = vld [vmem:[%s1 + $0x64] sm:$0xf]
  %v143 = vld [vmem:[%s1 + $0x68] sm:$0xf]
  %v144 = vld [vmem:[%s1 + $0x6c] sm:$0xf]
  %v145 = vld [vmem:[%s1 + $0x70] sm:$0xf]
  %v146 = vld [vmem:[%s1 + $0x74] sm:$0xf]
  %v147 = vld [vmem:[%s1 + $0x78] sm:$0xf]
  %v148 = vld [vmem:[%s1 + $0x7c] sm:$0xf]
  %v149 = vld [vmem:[%s1 + $0x80] sm:$0xf]
  %v150 = vld [vmem:[%s1 + $0x84] sm:$0xf]
  %v151 = vld [vmem:[%s1 + $0x88] sm:$0xf]
  %v152 = vld [vmem:[%s1 + $0x8c] sm:$0xf]
  %v153 = vld [vmem:[%s1 + $0x90] sm:$0xf]
  %v154 = vld [vmem:[%s1 + $0x94] sm:$0xf]
  %v155 = vld [vmem:[%s1 + $0x98] sm:$0xf]
  %v156 = vld [vmem:[%s1 + $0x9c] sm:$0xf]
  %v157 = vld [vmem:[%s1 + $0xa0] sm:$0xf]
  %v158 = vld [vmem:[%s1 + $0xa4] sm:$0xf]
  %v159 = vld [vmem:[%s1 + $0xa8] sm:$0xf]
  %v160 = vld [vmem:[%s1 + $0xac] sm:$0xf]
  %v161 = vld [vmem:[%s1 + $0xb0] sm:$0xf]
  %v162 = vld [vmem:[%s1 + $0xb4] sm:$0xf]
  %v163 = vld [vmem:[%s1 + $0xb8] sm:$0xf]
  %v164 = vld [vmem:[%s1 + $0xbc] sm:$0xf]
  %v165 = vld [vmem:[%s1 + $0xc0] sm:$0xf]
  %v166 = vld [vmem:[%s1 + $0xc4] sm:$0xf]
  %v167 = vld [vmem:[%s1 + $0xc8] sm:$0xf]
  %v168 = vld [vmem:[%s1 + $0xcc] sm:$0xf]
  %v169 = vld [vmem:[%s1 + $0xd0] sm:$0xf]
  %v170 = vld [vmem:[%s1 + $0xd4] sm:$0xf]
  %v171 = vld [vmem:[%s1 + $0xd8] sm:$0xf]
  %v172 = vld [vmem:[%s1 + $0xdc] sm:$0xf]
  %v173 = vld [vmem:[%s1 + $0xe0] sm:$0xf]
  %v174 = vld [vmem:[%s1 + $0xe4] sm:$0xf]
  %v175 = vld [vmem:[%s1 + $0xe8] sm:$0xf]
  %v176 = vld [vmem:[%s1 + $0xec] sm:$0xf]
  %v177 = vld [vmem:[%s1 + $0xf0] sm:$0xf]
  %v178 = vld [vmem:[%s1 + $0xf4] sm:$0xf]
  %v179 = vld [vmem:[%s1 + $0xf8] sm:$0xf]
  %v180 = vld [vmem:[%s1 + $0xfc] sm:$0xf]
  %v181 = vld [vmem:[%s1 + $0x100] sm:$0xf]
  %v182 = vld [vmem:[%s1 + $0x104] sm:$0xf]
  %v183 = vld [vmem:[%s1 + $0x108] sm:$0xf]
  %v184 = vld [vmem:[%s1 + $0x10c] sm:$0xf]
  %v185 = vld [vmem:[%s1 + $0x110] sm:$0xf]
  %v186 = vld [vmem:[%s1 + $0x114] sm:$0xf]
  %v187 = vld [vmem:[%s1 + $0x118] sm:$0xf]
  %v188 = vld [vmem:[%s1 + $0x11c] sm:$0xf]
  %v189 = vld [vmem:[%s1 + $0x120] sm:$0xf]
  %v190 = vld [vmem:[%s1 + $0x124] sm:$0xf]
  %v191 = vld [vmem:[%s1 + $0x128] sm:$0xf]
  %v192 = vld [vmem:[%s1 + $0x12c] sm:$0xf]
  %v193 = vld [vmem:[%s1 + $0x130] sm:$0xf]
  %v194 = vld [vmem:[%s1 + $0x134] sm:$0xf]
  %v195 = vld [vmem:[%s1 + $0x138] sm:$0xf]
  %v196 = vld [vmem:[%s1 + $0x13c] sm:$0xf]
  %v197 = vld [vmem:[%s1 + $0x140] sm:$0xf]
  %v198 = vld [vmem:[%s1 + $0x144] sm:$0xf]
  %v199 = vld [vmem:[%s1 + $0x148] sm:$0xf]
  %v200 = vld [vmem:[%s1 + $0x14c] sm:$0xf]
  %v201 = vld [vmem:[%s1 + $0x150] sm:$0xf]
  %v202 = vld [vmem:[%s1 + $0x154] sm:$0xf]
  %v203 = vld [vmem:[%s1 + $0x158] sm:$0xf]
  %v204 = vld [vmem:[%s1 + $0x15c] sm:$0xf]
  %v205 = vld [vmem:[%s1 + $0x160] sm:$0xf]
  %v206 = vld [vmem:[%s1 + $0x164] sm:$0xf]
  %v207 = vld [vmem:[%s1 + $0x168] sm:$0xf]
  %v208 = vld [vmem:[%s1 + $0x16c] sm:$0xf]
  %v209 = vld [vmem:[%s1 + $0x170] sm:$0xf]
  %v210 = vld [vmem:[%s1 + $0x174] sm:$0xf]
  %v211 = vld [vmem:[%s1 + $0x178] sm:$0xf]
  %v212 = vld [vmem:[%s1 + $0x17c] sm:$0xf]
  %v213 = vld [vmem:[%s1 + $0x180] sm:$0xf]
  %v214 = vld [vmem:[%s1 + $0x184] sm:$0xf]
  %v215 = vld [vmem:[%s1 + $0x188] sm:$0xf]
  %v216 = vld [vmem:[%s1 + $0x18c] sm:$0xf]
  %v217 = vld [vmem:[%s1 + $0x190] sm:$0xf]
  %v218 = vld [vmem:[%s1 + $0x194] sm:$0xf]
  %v219 = vld [vmem:[%s1 + $0x198] sm:$0xf]
  %v220 = vld [vmem:[%s1 + $0x19c] sm:$0xf]
  %v221 = vld [vmem:[%s1 + $0x1a0] sm:$0xf]
  %v222 = vld [vmem:[%s1 + $0x1a4] sm:$0xf]
  %v223 = vld [vmem:[%s1 + $0x1a8] sm:$0xf]
  %v224 = vld [vmem:[%s1 + $0x1ac] sm:$0xf]
  %v225 = vld [vmem:[%s1 + $0x1b0] sm:$0xf]
  %v226 = vld [vmem:[%s1 + $0x1b4] sm:$0xf]
  %v227 = vld [vmem:[%s1 + $0x1b8] sm:$0xf]
  %v228 = vld [vmem:[%s1 + $0x1bc] sm:$0xf]
  %v229 = vld [vmem:[%s1 + $0x1c0] sm:$0xf]
  %v230 = vld [vmem:[%s1 + $0x1c4] sm:$0xf]
  %v231 = vld [vmem:[%s1 + $0x1c8] sm:$0xf]
  %v232 = vld [vmem:[%s1 + $0x1cc] sm:$0xf]
  %v233 = vld [vmem:[%s1 + $0x1d0] sm:$0xf]
  %v234 = vld [vmem:[%s1 + $0x1d4] sm:$0xf]
  %v235 = vld [vmem:[%s1 + $0x1d8] sm:$0xf]
  %v236 = vld [vmem:[%s1 + $0x1dc] sm:$0xf]
  %v237 = vld [vmem:[%s1 + $0x1e0] sm:$0xf]
  %v238 = vld [vmem:[%s1 + $0x1e4] sm:$0xf]
  %v239 = vld [vmem:[%s1 + $0x1e8] sm:$0xf]
  %v240 = vld [vmem:[%s1 + $0x1ec] sm:$0xf]
  %v241 = vld [vmem:[%s1 + $0x1f0] sm:$0xf]
  %v242 = vld [vmem:[%s1 + $0x1f4] sm:$0xf]
  %v243 = vld [vmem:[%s1 + $0x1f8] sm:$0xf]
  %v244 = vld [vmem:[%s1 + $0x1fc] sm:$0xf]
  %v309 = vunpack.c.l.b16 %v53
  %v310 = vunpack.c.h.b16 %v53
  %v311 = vunpack.c.l.b16 %v54
  %v312 = vunpack.c.h.b16 %v54
  %v313 = vunpack.c.l.b16 %v55
  %v314 = vunpack.c.h.b16 %v55
  %v315 = vunpack.c.l.b16 %v56
  %v316 = vunpack.c.h.b16 %v56
  %v317 = vunpack.c.l.b16 %v57
  %v318 = vunpack.c.h.b16 %v57
  %v319 = vunpack.c.l.b16 %v58
  %v320 = vunpack.c.h.b16 %v58
  %v321 = vunpack.c.l.b16 %v59
  %v322 = vunpack.c.h.b16 %v59
  %v323 = vunpack.c.l.b16 %v60
  %v324 = vunpack.c.h.b16 %v60
  %v325 = vunpack.c.l.b16 %v61
  %v326 = vunpack.c.h.b16 %v61
  %v327 = vunpack.c.l.b16 %v62
  %v328 = vunpack.c.h.b16 %v62
  %v329 = vunpack.c.l.b16 %v63
  %v330 = vunpack.c.h.b16 %v63
  %v331 = vunpack.c.l.b16 %v64
  %v332 = vunpack.c.h.b16 %v64
  %v333 = vunpack.c.l.b16 %v65
  %v334 = vunpack.c.h.b16 %v65
  %v335 = vunpack.c.l.b16 %v66
  %v336 = vunpack.c.h.b16 %v66
  %v337 = vunpack.c.l.b16 %v67
  %v338 = vunpack.c.h.b16 %v67
  %v339 = vunpack.c.l.b16 %v68
  %v340 = vunpack.c.h.b16 %v68
  %v341 = vunpack.c.l.b16 %v69
  %v342 = vunpack.c.h.b16 %v69
  %v343 = vunpack.c.l.b16 %v70
  %v344 = vunpack.c.h.b16 %v70
  %v345 = vunpack.c.l.b16 %v71
  %v346 = vunpack.c.h.b16 %v71
  %v347 = vunpack.c.l.b16 %v72
  %v348 = vunpack.c.h.b16 %v72
  %v349 = vunpack.c.l.b16 %v73
  %v350 = vunpack.c.h.b16 %v73
  %v351 = vunpack.c.l.b16 %v74
  %v352 = vunpack.c.h.b16 %v74
  %v353 = vunpack.c.l.b16 %v75
  %v354 = vunpack.c.h.b16 %v75
  %v355 = vunpack.c.l.b16 %v76
  %v356 = vunpack.c.h.b16 %v76
  %v357 = vunpack.c.l.b16 %v77
  %v358 = vunpack.c.h.b16 %v77
  %v359 = vunpack.c.l.b16 %v78
  %v360 = vunpack.c.h.b16 %v78
  %v361 = vunpack.c.l.b16 %v79
  %v362 = vunpack.c.h.b16 %v79
  %v363 = vunpack.c.l.b16 %v80
  %v364 = vunpack.c.h.b16 %v80
  %v365 = vunpack.c.l.b16 %v81
  %v366 = vunpack.c.h.b16 %v81
  %v367 = vunpack.c.l.b16 %v82
  %v368 = vunpack.c.h.b16 %v82
  %v369 = vunpack.c.l.b16 %v83
  %v370 = vunpack.c.h.b16 %v83
  %v371 = vunpack.c.l.b16 %v84
  %v372 = vunpack.c.h.b16 %v84
  %v373 = vunpack.c.l.b16 %v85
  %v374 = vunpack.c.h.b16 %v85
  %v375 = vunpack.c.l.b16 %v86
  %v376 = vunpack.c.h.b16 %v86
  %v377 = vunpack.c.l.b16 %v87
  %v378 = vunpack.c.h.b16 %v87
  %v379 = vunpack.c.l.b16 %v88
  %v380 = vunpack.c.h.b16 %v88
  %v381 = vunpack.c.l.b16 %v89
  %v382 = vunpack.c.h.b16 %v89
  %v383 = vunpack.c.l.b16 %v90
  %v384 = vunpack.c.h.b16 %v90
  %v385 = vunpack.c.l.b16 %v91
  %v386 = vunpack.c.h.b16 %v91
  %v387 = vunpack.c.l.b16 %v92
  %v388 = vunpack.c.h.b16 %v92
  %v389 = vunpack.c.l.b16 %v93
  %v390 = vunpack.c.h.b16 %v93
  %v391 = vunpack.c.l.b16 %v94
  %v392 = vunpack.c.h.b16 %v94
  %v393 = vunpack.c.l.b16 %v95
  %v394 = vunpack.c.h.b16 %v95
  %v395 = vunpack.c.l.b16 %v96
  %v396 = vunpack.c.h.b16 %v96
  %v397 = vunpack.c.l.b16 %v97
  %v398 = vunpack.c.h.b16 %v97
  %v399 = vunpack.c.l.b16 %v98
  %v400 = vunpack.c.h.b16 %v98
  %v401 = vunpack.c.l.b16 %v99
  %v402 = vunpack.c.h.b16 %v99
  %v403 = vunpack.c.l.b16 %v100
  %v404 = vunpack.c.h.b16 %v100
  %v405 = vunpack.c.l.b16 %v101
  %v406 = vunpack.c.h.b16 %v101
  %v407 = vunpack.c.l.b16 %v102
  %v408 = vunpack.c.h.b16 %v102
  %v409 = vunpack.c.l.b16 %v103
  %v410 = vunpack.c.h.b16 %v103
  %v411 = vunpack.c.l.b16 %v104
  %v412 = vunpack.c.h.b16 %v104
  %v413 = vunpack.c.l.b16 %v105
  %v414 = vunpack.c.h.b16 %v105
  %v415 = vunpack.c.l.b16 %v106
  %v416 = vunpack.c.h.b16 %v106
  %v417 = vunpack.c.l.b16 %v107
  %v418 = vunpack.c.h.b16 %v107
  %v419 = vunpack.c.l.b16 %v108
  %v420 = vunpack.c.h.b16 %v108
  %v421 = vunpack.c.l.b16 %v109
  %v422 = vunpack.c.h.b16 %v109
  %v423 = vunpack.c.l.b16 %v110
  %v424 = vunpack.c.h.b16 %v110
  %v425 = vunpack.c.l.b16 %v111
  %v426 = vunpack.c.h.b16 %v111
  %v427 = vunpack.c.l.b16 %v112
  %v428 = vunpack.c.h.b16 %v112
  %v429 = vunpack.c.l.b16 %v113
  %v430 = vunpack.c.h.b16 %v113
  %v431 = vunpack.c.l.b16 %v114
  %v432 = vunpack.c.h.b16 %v114
  %v433 = vunpack.c.l.b16 %v115
  %v434 = vunpack.c.h.b16 %v115
  %v435 = vunpack.c.l.b16 %v116
  %v436 = vunpack.c.h.b16 %v116
  %v437 = vpack.c.b16 %v317, %v309
  %v438 = vpack.c.b16 %v318, %v310
  %v439 = vpack.c.b16 %v319, %v311
  %v440 = vpack.c.b16 %v320, %v312
  %v441 = vpack.c.b16 %v321, %v313
  %v442 = vpack.c.b16 %v322, %v314
  %v443 = vpack.c.b16 %v323, %v315
  %v444 = vpack.c.b16 %v324, %v316
  %v445 = vpack.c.b16 %v333, %v325
  %v446 = vpack.c.b16 %v334, %v326
  %v447 = vpack.c.b16 %v335, %v327
  %v448 = vpack.c.b16 %v336, %v328
  %v449 = vpack.c.b16 %v337, %v329
  %v450 = vpack.c.b16 %v338, %v330
  %v451 = vpack.c.b16 %v339, %v331
  %v452 = vpack.c.b16 %v340, %v332
  %v453 = vpack.c.b16 %v349, %v341
  %v454 = vpack.c.b16 %v350, %v342
  %v455 = vpack.c.b16 %v351, %v343
  %v456 = vpack.c.b16 %v352, %v344
  %v457 = vpack.c.b16 %v353, %v345
  %v458 = vpack.c.b16 %v354, %v346
  %v459 = vpack.c.b16 %v355, %v347
  %v460 = vpack.c.b16 %v356, %v348
  %v461 = vpack.c.b16 %v365, %v357
  %v462 = vpack.c.b16 %v366, %v358
  %v463 = vpack.c.b16 %v367, %v359
  %v464 = vpack.c.b16 %v368, %v360
  %v465 = vpack.c.b16 %v369, %v361
  %v466 = vpack.c.b16 %v370, %v362
  %v467 = vpack.c.b16 %v371, %v363
  %v468 = vpack.c.b16 %v372, %v364
  %v469 = vpack.c.b16 %v381, %v373
  %v470 = vpack.c.b16 %v382, %v374
  %v471 = vpack.c.b16 %v383, %v375
  %v472 = vpack.c.b16 %v384, %v376
  %v473 = vpack.c.b16 %v385, %v377
  %v474 = vpack.c.b16 %v386, %v378
  %v475 = vpack.c.b16 %v387, %v379
  %v476 = vpack.c.b16 %v388, %v380
  %v477 = vpack.c.b16 %v397, %v389
  %v478 = vpack.c.b16 %v398, %v390
  %v479 = vpack.c.b16 %v399, %v391
  %v480 = vpack.c.b16 %v400, %v392
  %v481 = vpack.c.b16 %v401, %v393
  %v482 = vpack.c.b16 %v402, %v394
  %v483 = vpack.c.b16 %v403, %v395
  %v484 = vpack.c.b16 %v404, %v396
  %v485 = vpack.c.b16 %v413, %v405
  %v486 = vpack.c.b16 %v414, %v406
  %v487 = vpack.c.b16 %v415, %v407
  %v488 = vpack.c.b16 %v416, %v408
  %v489 = vpack.c.b16 %v417, %v409
  %v490 = vpack.c.b16 %v418, %v410
  %v491 = vpack.c.b16 %v419, %v411
  %v492 = vpack.c.b16 %v420, %v412
  %v493 = vpack.c.b16 %v429, %v421
  %v494 = vpack.c.b16 %v430, %v422
  %v495 = vpack.c.b16 %v431, %v423
  %v496 = vpack.c.b16 %v432, %v424
  %v497 = vpack.c.b16 %v433, %v425
  %v498 = vpack.c.b16 %v434, %v426
  %v499 = vpack.c.b16 %v435, %v427
  %v500 = vpack.c.b16 %v436, %v428
  %v693 = vunpack.c.l.b16 %v117
  %v694 = vunpack.c.l.b16 %v118
  %v695 = vunpack.c.l.b16 %v119
  %v696 = vunpack.c.l.b16 %v120
  %v697 = vunpack.c.l.b16 %v121
  %v698 = vunpack.c.l.b16 %v122
  %v699 = vunpack.c.l.b16 %v123
  %v700 = vunpack.c.l.b16 %v124
  %v701 = vunpack.c.l.b16 %v125
  %v702 = vunpack.c.l.b16 %v126
  %v703 = vunpack.c.l.b16 %v127
  %v704 = vunpack.c.l.b16 %v128
  %v705 = vunpack.c.l.b16 %v129
  %v706 = vunpack.c.l.b16 %v130
  %v707 = vunpack.c.l.b16 %v131
  %v708 = vunpack.c.l.b16 %v132
  %v709 = vunpack.c.l.b16 %v133
  %v710 = vunpack.c.l.b16 %v134
  %v711 = vunpack.c.l.b16 %v135
  %v712 = vunpack.c.l.b16 %v136
  %v713 = vunpack.c.l.b16 %v137
  %v714 = vunpack.c.l.b16 %v138
  %v715 = vunpack.c.l.b16 %v139
  %v716 = vunpack.c.l.b16 %v140
  %v717 = vunpack.c.l.b16 %v141
  %v718 = vunpack.c.l.b16 %v142
  %v719 = vunpack.c.l.b16 %v143
  %v720 = vunpack.c.l.b16 %v144
  %v721 = vunpack.c.l.b16 %v145
  %v722 = vunpack.c.l.b16 %v146
  %v723 = vunpack.c.l.b16 %v147
  %v724 = vunpack.c.l.b16 %v148
  %v725 = vunpack.c.l.b16 %v149
  %v726 = vunpack.c.l.b16 %v150
  %v727 = vunpack.c.l.b16 %v151
  %v728 = vunpack.c.l.b16 %v152
  %v729 = vunpack.c.l.b16 %v153
  %v730 = vunpack.c.l.b16 %v154
  %v731 = vunpack.c.l.b16 %v155
  %v732 = vunpack.c.l.b16 %v156
  %v733 = vunpack.c.l.b16 %v157
  %v734 = vunpack.c.l.b16 %v158
  %v735 = vunpack.c.l.b16 %v159
  %v736 = vunpack.c.l.b16 %v160
  %v737 = vunpack.c.l.b16 %v161
  %v738 = vunpack.c.l.b16 %v162
  %v739 = vunpack.c.l.b16 %v163
  %v740 = vunpack.c.l.b16 %v164
  %v741 = vunpack.c.l.b16 %v165
  %v742 = vunpack.c.l.b16 %v166
  %v743 = vunpack.c.l.b16 %v167
  %v744 = vunpack.c.l.b16 %v168
  %v745 = vunpack.c.l.b16 %v169
  %v746 = vunpack.c.l.b16 %v170
  %v747 = vunpack.c.l.b16 %v171
  %v748 = vunpack.c.l.b16 %v172
  %v749 = vunpack.c.l.b16 %v173
  %v750 = vunpack.c.l.b16 %v174
  %v751 = vunpack.c.l.b16 %v175
  %v752 = vunpack.c.l.b16 %v176
  %v753 = vunpack.c.l.b16 %v177
  %v754 = vunpack.c.l.b16 %v178
  %v755 = vunpack.c.l.b16 %v179
  %v756 = vunpack.c.l.b16 %v180
  %v757 = vunpack.c.l.b16 %v181
  %v758 = vunpack.c.l.b16 %v182
  %v759 = vunpack.c.l.b16 %v183
  %v760 = vunpack.c.l.b16 %v184
  %v761 = vunpack.c.l.b16 %v185
  %v762 = vunpack.c.l.b16 %v186
  %v763 = vunpack.c.l.b16 %v187
  %v764 = vunpack.c.l.b16 %v188
  %v765 = vunpack.c.l.b16 %v189
  %v766 = vunpack.c.l.b16 %v190
  %v767 = vunpack.c.l.b16 %v191
  %v768 = vunpack.c.l.b16 %v192
  %v769 = vunpack.c.l.b16 %v193
  %v770 = vunpack.c.l.b16 %v194
  %v771 = vunpack.c.l.b16 %v195
  %v772 = vunpack.c.l.b16 %v196
  %v773 = vunpack.c.l.b16 %v197
  %v774 = vunpack.c.l.b16 %v198
  %v775 = vunpack.c.l.b16 %v199
  %v776 = vunpack.c.l.b16 %v200
  %v777 = vunpack.c.l.b16 %v201
  %v778 = vunpack.c.l.b16 %v202
  %v779 = vunpack.c.l.b16 %v203
  %v780 = vunpack.c.l.b16 %v204
  %v781 = vunpack.c.l.b16 %v205
  %v782 = vunpack.c.l.b16 %v206
  %v783 = vunpack.c.l.b16 %v207
  %v784 = vunpack.c.l.b16 %v208
  %v785 = vunpack.c.l.b16 %v209
  %v786 = vunpack.c.l.b16 %v210
  %v787 = vunpack.c.l.b16 %v211
  %v788 = vunpack.c.l.b16 %v212
  %v789 = vunpack.c.l.b16 %v213
  %v790 = vunpack.c.l.b16 %v214
  %v791 = vunpack.c.l.b16 %v215
  %v792 = vunpack.c.l.b16 %v216
  %v793 = vunpack.c.l.b16 %v217
  %v794 = vunpack.c.l.b16 %v218
  %v795 = vunpack.c.l.b16 %v219
  %v796 = vunpack.c.l.b16 %v220
  %v797 = vunpack.c.l.b16 %v221
  %v798 = vunpack.c.l.b16 %v222
  %v799 = vunpack.c.l.b16 %v223
  %v800 = vunpack.c.l.b16 %v224
  %v801 = vunpack.c.l.b16 %v225
  %v802 = vunpack.c.l.b16 %v226
  %v803 = vunpack.c.l.b16 %v227
  %v804 = vunpack.c.l.b16 %v228
  %v805 = vunpack.c.l.b16 %v229
  %v806 = vunpack.c.l.b16 %v230
  %v807 = vunpack.c.l.b16 %v231
  %v808 = vunpack.c.l.b16 %v232
  %v809 = vunpack.c.l.b16 %v233
  %v810 = vunpack.c.l.b16 %v234
  %v811 = vunpack.c.l.b16 %v235
  %v812 = vunpack.c.l.b16 %v236
  %v813 = vunpack.c.l.b16 %v237
  %v814 = vunpack.c.l.b16 %v238
  %v815 = vunpack.c.l.b16 %v239
  %v816 = vunpack.c.l.b16 %v240
  %v817 = vunpack.c.l.b16 %v241
  %v818 = vunpack.c.l.b16 %v242
  %v819 = vunpack.c.l.b16 %v243
  %v820 = vunpack.c.l.b16 %v244
  %v821 = vpack.c.b16 %v694, %v693
  %v822 = vpack.c.b16 %v696, %v695
  %v823 = vpack.c.b16 %v698, %v697
  %v824 = vpack.c.b16 %v700, %v699
  %v825 = vpack.c.b16 %v702, %v701
  %v826 = vpack.c.b16 %v704, %v703
  %v827 = vpack.c.b16 %v706, %v705
  %v828 = vpack.c.b16 %v708, %v707
  %v829 = vpack.c.b16 %v710, %v709
  %v830 = vpack.c.b16 %v712, %v711
  %v831 = vpack.c.b16 %v714, %v713
  %v832 = vpack.c.b16 %v716, %v715
  %v833 = vpack.c.b16 %v718, %v717
  %v834 = vpack.c.b16 %v720, %v719
  %v835 = vpack.c.b16 %v722, %v721
  %v836 = vpack.c.b16 %v724, %v723
  %v837 = vpack.c.b16 %v726, %v725
  %v838 = vpack.c.b16 %v728, %v727
  %v839 = vpack.c.b16 %v730, %v729
  %v840 = vpack.c.b16 %v732, %v731
  %v841 = vpack.c.b16 %v734, %v733
  %v842 = vpack.c.b16 %v736, %v735
  %v843 = vpack.c.b16 %v738, %v737
  %v844 = vpack.c.b16 %v740, %v739
  %v845 = vpack.c.b16 %v742, %v741
  %v846 = vpack.c.b16 %v744, %v743
  %v847 = vpack.c.b16 %v746, %v745
  %v848 = vpack.c.b16 %v748, %v747
  %v849 = vpack.c.b16 %v750, %v749
  %v850 = vpack.c.b16 %v752, %v751
  %v851 = vpack.c.b16 %v754, %v753
  %v852 = vpack.c.b16 %v756, %v755
  %v853 = vpack.c.b16 %v758, %v757
  %v854 = vpack.c.b16 %v760, %v759
  %v855 = vpack.c.b16 %v762, %v761
  %v856 = vpack.c.b16 %v764, %v763
  %v857 = vpack.c.b16 %v766, %v765
  %v858 = vpack.c.b16 %v768, %v767
  %v859 = vpack.c.b16 %v770, %v769
  %v860 = vpack.c.b16 %v772, %v771
  %v861 = vpack.c.b16 %v774, %v773
  %v862 = vpack.c.b16 %v776, %v775
  %v863 = vpack.c.b16 %v778, %v777
  %v864 = vpack.c.b16 %v780, %v779
  %v865 = vpack.c.b16 %v782, %v781
  %v866 = vpack.c.b16 %v784, %v783
  %v867 = vpack.c.b16 %v786, %v785
  %v868 = vpack.c.b16 %v788, %v787
  %v869 = vpack.c.b16 %v790, %v789
  %v870 = vpack.c.b16 %v792, %v791
  %v871 = vpack.c.b16 %v794, %v793
  %v872 = vpack.c.b16 %v796, %v795
  %v873 = vpack.c.b16 %v798, %v797
  %v874 = vpack.c.b16 %v800, %v799
  %v875 = vpack.c.b16 %v802, %v801
  %v876 = vpack.c.b16 %v804, %v803
  %v877 = vpack.c.b16 %v806, %v805
  %v878 = vpack.c.b16 %v808, %v807
  %v879 = vpack.c.b16 %v810, %v809
  %v880 = vpack.c.b16 %v812, %v811
  %v881 = vpack.c.b16 %v814, %v813
  %v882 = vpack.c.b16 %v816, %v815
  %v883 = vpack.c.b16 %v818, %v817
  %v884 = vpack.c.b16 %v820, %v819
  %949 = vmatpush.bf16.msra.mxu0 %v828
  %950 = vmatpush.bf16.msra.mxu0 %v827
  %951 = vmatpush.bf16.msra.mxu0 %v826
  %952 = vmatpush.bf16.msra.mxu0 %v825
  %953 = vmatpush.bf16.msra.mxu0 %v824
  %954 = vmatpush.bf16.msra.mxu0 %v823
  %955 = vmatpush.bf16.msra.mxu0 %v822
  %956 = vmatpush.bf16.msra.mxu0 %v821
  %957 = vmatmul.bf16.gmra.mxu0 %v437
  %v958 = vpop.f32.mrf.mxu0
  %v959 = vadd.f32 0.0, %v958
  %v960 = vpop.f32.mrf.mxu0
  %v961 = vadd.f32 0.0, %v960
  %962 = vmatmul.bf16.gmra.mxu0 %v445
  %v963 = vpop.f32.mrf.mxu0
  %v964 = vadd.f32 0.0, %v963
  %v965 = vpop.f32.mrf.mxu0
  %v966 = vadd.f32 0.0, %v965
  %967 = vmatmul.bf16.gmra.mxu0 %v453
  %v968 = vpop.f32.mrf.mxu0
  %v969 = vadd.f32 0.0, %v968
  %v970 = vpop.f32.mrf.mxu0
  %v971 = vadd.f32 0.0, %v970
  %972 = vmatmul.bf16.gmra.mxu0 %v461
  %v973 = vpop.f32.mrf.mxu0
  %v974 = vadd.f32 0.0, %v973
  %v975 = vpop.f32.mrf.mxu0
  %v976 = vadd.f32 0.0, %v975
  %977 = vmatmul.bf16.gmra.mxu0 %v469
  %v978 = vpop.f32.mrf.mxu0
  %v979 = vadd.f32 0.0, %v978
  %v980 = vpop.f32.mrf.mxu0
  %v981 = vadd.f32 0.0, %v980
  %982 = vmatmul.bf16.gmra.mxu0 %v477
  %v983 = vpop.f32.mrf.mxu0
  %v984 = vadd.f32 0.0, %v983
  %v985 = vpop.f32.mrf.mxu0
  %v986 = vadd.f32 0.0, %v985
  %987 = vmatmul.bf16.gmra.mxu0 %v485
  %v988 = vpop.f32.mrf.mxu0
  %v989 = vadd.f32 0.0, %v988
  %v990 = vpop.f32.mrf.mxu0
  %v991 = vadd.f32 0.0, %v990
  %992 = vmatmul.bf16.gmra.mxu0 %v493
  %v993 = vpop.f32.mrf.mxu0
  %v994 = vadd.f32 0.0, %v993
  %v995 = vpop.f32.mrf.mxu0
  %v996 = vadd.f32 0.0, %v995
  %997 = vdwg.mxu0
  %998 = vmatpush.bf16.msra.mxu0 %v836
  %999 = vmatpush.bf16.msra.mxu0 %v835
  %1000 = vmatpush.bf16.msra.mxu0 %v834
  %1001 = vmatpush.bf16.msra.mxu0 %v833
  %1002 = vmatpush.bf16.msra.mxu0 %v832
  %1003 = vmatpush.bf16.msra.mxu0 %v831
  %1004 = vmatpush.bf16.msra.mxu0 %v830
  %1005 = vmatpush.bf16.msra.mxu0 %v829
  %1006 = vmatmul.bf16.gmra.mxu0 %v438
  %v1007 = vpop.f32.mrf.mxu0
  %v1008 = vadd.f32 %v959, %v1007
  %v1009 = vpop.f32.mrf.mxu0
  %v1010 = vadd.f32 %v961, %v1009
  %1011 = vmatmul.bf16.gmra.mxu0 %v446
  %v1012 = vpop.f32.mrf.mxu0
  %v1013 = vadd.f32 %v964, %v1012
  %v1014 = vpop.f32.mrf.mxu0
  %v1015 = vadd.f32 %v966, %v1014
  %1016 = vmatmul.bf16.gmra.mxu0 %v454
  %v1017 = vpop.f32.mrf.mxu0
  %v1018 = vadd.f32 %v969, %v1017
  %v1019 = vpop.f32.mrf.mxu0
  %v1020 = vadd.f32 %v971, %v1019
  %1021 = vmatmul.bf16.gmra.mxu0 %v462
  %v1022 = vpop.f32.mrf.mxu0
  %v1023 = vadd.f32 %v974, %v1022
  %v1024 = vpop.f32.mrf.mxu0
  %v1025 = vadd.f32 %v976, %v1024
  %1026 = vmatmul.bf16.gmra.mxu0 %v470
  %v1027 = vpop.f32.mrf.mxu0
  %v1028 = vadd.f32 %v979, %v1027
  %v1029 = vpop.f32.mrf.mxu0
  %v1030 = vadd.f32 %v981, %v1029
  %1031 = vmatmul.bf16.gmra.mxu0 %v478
  %v1032 = vpop.f32.mrf.mxu0
  %v1033 = vadd.f32 %v984, %v1032
  %v1034 = vpop.f32.mrf.mxu0
  %v1035 = vadd.f32 %v986, %v1034
  %1036 = vmatmul.bf16.gmra.mxu0 %v486
  %v1037 = vpop.f32.mrf.mxu0
  %v1038 = vadd.f32 %v989, %v1037
  %v1039 = vpop.f32.mrf.mxu0
  %v1040 = vadd.f32 %v991, %v1039
  %1041 = vmatmul.bf16.gmra.mxu0 %v494
  %v1042 = vpop.f32.mrf.mxu0
  %v1043 = vadd.f32 %v994, %v1042
  %v1044 = vpop.f32.mrf.mxu0
  %v1045 = vadd.f32 %v996, %v1044
  %1046 = vdwg.mxu0
  %1047 = vmatpush.bf16.msra.mxu0 %v844
  %1048 = vmatpush.bf16.msra.mxu0 %v843
  %1049 = vmatpush.bf16.msra.mxu0 %v842
  %1050 = vmatpush.bf16.msra.mxu0 %v841
  %1051 = vmatpush.bf16.msra.mxu0 %v840
  %1052 = vmatpush.bf16.msra.mxu0 %v839
  %1053 = vmatpush.bf16.msra.mxu0 %v838
  %1054 = vmatpush.bf16.msra.mxu0 %v837
  %1055 = vmatmul.bf16.gmra.mxu0 %v439
  %v1056 = vpop.f32.mrf.mxu0
  %v1057 = vadd.f32 %v1008, %v1056
  %v1058 = vpop.f32.mrf.mxu0
  %v1059 = vadd.f32 %v1010, %v1058
  %1060 = vmatmul.bf16.gmra.mxu0 %v447
  %v1061 = vpop.f32.mrf.mxu0
  %v1062 = vadd.f32 %v1013, %v1061
  %v1063 = vpop.f32.mrf.mxu0
  %v1064 = vadd.f32 %v1015, %v1063
  %1065 = vmatmul.bf16.gmra.mxu0 %v455
  %v1066 = vpop.f32.mrf.mxu0
  %v1067 = vadd.f32 %v1018, %v1066
  %v1068 = vpop.f32.mrf.mxu0
  %v1069 = vadd.f32 %v1020, %v1068
  %1070 = vmatmul.bf16.gmra.mxu0 %v463
  %v1071 = vpop.f32.mrf.mxu0
  %v1072 = vadd.f32 %v1023, %v1071
  %v1073 = vpop.f32.mrf.mxu0
  %v1074 = vadd.f32 %v1025, %v1073
  %1075 = vmatmul.bf16.gmra.mxu0 %v471
  %v1076 = vpop.f32.mrf.mxu0
  %v1077 = vadd.f32 %v1028, %v1076
  %v1078 = vpop.f32.mrf.mxu0
  %v1079 = vadd.f32 %v1030, %v1078
  %1080 = vmatmul.bf16.gmra.mxu0 %v479
  %v1081 = vpop.f32.mrf.mxu0
  %v1082 = vadd.f32 %v1033, %v1081
  %v1083 = vpop.f32.mrf.mxu0
  %v1084 = vadd.f32 %v1035, %v1083
  %1085 = vmatmul.bf16.gmra.mxu0 %v487
  %v1086 = vpop.f32.mrf.mxu0
  %v1087 = vadd.f32 %v1038, %v1086
  %v1088 = vpop.f32.mrf.mxu0
  %v1089 = vadd.f32 %v1040, %v1088
  %1090 = vmatmul.bf16.gmra.mxu0 %v495
  %v1091 = vpop.f32.mrf.mxu0
  %v1092 = vadd.f32 %v1043, %v1091
  %v1093 = vpop.f32.mrf.mxu0
  %v1094 = vadd.f32 %v1045, %v1093
  %1095 = vdwg.mxu0
  %1096 = vmatpush.bf16.msra.mxu0 %v852
  %1097 = vmatpush.bf16.msra.mxu0 %v851
  %1098 = vmatpush.bf16.msra.mxu0 %v850
  %1099 = vmatpush.bf16.msra.mxu0 %v849
  %1100 = vmatpush.bf16.msra.mxu0 %v848
  %1101 = vmatpush.bf16.msra.mxu0 %v847
  %1102 = vmatpush.bf16.msra.mxu0 %v846
  %1103 = vmatpush.bf16.msra.mxu0 %v845
  %1104 = vmatmul.bf16.gmra.mxu0 %v440
  %v1105 = vpop.f32.mrf.mxu0
  %v1106 = vadd.f32 %v1057, %v1105
  %v1107 = vpop.f32.mrf.mxu0
  %v1108 = vadd.f32 %v1059, %v1107
  %1109 = vmatmul.bf16.gmra.mxu0 %v448
  %v1110 = vpop.f32.mrf.mxu0
  %v1111 = vadd.f32 %v1062, %v1110
  %v1112 = vpop.f32.mrf.mxu0
  %v1113 = vadd.f32 %v1064, %v1112
  %1114 = vmatmul.bf16.gmra.mxu0 %v456
  %v1115 = vpop.f32.mrf.mxu0
  %v1116 = vadd.f32 %v1067, %v1115
  %v1117 = vpop.f32.mrf.mxu0
  %v1118 = vadd.f32 %v1069, %v1117
  %1119 = vmatmul.bf16.gmra.mxu0 %v464
  %v1120 = vpop.f32.mrf.mxu0
  %v1121 = vadd.f32 %v1072, %v1120
  %v1122 = vpop.f32.mrf.mxu0
  %v1123 = vadd.f32 %v1074, %v1122
  %1124 = vmatmul.bf16.gmra.mxu0 %v472
  %v1125 = vpop.f32.mrf.mxu0
  %v1126 = vadd.f32 %v1077, %v1125
  %v1127 = vpop.f32.mrf.mxu0
  %v1128 = vadd.f32 %v1079, %v1127
  %1129 = vmatmul.bf16.gmra.mxu0 %v480
  %v1130 = vpop.f32.mrf.mxu0
  %v1131 = vadd.f32 %v1082, %v1130
  %v1132 = vpop.f32.mrf.mxu0
  %v1133 = vadd.f32 %v1084, %v1132
  %1134 = vmatmul.bf16.gmra.mxu0 %v488
  %v1135 = vpop.f32.mrf.mxu0
  %v1136 = vadd.f32 %v1087, %v1135
  %v1137 = vpop.f32.mrf.mxu0
  %v1138 = vadd.f32 %v1089, %v1137
  %1139 = vmatmul.bf16.gmra.mxu0 %v496
  %v1140 = vpop.f32.mrf.mxu0
  %v1141 = vadd.f32 %v1092, %v1140
  %v1142 = vpop.f32.mrf.mxu0
  %v1143 = vadd.f32 %v1094, %v1142
  %1144 = vdwg.mxu0
  %1145 = vmatpush.bf16.msra.mxu0 %v860
  %1146 = vmatpush.bf16.msra.mxu0 %v859
  %1147 = vmatpush.bf16.msra.mxu0 %v858
  %1148 = vmatpush.bf16.msra.mxu0 %v857
  %1149 = vmatpush.bf16.msra.mxu0 %v856
  %1150 = vmatpush.bf16.msra.mxu0 %v855
  %1151 = vmatpush.bf16.msra.mxu0 %v854
  %1152 = vmatpush.bf16.msra.mxu0 %v853
  %1153 = vmatmul.bf16.gmra.mxu0 %v441
  %v1154 = vpop.f32.mrf.mxu0
  %v1155 = vadd.f32 %v1106, %v1154
  %v1156 = vpop.f32.mrf.mxu0
  %v1157 = vadd.f32 %v1108, %v1156
  %1158 = vmatmul.bf16.gmra.mxu0 %v449
  %v1159 = vpop.f32.mrf.mxu0
  %v1160 = vadd.f32 %v1111, %v1159
  %v1161 = vpop.f32.mrf.mxu0
  %v1162 = vadd.f32 %v1113, %v1161
  %1163 = vmatmul.bf16.gmra.mxu0 %v457
  %v1164 = vpop.f32.mrf.mxu0
  %v1165 = vadd.f32 %v1116, %v1164
  %v1166 = vpop.f32.mrf.mxu0
  %v1167 = vadd.f32 %v1118, %v1166
  %1168 = vmatmul.bf16.gmra.mxu0 %v465
  %v1169 = vpop.f32.mrf.mxu0
  %v1170 = vadd.f32 %v1121, %v1169
  %v1171 = vpop.f32.mrf.mxu0
  %v1172 = vadd.f32 %v1123, %v1171
  %1173 = vmatmul.bf16.gmra.mxu0 %v473
  %v1174 = vpop.f32.mrf.mxu0
  %v1175 = vadd.f32 %v1126, %v1174
  %v1176 = vpop.f32.mrf.mxu0
  %v1177 = vadd.f32 %v1128, %v1176
  %1178 = vmatmul.bf16.gmra.mxu0 %v481
  %v1179 = vpop.f32.mrf.mxu0
  %v1180 = vadd.f32 %v1131, %v1179
  %v1181 = vpop.f32.mrf.mxu0
  %v1182 = vadd.f32 %v1133, %v1181
  %1183 = vmatmul.bf16.gmra.mxu0 %v489
  %v1184 = vpop.f32.mrf.mxu0
  %v1185 = vadd.f32 %v1136, %v1184
  %v1186 = vpop.f32.mrf.mxu0
  %v1187 = vadd.f32 %v1138, %v1186
  %1188 = vmatmul.bf16.gmra.mxu0 %v497
  %v1189 = vpop.f32.mrf.mxu0
  %v1190 = vadd.f32 %v1141, %v1189
  %v1191 = vpop.f32.mrf.mxu0
  %v1192 = vadd.f32 %v1143, %v1191
  %1193 = vdwg.mxu0
  %1194 = vmatpush.bf16.msra.mxu0 %v868
  %1195 = vmatpush.bf16.msra.mxu0 %v867
  %1196 = vmatpush.bf16.msra.mxu0 %v866
  %1197 = vmatpush.bf16.msra.mxu0 %v865
  %1198 = vmatpush.bf16.msra.mxu0 %v864
  %1199 = vmatpush.bf16.msra.mxu0 %v863
  %1200 = vmatpush.bf16.msra.mxu0 %v862
  %1201 = vmatpush.bf16.msra.mxu0 %v861
  %1202 = vmatmul.bf16.gmra.mxu0 %v442
  %v1203 = vpop.f32.mrf.mxu0
  %v1204 = vadd.f32 %v1155, %v1203
  %v1205 = vpop.f32.mrf.mxu0
  %v1206 = vadd.f32 %v1157, %v1205
  %1207 = vmatmul.bf16.gmra.mxu0 %v450
  %v1208 = vpop.f32.mrf.mxu0
  %v1209 = vadd.f32 %v1160, %v1208
  %v1210 = vpop.f32.mrf.mxu0
  %v1211 = vadd.f32 %v1162, %v1210
  %1212 = vmatmul.bf16.gmra.mxu0 %v458
  %v1213 = vpop.f32.mrf.mxu0
  %v1214 = vadd.f32 %v1165, %v1213
  %v1215 = vpop.f32.mrf.mxu0
  %v1216 = vadd.f32 %v1167, %v1215
  %1217 = vmatmul.bf16.gmra.mxu0 %v466
  %v1218 = vpop.f32.mrf.mxu0
  %v1219 = vadd.f32 %v1170, %v1218
  %v1220 = vpop.f32.mrf.mxu0
  %v1221 = vadd.f32 %v1172, %v1220
  %1222 = vmatmul.bf16.gmra.mxu0 %v474
  %v1223 = vpop.f32.mrf.mxu0
  %v1224 = vadd.f32 %v1175, %v1223
  %v1225 = vpop.f32.mrf.mxu0
  %v1226 = vadd.f32 %v1177, %v1225
  %1227 = vmatmul.bf16.gmra.mxu0 %v482
  %v1228 = vpop.f32.mrf.mxu0
  %v1229 = vadd.f32 %v1180, %v1228
  %v1230 = vpop.f32.mrf.mxu0
  %v1231 = vadd.f32 %v1182, %v1230
  %1232 = vmatmul.bf16.gmra.mxu0 %v490
  %v1233 = vpop.f32.mrf.mxu0
  %v1234 = vadd.f32 %v1185, %v1233
  %v1235 = vpop.f32.mrf.mxu0
  %v1236 = vadd.f32 %v1187, %v1235
  %1237 = vmatmul.bf16.gmra.mxu0 %v498
  %v1238 = vpop.f32.mrf.mxu0
  %v1239 = vadd.f32 %v1190, %v1238
  %v1240 = vpop.f32.mrf.mxu0
  %v1241 = vadd.f32 %v1192, %v1240
  %1242 = vdwg.mxu0
  %1243 = vmatpush.bf16.msra.mxu0 %v876
  %1244 = vmatpush.bf16.msra.mxu0 %v875
  %1245 = vmatpush.bf16.msra.mxu0 %v874
  %1246 = vmatpush.bf16.msra.mxu0 %v873
  %1247 = vmatpush.bf16.msra.mxu0 %v872
  %1248 = vmatpush.bf16.msra.mxu0 %v871
  %1249 = vmatpush.bf16.msra.mxu0 %v870
  %1250 = vmatpush.bf16.msra.mxu0 %v869
  %1251 = vmatmul.bf16.gmra.mxu0 %v443
  %v1252 = vpop.f32.mrf.mxu0
  %v1253 = vadd.f32 %v1204, %v1252
  %v1254 = vpop.f32.mrf.mxu0
  %v1255 = vadd.f32 %v1206, %v1254
  %1256 = vmatmul.bf16.gmra.mxu0 %v451
  %v1257 = vpop.f32.mrf.mxu0
  %v1258 = vadd.f32 %v1209, %v1257
  %v1259 = vpop.f32.mrf.mxu0
  %v1260 = vadd.f32 %v1211, %v1259
  %1261 = vmatmul.bf16.gmra.mxu0 %v459
  %v1262 = vpop.f32.mrf.mxu0
  %v1263 = vadd.f32 %v1214, %v1262
  %v1264 = vpop.f32.mrf.mxu0
  %v1265 = vadd.f32 %v1216, %v1264
  %1266 = vmatmul.bf16.gmra.mxu0 %v467
  %v1267 = vpop.f32.mrf.mxu0
  %v1268 = vadd.f32 %v1219, %v1267
  %v1269 = vpop.f32.mrf.mxu0
  %v1270 = vadd.f32 %v1221, %v1269
  %1271 = vmatmul.bf16.gmra.mxu0 %v475
  %v1272 = vpop.f32.mrf.mxu0
  %v1273 = vadd.f32 %v1224, %v1272
  %v1274 = vpop.f32.mrf.mxu0
  %v1275 = vadd.f32 %v1226, %v1274
  %1276 = vmatmul.bf16.gmra.mxu0 %v483
  %v1277 = vpop.f32.mrf.mxu0
  %v1278 = vadd.f32 %v1229, %v1277
  %v1279 = vpop.f32.mrf.mxu0
  %v1280 = vadd.f32 %v1231, %v1279
  %1281 = vmatmul.bf16.gmra.mxu0 %v491
  %v1282 = vpop.f32.mrf.mxu0
  %v1283 = vadd.f32 %v1234, %v1282
  %v1284 = vpop.f32.mrf.mxu0
  %v1285 = vadd.f32 %v1236, %v1284
  %1286 = vmatmul.bf16.gmra.mxu0 %v499
  %v1287 = vpop.f32.mrf.mxu0
  %v1288 = vadd.f32 %v1239, %v1287
  %v1289 = vpop.f32.mrf.mxu0
  %v1290 = vadd.f32 %v1241, %v1289
  %1291 = vdwg.mxu0
  %1292 = vmatpush.bf16.msra.mxu0 %v884
  %1293 = vmatpush.bf16.msra.mxu0 %v883
  %1294 = vmatpush.bf16.msra.mxu0 %v882
  %1295 = vmatpush.bf16.msra.mxu0 %v881
  %1296 = vmatpush.bf16.msra.mxu0 %v880
  %1297 = vmatpush.bf16.msra.mxu0 %v879
  %1298 = vmatpush.bf16.msra.mxu0 %v878
  %1299 = vmatpush.bf16.msra.mxu0 %v877
  %1300 = vmatmul.bf16.gmra.mxu0 %v444
  %v1301 = vpop.f32.mrf.mxu0
  %v1302 = vadd.f32 %v1253, %v1301
  %v1303 = vpop.f32.mrf.mxu0
  %v1304 = vadd.f32 %v1255, %v1303
  %1305 = vmatmul.bf16.gmra.mxu0 %v452
  %v1306 = vpop.f32.mrf.mxu0
  %v1307 = vadd.f32 %v1258, %v1306
  %v1308 = vpop.f32.mrf.mxu0
  %v1309 = vadd.f32 %v1260, %v1308
  %1310 = vmatmul.bf16.gmra.mxu0 %v460
  %v1311 = vpop.f32.mrf.mxu0
  %v1312 = vadd.f32 %v1263, %v1311
  %v1313 = vpop.f32.mrf.mxu0
  %v1314 = vadd.f32 %v1265, %v1313
  %1315 = vmatmul.bf16.gmra.mxu0 %v468
  %v1316 = vpop.f32.mrf.mxu0
  %v1317 = vadd.f32 %v1268, %v1316
  %v1318 = vpop.f32.mrf.mxu0
  %v1319 = vadd.f32 %v1270, %v1318
  %1320 = vmatmul.bf16.gmra.mxu0 %v476
  %v1321 = vpop.f32.mrf.mxu0
  %v1322 = vadd.f32 %v1273, %v1321
  %v1323 = vpop.f32.mrf.mxu0
  %v1324 = vadd.f32 %v1275, %v1323
  %1325 = vmatmul.bf16.gmra.mxu0 %v484
  %v1326 = vpop.f32.mrf.mxu0
  %v1327 = vadd.f32 %v1278, %v1326
  %v1328 = vpop.f32.mrf.mxu0
  %v1329 = vadd.f32 %v1280, %v1328
  %1330 = vmatmul.bf16.gmra.mxu0 %v492
  %v1331 = vpop.f32.mrf.mxu0
  %v1332 = vadd.f32 %v1283, %v1331
  %v1333 = vpop.f32.mrf.mxu0
  %v1334 = vadd.f32 %v1285, %v1333
  %1335 = vmatmul.bf16.gmra.mxu0 %v500
  %v1336 = vpop.f32.mrf.mxu0
  %v1337 = vadd.f32 %v1288, %v1336
  %v1338 = vpop.f32.mrf.mxu0
  %v1339 = vadd.f32 %v1290, %v1338
  %1340 = vdwg.mxu0
  %v1341 = vadd.f32 %v37, %v1302
  %v1342 = vadd.f32 %v38, %v1304
  %v1343 = vadd.f32 %v39, %v1307
  %v1344 = vadd.f32 %v40, %v1309
  %v1345 = vadd.f32 %v41, %v1312
  %v1346 = vadd.f32 %v42, %v1314
  %v1347 = vadd.f32 %v43, %v1317
  %v1348 = vadd.f32 %v44, %v1319
  %v1349 = vadd.f32 %v45, %v1322
  %v1350 = vadd.f32 %v46, %v1324
  %v1351 = vadd.f32 %v47, %v1327
  %v1352 = vadd.f32 %v48, %v1329
  %v1353 = vadd.f32 %v49, %v1332
  %v1354 = vadd.f32 %v50, %v1334
  %v1355 = vadd.f32 %v51, %v1337
  %v1356 = vadd.f32 %v52, %v1339
  %1357 = vst [vmem:[#allocation2] sm:$0xff] %v1341
  %1358 = vst [vmem:[#allocation2 + $0x8] sm:$0xff] %v1342
  %1359 = vst [vmem:[#allocation2 + $0x10] sm:$0xff] %v1343
  %1360 = vst [vmem:[#allocation2 + $0x18] sm:$0xff] %v1344
  %1361 = vst [vmem:[#allocation2 + $0x20] sm:$0xff] %v1345
  %1362 = vst [vmem:[#allocation2 + $0x28] sm:$0xff] %v1346
  %1363 = vst [vmem:[#allocation2 + $0x30] sm:$0xff] %v1347
  %1364 = vst [vmem:[#allocation2 + $0x38] sm:$0xff] %v1348
  %1365 = vst [vmem:[#allocation2 + $0x40] sm:$0xff] %v1349
  %1366 = vst [vmem:[#allocation2 + $0x48] sm:$0xff] %v1350
  %1367 = vst [vmem:[#allocation2 + $0x50] sm:$0xff] %v1351
  %1368 = vst [vmem:[#allocation2 + $0x58] sm:$0xff] %v1352
  %1369 = vst [vmem:[#allocation2 + $0x60] sm:$0xff] %v1353
  %1370 = vst [vmem:[#allocation2 + $0x68] sm:$0xff] %v1354
  %1371 = vst [vmem:[#allocation2 + $0x70] sm:$0xff] %v1355
  %1372 = vst [vmem:[#allocation2 + $0x78] sm:$0xff] %v1356
  // Predicated region
  $region22: #{discriminator_forward.6} parent=0 // pred_check
    %p1373 = pneg %p17
  $region23: #{discriminator_forward.6} parent=0 // pred_check_branch
    %1375 = sbr.rel (%p1373) target = $region25
  $region24: #{discriminator_forward.6} parent=0 // pred_region
    %v1376 = vld [vmem:[#allocation2] sm:$0xff]
    %v1377 = vld [vmem:[#allocation2 + $0x8] sm:$0xff]
    %v1378 = vld [vmem:[#allocation2 + $0x10] sm:$0xff]
    %v1379 = vld [vmem:[#allocation2 + $0x18] sm:$0xff]
    %v1380 = vld [vmem:[#allocation2 + $0x20] sm:$0xff]
    %v1381 = vld [vmem:[#allocation2 + $0x28] sm:$0xff]
    %v1382 = vld [vmem:[#allocation2 + $0x30] sm:$0xff]
    %v1383 = vld [vmem:[#allocation2 + $0x38] sm:$0xff]
    %v1384 = vld [vmem:[#allocation2 + $0x40] sm:$0xff]
    %v1385 = vld [vmem:[#allocation2 + $0x48] sm:$0xff]
    %v1386 = vld [vmem:[#allocation2 + $0x50] sm:$0xff]
    %v1387 = vld [vmem:[#allocation2 + $0x58] sm:$0xff]
    %v1388 = vld [vmem:[#allocation2 + $0x60] sm:$0xff]
    %v1389 = vld [vmem:[#allocation2 + $0x68] sm:$0xff]
    %v1390 = vld [vmem:[#allocation2 + $0x70] sm:$0xff]
    %v1391 = vld [vmem:[#allocation2 + $0x78] sm:$0xff]
    %v1392 = vld [vmem:[%s2] sm:$0x1]
    %v1394 = vperm.slane %v1392, 0
    %v1396 = vmul.f32 %v1376, %v1394
    %v1397 = vmul.f32 %v1377, %v1394
    %v1398 = vmul.f32 %v1378, %v1394
    %v1399 = vmul.f32 %v1379, %v1394
    %v1400 = vmul.f32 %v1380, %v1394
    %v1401 = vmul.f32 %v1381, %v1394
    %v1402 = vmul.f32 %v1382, %v1394
    %v1403 = vmul.f32 %v1383, %v1394
    %v1404 = vmul.f32 %v1384, %v1394
    %v1405 = vmul.f32 %v1385, %v1394
    %v1406 = vmul.f32 %v1386, %v1394
    %v1407 = vmul.f32 %v1387, %v1394
    %v1408 = vmul.f32 %v1388, %v1394
    %v1409 = vmul.f32 %v1389, %v1394
    %v1410 = vmul.f32 %v1390, %v1394
    %v1411 = vmul.f32 %v1391, %v1394
    %v1412 = vld [vmem:[%s3] sm:$0x1]
    %v1414 = vperm.slane %v1412, 0
    %v1416 = vadd.f32 %v1396, %v1414
    %v1417 = vadd.f32 %v1397, %v1414
    %v1418 = vadd.f32 %v1398, %v1414
    %v1419 = vadd.f32 %v1399, %v1414
    %v1420 = vadd.f32 %v1400, %v1414
    %v1421 = vadd.f32 %v1401, %v1414
    %v1422 = vadd.f32 %v1402, %v1414
    %v1423 = vadd.f32 %v1403, %v1414
    %v1424 = vadd.f32 %v1404, %v1414
    %v1425 = vadd.f32 %v1405, %v1414
    %v1426 = vadd.f32 %v1406, %v1414
    %v1427 = vadd.f32 %v1407, %v1414
    %v1428 = vadd.f32 %v1408, %v1414
    %v1429 = vadd.f32 %v1409, %v1414
    %v1430 = vadd.f32 %v1410, %v1414
    %v1431 = vadd.f32 %v1411, %v1414
    %vm1432 = vcmp.ge.f32.partialorder %v1416, 0.0
    %vm1433 = vcmp.ge.f32.partialorder %v1417, 0.0
    %vm1434 = vcmp.ge.f32.partialorder %v1418, 0.0
    %vm1435 = vcmp.ge.f32.partialorder %v1419, 0.0
    %vm1436 = vcmp.ge.f32.partialorder %v1420, 0.0
    %vm1437 = vcmp.ge.f32.partialorder %v1421, 0.0
    %vm1438 = vcmp.ge.f32.partialorder %v1422, 0.0
    %vm1439 = vcmp.ge.f32.partialorder %v1423, 0.0
    %vm1440 = vcmp.ge.f32.partialorder %v1424, 0.0
    %vm1441 = vcmp.ge.f32.partialorder %v1425, 0.0
    %vm1442 = vcmp.ge.f32.partialorder %v1426, 0.0
    %vm1443 = vcmp.ge.f32.partialorder %v1427, 0.0
    %vm1444 = vcmp.ge.f32.partialorder %v1428, 0.0
    %vm1445 = vcmp.ge.f32.partialorder %v1429, 0.0
    %vm1446 = vcmp.ge.f32.partialorder %v1430, 0.0
    %vm1447 = vcmp.ge.f32.partialorder %v1431, 0.0
    %v1448 = vmul.f32 %v1416, 0.2
    %v1449 = vmul.f32 %v1417, 0.2
    %v1450 = vmul.f32 %v1418, 0.2
    %v1451 = vmul.f32 %v1419, 0.2
    %v1452 = vmul.f32 %v1420, 0.2
    %v1453 = vmul.f32 %v1421, 0.2
    %v1454 = vmul.f32 %v1422, 0.2
    %v1455 = vmul.f32 %v1423, 0.2
    %v1456 = vmul.f32 %v1424, 0.2
    %v1457 = vmul.f32 %v1425, 0.2
    %v1458 = vmul.f32 %v1426, 0.2
    %v1459 = vmul.f32 %v1427, 0.2
    %v1460 = vmul.f32 %v1428, 0.2
    %v1461 = vmul.f32 %v1429, 0.2
    %v1462 = vmul.f32 %v1430, 0.2
    %v1463 = vmul.f32 %v1431, 0.2
    %v1464 = vsel %vm1432, %v1416, %v1448
    %v1465 = vsel %vm1433, %v1417, %v1449
    %v1466 = vsel %vm1434, %v1418, %v1450
    %v1467 = vsel %vm1435, %v1419, %v1451
    %v1468 = vsel %vm1436, %v1420, %v1452
    %v1469 = vsel %vm1437, %v1421, %v1453
    %v1470 = vsel %vm1438, %v1422, %v1454
    %v1471 = vsel %vm1439, %v1423, %v1455
    %v1472 = vsel %vm1440, %v1424, %v1456
    %v1473 = vsel %vm1441, %v1425, %v1457
    %v1474 = vsel %vm1442, %v1426, %v1458
    %v1475 = vsel %vm1443, %v1427, %v1459
    %v1476 = vsel %vm1444, %v1428, %v1460
    %v1477 = vsel %vm1445, %v1429, %v1461
    %v1478 = vsel %vm1446, %v1430, %v1462
    %v1479 = vsel %vm1447, %v1431, %v1463
    %v1480 = vpack.c.bf16 %v1464, %v1464
    %v1481 = vpack.c.bf16 %v1465, %v1465
    %v1482 = vpack.c.bf16 %v1466, %v1466
    %v1483 = vpack.c.bf16 %v1467, %v1467
    %v1484 = vpack.c.bf16 %v1468, %v1468
    %v1485 = vpack.c.bf16 %v1469, %v1469
    %v1486 = vpack.c.bf16 %v1470, %v1470
    %v1487 = vpack.c.bf16 %v1471, %v1471
    %v1488 = vpack.c.bf16 %v1472, %v1472
    %v1489 = vpack.c.bf16 %v1473, %v1473
    %v1490 = vpack.c.bf16 %v1474, %v1474
    %v1491 = vpack.c.bf16 %v1475, %v1475
    %v1492 = vpack.c.bf16 %v1476, %v1476
    %v1493 = vpack.c.bf16 %v1477, %v1477
    %v1494 = vpack.c.bf16 %v1478, %v1478
    %v1495 = vpack.c.bf16 %v1479, %v1479
    %1496 = vst [vmem:[%s4] sm:$0xf] %v1480
    %1497 = vst [vmem:[%s4 + $0x4] sm:$0xf] %v1481
    %1498 = vst [vmem:[%s4 + $0x8] sm:$0xf] %v1482
    %1499 = vst [vmem:[%s4 + $0xc] sm:$0xf] %v1483
    %1500 = vst [vmem:[%s4 + $0x10] sm:$0xf] %v1484
    %1501 = vst [vmem:[%s4 + $0x14] sm:$0xf] %v1485
    %1502 = vst [vmem:[%s4 + $0x18] sm:$0xf] %v1486
    %1503 = vst [vmem:[%s4 + $0x1c] sm:$0xf] %v1487
    %1504 = vst [vmem:[%s4 + $0x20] sm:$0xf] %v1488
    %1505 = vst [vmem:[%s4 + $0x24] sm:$0xf] %v1489
    %1506 = vst [vmem:[%s4 + $0x28] sm:$0xf] %v1490
    %1507 = vst [vmem:[%s4 + $0x2c] sm:$0xf] %v1491
    %1508 = vst [vmem:[%s4 + $0x30] sm:$0xf] %v1492
    %1509 = vst [vmem:[%s4 + $0x34] sm:$0xf] %v1493
    %1510 = vst [vmem:[%s4 + $0x38] sm:$0xf] %v1494
    %1511 = vst [vmem:[%s4 + $0x3c] sm:$0xf] %v1495
  $region25: #{discriminator_forward.6} parent=0 // pred_fallthru
    _
  // Predicated region
  $region26: #{discriminator_forward.6} parent=0 // pred_check
    _
  $region27: #{discriminator_forward.6} parent=0 // pred_check_branch
    %1513 = sbr.rel (0) target = $region29
  $region28: #{discriminator_forward.6} parent=0 // pred_region
    _
  $region29: #{discriminator_forward.6} parent=0 // pred_fallthru
    _
  // Predicated region
  $region30: #{discriminator_forward.6} parent=0 // pred_check
    _
  $region31: #{discriminator_forward.6} parent=0 // pred_check_branch
    %1515 = sbr.rel (0) target = $region33
  $region32: #{discriminator_forward.6} parent=0 // pred_region
    _
  $region33: #{discriminator_forward.6} parent=0 // pred_fallthru
    _

// kernel: discriminator_forward.7
$region0: #{discriminator_forward.7}
  #allocation0 [shape = 'u32[]', space=smem, size = 0x4, offset = 0x4, fixed_abs, tag = 'smem constant byte address 0x4 - core index']
  #allocation1 [shape = 'u32[72,128]{1,0:T(1,128)}', space=vmem, size = 0x9000, scoped, tag = 'internal scratch']
  #allocation2 [shape = 'f32[32,256]{1,0:T(8,128)}', space=vmem, size = 0x8000, scoped, tag = 'scratch operand']
  %s0 = inlined_call_operand.vmem [shape: bf16[32,2048], index: 0, kind: input, shape index: {}]
  %s1 = inlined_call_operand.vmem [shape: bf16[2048,256], index: 1, kind: input, shape index: {}]
  %s2 = inlined_call_operand.vmem [shape: f32[1,256], index: 2, kind: input, shape index: {}]
  %s3 = inlined_call_operand.vmem [shape: f32[1,256], index: 3, kind: input, shape index: {}]
  %s4 = inlined_call_operand.vmem [shape: bf16[32,256], index: 4, kind: output, shape index: {}]
  %s5 = sld [smem:[#allocation0]]
  $region34: #{discriminator_forward.7} parent=0
    _
  %s7 = ssub.s32 1, %s5
  %s8 = scalar_select 0, %s7, %s5
  // Predicated region
  $region2: #{discriminator_forward.7} parent=0 // pred_check
    _
  $region3: #{discriminator_forward.7} parent=0 // pred_check_branch
    %10 = sbr.rel (0) target = $region5
  $region4: #{discriminator_forward.7} parent=0 // pred_region
    _
  $region5: #{discriminator_forward.7} parent=0 // pred_fallthru
    _
  // Predicated region
  $region6: #{discriminator_forward.7} parent=0 // pred_check
    _
  $region7: #{discriminator_forward.7} parent=0 // pred_check_branch
    %12 = sbr.rel (0) target = $region9
  $region8: #{discriminator_forward.7} parent=0 // pred_region
    _
  $region9: #{discriminator_forward.7} parent=0 // pred_fallthru
    _
  // Predicated region
  $region10: #{discriminator_forward.7} parent=0 // pred_check
    _
  $region11: #{discriminator_forward.7} parent=0 // pred_check_branch
    %14 = sbr.rel (0) target = $region13
  $region12: #{discriminator_forward.7} parent=0 // pred_region
    _
  $region13: #{discriminator_forward.7} parent=0 // pred_fallthru
    _
  // Predicated region
  $region14: #{discriminator_forward.7} parent=0 // pred_check
    _
  $region15: #{discriminator_forward.7} parent=0 // pred_check_branch
    %16 = sbr.rel (0) target = $region17
  $region16: #{discriminator_forward.7} parent=0 // pred_region
    _
  $region17: #{discriminator_forward.7} parent=0 // pred_fallthru
    _
  %p17 = scmp.eq.s32.totalorder 0, 0
  // Predicated region
  $region18: #{discriminator_forward.7} parent=0 // pred_check
    %p18 = pneg %p17
  $region19: #{discriminator_forward.7} parent=0 // pred_check_branch
    %20 = sbr.rel (%p18) target = $region21
  $region20: #{discriminator_forward.7} parent=0 // pred_region
    %21 = vst [vmem:[#allocation2] sm:$0xff] 0.0
    %22 = vst [vmem:[#allocation2 + $0x8] sm:$0xff] 0.0
    %23 = vst [vmem:[#allocation2 + $0x10] sm:$0xff] 0.0
    %24 = vst [vmem:[#allocation2 + $0x18] sm:$0xff] 0.0
    %25 = vst [vmem:[#allocation2 + $0x20] sm:$0xff] 0.0
    %26 = vst [vmem:[#allocation2 + $0x28] sm:$0xff] 0.0
    %27 = vst [vmem:[#allocation2 + $0x30] sm:$0xff] 0.0
    %28 = vst [vmem:[#allocation2 + $0x38] sm:$0xff] 0.0
  $region21: #{discriminator_forward.7} parent=0 // pred_fallthru
    _
  %v29 = vld [vmem:[#allocation2] sm:$0xff]
  %v30 = vld [vmem:[#allocation2 + $0x8] sm:$0xff]
  %v31 = vld [vmem:[#allocation2 + $0x10] sm:$0xff]
  %v32 = vld [vmem:[#allocation2 + $0x18] sm:$0xff]
  %v33 = vld [vmem:[#allocation2 + $0x20] sm:$0xff]
  %v34 = vld [vmem:[#allocation2 + $0x28] sm:$0xff]
  %v35 = vld [vmem:[#allocation2 + $0x30] sm:$0xff]
  %v36 = vld [vmem:[#allocation2 + $0x38] sm:$0xff]
  %v37 = vld [vmem:[%s0] sm:$0xff]
  %v38 = vld [vmem:[%s0 + $0x8] sm:$0xff]
  %v39 = vld [vmem:[%s0 + $0x10] sm:$0xff]
  %v40 = vld [vmem:[%s0 + $0x18] sm:$0xff]
  %v41 = vld [vmem:[%s0 + $0x20] sm:$0xff]
  %v42 = vld [vmem:[%s0 + $0x28] sm:$0xff]
  %v43 = vld [vmem:[%s0 + $0x30] sm:$0xff]
  %v44 = vld [vmem:[%s0 + $0x38] sm:$0xff]
  %v45 = vld [vmem:[%s0 + $0x40] sm:$0xff]
  %v46 = vld [vmem:[%s0 + $0x48] sm:$0xff]
  %v47 = vld [vmem:[%s0 + $0x50] sm:$0xff]
  %v48 = vld [vmem:[%s0 + $0x58] sm:$0xff]
  %v49 = vld [vmem:[%s0 + $0x60] sm:$0xff]
  %v50 = vld [vmem:[%s0 + $0x68] sm:$0xff]
  %v51 = vld [vmem:[%s0 + $0x70] sm:$0xff]
  %v52 = vld [vmem:[%s0 + $0x78] sm:$0xff]
  %v53 = vld [vmem:[%s0 + $0x80] sm:$0xff]
  %v54 = vld [vmem:[%s0 + $0x88] sm:$0xff]
  %v55 = vld [vmem:[%s0 + $0x90] sm:$0xff]
  %v56 = vld [vmem:[%s0 + $0x98] sm:$0xff]
  %v57 = vld [vmem:[%s0 + $0xa0] sm:$0xff]
  %v58 = vld [vmem:[%s0 + $0xa8] sm:$0xff]
  %v59 = vld [vmem:[%s0 + $0xb0] sm:$0xff]
  %v60 = vld [vmem:[%s0 + $0xb8] sm:$0xff]
  %v61 = vld [vmem:[%s0 + $0xc0] sm:$0xff]
  %v62 = vld [vmem:[%s0 + $0xc8] sm:$0xff]
  %v63 = vld [vmem:[%s0 + $0xd0] sm:$0xff]
  %v64 = vld [vmem:[%s0 + $0xd8] sm:$0xff]
  %v65 = vld [vmem:[%s0 + $0xe0] sm:$0xff]
  %v66 = vld [vmem:[%s0 + $0xe8] sm:$0xff]
  %v67 = vld [vmem:[%s0 + $0xf0] sm:$0xff]
  %v68 = vld [vmem:[%s0 + $0xf8] sm:$0xff]
  %v69 = vld [vmem:[%s1] sm:$0xff]
  %v70 = vld [vmem:[%s1 + $0x8] sm:$0xff]
  %v71 = vld [vmem:[%s1 + $0x10] sm:$0xff]
  %v72 = vld [vmem:[%s1 + $0x18] sm:$0xff]
  %v73 = vld [vmem:[%s1 + $0x20] sm:$0xff]
  %v74 = vld [vmem:[%s1 + $0x28] sm:$0xff]
  %v75 = vld [vmem:[%s1 + $0x30] sm:$0xff]
  %v76 = vld [vmem:[%s1 + $0x38] sm:$0xff]
  %v77 = vld [vmem:[%s1 + $0x40] sm:$0xff]
  %v78 = vld [vmem:[%s1 + $0x48] sm:$0xff]
  %v79 = vld [vmem:[%s1 + $0x50] sm:$0xff]
  %v80 = vld [vmem:[%s1 + $0x58] sm:$0xff]
  %v81 = vld [vmem:[%s1 + $0x60] sm:$0xff]
  %v82 = vld [vmem:[%s1 + $0x68] sm:$0xff]
  %v83 = vld [vmem:[%s1 + $0x70] sm:$0xff]
  %v84 = vld [vmem:[%s1 + $0x78] sm:$0xff]
  %v85 = vld [vmem:[%s1 + $0x80] sm:$0xff]
  %v86 = vld [vmem:[%s1 + $0x88] sm:$0xff]
  %v87 = vld [vmem:[%s1 + $0x90] sm:$0xff]
  %v88 = vld [vmem:[%s1 + $0x98] sm:$0xff]
  %v89 = vld [vmem:[%s1 + $0xa0] sm:$0xff]
  %v90 = vld [vmem:[%s1 + $0xa8] sm:$0xff]
  %v91 = vld [vmem:[%s1 + $0xb0] sm:$0xff]
  %v92 = vld [vmem:[%s1 + $0xb8] sm:$0xff]
  %v93 = vld [vmem:[%s1 + $0xc0] sm:$0xff]
  %v94 = vld [vmem:[%s1 + $0xc8] sm:$0xff]
  %v95 = vld [vmem:[%s1 + $0xd0] sm:$0xff]
  %v96 = vld [vmem:[%s1 + $0xd8] sm:$0xff]
  %v97 = vld [vmem:[%s1 + $0xe0] sm:$0xff]
  %v98 = vld [vmem:[%s1 + $0xe8] sm:$0xff]
  %v99 = vld [vmem:[%s1 + $0xf0] sm:$0xff]
  %v100 = vld [vmem:[%s1 + $0xf8] sm:$0xff]
  %v101 = vld [vmem:[%s1 + $0x100] sm:$0xff]
  %v102 = vld [vmem:[%s1 + $0x108] sm:$0xff]
  %v103 = vld [vmem:[%s1 + $0x110] sm:$0xff]
  %v104 = vld [vmem:[%s1 + $0x118] sm:$0xff]
  %v105 = vld [vmem:[%s1 + $0x120] sm:$0xff]
  %v106 = vld [vmem:[%s1 + $0x128] sm:$0xff]
  %v107 = vld [vmem:[%s1 + $0x130] sm:$0xff]
  %v108 = vld [vmem:[%s1 + $0x138] sm:$0xff]
  %v109 = vld [vmem:[%s1 + $0x140] sm:$0xff]
  %v110 = vld [vmem:[%s1 + $0x148] sm:$0xff]
  %v111 = vld [vmem:[%s1 + $0x150] sm:$0xff]
  %v112 = vld [vmem:[%s1 + $0x158] sm:$0xff]
  %v113 = vld [vmem:[%s1 + $0x160] sm:$0xff]
  %v114 = vld [vmem:[%s1 + $0x168] sm:$0xff]
  %v115 = vld [vmem:[%s1 + $0x170] sm:$0xff]
  %v116 = vld [vmem:[%s1 + $0x178] sm:$0xff]
  %v117 = vld [vmem:[%s1 + $0x180] sm:$0xff]
  %v118 = vld [vmem:[%s1 + $0x188] sm:$0xff]
  %v119 = vld [vmem:[%s1 + $0x190] sm:$0xff]
  %v120 = vld [vmem:[%s1 + $0x198] sm:$0xff]
  %v121 = vld [vmem:[%s1 + $0x1a0] sm:$0xff]
  %v122 = vld [vmem:[%s1 + $0x1a8] sm:$0xff]
  %v123 = vld [vmem:[%s1 + $0x1b0] sm:$0xff]
  %v124 = vld [vmem:[%s1 + $0x1b8] sm:$0xff]
  %v125 = vld [vmem:[%s1 + $0x1c0] sm:$0xff]
  %v126 = vld [vmem:[%s1 + $0x1c8] sm:$0xff]
  %v127 = vld [vmem:[%s1 + $0x1d0] sm:$0xff]
  %v128 = vld [vmem:[%s1 + $0x1d8] sm:$0xff]
  %v129 = vld [vmem:[%s1 + $0x1e0] sm:$0xff]
  %v130 = vld [vmem:[%s1 + $0x1e8] sm:$0xff]
  %v131 = vld [vmem:[%s1 + $0x1f0] sm:$0xff]
  %v132 = vld [vmem:[%s1 + $0x1f8] sm:$0xff]
  %v133 = vld [vmem:[%s1 + $0x200] sm:$0xff]
  %v134 = vld [vmem:[%s1 + $0x208] sm:$0xff]
  %v135 = vld [vmem:[%s1 + $0x210] sm:$0xff]
  %v136 = vld [vmem:[%s1 + $0x218] sm:$0xff]
  %v137 = vld [vmem:[%s1 + $0x220] sm:$0xff]
  %v138 = vld [vmem:[%s1 + $0x228] sm:$0xff]
  %v139 = vld [vmem:[%s1 + $0x230] sm:$0xff]
  %v140 = vld [vmem:[%s1 + $0x238] sm:$0xff]
  %v141 = vld [vmem:[%s1 + $0x240] sm:$0xff]
  %v142 = vld [vmem:[%s1 + $0x248] sm:$0xff]
  %v143 = vld [vmem:[%s1 + $0x250] sm:$0xff]
  %v144 = vld [vmem:[%s1 + $0x258] sm:$0xff]
  %v145 = vld [vmem:[%s1 + $0x260] sm:$0xff]
  %v146 = vld [vmem:[%s1 + $0x268] sm:$0xff]
  %v147 = vld [vmem:[%s1 + $0x270] sm:$0xff]
  %v148 = vld [vmem:[%s1 + $0x278] sm:$0xff]
  %v149 = vld [vmem:[%s1 + $0x280] sm:$0xff]
  %v150 = vld [vmem:[%s1 + $0x288] sm:$0xff]
  %v151 = vld [vmem:[%s1 + $0x290] sm:$0xff]
  %v152 = vld [vmem:[%s1 + $0x298] sm:$0xff]
  %v153 = vld [vmem:[%s1 + $0x2a0] sm:$0xff]
  %v154 = vld [vmem:[%s1 + $0x2a8] sm:$0xff]
  %v155 = vld [vmem:[%s1 + $0x2b0] sm:$0xff]
  %v156 = vld [vmem:[%s1 + $0x2b8] sm:$0xff]
  %v157 = vld [vmem:[%s1 + $0x2c0] sm:$0xff]
  %v158 = vld [vmem:[%s1 + $0x2c8] sm:$0xff]
  %v159 = vld [vmem:[%s1 + $0x2d0] sm:$0xff]
  %v160 = vld [vmem:[%s1 + $0x2d8] sm:$0xff]
  %v161 = vld [vmem:[%s1 + $0x2e0] sm:$0xff]
  %v162 = vld [vmem:[%s1 + $0x2e8] sm:$0xff]
  %v163 = vld [vmem:[%s1 + $0x2f0] sm:$0xff]
  %v164 = vld [vmem:[%s1 + $0x2f8] sm:$0xff]
  %v165 = vld [vmem:[%s1 + $0x300] sm:$0xff]
  %v166 = vld [vmem:[%s1 + $0x308] sm:$0xff]
  %v167 = vld [vmem:[%s1 + $0x310] sm:$0xff]
  %v168 = vld [vmem:[%s1 + $0x318] sm:$0xff]
  %v169 = vld [vmem:[%s1 + $0x320] sm:$0xff]
  %v170 = vld [vmem:[%s1 + $0x328] sm:$0xff]
  %v171 = vld [vmem:[%s1 + $0x330] sm:$0xff]
  %v172 = vld [vmem:[%s1 + $0x338] sm:$0xff]
  %v173 = vld [vmem:[%s1 + $0x340] sm:$0xff]
  %v174 = vld [vmem:[%s1 + $0x348] sm:$0xff]
  %v175 = vld [vmem:[%s1 + $0x350] sm:$0xff]
  %v176 = vld [vmem:[%s1 + $0x358] sm:$0xff]
  %v177 = vld [vmem:[%s1 + $0x360] sm:$0xff]
  %v178 = vld [vmem:[%s1 + $0x368] sm:$0xff]
  %v179 = vld [vmem:[%s1 + $0x370] sm:$0xff]
  %v180 = vld [vmem:[%s1 + $0x378] sm:$0xff]
  %v181 = vld [vmem:[%s1 + $0x380] sm:$0xff]
  %v182 = vld [vmem:[%s1 + $0x388] sm:$0xff]
  %v183 = vld [vmem:[%s1 + $0x390] sm:$0xff]
  %v184 = vld [vmem:[%s1 + $0x398] sm:$0xff]
  %v185 = vld [vmem:[%s1 + $0x3a0] sm:$0xff]
  %v186 = vld [vmem:[%s1 + $0x3a8] sm:$0xff]
  %v187 = vld [vmem:[%s1 + $0x3b0] sm:$0xff]
  %v188 = vld [vmem:[%s1 + $0x3b8] sm:$0xff]
  %v189 = vld [vmem:[%s1 + $0x3c0] sm:$0xff]
  %v190 = vld [vmem:[%s1 + $0x3c8] sm:$0xff]
  %v191 = vld [vmem:[%s1 + $0x3d0] sm:$0xff]
  %v192 = vld [vmem:[%s1 + $0x3d8] sm:$0xff]
  %v193 = vld [vmem:[%s1 + $0x3e0] sm:$0xff]
  %v194 = vld [vmem:[%s1 + $0x3e8] sm:$0xff]
  %v195 = vld [vmem:[%s1 + $0x3f0] sm:$0xff]
  %v196 = vld [vmem:[%s1 + $0x3f8] sm:$0xff]
  %v197 = vld [vmem:[%s1 + $0x400] sm:$0xff]
  %v198 = vld [vmem:[%s1 + $0x408] sm:$0xff]
  %v199 = vld [vmem:[%s1 + $0x410] sm:$0xff]
  %v200 = vld [vmem:[%s1 + $0x418] sm:$0xff]
  %v201 = vld [vmem:[%s1 + $0x420] sm:$0xff]
  %v202 = vld [vmem:[%s1 + $0x428] sm:$0xff]
  %v203 = vld [vmem:[%s1 + $0x430] sm:$0xff]
  %v204 = vld [vmem:[%s1 + $0x438] sm:$0xff]
  %v205 = vld [vmem:[%s1 + $0x440] sm:$0xff]
  %v206 = vld [vmem:[%s1 + $0x448] sm:$0xff]
  %v207 = vld [vmem:[%s1 + $0x450] sm:$0xff]
  %v208 = vld [vmem:[%s1 + $0x458] sm:$0xff]
  %v209 = vld [vmem:[%s1 + $0x460] sm:$0xff]
  %v210 = vld [vmem:[%s1 + $0x468] sm:$0xff]
  %v211 = vld [vmem:[%s1 + $0x470] sm:$0xff]
  %v212 = vld [vmem:[%s1 + $0x478] sm:$0xff]
  %v213 = vld [vmem:[%s1 + $0x480] sm:$0xff]
  %v214 = vld [vmem:[%s1 + $0x488] sm:$0xff]
  %v215 = vld [vmem:[%s1 + $0x490] sm:$0xff]
  %v216 = vld [vmem:[%s1 + $0x498] sm:$0xff]
  %v217 = vld [vmem:[%s1 + $0x4a0] sm:$0xff]
  %v218 = vld [vmem:[%s1 + $0x4a8] sm:$0xff]
  %v219 = vld [vmem:[%s1 + $0x4b0] sm:$0xff]
  %v220 = vld [vmem:[%s1 + $0x4b8] sm:$0xff]
  %v221 = vld [vmem:[%s1 + $0x4c0] sm:$0xff]
  %v222 = vld [vmem:[%s1 + $0x4c8] sm:$0xff]
  %v223 = vld [vmem:[%s1 + $0x4d0] sm:$0xff]
  %v224 = vld [vmem:[%s1 + $0x4d8] sm:$0xff]
  %v225 = vld [vmem:[%s1 + $0x4e0] sm:$0xff]
  %v226 = vld [vmem:[%s1 + $0x4e8] sm:$0xff]
  %v227 = vld [vmem:[%s1 + $0x4f0] sm:$0xff]
  %v228 = vld [vmem:[%s1 + $0x4f8] sm:$0xff]
  %v229 = vld [vmem:[%s1 + $0x500] sm:$0xff]
  %v230 = vld [vmem:[%s1 + $0x508] sm:$0xff]
  %v231 = vld [vmem:[%s1 + $0x510] sm:$0xff]
  %v232 = vld [vmem:[%s1 + $0x518] sm:$0xff]
  %v233 = vld [vmem:[%s1 + $0x520] sm:$0xff]
  %v234 = vld [vmem:[%s1 + $0x528] sm:$0xff]
  %v235 = vld [vmem:[%s1 + $0x530] sm:$0xff]
  %v236 = vld [vmem:[%s1 + $0x538] sm:$0xff]
  %v237 = vld [vmem:[%s1 + $0x540] sm:$0xff]
  %v238 = vld [vmem:[%s1 + $0x548] sm:$0xff]
  %v239 = vld [vmem:[%s1 + $0x550] sm:$0xff]
  %v240 = vld [vmem:[%s1 + $0x558] sm:$0xff]
  %v241 = vld [vmem:[%s1 + $0x560] sm:$0xff]
  %v242 = vld [vmem:[%s1 + $0x568] sm:$0xff]
  %v243 = vld [vmem:[%s1 + $0x570] sm:$0xff]
  %v244 = vld [vmem:[%s1 + $0x578] sm:$0xff]
  %v245 = vld [vmem:[%s1 + $0x580] sm:$0xff]
  %v246 = vld [vmem:[%s1 + $0x588] sm:$0xff]
  %v247 = vld [vmem:[%s1 + $0x590] sm:$0xff]
  %v248 = vld [vmem:[%s1 + $0x598] sm:$0xff]
  %v249 = vld [vmem:[%s1 + $0x5a0] sm:$0xff]
  %v250 = vld [vmem:[%s1 + $0x5a8] sm:$0xff]
  %v251 = vld [vmem:[%s1 + $0x5b0] sm:$0xff]
  %v252 = vld [vmem:[%s1 + $0x5b8] sm:$0xff]
  %v253 = vld [vmem:[%s1 + $0x5c0] sm:$0xff]
  %v254 = vld [vmem:[%s1 + $0x5c8] sm:$0xff]
  %v255 = vld [vmem:[%s1 + $0x5d0] sm:$0xff]
  %v256 = vld [vmem:[%s1 + $0x5d8] sm:$0xff]
  %v257 = vld [vmem:[%s1 + $0x5e0] sm:$0xff]
  %v258 = vld [vmem:[%s1 + $0x5e8] sm:$0xff]
  %v259 = vld [vmem:[%s1 + $0x5f0] sm:$0xff]
  %v260 = vld [vmem:[%s1 + $0x5f8] sm:$0xff]
  %v261 = vld [vmem:[%s1 + $0x600] sm:$0xff]
  %v262 = vld [vmem:[%s1 + $0x608] sm:$0xff]
  %v263 = vld [vmem:[%s1 + $0x610] sm:$0xff]
  %v264 = vld [vmem:[%s1 + $0x618] sm:$0xff]
  %v265 = vld [vmem:[%s1 + $0x620] sm:$0xff]
  %v266 = vld [vmem:[%s1 + $0x628] sm:$0xff]
  %v267 = vld [vmem:[%s1 + $0x630] sm:$0xff]
  %v268 = vld [vmem:[%s1 + $0x638] sm:$0xff]
  %v269 = vld [vmem:[%s1 + $0x640] sm:$0xff]
  %v270 = vld [vmem:[%s1 + $0x648] sm:$0xff]
  %v271 = vld [vmem:[%s1 + $0x650] sm:$0xff]
  %v272 = vld [vmem:[%s1 + $0x658] sm:$0xff]
  %v273 = vld [vmem:[%s1 + $0x660] sm:$0xff]
  %v274 = vld [vmem:[%s1 + $0x668] sm:$0xff]
  %v275 = vld [vmem:[%s1 + $0x670] sm:$0xff]
  %v276 = vld [vmem:[%s1 + $0x678] sm:$0xff]
  %v277 = vld [vmem:[%s1 + $0x680] sm:$0xff]
  %v278 = vld [vmem:[%s1 + $0x688] sm:$0xff]
  %v279 = vld [vmem:[%s1 + $0x690] sm:$0xff]
  %v280 = vld [vmem:[%s1 + $0x698] sm:$0xff]
  %v281 = vld [vmem:[%s1 + $0x6a0] sm:$0xff]
  %v282 = vld [vmem:[%s1 + $0x6a8] sm:$0xff]
  %v283 = vld [vmem:[%s1 + $0x6b0] sm:$0xff]
  %v284 = vld [vmem:[%s1 + $0x6b8] sm:$0xff]
  %v285 = vld [vmem:[%s1 + $0x6c0] sm:$0xff]
  %v286 = vld [vmem:[%s1 + $0x6c8] sm:$0xff]
  %v287 = vld [vmem:[%s1 + $0x6d0] sm:$0xff]
  %v288 = vld [vmem:[%s1 + $0x6d8] sm:$0xff]
  %v289 = vld [vmem:[%s1 + $0x6e0] sm:$0xff]
  %v290 = vld [vmem:[%s1 + $0x6e8] sm:$0xff]
  %v291 = vld [vmem:[%s1 + $0x6f0] sm:$0xff]
  %v292 = vld [vmem:[%s1 + $0x6f8] sm:$0xff]
  %v293 = vld [vmem:[%s1 + $0x700] sm:$0xff]
  %v294 = vld [vmem:[%s1 + $0x708] sm:$0xff]
  %v295 = vld [vmem:[%s1 + $0x710] sm:$0xff]
  %v296 = vld [vmem:[%s1 + $0x718] sm:$0xff]
  %v297 = vld [vmem:[%s1 + $0x720] sm:$0xff]
  %v298 = vld [vmem:[%s1 + $0x728] sm:$0xff]
  %v299 = vld [vmem:[%s1 + $0x730] sm:$0xff]
  %v300 = vld [vmem:[%s1 + $0x738] sm:$0xff]
  %v301 = vld [vmem:[%s1 + $0x740] sm:$0xff]
  %v302 = vld [vmem:[%s1 + $0x748] sm:$0xff]
  %v303 = vld [vmem:[%s1 + $0x750] sm:$0xff]
  %v304 = vld [vmem:[%s1 + $0x758] sm:$0xff]
  %v305 = vld [vmem:[%s1 + $0x760] sm:$0xff]
  %v306 = vld [vmem:[%s1 + $0x768] sm:$0xff]
  %v307 = vld [vmem:[%s1 + $0x770] sm:$0xff]
  %v308 = vld [vmem:[%s1 + $0x778] sm:$0xff]
  %v309 = vld [vmem:[%s1 + $0x780] sm:$0xff]
  %v310 = vld [vmem:[%s1 + $0x788] sm:$0xff]
  %v311 = vld [vmem:[%s1 + $0x790] sm:$0xff]
  %v312 = vld [vmem:[%s1 + $0x798] sm:$0xff]
  %v313 = vld [vmem:[%s1 + $0x7a0] sm:$0xff]
  %v314 = vld [vmem:[%s1 + $0x7a8] sm:$0xff]
  %v315 = vld [vmem:[%s1 + $0x7b0] sm:$0xff]
  %v316 = vld [vmem:[%s1 + $0x7b8] sm:$0xff]
  %v317 = vld [vmem:[%s1 + $0x7c0] sm:$0xff]
  %v318 = vld [vmem:[%s1 + $0x7c8] sm:$0xff]
  %v319 = vld [vmem:[%s1 + $0x7d0] sm:$0xff]
  %v320 = vld [vmem:[%s1 + $0x7d8] sm:$0xff]
  %v321 = vld [vmem:[%s1 + $0x7e0] sm:$0xff]
  %v322 = vld [vmem:[%s1 + $0x7e8] sm:$0xff]
  %v323 = vld [vmem:[%s1 + $0x7f0] sm:$0xff]
  %v324 = vld [vmem:[%s1 + $0x7f8] sm:$0xff]
  %v357 = vunpack.c.l.b16 %v37
  %v358 = vunpack.c.h.b16 %v37
  %v359 = vunpack.c.l.b16 %v38
  %v360 = vunpack.c.h.b16 %v38
  %v361 = vunpack.c.l.b16 %v39
  %v362 = vunpack.c.h.b16 %v39
  %v363 = vunpack.c.l.b16 %v40
  %v364 = vunpack.c.h.b16 %v40
  %v365 = vunpack.c.l.b16 %v41
  %v366 = vunpack.c.h.b16 %v41
  %v367 = vunpack.c.l.b16 %v42
  %v368 = vunpack.c.h.b16 %v42
  %v369 = vunpack.c.l.b16 %v43
  %v370 = vunpack.c.h.b16 %v43
  %v371 = vunpack.c.l.b16 %v44
  %v372 = vunpack.c.h.b16 %v44
  %v373 = vunpack.c.l.b16 %v45
  %v374 = vunpack.c.h.b16 %v45
  %v375 = vunpack.c.l.b16 %v46
  %v376 = vunpack.c.h.b16 %v46
  %v377 = vunpack.c.l.b16 %v47
  %v378 = vunpack.c.h.b16 %v47
  %v379 = vunpack.c.l.b16 %v48
  %v380 = vunpack.c.h.b16 %v48
  %v381 = vunpack.c.l.b16 %v49
  %v382 = vunpack.c.h.b16 %v49
  %v383 = vunpack.c.l.b16 %v50
  %v384 = vunpack.c.h.b16 %v50
  %v385 = vunpack.c.l.b16 %v51
  %v386 = vunpack.c.h.b16 %v51
  %v387 = vunpack.c.l.b16 %v52
  %v388 = vunpack.c.h.b16 %v52
  %v389 = vunpack.c.l.b16 %v53
  %v390 = vunpack.c.h.b16 %v53
  %v391 = vunpack.c.l.b16 %v54
  %v392 = vunpack.c.h.b16 %v54
  %v393 = vunpack.c.l.b16 %v55
  %v394 = vunpack.c.h.b16 %v55
  %v395 = vunpack.c.l.b16 %v56
  %v396 = vunpack.c.h.b16 %v56
  %v397 = vunpack.c.l.b16 %v57
  %v398 = vunpack.c.h.b16 %v57
  %v399 = vunpack.c.l.b16 %v58
  %v400 = vunpack.c.h.b16 %v58
  %v401 = vunpack.c.l.b16 %v59
  %v402 = vunpack.c.h.b16 %v59
  %v403 = vunpack.c.l.b16 %v60
  %v404 = vunpack.c.h.b16 %v60
  %v405 = vunpack.c.l.b16 %v61
  %v406 = vunpack.c.h.b16 %v61
  %v407 = vunpack.c.l.b16 %v62
  %v408 = vunpack.c.h.b16 %v62
  %v409 = vunpack.c.l.b16 %v63
  %v410 = vunpack.c.h.b16 %v63
  %v411 = vunpack.c.l.b16 %v64
  %v412 = vunpack.c.h.b16 %v64
  %v413 = vunpack.c.l.b16 %v65
  %v414 = vunpack.c.h.b16 %v65
  %v415 = vunpack.c.l.b16 %v66
  %v416 = vunpack.c.h.b16 %v66
  %v417 = vunpack.c.l.b16 %v67
  %v418 = vunpack.c.h.b16 %v67
  %v419 = vunpack.c.l.b16 %v68
  %v420 = vunpack.c.h.b16 %v68
  %v421 = vpack.c.b16 %v373, %v357
  %v422 = vpack.c.b16 %v374, %v358
  %v423 = vpack.c.b16 %v375, %v359
  %v424 = vpack.c.b16 %v376, %v360
  %v425 = vpack.c.b16 %v377, %v361
  %v426 = vpack.c.b16 %v378, %v362
  %v427 = vpack.c.b16 %v379, %v363
  %v428 = vpack.c.b16 %v380, %v364
  %v429 = vpack.c.b16 %v381, %v365
  %v430 = vpack.c.b16 %v382, %v366
  %v431 = vpack.c.b16 %v383, %v367
  %v432 = vpack.c.b16 %v384, %v368
  %v433 = vpack.c.b16 %v385, %v369
  %v434 = vpack.c.b16 %v386, %v370
  %v435 = vpack.c.b16 %v387, %v371
  %v436 = vpack.c.b16 %v388, %v372
  %v437 = vpack.c.b16 %v405, %v389
  %v438 = vpack.c.b16 %v406, %v390
  %v439 = vpack.c.b16 %v407, %v391
  %v440 = vpack.c.b16 %v408, %v392
  %v441 = vpack.c.b16 %v409, %v393
  %v442 = vpack.c.b16 %v410, %v394
  %v443 = vpack.c.b16 %v411, %v395
  %v444 = vpack.c.b16 %v412, %v396
  %v445 = vpack.c.b16 %v413, %v397
  %v446 = vpack.c.b16 %v414, %v398
  %v447 = vpack.c.b16 %v415, %v399
  %v448 = vpack.c.b16 %v416, %v400
  %v449 = vpack.c.b16 %v417, %v401
  %v450 = vpack.c.b16 %v418, %v402
  %v451 = vpack.c.b16 %v419, %v403
  %v452 = vpack.c.b16 %v420, %v404
  %v741 = vunpack.c.l.b16 %v69
  %v742 = vunpack.c.h.b16 %v69
  %v743 = vunpack.c.l.b16 %v70
  %v744 = vunpack.c.h.b16 %v70
  %v745 = vunpack.c.l.b16 %v71
  %v746 = vunpack.c.h.b16 %v71
  %v747 = vunpack.c.l.b16 %v72
  %v748 = vunpack.c.h.b16 %v72
  %v749 = vunpack.c.l.b16 %v73
  %v750 = vunpack.c.h.b16 %v73
  %v751 = vunpack.c.l.b16 %v74
  %v752 = vunpack.c.h.b16 %v74
  %v753 = vunpack.c.l.b16 %v75
  %v754 = vunpack.c.h.b16 %v75
  %v755 = vunpack.c.l.b16 %v76
  %v756 = vunpack.c.h.b16 %v76
  %v757 = vunpack.c.l.b16 %v77
  %v758 = vunpack.c.h.b16 %v77
  %v759 = vunpack.c.l.b16 %v78
  %v760 = vunpack.c.h.b16 %v78
  %v761 = vunpack.c.l.b16 %v79
  %v762 = vunpack.c.h.b16 %v79
  %v763 = vunpack.c.l.b16 %v80
  %v764 = vunpack.c.h.b16 %v80
  %v765 = vunpack.c.l.b16 %v81
  %v766 = vunpack.c.h.b16 %v81
  %v767 = vunpack.c.l.b16 %v82
  %v768 = vunpack.c.h.b16 %v82
  %v769 = vunpack.c.l.b16 %v83
  %v770 = vunpack.c.h.b16 %v83
  %v771 = vunpack.c.l.b16 %v84
  %v772 = vunpack.c.h.b16 %v84
  %v773 = vunpack.c.l.b16 %v85
  %v774 = vunpack.c.h.b16 %v85
  %v775 = vunpack.c.l.b16 %v86
  %v776 = vunpack.c.h.b16 %v86
  %v777 = vunpack.c.l.b16 %v87
  %v778 = vunpack.c.h.b16 %v87
  %v779 = vunpack.c.l.b16 %v88
  %v780 = vunpack.c.h.b16 %v88
  %v781 = vunpack.c.l.b16 %v89
  %v782 = vunpack.c.h.b16 %v89
  %v783 = vunpack.c.l.b16 %v90
  %v784 = vunpack.c.h.b16 %v90
  %v785 = vunpack.c.l.b16 %v91
  %v786 = vunpack.c.h.b16 %v91
  %v787 = vunpack.c.l.b16 %v92
  %v788 = vunpack.c.h.b16 %v92
  %v789 = vunpack.c.l.b16 %v93
  %v790 = vunpack.c.h.b16 %v93
  %v791 = vunpack.c.l.b16 %v94
  %v792 = vunpack.c.h.b16 %v94
  %v793 = vunpack.c.l.b16 %v95
  %v794 = vunpack.c.h.b16 %v95
  %v795 = vunpack.c.l.b16 %v96
  %v796 = vunpack.c.h.b16 %v96
  %v797 = vunpack.c.l.b16 %v97
  %v798 = vunpack.c.h.b16 %v97
  %v799 = vunpack.c.l.b16 %v98
  %v800 = vunpack.c.h.b16 %v98
  %v801 = vunpack.c.l.b16 %v99
  %v802 = vunpack.c.h.b16 %v99
  %v803 = vunpack.c.l.b16 %v100
  %v804 = vunpack.c.h.b16 %v100
  %v805 = vunpack.c.l.b16 %v101
  %v806 = vunpack.c.h.b16 %v101
  %v807 = vunpack.c.l.b16 %v102
  %v808 = vunpack.c.h.b16 %v102
  %v809 = vunpack.c.l.b16 %v103
  %v810 = vunpack.c.h.b16 %v103
  %v811 = vunpack.c.l.b16 %v104
  %v812 = vunpack.c.h.b16 %v104
  %v813 = vunpack.c.l.b16 %v105
  %v814 = vunpack.c.h.b16 %v105
  %v815 = vunpack.c.l.b16 %v106
  %v816 = vunpack.c.h.b16 %v106
  %v817 = vunpack.c.l.b16 %v107
  %v818 = vunpack.c.h.b16 %v107
  %v819 = vunpack.c.l.b16 %v108
  %v820 = vunpack.c.h.b16 %v108
  %v821 = vunpack.c.l.b16 %v109
  %v822 = vunpack.c.h.b16 %v109
  %v823 = vunpack.c.l.b16 %v110
  %v824 = vunpack.c.h.b16 %v110
  %v825 = vunpack.c.l.b16 %v111
  %v826 = vunpack.c.h.b16 %v111
  %v827 = vunpack.c.l.b16 %v112
  %v828 = vunpack.c.h.b16 %v112
  %v829 = vunpack.c.l.b16 %v113
  %v830 = vunpack.c.h.b16 %v113
  %v831 = vunpack.c.l.b16 %v114
  %v832 = vunpack.c.h.b16 %v114
  %v833 = vunpack.c.l.b16 %v115
  %v834 = vunpack.c.h.b16 %v115
  %v835 = vunpack.c.l.b16 %v116
  %v836 = vunpack.c.h.b16 %v116
  %v837 = vunpack.c.l.b16 %v117
  %v838 = vunpack.c.h.b16 %v117
  %v839 = vunpack.c.l.b16 %v118
  %v840 = vunpack.c.h.b16 %v118
  %v841 = vunpack.c.l.b16 %v119
  %v842 = vunpack.c.h.b16 %v119
  %v843 = vunpack.c.l.b16 %v120
  %v844 = vunpack.c.h.b16 %v120
  %v845 = vunpack.c.l.b16 %v121
  %v846 = vunpack.c.h.b16 %v121
  %v847 = vunpack.c.l.b16 %v122
  %v848 = vunpack.c.h.b16 %v122
  %v849 = vunpack.c.l.b16 %v123
  %v850 = vunpack.c.h.b16 %v123
  %v851 = vunpack.c.l.b16 %v124
  %v852 = vunpack.c.h.b16 %v124
  %v853 = vunpack.c.l.b16 %v125
  %v854 = vunpack.c.h.b16 %v125
  %v855 = vunpack.c.l.b16 %v126
  %v856 = vunpack.c.h.b16 %v126
  %v857 = vunpack.c.l.b16 %v127
  %v858 = vunpack.c.h.b16 %v127
  %v859 = vunpack.c.l.b16 %v128
  %v860 = vunpack.c.h.b16 %v128
  %v861 = vunpack.c.l.b16 %v129
  %v862 = vunpack.c.h.b16 %v129
  %v863 = vunpack.c.l.b16 %v130
  %v864 = vunpack.c.h.b16 %v130
  %v865 = vunpack.c.l.b16 %v131
  %v866 = vunpack.c.h.b16 %v131
  %v867 = vunpack.c.l.b16 %v132
  %v868 = vunpack.c.h.b16 %v132
  %v869 = vunpack.c.l.b16 %v133
  %v870 = vunpack.c.h.b16 %v133
  %v871 = vunpack.c.l.b16 %v134
  %v872 = vunpack.c.h.b16 %v134
  %v873 = vunpack.c.l.b16 %v135
  %v874 = vunpack.c.h.b16 %v135
  %v875 = vunpack.c.l.b16 %v136
  %v876 = vunpack.c.h.b16 %v136
  %v877 = vunpack.c.l.b16 %v137
  %v878 = vunpack.c.h.b16 %v137
  %v879 = vunpack.c.l.b16 %v138
  %v880 = vunpack.c.h.b16 %v138
  %v881 = vunpack.c.l.b16 %v139
  %v882 = vunpack.c.h.b16 %v139
  %v883 = vunpack.c.l.b16 %v140
  %v884 = vunpack.c.h.b16 %v140
  %v885 = vunpack.c.l.b16 %v141
  %v886 = vunpack.c.h.b16 %v141
  %v887 = vunpack.c.l.b16 %v142
  %v888 = vunpack.c.h.b16 %v142
  %v889 = vunpack.c.l.b16 %v143
  %v890 = vunpack.c.h.b16 %v143
  %v891 = vunpack.c.l.b16 %v144
  %v892 = vunpack.c.h.b16 %v144
  %v893 = vunpack.c.l.b16 %v145
  %v894 = vunpack.c.h.b16 %v145
  %v895 = vunpack.c.l.b16 %v146
  %v896 = vunpack.c.h.b16 %v146
  %v897 = vunpack.c.l.b16 %v147
  %v898 = vunpack.c.h.b16 %v147
  %v899 = vunpack.c.l.b16 %v148
  %v900 = vunpack.c.h.b16 %v148
  %v901 = vunpack.c.l.b16 %v149
  %v902 = vunpack.c.h.b16 %v149
  %v903 = vunpack.c.l.b16 %v150
  %v904 = vunpack.c.h.b16 %v150
  %v905 = vunpack.c.l.b16 %v151
  %v906 = vunpack.c.h.b16 %v151
  %v907 = vunpack.c.l.b16 %v152
  %v908 = vunpack.c.h.b16 %v152
  %v909 = vunpack.c.l.b16 %v153
  %v910 = vunpack.c.h.b16 %v153
  %v911 = vunpack.c.l.b16 %v154
  %v912 = vunpack.c.h.b16 %v154
  %v913 = vunpack.c.l.b16 %v155
  %v914 = vunpack.c.h.b16 %v155
  %v915 = vunpack.c.l.b16 %v156
  %v916 = vunpack.c.h.b16 %v156
  %v917 = vunpack.c.l.b16 %v157
  %v918 = vunpack.c.h.b16 %v157
  %v919 = vunpack.c.l.b16 %v158
  %v920 = vunpack.c.h.b16 %v158
  %v921 = vunpack.c.l.b16 %v159
  %v922 = vunpack.c.h.b16 %v159
  %v923 = vunpack.c.l.b16 %v160
  %v924 = vunpack.c.h.b16 %v160
  %v925 = vunpack.c.l.b16 %v161
  %v926 = vunpack.c.h.b16 %v161
  %v927 = vunpack.c.l.b16 %v162
  %v928 = vunpack.c.h.b16 %v162
  %v929 = vunpack.c.l.b16 %v163
  %v930 = vunpack.c.h.b16 %v163
  %v931 = vunpack.c.l.b16 %v164
  %v932 = vunpack.c.h.b16 %v164
  %v933 = vunpack.c.l.b16 %v165
  %v934 = vunpack.c.h.b16 %v165
  %v935 = vunpack.c.l.b16 %v166
  %v936 = vunpack.c.h.b16 %v166
  %v937 = vunpack.c.l.b16 %v167
  %v938 = vunpack.c.h.b16 %v167
  %v939 = vunpack.c.l.b16 %v168
  %v940 = vunpack.c.h.b16 %v168
  %v941 = vunpack.c.l.b16 %v169
  %v942 = vunpack.c.h.b16 %v169
  %v943 = vunpack.c.l.b16 %v170
  %v944 = vunpack.c.h.b16 %v170
  %v945 = vunpack.c.l.b16 %v171
  %v946 = vunpack.c.h.b16 %v171
  %v947 = vunpack.c.l.b16 %v172
  %v948 = vunpack.c.h.b16 %v172
  %v949 = vunpack.c.l.b16 %v173
  %v950 = vunpack.c.h.b16 %v173
  %v951 = vunpack.c.l.b16 %v174
  %v952 = vunpack.c.h.b16 %v174
  %v953 = vunpack.c.l.b16 %v175
  %v954 = vunpack.c.h.b16 %v175
  %v955 = vunpack.c.l.b16 %v176
  %v956 = vunpack.c.h.b16 %v176
  %v957 = vunpack.c.l.b16 %v177
  %v958 = vunpack.c.h.b16 %v177
  %v959 = vunpack.c.l.b16 %v178
  %v960 = vunpack.c.h.b16 %v178
  %v961 = vunpack.c.l.b16 %v179
  %v962 = vunpack.c.h.b16 %v179
  %v963 = vunpack.c.l.b16 %v180
  %v964 = vunpack.c.h.b16 %v180
  %v965 = vunpack.c.l.b16 %v181
  %v966 = vunpack.c.h.b16 %v181
  %v967 = vunpack.c.l.b16 %v182
  %v968 = vunpack.c.h.b16 %v182
  %v969 = vunpack.c.l.b16 %v183
  %v970 = vunpack.c.h.b16 %v183
  %v971 = vunpack.c.l.b16 %v184
  %v972 = vunpack.c.h.b16 %v184
  %v973 = vunpack.c.l.b16 %v185
  %v974 = vunpack.c.h.b16 %v185
  %v975 = vunpack.c.l.b16 %v186
  %v976 = vunpack.c.h.b16 %v186
  %v977 = vunpack.c.l.b16 %v187
  %v978 = vunpack.c.h.b16 %v187
  %v979 = vunpack.c.l.b16 %v188
  %v980 = vunpack.c.h.b16 %v188
  %v981 = vunpack.c.l.b16 %v189
  %v982 = vunpack.c.h.b16 %v189
  %v983 = vunpack.c.l.b16 %v190
  %v984 = vunpack.c.h.b16 %v190
  %v985 = vunpack.c.l.b16 %v191
  %v986 = vunpack.c.h.b16 %v191
  %v987 = vunpack.c.l.b16 %v192
  %v988 = vunpack.c.h.b16 %v192
  %v989 = vunpack.c.l.b16 %v193
  %v990 = vunpack.c.h.b16 %v193
  %v991 = vunpack.c.l.b16 %v194
  %v992 = vunpack.c.h.b16 %v194
  %v993 = vunpack.c.l.b16 %v195
  %v994 = vunpack.c.h.b16 %v195
  %v995 = vunpack.c.l.b16 %v196
  %v996 = vunpack.c.h.b16 %v196
  %v997 = vunpack.c.l.b16 %v197
  %v998 = vunpack.c.h.b16 %v197
  %v999 = vunpack.c.l.b16 %v198
  %v1000 = vunpack.c.h.b16 %v198
  %v1001 = vunpack.c.l.b16 %v199
  %v1002 = vunpack.c.h.b16 %v199
  %v1003 = vunpack.c.l.b16 %v200
  %v1004 = vunpack.c.h.b16 %v200
  %v1005 = vunpack.c.l.b16 %v201
  %v1006 = vunpack.c.h.b16 %v201
  %v1007 = vunpack.c.l.b16 %v202
  %v1008 = vunpack.c.h.b16 %v202
  %v1009 = vunpack.c.l.b16 %v203
  %v1010 = vunpack.c.h.b16 %v203
  %v1011 = vunpack.c.l.b16 %v204
  %v1012 = vunpack.c.h.b16 %v204
  %v1013 = vunpack.c.l.b16 %v205
  %v1014 = vunpack.c.h.b16 %v205
  %v1015 = vunpack.c.l.b16 %v206
  %v1016 = vunpack.c.h.b16 %v206
  %v1017 = vunpack.c.l.b16 %v207
  %v1018 = vunpack.c.h.b16 %v207
  %v1019 = vunpack.c.l.b16 %v208
  %v1020 = vunpack.c.h.b16 %v208
  %v1021 = vunpack.c.l.b16 %v209
  %v1022 = vunpack.c.h.b16 %v209
  %v1023 = vunpack.c.l.b16 %v210
  %v1024 = vunpack.c.h.b16 %v210
  %v1025 = vunpack.c.l.b16 %v211
  %v1026 = vunpack.c.h.b16 %v211
  %v1027 = vunpack.c.l.b16 %v212
  %v1028 = vunpack.c.h.b16 %v212
  %v1029 = vunpack.c.l.b16 %v213
  %v1030 = vunpack.c.h.b16 %v213
  %v1031 = vunpack.c.l.b16 %v214
  %v1032 = vunpack.c.h.b16 %v214
  %v1033 = vunpack.c.l.b16 %v215
  %v1034 = vunpack.c.h.b16 %v215
  %v1035 = vunpack.c.l.b16 %v216
  %v1036 = vunpack.c.h.b16 %v216
  %v1037 = vunpack.c.l.b16 %v217
  %v1038 = vunpack.c.h.b16 %v217
  %v1039 = vunpack.c.l.b16 %v218
  %v1040 = vunpack.c.h.b16 %v218
  %v1041 = vunpack.c.l.b16 %v219
  %v1042 = vunpack.c.h.b16 %v219
  %v1043 = vunpack.c.l.b16 %v220
  %v1044 = vunpack.c.h.b16 %v220
  %v1045 = vunpack.c.l.b16 %v221
  %v1046 = vunpack.c.h.b16 %v221
  %v1047 = vunpack.c.l.b16 %v222
  %v1048 = vunpack.c.h.b16 %v222
  %v1049 = vunpack.c.l.b16 %v223
  %v1050 = vunpack.c.h.b16 %v223
  %v1051 = vunpack.c.l.b16 %v224
  %v1052 = vunpack.c.h.b16 %v224
  %v1053 = vunpack.c.l.b16 %v225
  %v1054 = vunpack.c.h.b16 %v225
  %v1055 = vunpack.c.l.b16 %v226
  %v1056 = vunpack.c.h.b16 %v226
  %v1057 = vunpack.c.l.b16 %v227
  %v1058 = vunpack.c.h.b16 %v227
  %v1059 = vunpack.c.l.b16 %v228
  %v1060 = vunpack.c.h.b16 %v228
  %v1061 = vunpack.c.l.b16 %v229
  %v1062 = vunpack.c.h.b16 %v229
  %v1063 = vunpack.c.l.b16 %v230
  %v1064 = vunpack.c.h.b16 %v230
  %v1065 = vunpack.c.l.b16 %v231
  %v1066 = vunpack.c.h.b16 %v231
  %v1067 = vunpack.c.l.b16 %v232
  %v1068 = vunpack.c.h.b16 %v232
  %v1069 = vunpack.c.l.b16 %v233
  %v1070 = vunpack.c.h.b16 %v233
  %v1071 = vunpack.c.l.b16 %v234
  %v1072 = vunpack.c.h.b16 %v234
  %v1073 = vunpack.c.l.b16 %v235
  %v1074 = vunpack.c.h.b16 %v235
  %v1075 = vunpack.c.l.b16 %v236
  %v1076 = vunpack.c.h.b16 %v236
  %v1077 = vunpack.c.l.b16 %v237
  %v1078 = vunpack.c.h.b16 %v237
  %v1079 = vunpack.c.l.b16 %v238
  %v1080 = vunpack.c.h.b16 %v238
  %v1081 = vunpack.c.l.b16 %v239
  %v1082 = vunpack.c.h.b16 %v239
  %v1083 = vunpack.c.l.b16 %v240
  %v1084 = vunpack.c.h.b16 %v240
  %v1085 = vunpack.c.l.b16 %v241
  %v1086 = vunpack.c.h.b16 %v241
  %v1087 = vunpack.c.l.b16 %v242
  %v1088 = vunpack.c.h.b16 %v242
  %v1089 = vunpack.c.l.b16 %v243
  %v1090 = vunpack.c.h.b16 %v243
  %v1091 = vunpack.c.l.b16 %v244
  %v1092 = vunpack.c.h.b16 %v244
  %v1093 = vunpack.c.l.b16 %v245
  %v1094 = vunpack.c.h.b16 %v245
  %v1095 = vunpack.c.l.b16 %v246
  %v1096 = vunpack.c.h.b16 %v246
  %v1097 = vunpack.c.l.b16 %v247
  %v1098 = vunpack.c.h.b16 %v247
  %v1099 = vunpack.c.l.b16 %v248
  %v1100 = vunpack.c.h.b16 %v248
  %v1101 = vunpack.c.l.b16 %v249
  %v1102 = vunpack.c.h.b16 %v249
  %v1103 = vunpack.c.l.b16 %v250
  %v1104 = vunpack.c.h.b16 %v250
  %v1105 = vunpack.c.l.b16 %v251
  %v1106 = vunpack.c.h.b16 %v251
  %v1107 = vunpack.c.l.b16 %v252
  %v1108 = vunpack.c.h.b16 %v252
  %v1109 = vunpack.c.l.b16 %v253
  %v1110 = vunpack.c.h.b16 %v253
  %v1111 = vunpack.c.l.b16 %v254
  %v1112 = vunpack.c.h.b16 %v254
  %v1113 = vunpack.c.l.b16 %v255
  %v1114 = vunpack.c.h.b16 %v255
  %v1115 = vunpack.c.l.b16 %v256
  %v1116 = vunpack.c.h.b16 %v256
  %v1117 = vunpack.c.l.b16 %v257
  %v1118 = vunpack.c.h.b16 %v257
  %v1119 = vunpack.c.l.b16 %v258
  %v1120 = vunpack.c.h.b16 %v258
  %v1121 = vunpack.c.l.b16 %v259
  %v1122 = vunpack.c.h.b16 %v259
  %v1123 = vunpack.c.l.b16 %v260
  %v1124 = vunpack.c.h.b16 %v260
  %v1125 = vunpack.c.l.b16 %v261
  %v1126 = vunpack.c.h.b16 %v261
  %v1127 = vunpack.c.l.b16 %v262
  %v1128 = vunpack.c.h.b16 %v262
  %v1129 = vunpack.c.l.b16 %v263
  %v1130 = vunpack.c.h.b16 %v263
  %v1131 = vunpack.c.l.b16 %v264
  %v1132 = vunpack.c.h.b16 %v264
  %v1133 = vunpack.c.l.b16 %v265
  %v1134 = vunpack.c.h.b16 %v265
  %v1135 = vunpack.c.l.b16 %v266
  %v1136 = vunpack.c.h.b16 %v266
  %v1137 = vunpack.c.l.b16 %v267
  %v1138 = vunpack.c.h.b16 %v267
  %v1139 = vunpack.c.l.b16 %v268
  %v1140 = vunpack.c.h.b16 %v268
  %v1141 = vunpack.c.l.b16 %v269
  %v1142 = vunpack.c.h.b16 %v269
  %v1143 = vunpack.c.l.b16 %v270
  %v1144 = vunpack.c.h.b16 %v270
  %v1145 = vunpack.c.l.b16 %v271
  %v1146 = vunpack.c.h.b16 %v271
  %v1147 = vunpack.c.l.b16 %v272
  %v1148 = vunpack.c.h.b16 %v272
  %v1149 = vunpack.c.l.b16 %v273
  %v1150 = vunpack.c.h.b16 %v273
  %v1151 = vunpack.c.l.b16 %v274
  %v1152 = vunpack.c.h.b16 %v274
  %v1153 = vunpack.c.l.b16 %v275
  %v1154 = vunpack.c.h.b16 %v275
  %v1155 = vunpack.c.l.b16 %v276
  %v1156 = vunpack.c.h.b16 %v276
  %v1157 = vunpack.c.l.b16 %v277
  %v1158 = vunpack.c.h.b16 %v277
  %v1159 = vunpack.c.l.b16 %v278
  %v1160 = vunpack.c.h.b16 %v278
  %v1161 = vunpack.c.l.b16 %v279
  %v1162 = vunpack.c.h.b16 %v279
  %v1163 = vunpack.c.l.b16 %v280
  %v1164 = vunpack.c.h.b16 %v280
  %v1165 = vunpack.c.l.b16 %v281
  %v1166 = vunpack.c.h.b16 %v281
  %v1167 = vunpack.c.l.b16 %v282
  %v1168 = vunpack.c.h.b16 %v282
  %v1169 = vunpack.c.l.b16 %v283
  %v1170 = vunpack.c.h.b16 %v283
  %v1171 = vunpack.c.l.b16 %v284
  %v1172 = vunpack.c.h.b16 %v284
  %v1173 = vunpack.c.l.b16 %v285
  %v1174 = vunpack.c.h.b16 %v285
  %v1175 = vunpack.c.l.b16 %v286
  %v1176 = vunpack.c.h.b16 %v286
  %v1177 = vunpack.c.l.b16 %v287
  %v1178 = vunpack.c.h.b16 %v287
  %v1179 = vunpack.c.l.b16 %v288
  %v1180 = vunpack.c.h.b16 %v288
  %v1181 = vunpack.c.l.b16 %v289
  %v1182 = vunpack.c.h.b16 %v289
  %v1183 = vunpack.c.l.b16 %v290
  %v1184 = vunpack.c.h.b16 %v290
  %v1185 = vunpack.c.l.b16 %v291
  %v1186 = vunpack.c.h.b16 %v291
  %v1187 = vunpack.c.l.b16 %v292
  %v1188 = vunpack.c.h.b16 %v292
  %v1189 = vunpack.c.l.b16 %v293
  %v1190 = vunpack.c.h.b16 %v293
  %v1191 = vunpack.c.l.b16 %v294
  %v1192 = vunpack.c.h.b16 %v294
  %v1193 = vunpack.c.l.b16 %v295
  %v1194 = vunpack.c.h.b16 %v295
  %v1195 = vunpack.c.l.b16 %v296
  %v1196 = vunpack.c.h.b16 %v296
  %v1197 = vunpack.c.l.b16 %v297
  %v1198 = vunpack.c.h.b16 %v297
  %v1199 = vunpack.c.l.b16 %v298
  %v1200 = vunpack.c.h.b16 %v298
  %v1201 = vunpack.c.l.b16 %v299
  %v1202 = vunpack.c.h.b16 %v299
  %v1203 = vunpack.c.l.b16 %v300
  %v1204 = vunpack.c.h.b16 %v300
  %v1205 = vunpack.c.l.b16 %v301
  %v1206 = vunpack.c.h.b16 %v301
  %v1207 = vunpack.c.l.b16 %v302
  %v1208 = vunpack.c.h.b16 %v302
  %v1209 = vunpack.c.l.b16 %v303
  %v1210 = vunpack.c.h.b16 %v303
  %v1211 = vunpack.c.l.b16 %v304
  %v1212 = vunpack.c.h.b16 %v304
  %v1213 = vunpack.c.l.b16 %v305
  %v1214 = vunpack.c.h.b16 %v305
  %v1215 = vunpack.c.l.b16 %v306
  %v1216 = vunpack.c.h.b16 %v306
  %v1217 = vunpack.c.l.b16 %v307
  %v1218 = vunpack.c.h.b16 %v307
  %v1219 = vunpack.c.l.b16 %v308
  %v1220 = vunpack.c.h.b16 %v308
  %v1221 = vunpack.c.l.b16 %v309
  %v1222 = vunpack.c.h.b16 %v309
  %v1223 = vunpack.c.l.b16 %v310
  %v1224 = vunpack.c.h.b16 %v310
  %v1225 = vunpack.c.l.b16 %v311
  %v1226 = vunpack.c.h.b16 %v311
  %v1227 = vunpack.c.l.b16 %v312
  %v1228 = vunpack.c.h.b16 %v312
  %v1229 = vunpack.c.l.b16 %v313
  %v1230 = vunpack.c.h.b16 %v313
  %v1231 = vunpack.c.l.b16 %v314
  %v1232 = vunpack.c.h.b16 %v314
  %v1233 = vunpack.c.l.b16 %v315
  %v1234 = vunpack.c.h.b16 %v315
  %v1235 = vunpack.c.l.b16 %v316
  %v1236 = vunpack.c.h.b16 %v316
  %v1237 = vunpack.c.l.b16 %v317
  %v1238 = vunpack.c.h.b16 %v317
  %v1239 = vunpack.c.l.b16 %v318
  %v1240 = vunpack.c.h.b16 %v318
  %v1241 = vunpack.c.l.b16 %v319
  %v1242 = vunpack.c.h.b16 %v319
  %v1243 = vunpack.c.l.b16 %v320
  %v1244 = vunpack.c.h.b16 %v320
  %v1245 = vunpack.c.l.b16 %v321
  %v1246 = vunpack.c.h.b16 %v321
  %v1247 = vunpack.c.l.b16 %v322
  %v1248 = vunpack.c.h.b16 %v322
  %v1249 = vunpack.c.l.b16 %v323
  %v1250 = vunpack.c.h.b16 %v323
  %v1251 = vunpack.c.l.b16 %v324
  %v1252 = vunpack.c.h.b16 %v324
  %v1253 = vpack.c.b16 %v743, %v741
  %v1254 = vpack.c.b16 %v744, %v742
  %v1255 = vpack.c.b16 %v747, %v745
  %v1256 = vpack.c.b16 %v748, %v746
  %v1257 = vpack.c.b16 %v751, %v749
  %v1258 = vpack.c.b16 %v752, %v750
  %v1259 = vpack.c.b16 %v755, %v753
  %v1260 = vpack.c.b16 %v756, %v754
  %v1261 = vpack.c.b16 %v759, %v757
  %v1262 = vpack.c.b16 %v760, %v758
  %v1263 = vpack.c.b16 %v763, %v761
  %v1264 = vpack.c.b16 %v764, %v762
  %v1265 = vpack.c.b16 %v767, %v765
  %v1266 = vpack.c.b16 %v768, %v766
  %v1267 = vpack.c.b16 %v771, %v769
  %v1268 = vpack.c.b16 %v772, %v770
  %v1269 = vpack.c.b16 %v775, %v773
  %v1270 = vpack.c.b16 %v776, %v774
  %v1271 = vpack.c.b16 %v779, %v777
  %v1272 = vpack.c.b16 %v780, %v778
  %v1273 = vpack.c.b16 %v783, %v781
  %v1274 = vpack.c.b16 %v784, %v782
  %v1275 = vpack.c.b16 %v787, %v785
  %v1276 = vpack.c.b16 %v788, %v786
  %v1277 = vpack.c.b16 %v791, %v789
  %v1278 = vpack.c.b16 %v792, %v790
  %v1279 = vpack.c.b16 %v795, %v793
  %v1280 = vpack.c.b16 %v796, %v794
  %v1281 = vpack.c.b16 %v799, %v797
  %v1282 = vpack.c.b16 %v800, %v798
  %v1283 = vpack.c.b16 %v803, %v801
  %v1284 = vpack.c.b16 %v804, %v802
  %v1285 = vpack.c.b16 %v807, %v805
  %v1286 = vpack.c.b16 %v808, %v806
  %v1287 = vpack.c.b16 %v811, %v809
  %v1288 = vpack.c.b16 %v812, %v810
  %v1289 = vpack.c.b16 %v815, %v813
  %v1290 = vpack.c.b16 %v816, %v814
  %v1291 = vpack.c.b16 %v819, %v817
  %v1292 = vpack.c.b16 %v820, %v818
  %v1293 = vpack.c.b16 %v823, %v821
  %v1294 = vpack.c.b16 %v824, %v822
  %v1295 = vpack.c.b16 %v827, %v825
  %v1296 = vpack.c.b16 %v828, %v826
  %v1297 = vpack.c.b16 %v831, %v829
  %v1298 = vpack.c.b16 %v832, %v830
  %v1299 = vpack.c.b16 %v835, %v833
  %v1300 = vpack.c.b16 %v836, %v834
  %v1301 = vpack.c.b16 %v839, %v837
  %v1302 = vpack.c.b16 %v840, %v838
  %v1303 = vpack.c.b16 %v843, %v841
  %v1304 = vpack.c.b16 %v844, %v842
  %v1305 = vpack.c.b16 %v847, %v845
  %v1306 = vpack.c.b16 %v848, %v846
  %v1307 = vpack.c.b16 %v851, %v849
  %v1308 = vpack.c.b16 %v852, %v850
  %v1309 = vpack.c.b16 %v855, %v853
  %v1310 = vpack.c.b16 %v856, %v854
  %v1311 = vpack.c.b16 %v859, %v857
  %v1312 = vpack.c.b16 %v860, %v858
  %v1313 = vpack.c.b16 %v863, %v861
  %v1314 = vpack.c.b16 %v864, %v862
  %v1315 = vpack.c.b16 %v867, %v865
  %v1316 = vpack.c.b16 %v868, %v866
  %v1317 = vpack.c.b16 %v871, %v869
  %v1318 = vpack.c.b16 %v872, %v870
  %v1319 = vpack.c.b16 %v875, %v873
  %v1320 = vpack.c.b16 %v876, %v874
  %v1321 = vpack.c.b16 %v879, %v877
  %v1322 = vpack.c.b16 %v880, %v878
  %v1323 = vpack.c.b16 %v883, %v881
  %v1324 = vpack.c.b16 %v884, %v882
  %v1325 = vpack.c.b16 %v887, %v885
  %v1326 = vpack.c.b16 %v888, %v886
  %v1327 = vpack.c.b16 %v891, %v889
  %v1328 = vpack.c.b16 %v892, %v890
  %v1329 = vpack.c.b16 %v895, %v893
  %v1330 = vpack.c.b16 %v896, %v894
  %v1331 = vpack.c.b16 %v899, %v897
  %v1332 = vpack.c.b16 %v900, %v898
  %v1333 = vpack.c.b16 %v903, %v901
  %v1334 = vpack.c.b16 %v904, %v902
  %v1335 = vpack.c.b16 %v907, %v905
  %v1336 = vpack.c.b16 %v908, %v906
  %v1337 = vpack.c.b16 %v911, %v909
  %v1338 = vpack.c.b16 %v912, %v910
  %v1339 = vpack.c.b16 %v915, %v913
  %v1340 = vpack.c.b16 %v916, %v914
  %v1341 = vpack.c.b16 %v919, %v917
  %v1342 = vpack.c.b16 %v920, %v918
  %v1343 = vpack.c.b16 %v923, %v921
  %v1344 = vpack.c.b16 %v924, %v922
  %v1345 = vpack.c.b16 %v927, %v925
  %v1346 = vpack.c.b16 %v928, %v926
  %v1347 = vpack.c.b16 %v931, %v929
  %v1348 = vpack.c.b16 %v932, %v930
  %v1349 = vpack.c.b16 %v935, %v933
  %v1350 = vpack.c.b16 %v936, %v934
  %v1351 = vpack.c.b16 %v939, %v937
  %v1352 = vpack.c.b16 %v940, %v938
  %v1353 = vpack.c.b16 %v943, %v941
  %v1354 = vpack.c.b16 %v944, %v942
  %v1355 = vpack.c.b16 %v947, %v945
  %v1356 = vpack.c.b16 %v948, %v946
  %v1357 = vpack.c.b16 %v951, %v949
  %v1358 = vpack.c.b16 %v952, %v950
  %v1359 = vpack.c.b16 %v955, %v953
  %v1360 = vpack.c.b16 %v956, %v954
  %v1361 = vpack.c.b16 %v959, %v957
  %v1362 = vpack.c.b16 %v960, %v958
  %v1363 = vpack.c.b16 %v963, %v961
  %v1364 = vpack.c.b16 %v964, %v962
  %v1365 = vpack.c.b16 %v967, %v965
  %v1366 = vpack.c.b16 %v968, %v966
  %v1367 = vpack.c.b16 %v971, %v969
  %v1368 = vpack.c.b16 %v972, %v970
  %v1369 = vpack.c.b16 %v975, %v973
  %v1370 = vpack.c.b16 %v976, %v974
  %v1371 = vpack.c.b16 %v979, %v977
  %v1372 = vpack.c.b16 %v980, %v978
  %v1373 = vpack.c.b16 %v983, %v981
  %v1374 = vpack.c.b16 %v984, %v982
  %v1375 = vpack.c.b16 %v987, %v985
  %v1376 = vpack.c.b16 %v988, %v986
  %v1377 = vpack.c.b16 %v991, %v989
  %v1378 = vpack.c.b16 %v992, %v990
  %v1379 = vpack.c.b16 %v995, %v993
  %v1380 = vpack.c.b16 %v996, %v994
  %v1381 = vpack.c.b16 %v999, %v997
  %v1382 = vpack.c.b16 %v1000, %v998
  %v1383 = vpack.c.b16 %v1003, %v1001
  %v1384 = vpack.c.b16 %v1004, %v1002
  %v1385 = vpack.c.b16 %v1007, %v1005
  %v1386 = vpack.c.b16 %v1008, %v1006
  %v1387 = vpack.c.b16 %v1011, %v1009
  %v1388 = vpack.c.b16 %v1012, %v1010
  %v1389 = vpack.c.b16 %v1015, %v1013
  %v1390 = vpack.c.b16 %v1016, %v1014
  %v1391 = vpack.c.b16 %v1019, %v1017
  %v1392 = vpack.c.b16 %v1020, %v1018
  %v1393 = vpack.c.b16 %v1023, %v1021
  %v1394 = vpack.c.b16 %v1024, %v1022
  %v1395 = vpack.c.b16 %v1027, %v1025
  %v1396 = vpack.c.b16 %v1028, %v1026
  %v1397 = vpack.c.b16 %v1031, %v1029
  %v1398 = vpack.c.b16 %v1032, %v1030
  %v1399 = vpack.c.b16 %v1035, %v1033
  %v1400 = vpack.c.b16 %v1036, %v1034
  %v1401 = vpack.c.b16 %v1039, %v1037
  %v1402 = vpack.c.b16 %v1040, %v1038
  %v1403 = vpack.c.b16 %v1043, %v1041
  %v1404 = vpack.c.b16 %v1044, %v1042
  %v1405 = vpack.c.b16 %v1047, %v1045
  %v1406 = vpack.c.b16 %v1048, %v1046
  %v1407 = vpack.c.b16 %v1051, %v1049
  %v1408 = vpack.c.b16 %v1052, %v1050
  %v1409 = vpack.c.b16 %v1055, %v1053
  %v1410 = vpack.c.b16 %v1056, %v1054
  %v1411 = vpack.c.b16 %v1059, %v1057
  %v1412 = vpack.c.b16 %v1060, %v1058
  %v1413 = vpack.c.b16 %v1063, %v1061
  %v1414 = vpack.c.b16 %v1064, %v1062
  %v1415 = vpack.c.b16 %v1067, %v1065
  %v1416 = vpack.c.b16 %v1068, %v1066
  %v1417 = vpack.c.b16 %v1071, %v1069
  %v1418 = vpack.c.b16 %v1072, %v1070
  %v1419 = vpack.c.b16 %v1075, %v1073
  %v1420 = vpack.c.b16 %v1076, %v1074
  %v1421 = vpack.c.b16 %v1079, %v1077
  %v1422 = vpack.c.b16 %v1080, %v1078
  %v1423 = vpack.c.b16 %v1083, %v1081
  %v1424 = vpack.c.b16 %v1084, %v1082
  %v1425 = vpack.c.b16 %v1087, %v1085
  %v1426 = vpack.c.b16 %v1088, %v1086
  %v1427 = vpack.c.b16 %v1091, %v1089
  %v1428 = vpack.c.b16 %v1092, %v1090
  %v1429 = vpack.c.b16 %v1095, %v1093
  %v1430 = vpack.c.b16 %v1096, %v1094
  %v1431 = vpack.c.b16 %v1099, %v1097
  %v1432 = vpack.c.b16 %v1100, %v1098
  %v1433 = vpack.c.b16 %v1103, %v1101
  %v1434 = vpack.c.b16 %v1104, %v1102
  %v1435 = vpack.c.b16 %v1107, %v1105
  %v1436 = vpack.c.b16 %v1108, %v1106
  %v1437 = vpack.c.b16 %v1111, %v1109
  %v1438 = vpack.c.b16 %v1112, %v1110
  %v1439 = vpack.c.b16 %v1115, %v1113
  %v1440 = vpack.c.b16 %v1116, %v1114
  %v1441 = vpack.c.b16 %v1119, %v1117
  %v1442 = vpack.c.b16 %v1120, %v1118
  %v1443 = vpack.c.b16 %v1123, %v1121
  %v1444 = vpack.c.b16 %v1124, %v1122
  %v1445 = vpack.c.b16 %v1127, %v1125
  %v1446 = vpack.c.b16 %v1128, %v1126
  %v1447 = vpack.c.b16 %v1131, %v1129
  %v1448 = vpack.c.b16 %v1132, %v1130
  %v1449 = vpack.c.b16 %v1135, %v1133
  %v1450 = vpack.c.b16 %v1136, %v1134
  %v1451 = vpack.c.b16 %v1139, %v1137
  %v1452 = vpack.c.b16 %v1140, %v1138
  %v1453 = vpack.c.b16 %v1143, %v1141
  %v1454 = vpack.c.b16 %v1144, %v1142
  %v1455 = vpack.c.b16 %v1147, %v1145
  %v1456 = vpack.c.b16 %v1148, %v1146
  %v1457 = vpack.c.b16 %v1151, %v1149
  %v1458 = vpack.c.b16 %v1152, %v1150
  %v1459 = vpack.c.b16 %v1155, %v1153
  %v1460 = vpack.c.b16 %v1156, %v1154
  %v1461 = vpack.c.b16 %v1159, %v1157
  %v1462 = vpack.c.b16 %v1160, %v1158
  %v1463 = vpack.c.b16 %v1163, %v1161
  %v1464 = vpack.c.b16 %v1164, %v1162
  %v1465 = vpack.c.b16 %v1167, %v1165
  %v1466 = vpack.c.b16 %v1168, %v1166
  %v1467 = vpack.c.b16 %v1171, %v1169
  %v1468 = vpack.c.b16 %v1172, %v1170
  %v1469 = vpack.c.b16 %v1175, %v1173
  %v1470 = vpack.c.b16 %v1176, %v1174
  %v1471 = vpack.c.b16 %v1179, %v1177
  %v1472 = vpack.c.b16 %v1180, %v1178
  %v1473 = vpack.c.b16 %v1183, %v1181
  %v1474 = vpack.c.b16 %v1184, %v1182
  %v1475 = vpack.c.b16 %v1187, %v1185
  %v1476 = vpack.c.b16 %v1188, %v1186
  %v1477 = vpack.c.b16 %v1191, %v1189
  %v1478 = vpack.c.b16 %v1192, %v1190
  %v1479 = vpack.c.b16 %v1195, %v1193
  %v1480 = vpack.c.b16 %v1196, %v1194
  %v1481 = vpack.c.b16 %v1199, %v1197
  %v1482 = vpack.c.b16 %v1200, %v1198
  %v1483 = vpack.c.b16 %v1203, %v1201
  %v1484 = vpack.c.b16 %v1204, %v1202
  %v1485 = vpack.c.b16 %v1207, %v1205
  %v1486 = vpack.c.b16 %v1208, %v1206
  %v1487 = vpack.c.b16 %v1211, %v1209
  %v1488 = vpack.c.b16 %v1212, %v1210
  %v1489 = vpack.c.b16 %v1215, %v1213
  %v1490 = vpack.c.b16 %v1216, %v1214
  %v1491 = vpack.c.b16 %v1219, %v1217
  %v1492 = vpack.c.b16 %v1220, %v1218
  %v1493 = vpack.c.b16 %v1223, %v1221
  %v1494 = vpack.c.b16 %v1224, %v1222
  %v1495 = vpack.c.b16 %v1227, %v1225
  %v1496 = vpack.c.b16 %v1228, %v1226
  %v1497 = vpack.c.b16 %v1231, %v1229
  %v1498 = vpack.c.b16 %v1232, %v1230
  %v1499 = vpack.c.b16 %v1235, %v1233
  %v1500 = vpack.c.b16 %v1236, %v1234
  %v1501 = vpack.c.b16 %v1239, %v1237
  %v1502 = vpack.c.b16 %v1240, %v1238
  %v1503 = vpack.c.b16 %v1243, %v1241
  %v1504 = vpack.c.b16 %v1244, %v1242
  %v1505 = vpack.c.b16 %v1247, %v1245
  %v1506 = vpack.c.b16 %v1248, %v1246
  %v1507 = vpack.c.b16 %v1251, %v1249
  %v1508 = vpack.c.b16 %v1252, %v1250
  %1765 = vmatpush.bf16.msra.mxu0 %v1267
  %1766 = vmatpush.bf16.msra.mxu0 %v1265
  %1767 = vmatpush.bf16.msra.mxu0 %v1263
  %1768 = vmatpush.bf16.msra.mxu0 %v1261
  %1769 = vmatpush.bf16.msra.mxu0 %v1259
  %1770 = vmatpush.bf16.msra.mxu0 %v1257
  %1771 = vmatpush.bf16.msra.mxu0 %v1255
  %1772 = vmatpush.bf16.msra.mxu0 %v1253
  %1773 = vmatmul.bf16.gmra.mxu0 %v421
  %v1774 = vpop.f32.mrf.mxu0
  %v1775 = vadd.f32 0.0, %v1774
  %v1776 = vpop.f32.mrf.mxu0
  %v1777 = vadd.f32 0.0, %v1776
  %1778 = vmatmul.bf16.gmra.mxu0 %v437
  %v1779 = vpop.f32.mrf.mxu0
  %v1780 = vadd.f32 0.0, %v1779
  %v1781 = vpop.f32.mrf.mxu0
  %v1782 = vadd.f32 0.0, %v1781
  %1783 = vdwg.mxu0
  %1784 = vmatpush.bf16.msra.mxu0 %v1283
  %1785 = vmatpush.bf16.msra.mxu0 %v1281
  %1786 = vmatpush.bf16.msra.mxu0 %v1279
  %1787 = vmatpush.bf16.msra.mxu0 %v1277
  %1788 = vmatpush.bf16.msra.mxu0 %v1275
  %1789 = vmatpush.bf16.msra.mxu0 %v1273
  %1790 = vmatpush.bf16.msra.mxu0 %v1271
  %1791 = vmatpush.bf16.msra.mxu0 %v1269
  %1792 = vmatmul.bf16.gmra.mxu0 %v422
  %v1793 = vpop.f32.mrf.mxu0
  %v1794 = vadd.f32 %v1775, %v1793
  %v1795 = vpop.f32.mrf.mxu0
  %v1796 = vadd.f32 %v1777, %v1795
  %1797 = vmatmul.bf16.gmra.mxu0 %v438
  %v1798 = vpop.f32.mrf.mxu0
  %v1799 = vadd.f32 %v1780, %v1798
  %v1800 = vpop.f32.mrf.mxu0
  %v1801 = vadd.f32 %v1782, %v1800
  %1802 = vdwg.mxu0
  %1803 = vmatpush.bf16.msra.mxu0 %v1299
  %1804 = vmatpush.bf16.msra.mxu0 %v1297
  %1805 = vmatpush.bf16.msra.mxu0 %v1295
  %1806 = vmatpush.bf16.msra.mxu0 %v1293
  %1807 = vmatpush.bf16.msra.mxu0 %v1291
  %1808 = vmatpush.bf16.msra.mxu0 %v1289
  %1809 = vmatpush.bf16.msra.mxu0 %v1287
  %1810 = vmatpush.bf16.msra.mxu0 %v1285
  %1811 = vmatmul.bf16.gmra.mxu0 %v423
  %v1812 = vpop.f32.mrf.mxu0
  %v1813 = vadd.f32 %v1794, %v1812
  %v1814 = vpop.f32.mrf.mxu0
  %v1815 = vadd.f32 %v1796, %v1814
  %1816 = vmatmul.bf16.gmra.mxu0 %v439
  %v1817 = vpop.f32.mrf.mxu0
  %v1818 = vadd.f32 %v1799, %v1817
  %v1819 = vpop.f32.mrf.mxu0
  %v1820 = vadd.f32 %v1801, %v1819
  %1821 = vdwg.mxu0
  %1822 = vmatpush.bf16.msra.mxu0 %v1315
  %1823 = vmatpush.bf16.msra.mxu0 %v1313
  %1824 = vmatpush.bf16.msra.mxu0 %v1311
  %1825 = vmatpush.bf16.msra.mxu0 %v1309
  %1826 = vmatpush.bf16.msra.mxu0 %v1307
  %1827 = vmatpush.bf16.msra.mxu0 %v1305
  %1828 = vmatpush.bf16.msra.mxu0 %v1303
  %1829 = vmatpush.bf16.msra.mxu0 %v1301
  %1830 = vmatmul.bf16.gmra.mxu0 %v424
  %v1831 = vpop.f32.mrf.mxu0
  %v1832 = vadd.f32 %v1813, %v1831
  %v1833 = vpop.f32.mrf.mxu0
  %v1834 = vadd.f32 %v1815, %v1833
  %1835 = vmatmul.bf16.gmra.mxu0 %v440
  %v1836 = vpop.f32.mrf.mxu0
  %v1837 = vadd.f32 %v1818, %v1836
  %v1838 = vpop.f32.mrf.mxu0
  %v1839 = vadd.f32 %v1820, %v1838
  %1840 = vdwg.mxu0
  %1841 = vmatpush.bf16.msra.mxu0 %v1331
  %1842 = vmatpush.bf16.msra.mxu0 %v1329
  %1843 = vmatpush.bf16.msra.mxu0 %v1327
  %1844 = vmatpush.bf16.msra.mxu0 %v1325
  %1845 = vmatpush.bf16.msra.mxu0 %v1323
  %1846 = vmatpush.bf16.msra.mxu0 %v1321
  %1847 = vmatpush.bf16.msra.mxu0 %v1319
  %1848 = vmatpush.bf16.msra.mxu0 %v1317
  %1849 = vmatmul.bf16.gmra.mxu0 %v425
  %v1850 = vpop.f32.mrf.mxu0
  %v1851 = vadd.f32 %v1832, %v1850
  %v1852 = vpop.f32.mrf.mxu0
  %v1853 = vadd.f32 %v1834, %v1852
  %1854 = vmatmul.bf16.gmra.mxu0 %v441
  %v1855 = vpop.f32.mrf.mxu0
  %v1856 = vadd.f32 %v1837, %v1855
  %v1857 = vpop.f32.mrf.mxu0
  %v1858 = vadd.f32 %v1839, %v1857
  %1859 = vdwg.mxu0
  %1860 = vmatpush.bf16.msra.mxu0 %v1347
  %1861 = vmatpush.bf16.msra.mxu0 %v1345
  %1862 = vmatpush.bf16.msra.mxu0 %v1343
  %1863 = vmatpush.bf16.msra.mxu0 %v1341
  %1864 = vmatpush.bf16.msra.mxu0 %v1339
  %1865 = vmatpush.bf16.msra.mxu0 %v1337
  %1866 = vmatpush.bf16.msra.mxu0 %v1335
  %1867 = vmatpush.bf16.msra.mxu0 %v1333
  %1868 = vmatmul.bf16.gmra.mxu0 %v426
  %v1869 = vpop.f32.mrf.mxu0
  %v1870 = vadd.f32 %v1851, %v1869
  %v1871 = vpop.f32.mrf.mxu0
  %v1872 = vadd.f32 %v1853, %v1871
  %1873 = vmatmul.bf16.gmra.mxu0 %v442
  %v1874 = vpop.f32.mrf.mxu0
  %v1875 = vadd.f32 %v1856, %v1874
  %v1876 = vpop.f32.mrf.mxu0
  %v1877 = vadd.f32 %v1858, %v1876
  %1878 = vdwg.mxu0
  %1879 = vmatpush.bf16.msra.mxu0 %v1363
  %1880 = vmatpush.bf16.msra.mxu0 %v1361
  %1881 = vmatpush.bf16.msra.mxu0 %v1359
  %1882 = vmatpush.bf16.msra.mxu0 %v1357
  %1883 = vmatpush.bf16.msra.mxu0 %v1355
  %1884 = vmatpush.bf16.msra.mxu0 %v1353
  %1885 = vmatpush.bf16.msra.mxu0 %v1351
  %1886 = vmatpush.bf16.msra.mxu0 %v1349
  %1887 = vmatmul.bf16.gmra.mxu0 %v427
  %v1888 = vpop.f32.mrf.mxu0
  %v1889 = vadd.f32 %v1870, %v1888
  %v1890 = vpop.f32.mrf.mxu0
  %v1891 = vadd.f32 %v1872, %v1890
  %1892 = vmatmul.bf16.gmra.mxu0 %v443
  %v1893 = vpop.f32.mrf.mxu0
  %v1894 = vadd.f32 %v1875, %v1893
  %v1895 = vpop.f32.mrf.mxu0
  %v1896 = vadd.f32 %v1877, %v1895
  %1897 = vdwg.mxu0
  %1898 = vmatpush.bf16.msra.mxu0 %v1379
  %1899 = vmatpush.bf16.msra.mxu0 %v1377
  %1900 = vmatpush.bf16.msra.mxu0 %v1375
  %1901 = vmatpush.bf16.msra.mxu0 %v1373
  %1902 = vmatpush.bf16.msra.mxu0 %v1371
  %1903 = vmatpush.bf16.msra.mxu0 %v1369
  %1904 = vmatpush.bf16.msra.mxu0 %v1367
  %1905 = vmatpush.bf16.msra.mxu0 %v1365
  %1906 = vmatmul.bf16.gmra.mxu0 %v428
  %v1907 = vpop.f32.mrf.mxu0
  %v1908 = vadd.f32 %v1889, %v1907
  %v1909 = vpop.f32.mrf.mxu0
  %v1910 = vadd.f32 %v1891, %v1909
  %1911 = vmatmul.bf16.gmra.mxu0 %v444
  %v1912 = vpop.f32.mrf.mxu0
  %v1913 = vadd.f32 %v1894, %v1912
  %v1914 = vpop.f32.mrf.mxu0
  %v1915 = vadd.f32 %v1896, %v1914
  %1916 = vdwg.mxu0
  %1917 = vmatpush.bf16.msra.mxu0 %v1395
  %1918 = vmatpush.bf16.msra.mxu0 %v1393
  %1919 = vmatpush.bf16.msra.mxu0 %v1391
  %1920 = vmatpush.bf16.msra.mxu0 %v1389
  %1921 = vmatpush.bf16.msra.mxu0 %v1387
  %1922 = vmatpush.bf16.msra.mxu0 %v1385
  %1923 = vmatpush.bf16.msra.mxu0 %v1383
  %1924 = vmatpush.bf16.msra.mxu0 %v1381
  %1925 = vmatmul.bf16.gmra.mxu0 %v429
  %v1926 = vpop.f32.mrf.mxu0
  %v1927 = vadd.f32 %v1908, %v1926
  %v1928 = vpop.f32.mrf.mxu0
  %v1929 = vadd.f32 %v1910, %v1928
  %1930 = vmatmul.bf16.gmra.mxu0 %v445
  %v1931 = vpop.f32.mrf.mxu0
  %v1932 = vadd.f32 %v1913, %v1931
  %v1933 = vpop.f32.mrf.mxu0
  %v1934 = vadd.f32 %v1915, %v1933
  %1935 = vdwg.mxu0
  %1936 = vmatpush.bf16.msra.mxu0 %v1411
  %1937 = vmatpush.bf16.msra.mxu0 %v1409
  %1938 = vmatpush.bf16.msra.mxu0 %v1407
  %1939 = vmatpush.bf16.msra.mxu0 %v1405
  %1940 = vmatpush.bf16.msra.mxu0 %v1403
  %1941 = vmatpush.bf16.msra.mxu0 %v1401
  %1942 = vmatpush.bf16.msra.mxu0 %v1399
  %1943 = vmatpush.bf16.msra.mxu0 %v1397
  %1944 = vmatmul.bf16.gmra.mxu0 %v430
  %v1945 = vpop.f32.mrf.mxu0
  %v1946 = vadd.f32 %v1927, %v1945
  %v1947 = vpop.f32.mrf.mxu0
  %v1948 = vadd.f32 %v1929, %v1947
  %1949 = vmatmul.bf16.gmra.mxu0 %v446
  %v1950 = vpop.f32.mrf.mxu0
  %v1951 = vadd.f32 %v1932, %v1950
  %v1952 = vpop.f32.mrf.mxu0
  %v1953 = vadd.f32 %v1934, %v1952
  %1954 = vdwg.mxu0
  %1955 = vmatpush.bf16.msra.mxu0 %v1427
  %1956 = vmatpush.bf16.msra.mxu0 %v1425
  %1957 = vmatpush.bf16.msra.mxu0 %v1423
  %1958 = vmatpush.bf16.msra.mxu0 %v1421
  %1959 = vmatpush.bf16.msra.mxu0 %v1419
  %1960 = vmatpush.bf16.msra.mxu0 %v1417
  %1961 = vmatpush.bf16.msra.mxu0 %v1415
  %1962 = vmatpush.bf16.msra.mxu0 %v1413
  %1963 = vmatmul.bf16.gmra.mxu0 %v431
  %v1964 = vpop.f32.mrf.mxu0
  %v1965 = vadd.f32 %v1946, %v1964
  %v1966 = vpop.f32.mrf.mxu0
  %v1967 = vadd.f32 %v1948, %v1966
  %1968 = vmatmul.bf16.gmra.mxu0 %v447
  %v1969 = vpop.f32.mrf.mxu0
  %v1970 = vadd.f32 %v1951, %v1969
  %v1971 = vpop.f32.mrf.mxu0
  %v1972 = vadd.f32 %v1953, %v1971
  %1973 = vdwg.mxu0
  %1974 = vmatpush.bf16.msra.mxu0 %v1443
  %1975 = vmatpush.bf16.msra.mxu0 %v1441
  %1976 = vmatpush.bf16.msra.mxu0 %v1439
  %1977 = vmatpush.bf16.msra.mxu0 %v1437
  %1978 = vmatpush.bf16.msra.mxu0 %v1435
  %1979 = vmatpush.bf16.msra.mxu0 %v1433
  %1980 = vmatpush.bf16.msra.mxu0 %v1431
  %1981 = vmatpush.bf16.msra.mxu0 %v1429
  %1982 = vmatmul.bf16.gmra.mxu0 %v432
  %v1983 = vpop.f32.mrf.mxu0
  %v1984 = vadd.f32 %v1965, %v1983
  %v1985 = vpop.f32.mrf.mxu0
  %v1986 = vadd.f32 %v1967, %v1985
  %1987 = vmatmul.bf16.gmra.mxu0 %v448
  %v1988 = vpop.f32.mrf.mxu0
  %v1989 = vadd.f32 %v1970, %v1988
  %v1990 = vpop.f32.mrf.mxu0
  %v1991 = vadd.f32 %v1972, %v1990
  %1992 = vdwg.mxu0
  %1993 = vmatpush.bf16.msra.mxu0 %v1459
  %1994 = vmatpush.bf16.msra.mxu0 %v1457
  %1995 = vmatpush.bf16.msra.mxu0 %v1455
  %1996 = vmatpush.bf16.msra.mxu0 %v1453
  %1997 = vmatpush.bf16.msra.mxu0 %v1451
  %1998 = vmatpush.bf16.msra.mxu0 %v1449
  %1999 = vmatpush.bf16.msra.mxu0 %v1447
  %2000 = vmatpush.bf16.msra.mxu0 %v1445
  %2001 = vmatmul.bf16.gmra.mxu0 %v433
  %v2002 = vpop.f32.mrf.mxu0
  %v2003 = vadd.f32 %v1984, %v2002
  %v2004 = vpop.f32.mrf.mxu0
  %v2005 = vadd.f32 %v1986, %v2004
  %2006 = vmatmul.bf16.gmra.mxu0 %v449
  %v2007 = vpop.f32.mrf.mxu0
  %v2008 = vadd.f32 %v1989, %v2007
  %v2009 = vpop.f32.mrf.mxu0
  %v2010 = vadd.f32 %v1991, %v2009
  %2011 = vdwg.mxu0
  %2012 = vmatpush.bf16.msra.mxu0 %v1475
  %2013 = vmatpush.bf16.msra.mxu0 %v1473
  %2014 = vmatpush.bf16.msra.mxu0 %v1471
  %2015 = vmatpush.bf16.msra.mxu0 %v1469
  %2016 = vmatpush.bf16.msra.mxu0 %v1467
  %2017 = vmatpush.bf16.msra.mxu0 %v1465
  %2018 = vmatpush.bf16.msra.mxu0 %v1463
  %2019 = vmatpush.bf16.msra.mxu0 %v1461
  %2020 = vmatmul.bf16.gmra.mxu0 %v434
  %v2021 = vpop.f32.mrf.mxu0
  %v2022 = vadd.f32 %v2003, %v2021
  %v2023 = vpop.f32.mrf.mxu0
  %v2024 = vadd.f32 %v2005, %v2023
  %2025 = vmatmul.bf16.gmra.mxu0 %v450
  %v2026 = vpop.f32.mrf.mxu0
  %v2027 = vadd.f32 %v2008, %v2026
  %v2028 = vpop.f32.mrf.mxu0
  %v2029 = vadd.f32 %v2010, %v2028
  %2030 = vdwg.mxu0
  %2031 = vmatpush.bf16.msra.mxu0 %v1491
  %2032 = vmatpush.bf16.msra.mxu0 %v1489
  %2033 = vmatpush.bf16.msra.mxu0 %v1487
  %2034 = vmatpush.bf16.msra.mxu0 %v1485
  %2035 = vmatpush.bf16.msra.mxu0 %v1483
  %2036 = vmatpush.bf16.msra.mxu0 %v1481
  %2037 = vmatpush.bf16.msra.mxu0 %v1479
  %2038 = vmatpush.bf16.msra.mxu0 %v1477
  %2039 = vmatmul.bf16.gmra.mxu0 %v435
  %v2040 = vpop.f32.mrf.mxu0
  %v2041 = vadd.f32 %v2022, %v2040
  %v2042 = vpop.f32.mrf.mxu0
  %v2043 = vadd.f32 %v2024, %v2042
  %2044 = vmatmul.bf16.gmra.mxu0 %v451
  %v2045 = vpop.f32.mrf.mxu0
  %v2046 = vadd.f32 %v2027, %v2045
  %v2047 = vpop.f32.mrf.mxu0
  %v2048 = vadd.f32 %v2029, %v2047
  %2049 = vdwg.mxu0
  %2050 = vmatpush.bf16.msra.mxu0 %v1507
  %2051 = vmatpush.bf16.msra.mxu0 %v1505
  %2052 = vmatpush.bf16.msra.mxu0 %v1503
  %2053 = vmatpush.bf16.msra.mxu0 %v1501
  %2054 = vmatpush.bf16.msra.mxu0 %v1499
  %2055 = vmatpush.bf16.msra.mxu0 %v1497
  %2056 = vmatpush.bf16.msra.mxu0 %v1495
  %2057 = vmatpush.bf16.msra.mxu0 %v1493
  %2058 = vmatmul.bf16.gmra.mxu0 %v436
  %v2059 = vpop.f32.mrf.mxu0
  %v2060 = vadd.f32 %v2041, %v2059
  %v2061 = vpop.f32.mrf.mxu0
  %v2062 = vadd.f32 %v2043, %v2061
  %2063 = vmatmul.bf16.gmra.mxu0 %v452
  %v2064 = vpop.f32.mrf.mxu0
  %v2065 = vadd.f32 %v2046, %v2064
  %v2066 = vpop.f32.mrf.mxu0
  %v2067 = vadd.f32 %v2048, %v2066
  %2068 = vdwg.mxu0
  %2069 = vmatpush.bf16.msra.mxu0 %v1268
  %2070 = vmatpush.bf16.msra.mxu0 %v1266
  %2071 = vmatpush.bf16.msra.mxu0 %v1264
  %2072 = vmatpush.bf16.msra.mxu0 %v1262
  %2073 = vmatpush.bf16.msra.mxu0 %v1260
  %2074 = vmatpush.bf16.msra.mxu0 %v1258
  %2075 = vmatpush.bf16.msra.mxu0 %v1256
  %2076 = vmatpush.bf16.msra.mxu0 %v1254
  %2077 = vmatmul.bf16.gmra.mxu0 %v421
  %v2078 = vpop.f32.mrf.mxu0
  %v2079 = vadd.f32 0.0, %v2078
  %v2080 = vpop.f32.mrf.mxu0
  %v2081 = vadd.f32 0.0, %v2080
  %2082 = vmatmul.bf16.gmra.mxu0 %v437
  %v2083 = vpop.f32.mrf.mxu0
  %v2084 = vadd.f32 0.0, %v2083
  %v2085 = vpop.f32.mrf.mxu0
  %v2086 = vadd.f32 0.0, %v2085
  %2087 = vdwg.mxu0
  %2088 = vmatpush.bf16.msra.mxu0 %v1284
  %2089 = vmatpush.bf16.msra.mxu0 %v1282
  %2090 = vmatpush.bf16.msra.mxu0 %v1280
  %2091 = vmatpush.bf16.msra.mxu0 %v1278
  %2092 = vmatpush.bf16.msra.mxu0 %v1276
  %2093 = vmatpush.bf16.msra.mxu0 %v1274
  %2094 = vmatpush.bf16.msra.mxu0 %v1272
  %2095 = vmatpush.bf16.msra.mxu0 %v1270
  %2096 = vmatmul.bf16.gmra.mxu0 %v422
  %v2097 = vpop.f32.mrf.mxu0
  %v2098 = vadd.f32 %v2079, %v2097
  %v2099 = vpop.f32.mrf.mxu0
  %v2100 = vadd.f32 %v2081, %v2099
  %2101 = vmatmul.bf16.gmra.mxu0 %v438
  %v2102 = vpop.f32.mrf.mxu0
  %v2103 = vadd.f32 %v2084, %v2102
  %v2104 = vpop.f32.mrf.mxu0
  %v2105 = vadd.f32 %v2086, %v2104
  %2106 = vdwg.mxu0
  %2107 = vmatpush.bf16.msra.mxu0 %v1300
  %2108 = vmatpush.bf16.msra.mxu0 %v1298
  %2109 = vmatpush.bf16.msra.mxu0 %v1296
  %2110 = vmatpush.bf16.msra.mxu0 %v1294
  %2111 = vmatpush.bf16.msra.mxu0 %v1292
  %2112 = vmatpush.bf16.msra.mxu0 %v1290
  %2113 = vmatpush.bf16.msra.mxu0 %v1288
  %2114 = vmatpush.bf16.msra.mxu0 %v1286
  %2115 = vmatmul.bf16.gmra.mxu0 %v423
  %v2116 = vpop.f32.mrf.mxu0
  %v2117 = vadd.f32 %v2098, %v2116
  %v2118 = vpop.f32.mrf.mxu0
  %v2119 = vadd.f32 %v2100, %v2118
  %2120 = vmatmul.bf16.gmra.mxu0 %v439
  %v2121 = vpop.f32.mrf.mxu0
  %v2122 = vadd.f32 %v2103, %v2121
  %v2123 = vpop.f32.mrf.mxu0
  %v2124 = vadd.f32 %v2105, %v2123
  %2125 = vdwg.mxu0
  %2126 = vmatpush.bf16.msra.mxu0 %v1316
  %2127 = vmatpush.bf16.msra.mxu0 %v1314
  %2128 = vmatpush.bf16.msra.mxu0 %v1312
  %2129 = vmatpush.bf16.msra.mxu0 %v1310
  %2130 = vmatpush.bf16.msra.mxu0 %v1308
  %2131 = vmatpush.bf16.msra.mxu0 %v1306
  %2132 = vmatpush.bf16.msra.mxu0 %v1304
  %2133 = vmatpush.bf16.msra.mxu0 %v1302
  %2134 = vmatmul.bf16.gmra.mxu0 %v424
  %v2135 = vpop.f32.mrf.mxu0
  %v2136 = vadd.f32 %v2117, %v2135
  %v2137 = vpop.f32.mrf.mxu0
  %v2138 = vadd.f32 %v2119, %v2137
  %2139 = vmatmul.bf16.gmra.mxu0 %v440
  %v2140 = vpop.f32.mrf.mxu0
  %v2141 = vadd.f32 %v2122, %v2140
  %v2142 = vpop.f32.mrf.mxu0
  %v2143 = vadd.f32 %v2124, %v2142
  %2144 = vdwg.mxu0
  %2145 = vmatpush.bf16.msra.mxu0 %v1332
  %2146 = vmatpush.bf16.msra.mxu0 %v1330
  %2147 = vmatpush.bf16.msra.mxu0 %v1328
  %2148 = vmatpush.bf16.msra.mxu0 %v1326
  %2149 = vmatpush.bf16.msra.mxu0 %v1324
  %2150 = vmatpush.bf16.msra.mxu0 %v1322
  %2151 = vmatpush.bf16.msra.mxu0 %v1320
  %2152 = vmatpush.bf16.msra.mxu0 %v1318
  %2153 = vmatmul.bf16.gmra.mxu0 %v425
  %v2154 = vpop.f32.mrf.mxu0
  %v2155 = vadd.f32 %v2136, %v2154
  %v2156 = vpop.f32.mrf.mxu0
  %v2157 = vadd.f32 %v2138, %v2156
  %2158 = vmatmul.bf16.gmra.mxu0 %v441
  %v2159 = vpop.f32.mrf.mxu0
  %v2160 = vadd.f32 %v2141, %v2159
  %v2161 = vpop.f32.mrf.mxu0
  %v2162 = vadd.f32 %v2143, %v2161
  %2163 = vdwg.mxu0
  %2164 = vmatpush.bf16.msra.mxu0 %v1348
  %2165 = vmatpush.bf16.msra.mxu0 %v1346
  %2166 = vmatpush.bf16.msra.mxu0 %v1344
  %2167 = vmatpush.bf16.msra.mxu0 %v1342
  %2168 = vmatpush.bf16.msra.mxu0 %v1340
  %2169 = vmatpush.bf16.msra.mxu0 %v1338
  %2170 = vmatpush.bf16.msra.mxu0 %v1336
  %2171 = vmatpush.bf16.msra.mxu0 %v1334
  %2172 = vmatmul.bf16.gmra.mxu0 %v426
  %v2173 = vpop.f32.mrf.mxu0
  %v2174 = vadd.f32 %v2155, %v2173
  %v2175 = vpop.f32.mrf.mxu0
  %v2176 = vadd.f32 %v2157, %v2175
  %2177 = vmatmul.bf16.gmra.mxu0 %v442
  %v2178 = vpop.f32.mrf.mxu0
  %v2179 = vadd.f32 %v2160, %v2178
  %v2180 = vpop.f32.mrf.mxu0
  %v2181 = vadd.f32 %v2162, %v2180
  %2182 = vdwg.mxu0
  %2183 = vmatpush.bf16.msra.mxu0 %v1364
  %2184 = vmatpush.bf16.msra.mxu0 %v1362
  %2185 = vmatpush.bf16.msra.mxu0 %v1360
  %2186 = vmatpush.bf16.msra.mxu0 %v1358
  %2187 = vmatpush.bf16.msra.mxu0 %v1356
  %2188 = vmatpush.bf16.msra.mxu0 %v1354
  %2189 = vmatpush.bf16.msra.mxu0 %v1352
  %2190 = vmatpush.bf16.msra.mxu0 %v1350
  %2191 = vmatmul.bf16.gmra.mxu0 %v427
  %v2192 = vpop.f32.mrf.mxu0
  %v2193 = vadd.f32 %v2174, %v2192
  %v2194 = vpop.f32.mrf.mxu0
  %v2195 = vadd.f32 %v2176, %v2194
  %2196 = vmatmul.bf16.gmra.mxu0 %v443
  %v2197 = vpop.f32.mrf.mxu0
  %v2198 = vadd.f32 %v2179, %v2197
  %v2199 = vpop.f32.mrf.mxu0
  %v2200 = vadd.f32 %v2181, %v2199
  %2201 = vdwg.mxu0
  %2202 = vmatpush.bf16.msra.mxu0 %v1380
  %2203 = vmatpush.bf16.msra.mxu0 %v1378
  %2204 = vmatpush.bf16.msra.mxu0 %v1376
  %2205 = vmatpush.bf16.msra.mxu0 %v1374
  %2206 = vmatpush.bf16.msra.mxu0 %v1372
  %2207 = vmatpush.bf16.msra.mxu0 %v1370
  %2208 = vmatpush.bf16.msra.mxu0 %v1368
  %2209 = vmatpush.bf16.msra.mxu0 %v1366
  %2210 = vmatmul.bf16.gmra.mxu0 %v428
  %v2211 = vpop.f32.mrf.mxu0
  %v2212 = vadd.f32 %v2193, %v2211
  %v2213 = vpop.f32.mrf.mxu0
  %v2214 = vadd.f32 %v2195, %v2213
  %2215 = vmatmul.bf16.gmra.mxu0 %v444
  %v2216 = vpop.f32.mrf.mxu0
  %v2217 = vadd.f32 %v2198, %v2216
  %v2218 = vpop.f32.mrf.mxu0
  %v2219 = vadd.f32 %v2200, %v2218
  %2220 = vdwg.mxu0
  %2221 = vmatpush.bf16.msra.mxu0 %v1396
  %2222 = vmatpush.bf16.msra.mxu0 %v1394
  %2223 = vmatpush.bf16.msra.mxu0 %v1392
  %2224 = vmatpush.bf16.msra.mxu0 %v1390
  %2225 = vmatpush.bf16.msra.mxu0 %v1388
  %2226 = vmatpush.bf16.msra.mxu0 %v1386
  %2227 = vmatpush.bf16.msra.mxu0 %v1384
  %2228 = vmatpush.bf16.msra.mxu0 %v1382
  %2229 = vmatmul.bf16.gmra.mxu0 %v429
  %v2230 = vpop.f32.mrf.mxu0
  %v2231 = vadd.f32 %v2212, %v2230
  %v2232 = vpop.f32.mrf.mxu0
  %v2233 = vadd.f32 %v2214, %v2232
  %2234 = vmatmul.bf16.gmra.mxu0 %v445
  %v2235 = vpop.f32.mrf.mxu0
  %v2236 = vadd.f32 %v2217, %v2235
  %v2237 = vpop.f32.mrf.mxu0
  %v2238 = vadd.f32 %v2219, %v2237
  %2239 = vdwg.mxu0
  %2240 = vmatpush.bf16.msra.mxu0 %v1412
  %2241 = vmatpush.bf16.msra.mxu0 %v1410
  %2242 = vmatpush.bf16.msra.mxu0 %v1408
  %2243 = vmatpush.bf16.msra.mxu0 %v1406
  %2244 = vmatpush.bf16.msra.mxu0 %v1404
  %2245 = vmatpush.bf16.msra.mxu0 %v1402
  %2246 = vmatpush.bf16.msra.mxu0 %v1400
  %2247 = vmatpush.bf16.msra.mxu0 %v1398
  %2248 = vmatmul.bf16.gmra.mxu0 %v430
  %v2249 = vpop.f32.mrf.mxu0
  %v2250 = vadd.f32 %v2231, %v2249
  %v2251 = vpop.f32.mrf.mxu0
  %v2252 = vadd.f32 %v2233, %v2251
  %2253 = vmatmul.bf16.gmra.mxu0 %v446
  %v2254 = vpop.f32.mrf.mxu0
  %v2255 = vadd.f32 %v2236, %v2254
  %v2256 = vpop.f32.mrf.mxu0
  %v2257 = vadd.f32 %v2238, %v2256
  %2258 = vdwg.mxu0
  %2259 = vmatpush.bf16.msra.mxu0 %v1428
  %2260 = vmatpush.bf16.msra.mxu0 %v1426
  %2261 = vmatpush.bf16.msra.mxu0 %v1424
  %2262 = vmatpush.bf16.msra.mxu0 %v1422
  %2263 = vmatpush.bf16.msra.mxu0 %v1420
  %2264 = vmatpush.bf16.msra.mxu0 %v1418
  %2265 = vmatpush.bf16.msra.mxu0 %v1416
  %2266 = vmatpush.bf16.msra.mxu0 %v1414
  %2267 = vmatmul.bf16.gmra.mxu0 %v431
  %v2268 = vpop.f32.mrf.mxu0
  %v2269 = vadd.f32 %v2250, %v2268
  %v2270 = vpop.f32.mrf.mxu0
  %v2271 = vadd.f32 %v2252, %v2270
  %2272 = vmatmul.bf16.gmra.mxu0 %v447
  %v2273 = vpop.f32.mrf.mxu0
  %v2274 = vadd.f32 %v2255, %v2273
  %v2275 = vpop.f32.mrf.mxu0
  %v2276 = vadd.f32 %v2257, %v2275
  %2277 = vdwg.mxu0
  %2278 = vmatpush.bf16.msra.mxu0 %v1444
  %2279 = vmatpush.bf16.msra.mxu0 %v1442
  %2280 = vmatpush.bf16.msra.mxu0 %v1440
  %2281 = vmatpush.bf16.msra.mxu0 %v1438
  %2282 = vmatpush.bf16.msra.mxu0 %v1436
  %2283 = vmatpush.bf16.msra.mxu0 %v1434
  %2284 = vmatpush.bf16.msra.mxu0 %v1432
  %2285 = vmatpush.bf16.msra.mxu0 %v1430
  %2286 = vmatmul.bf16.gmra.mxu0 %v432
  %v2287 = vpop.f32.mrf.mxu0
  %v2288 = vadd.f32 %v2269, %v2287
  %v2289 = vpop.f32.mrf.mxu0
  %v2290 = vadd.f32 %v2271, %v2289
  %2291 = vmatmul.bf16.gmra.mxu0 %v448
  %v2292 = vpop.f32.mrf.mxu0
  %v2293 = vadd.f32 %v2274, %v2292
  %v2294 = vpop.f32.mrf.mxu0
  %v2295 = vadd.f32 %v2276, %v2294
  %2296 = vdwg.mxu0
  %2297 = vmatpush.bf16.msra.mxu0 %v1460
  %2298 = vmatpush.bf16.msra.mxu0 %v1458
  %2299 = vmatpush.bf16.msra.mxu0 %v1456
  %2300 = vmatpush.bf16.msra.mxu0 %v1454
  %2301 = vmatpush.bf16.msra.mxu0 %v1452
  %2302 = vmatpush.bf16.msra.mxu0 %v1450
  %2303 = vmatpush.bf16.msra.mxu0 %v1448
  %2304 = vmatpush.bf16.msra.mxu0 %v1446
  %2305 = vmatmul.bf16.gmra.mxu0 %v433
  %v2306 = vpop.f32.mrf.mxu0
  %v2307 = vadd.f32 %v2288, %v2306
  %v2308 = vpop.f32.mrf.mxu0
  %v2309 = vadd.f32 %v2290, %v2308
  %2310 = vmatmul.bf16.gmra.mxu0 %v449
  %v2311 = vpop.f32.mrf.mxu0
  %v2312 = vadd.f32 %v2293, %v2311
  %v2313 = vpop.f32.mrf.mxu0
  %v2314 = vadd.f32 %v2295, %v2313
  %2315 = vdwg.mxu0
  %2316 = vmatpush.bf16.msra.mxu0 %v1476
  %2317 = vmatpush.bf16.msra.mxu0 %v1474
  %2318 = vmatpush.bf16.msra.mxu0 %v1472
  %2319 = vmatpush.bf16.msra.mxu0 %v1470
  %2320 = vmatpush.bf16.msra.mxu0 %v1468
  %2321 = vmatpush.bf16.msra.mxu0 %v1466
  %2322 = vmatpush.bf16.msra.mxu0 %v1464
  %2323 = vmatpush.bf16.msra.mxu0 %v1462
  %2324 = vmatmul.bf16.gmra.mxu0 %v434
  %v2325 = vpop.f32.mrf.mxu0
  %v2326 = vadd.f32 %v2307, %v2325
  %v2327 = vpop.f32.mrf.mxu0
  %v2328 = vadd.f32 %v2309, %v2327
  %2329 = vmatmul.bf16.gmra.mxu0 %v450
  %v2330 = vpop.f32.mrf.mxu0
  %v2331 = vadd.f32 %v2312, %v2330
  %v2332 = vpop.f32.mrf.mxu0
  %v2333 = vadd.f32 %v2314, %v2332
  %2334 = vdwg.mxu0
  %2335 = vmatpush.bf16.msra.mxu0 %v1492
  %2336 = vmatpush.bf16.msra.mxu0 %v1490
  %2337 = vmatpush.bf16.msra.mxu0 %v1488
  %2338 = vmatpush.bf16.msra.mxu0 %v1486
  %2339 = vmatpush.bf16.msra.mxu0 %v1484
  %2340 = vmatpush.bf16.msra.mxu0 %v1482
  %2341 = vmatpush.bf16.msra.mxu0 %v1480
  %2342 = vmatpush.bf16.msra.mxu0 %v1478
  %2343 = vmatmul.bf16.gmra.mxu0 %v435
  %v2344 = vpop.f32.mrf.mxu0
  %v2345 = vadd.f32 %v2326, %v2344
  %v2346 = vpop.f32.mrf.mxu0
  %v2347 = vadd.f32 %v2328, %v2346
  %2348 = vmatmul.bf16.gmra.mxu0 %v451
  %v2349 = vpop.f32.mrf.mxu0
  %v2350 = vadd.f32 %v2331, %v2349
  %v2351 = vpop.f32.mrf.mxu0
  %v2352 = vadd.f32 %v2333, %v2351
  %2353 = vdwg.mxu0
  %2354 = vmatpush.bf16.msra.mxu0 %v1508
  %2355 = vmatpush.bf16.msra.mxu0 %v1506
  %2356 = vmatpush.bf16.msra.mxu0 %v1504
  %2357 = vmatpush.bf16.msra.mxu0 %v1502
  %2358 = vmatpush.bf16.msra.mxu0 %v1500
  %2359 = vmatpush.bf16.msra.mxu0 %v1498
  %2360 = vmatpush.bf16.msra.mxu0 %v1496
  %2361 = vmatpush.bf16.msra.mxu0 %v1494
  %2362 = vmatmul.bf16.gmra.mxu0 %v436
  %v2363 = vpop.f32.mrf.mxu0
  %v2364 = vadd.f32 %v2345, %v2363
  %v2365 = vpop.f32.mrf.mxu0
  %v2366 = vadd.f32 %v2347, %v2365
  %2367 = vmatmul.bf16.gmra.mxu0 %v452
  %v2368 = vpop.f32.mrf.mxu0
  %v2369 = vadd.f32 %v2350, %v2368
  %v2370 = vpop.f32.mrf.mxu0
  %v2371 = vadd.f32 %v2352, %v2370
  %2372 = vdwg.mxu0
  %v2373 = vadd.f32 %v29, %v2060
  %v2374 = vadd.f32 %v30, %v2364
  %v2375 = vadd.f32 %v31, %v2062
  %v2376 = vadd.f32 %v32, %v2366
  %v2377 = vadd.f32 %v33, %v2065
  %v2378 = vadd.f32 %v34, %v2369
  %v2379 = vadd.f32 %v35, %v2067
  %v2380 = vadd.f32 %v36, %v2371
  %2381 = vst [vmem:[#allocation2] sm:$0xff] %v2373
  %2382 = vst [vmem:[#allocation2 + $0x8] sm:$0xff] %v2374
  %2383 = vst [vmem:[#allocation2 + $0x10] sm:$0xff] %v2375
  %2384 = vst [vmem:[#allocation2 + $0x18] sm:$0xff] %v2376
  %2385 = vst [vmem:[#allocation2 + $0x20] sm:$0xff] %v2377
  %2386 = vst [vmem:[#allocation2 + $0x28] sm:$0xff] %v2378
  %2387 = vst [vmem:[#allocation2 + $0x30] sm:$0xff] %v2379
  %2388 = vst [vmem:[#allocation2 + $0x38] sm:$0xff] %v2380
  // Predicated region
  $region22: #{discriminator_forward.7} parent=0 // pred_check
    %p2389 = pneg %p17
  $region23: #{discriminator_forward.7} parent=0 // pred_check_branch
    %2391 = sbr.rel (%p2389) target = $region25
  $region24: #{discriminator_forward.7} parent=0 // pred_region
    %v2392 = vld [vmem:[#allocation2] sm:$0xff]
    %v2393 = vld [vmem:[#allocation2 + $0x8] sm:$0xff]
    %v2394 = vld [vmem:[#allocation2 + $0x10] sm:$0xff]
    %v2395 = vld [vmem:[#allocation2 + $0x18] sm:$0xff]
    %v2396 = vld [vmem:[#allocation2 + $0x20] sm:$0xff]
    %v2397 = vld [vmem:[#allocation2 + $0x28] sm:$0xff]
    %v2398 = vld [vmem:[#allocation2 + $0x30] sm:$0xff]
    %v2399 = vld [vmem:[#allocation2 + $0x38] sm:$0xff]
    %v2400 = vld [vmem:[%s2] sm:$0x3]
    %v2402 = vperm.slane %v2400, 0
    %v2403 = vperm.slane %v2400, 1
    %v2406 = vmul.f32 %v2392, %v2402
    %v2407 = vmul.f32 %v2393, %v2403
    %v2408 = vmul.f32 %v2394, %v2402
    %v2409 = vmul.f32 %v2395, %v2403
    %v2410 = vmul.f32 %v2396, %v2402
    %v2411 = vmul.f32 %v2397, %v2403
    %v2412 = vmul.f32 %v2398, %v2402
    %v2413 = vmul.f32 %v2399, %v2403
    %v2414 = vld [vmem:[%s3] sm:$0x3]
    %v2416 = vperm.slane %v2414, 0
    %v2417 = vperm.slane %v2414, 1
    %v2420 = vadd.f32 %v2406, %v2416
    %v2421 = vadd.f32 %v2407, %v2417
    %v2422 = vadd.f32 %v2408, %v2416
    %v2423 = vadd.f32 %v2409, %v2417
    %v2424 = vadd.f32 %v2410, %v2416
    %v2425 = vadd.f32 %v2411, %v2417
    %v2426 = vadd.f32 %v2412, %v2416
    %v2427 = vadd.f32 %v2413, %v2417
    %vm2428 = vcmp.ge.f32.partialorder %v2420, 0.0
    %vm2429 = vcmp.ge.f32.partialorder %v2421, 0.0
    %vm2430 = vcmp.ge.f32.partialorder %v2422, 0.0
    %vm2431 = vcmp.ge.f32.partialorder %v2423, 0.0
    %vm2432 = vcmp.ge.f32.partialorder %v2424, 0.0
    %vm2433 = vcmp.ge.f32.partialorder %v2425, 0.0
    %vm2434 = vcmp.ge.f32.partialorder %v2426, 0.0
    %vm2435 = vcmp.ge.f32.partialorder %v2427, 0.0
    %v2436 = vmul.f32 %v2420, 0.2
    %v2437 = vmul.f32 %v2421, 0.2
    %v2438 = vmul.f32 %v2422, 0.2
    %v2439 = vmul.f32 %v2423, 0.2
    %v2440 = vmul.f32 %v2424, 0.2
    %v2441 = vmul.f32 %v2425, 0.2
    %v2442 = vmul.f32 %v2426, 0.2
    %v2443 = vmul.f32 %v2427, 0.2
    %v2444 = vsel %vm2428, %v2420, %v2436
    %v2445 = vsel %vm2429, %v2421, %v2437
    %v2446 = vsel %vm2430, %v2422, %v2438
    %v2447 = vsel %vm2431, %v2423, %v2439
    %v2448 = vsel %vm2432, %v2424, %v2440
    %v2449 = vsel %vm2433, %v2425, %v2441
    %v2450 = vsel %vm2434, %v2426, %v2442
    %v2451 = vsel %vm2435, %v2427, %v2443
    %v2452 = vpack.c.bf16 %v2445, %v2444
    %v2453 = vpack.c.bf16 %v2447, %v2446
    %v2454 = vpack.c.bf16 %v2449, %v2448
    %v2455 = vpack.c.bf16 %v2451, %v2450
    %2456 = vst [vmem:[%s4] sm:$0xff] %v2452
    %2457 = vst [vmem:[%s4 + $0x8] sm:$0xff] %v2453
    %2458 = vst [vmem:[%s4 + $0x10] sm:$0xff] %v2454
    %2459 = vst [vmem:[%s4 + $0x18] sm:$0xff] %v2455
  $region25: #{discriminator_forward.7} parent=0 // pred_fallthru
    _
  // Predicated region
  $region26: #{discriminator_forward.7} parent=0 // pred_check
    _
  $region27: #{discriminator_forward.7} parent=0 // pred_check_branch
    %2461 = sbr.rel (0) target = $region29
  $region28: #{discriminator_forward.7} parent=0 // pred_region
    _
  $region29: #{discriminator_forward.7} parent=0 // pred_fallthru
    _
  // Predicated region
  $region30: #{discriminator_forward.7} parent=0 // pred_check
    _
  $region31: #{discriminator_forward.7} parent=0 // pred_check_branch
    %2463 = sbr.rel (0) target = $region33
  $region32: #{discriminator_forward.7} parent=0 // pred_region
    _
  $region33: #{discriminator_forward.7} parent=0 // pred_fallthru
    _

// kernel: discriminator_forward.8
$region0: #{discriminator_forward.8}
  #allocation0 [shape = 'u32[]', space=smem, size = 0x4, offset = 0x4, fixed_abs, tag = 'smem constant byte address 0x4 - core index']
  #allocation1 [shape = 'u32[72,128]{1,0:T(1,128)}', space=vmem, size = 0x9000, scoped, tag = 'internal scratch']
  #allocation2 [shape = 'f32[24,256]{1,0:T(8,128)}', space=vmem, size = 0x6000, scoped, tag = 'scratch operand']
  %s0 = inlined_call_operand.vmem [shape: bf16[24,4096], index: 0, kind: input, shape index: {}]
  %s1 = inlined_call_operand.vmem [shape: bf16[4096,512], index: 1, kind: input, shape index: {}]
  %s2 = inlined_call_operand.vmem [shape: f32[1,512], index: 2, kind: input, shape index: {}]
  %s3 = inlined_call_operand.vmem [shape: f32[1,512], index: 3, kind: input, shape index: {}]
  %s4 = inlined_call_operand.vmem [shape: bf16[24,512], index: 4, kind: output, shape index: {}]
  %s5 = sld [smem:[#allocation0]]
  $region166: #{discriminator_forward.8} parent=0
    _
  %s7 = ssub.s32 1, %s5
  %s8 = scalar_select 0, %s7, %s5
  $region1: #{discriminator_forward.8} parent=0
    #allocation3 [shape = 'u8[196608]{0}', space=vmem, size = 0x30000, scoped, tag = 'input window, operand 0']
    #allocation4 [shape = 'u8[2097152]{0}', space=vmem, size = 0x200000, scoped, tag = 'input window, operand 1']
    #allocation5 [shape = 'u8[24576]{0}', space=vmem, size = 0x6000, scoped, tag = 'output window, operand 0']
    loop: start=0, step=1, limit=6
    $region2: #{discriminator_forward.8} parent=1 // loop_pre_header
      _
    $region3: #{discriminator_forward.8} parent=1 // loop_header
      %s10 = sphi 0, %s14
      %p11 = scmp.ge.s32.totalorder %s10, 6
      %s17 = sphi 0, %s36
      %s18 = sphi 0, %s32
      %s19 = sphi 0, %s28
      %s20 = sphi 0, %s17
      %s21 = sphi 0, %s18
      %s22 = sphi 0, %s19
      %s23 = sphi 0, %s20
      %s24 = sphi 0, %s21
      %s25 = sphi 0, %s22
      %s41 = sphi 0, %s43
      %s44 = sphi 0, %s41
      %s45 = sphi 0, %s44
      %s61 = sphi 0, %s45
      %s69 = sphi 0, %s71
      %s72 = sphi 0, %s69
      %s73 = sphi 0, %s72
      %s89 = sphi 0, %s73
      %s95 = sphi 0, %s97
      %s98 = sphi 0, %s95
      %s99 = sphi 0, %s98
      %s115 = sphi 0, %s99
      %s121 = sphi 0, %s123
      %s124 = sphi 0, %s121
      %s125 = sphi 0, %s124
      %s141 = sphi 0, %s125
      %s149 = sphi 0, %s151
      %s152 = sphi 0, %s149
      %s153 = sphi 0, %s152
      %s169 = sphi 0, %s153
    $region4: #{discriminator_forward.8} parent=1 // loop_header_branch
      %13 = sbr.rel (%p11) target = $region8
    $region5: #{discriminator_forward.8} parent=1 // loop_body
      %s15 = ssub.s32 %s10, 1
      %s16 = ssub.s32 %s10, 2
      %s26 = sadd.s32 1, %s19
      %p27 = scmp.ge.s32.totalorder %s26, 2
      %s28 = scalar_select %p27, 0, %s26
      %s29 = sadd.s32 1, %s18
      %s30 = scalar_select %p27, %s29, %s18
      %p31 = scmp.ge.s32.totalorder %s30, 2
      %s32 = scalar_select %p31, 0, %s30
      %s33 = sadd.s32 1, %s17
      %s34 = scalar_select %p31, %s33, %s17
      %p35 = scmp.ge.s32.totalorder %s34, 1
      %s36 = scalar_select %p35, 0, %s34
      %s37 = ssub.s32 %s17, %s36
      %s38 = ssub.s32 %s19, %s28
      %s39 = sor.u32 %s37, %s38
      %p40 = scmp.eq.s32.totalorder %s39, 0
      %s42 = sadd.s32 %s41, 1
      %s43 = scalar_select %p40, %s41, %s42
      %p46 = pneg %p40
      %p47 = scmp.eq.s32.totalorder %s10, 3
      %p48 = por %p46, %p47
      %p49 = scmp.ne.s32.totalorder %s41, %s44
      %p50 = scmp.eq.s32.totalorder %s10, 0
      %p51 = por %p49, %p50
      %p52 = scmp.ne.s32.totalorder %s41, %s44
      %p53 = scmp.eq.s32.totalorder %s15, 3
      %p54 = por %p52, %p53
      %p55 = scmp.ne.s32.totalorder %s44, %s45
      %p56 = scmp.eq.s32.totalorder %s15, 0
      %p57 = por %p55, %p56
      %p58 = scmp.ne.s32.totalorder %s44, %s45
      %p59 = scmp.eq.s32.totalorder %s16, 3
      %p60 = por %p58, %p59
      %p62 = scmp.ne.s32.totalorder %s45, %s61
      %p63 = scmp.eq.s32.totalorder %s16, 0
      %p64 = por %p62, %p63
      %s65 = ssub.s32 %s19, %s28
      %s66 = ssub.s32 %s18, %s32
      %s67 = sor.u32 %s65, %s66
      %p68 = scmp.eq.s32.totalorder %s67, 0
      %s70 = sadd.s32 %s69, 1
      %s71 = scalar_select %p68, %s69, %s70
      %p74 = pneg %p68
      %p75 = scmp.eq.s32.totalorder %s10, 3
      %p76 = por %p74, %p75
      %p77 = scmp.ne.s32.totalorder %s69, %s72
      %p78 = scmp.eq.s32.totalorder %s10, 0
      %p79 = por %p77, %p78
      %p80 = scmp.ne.s32.totalorder %s69, %s72
      %p81 = scmp.eq.s32.totalorder %s15, 3
      %p82 = por %p80, %p81
      %p83 = scmp.ne.s32.totalorder %s72, %s73
      %p84 = scmp.eq.s32.totalorder %s15, 0
      %p85 = por %p83, %p84
      %p86 = scmp.ne.s32.totalorder %s72, %s73
      %p87 = scmp.eq.s32.totalorder %s16, 3
      %p88 = por %p86, %p87
      %p90 = scmp.ne.s32.totalorder %s73, %s89
      %p91 = scmp.eq.s32.totalorder %s16, 0
      %p92 = por %p90, %p91
      %s93 = ssub.s32 %s18, %s32
      %p94 = scmp.eq.s32.totalorder %s93, 0
      %s96 = sadd.s32 %s95, 1
      %s97 = scalar_select %p94, %s95, %s96
      %p100 = pneg %p94
      %p101 = scmp.eq.s32.totalorder %s10, 3
      %p102 = por %p100, %p101
      %p103 = scmp.ne.s32.totalorder %s95, %s98
      %p104 = scmp.eq.s32.totalorder %s10, 0
      %p105 = por %p103, %p104
      %p106 = scmp.ne.s32.totalorder %s95, %s98
      %p107 = scmp.eq.s32.totalorder %s15, 3
      %p108 = por %p106, %p107
      %p109 = scmp.ne.s32.totalorder %s98, %s99
      %p110 = scmp.eq.s32.totalorder %s15, 0
      %p111 = por %p109, %p110
      %p112 = scmp.ne.s32.totalorder %s98, %s99
      %p113 = scmp.eq.s32.totalorder %s16, 3
      %p114 = por %p112, %p113
      %p116 = scmp.ne.s32.totalorder %s99, %s115
      %p117 = scmp.eq.s32.totalorder %s16, 0
      %p118 = por %p116, %p117
      %s119 = ssub.s32 %s18, %s32
      %p120 = scmp.eq.s32.totalorder %s119, 0
      %s122 = sadd.s32 %s121, 1
      %s123 = scalar_select %p120, %s121, %s122
      %p126 = pneg %p120
      %p127 = scmp.eq.s32.totalorder %s10, 3
      %p128 = por %p126, %p127
      %p129 = scmp.ne.s32.totalorder %s121, %s124
      %p130 = scmp.eq.s32.totalorder %s10, 0
      %p131 = por %p129, %p130
      %p132 = scmp.ne.s32.totalorder %s121, %s124
      %p133 = scmp.eq.s32.totalorder %s15, 3
      %p134 = por %p132, %p133
      %p135 = scmp.ne.s32.totalorder %s124, %s125
      %p136 = scmp.eq.s32.totalorder %s15, 0
      %p137 = por %p135, %p136
      %p138 = scmp.ne.s32.totalorder %s124, %s125
      %p139 = scmp.eq.s32.totalorder %s16, 3
      %p140 = por %p138, %p139
      %p142 = scmp.ne.s32.totalorder %s125, %s141
      %p143 = scmp.eq.s32.totalorder %s16, 0
      %p144 = por %p142, %p143
      %s145 = ssub.s32 %s17, %s36
      %s146 = ssub.s32 %s18, %s32
      %s147 = sor.u32 %s145, %s146
      %p148 = scmp.eq.s32.totalorder %s147, 0
      %s150 = sadd.s32 %s149, 1
      %s151 = scalar_select %p148, %s149, %s150
      %p154 = pneg %p148
      %p155 = scmp.eq.s32.totalorder %s10, 3
      %p156 = por %p154, %p155
      %p157 = scmp.ne.s32.totalorder %s149, %s152
      %p158 = scmp.eq.s32.totalorder %s10, 0
      %p159 = por %p157, %p158
      %p160 = scmp.ne.s32.totalorder %s149, %s152
      %p161 = scmp.eq.s32.totalorder %s15, 3
      %p162 = por %p160, %p161
      %p163 = scmp.ne.s32.totalorder %s152, %s153
      %p164 = scmp.eq.s32.totalorder %s15, 0
      %p165 = por %p163, %p164
      %p166 = scmp.ne.s32.totalorder %s152, %s153
      %p167 = scmp.eq.s32.totalorder %s16, 3
      %p168 = por %p166, %p167
      %p170 = scmp.ne.s32.totalorder %s153, %s169
      %p171 = scmp.eq.s32.totalorder %s16, 0
      %p172 = por %p170, %p171
      %p173 = scmp.le.s32.totalorder 1, %s10
      %p174 = scmp.lt.s32.totalorder %s10, 5
      %p175 = pnand %p173, %p174
      %p176 = pneg %p175
      // Predicated region
      $region9: #{discriminator_forward.8} parent=5 // pred_check
        _
      $region10: #{discriminator_forward.8} parent=5 // pred_check_branch
        %178 = sbr.rel (%p175) target = $region12
      $region11: #{discriminator_forward.8} parent=5 // pred_region
        %s179 = ssub.s32 %s10, 1
      $region12: #{discriminator_forward.8} parent=5 // pred_fallthru
        _
      %p180 = scmp.lt.s32.totalorder %s10, 4
      // Predicated region
      $region13: #{discriminator_forward.8} parent=5 // pred_check
        %p181 = pneg %p180
      $region14: #{discriminator_forward.8} parent=5 // pred_check_branch
        %183 = sbr.rel (%p181) target = $region16
      $region15: #{discriminator_forward.8} parent=5 // pred_region
        // Predicated region
        $region17: #{discriminator_forward.8} parent=15 // pred_check
          %p184 = pneg %p51
        $region18: #{discriminator_forward.8} parent=15 // pred_check_branch
          %186 = sbr.rel (%p184) target = $region20
        $region19: #{discriminator_forward.8} parent=15 // pred_region
          %s187 = sand.u32 %s41, 1
          %s188 = sand.u32 %s41, 1
          %s189 = smul.addr %s188, 192
          %s190 = scalar_lea.vmem [#allocation3], %s189
          %s191 = smul.u32 3, %s17
          %s192 = smul.u32 16, %s19
          %s193 = smul.addr %s191, 32
          %s194 = sadd.s32 %s192, %s193
          %s195 = smul.addr %s194, 4
          %s196 = scalar_lea.vmem %s0, %s195
          // Predicated region
          $region21: #{discriminator_forward.8} parent=19 // pred_check
            _
          $region22: #{discriminator_forward.8} parent=19 // pred_check_branch
            %198 = sbr.rel (0) target = $region24
          $region23: #{discriminator_forward.8} parent=19 // pred_region
            // Predicated region
            $region25: #{discriminator_forward.8} parent=23 // pred_check
              _
            $region26: #{discriminator_forward.8} parent=23 // pred_check_branch
              %200 = sbr.rel (0) target = $region28
            $region27: #{discriminator_forward.8} parent=23 // pred_region
              loop: start=0, step=1, limit=1
              $region29: #{discriminator_forward.8} parent=27 // loop_pre_header
                _
              $region30: #{discriminator_forward.8} parent=27 // loop_header
                %s202 = sphi 0, %s206
                %p203 = scmp.ge.s32.totalorder %s202, 1
                %s207 = sphi %s196, %s196
                %s208 = sphi %s190, %s190
              $region31: #{discriminator_forward.8} parent=27 // loop_header_branch
                %205 = sbr.rel (%p203) target = $region35
              $region32: #{discriminator_forward.8} parent=27 // loop_body
                %v209 = vld [vmem:[%s207] sm:$0xff]
                %210 = vst [vmem:[%s208] sm:$0xff] %v209
                %v211 = vld [vmem:[%s207 + $0x8] sm:$0xff]
                %212 = vst [vmem:[%s208 + $0x8] sm:$0xff] %v211
                %v213 = vld [vmem:[%s207 + $0x10] sm:$0xff]
                %214 = vst [vmem:[%s208 + $0x10] sm:$0xff] %v213
                %v215 = vld [vmem:[%s207 + $0x18] sm:$0xff]
                %216 = vst [vmem:[%s208 + $0x18] sm:$0xff] %v215
                %v217 = vld [vmem:[%s207 + $0x20] sm:$0xff]
                %218 = vst [vmem:[%s208 + $0x20] sm:$0xff] %v217
                %v219 = vld [vmem:[%s207 + $0x28] sm:$0xff]
                %220 = vst [vmem:[%s208 + $0x28] sm:$0xff] %v219
                %v221 = vld [vmem:[%s207 + $0x30] sm:$0xff]
                %222 = vst [vmem:[%s208 + $0x30] sm:$0xff] %v221
                %v223 = vld [vmem:[%s207 + $0x38] sm:$0xff]
                %224 = vst [vmem:[%s208 + $0x38] sm:$0xff] %v223
                %v225 = vld [vmem:[%s207 + $0x80] sm:$0xff]
                %226 = vst [vmem:[%s208 + $0x40] sm:$0xff] %v225
                %v227 = vld [vmem:[%s207 + $0x88] sm:$0xff]
                %228 = vst [vmem:[%s208 + $0x48] sm:$0xff] %v227
                %v229 = vld [vmem:[%s207 + $0x90] sm:$0xff]
                %230 = vst [vmem:[%s208 + $0x50] sm:$0xff] %v229
                %v231 = vld [vmem:[%s207 + $0x98] sm:$0xff]
                %232 = vst [vmem:[%s208 + $0x58] sm:$0xff] %v231
                %v233 = vld [vmem:[%s207 + $0xa0] sm:$0xff]
                %234 = vst [vmem:[%s208 + $0x60] sm:$0xff] %v233
                %v235 = vld [vmem:[%s207 + $0xa8] sm:$0xff]
                %236 = vst [vmem:[%s208 + $0x68] sm:$0xff] %v235
                %v237 = vld [vmem:[%s207 + $0xb0] sm:$0xff]
                %238 = vst [vmem:[%s208 + $0x70] sm:$0xff] %v237
                %v239 = vld [vmem:[%s207 + $0xb8] sm:$0xff]
                %240 = vst [vmem:[%s208 + $0x78] sm:$0xff] %v239
                %v241 = vld [vmem:[%s207 + $0x100] sm:$0xff]
                %242 = vst [vmem:[%s208 + $0x80] sm:$0xff] %v241
                %v243 = vld [vmem:[%s207 + $0x108] sm:$0xff]
                %244 = vst [vmem:[%s208 + $0x88] sm:$0xff] %v243
                %v245 = vld [vmem:[%s207 + $0x110] sm:$0xff]
                %246 = vst [vmem:[%s208 + $0x90] sm:$0xff] %v245
                %v247 = vld [vmem:[%s207 + $0x118] sm:$0xff]
                %248 = vst [vmem:[%s208 + $0x98] sm:$0xff] %v247
                %v249 = vld [vmem:[%s207 + $0x120] sm:$0xff]
                %250 = vst [vmem:[%s208 + $0xa0] sm:$0xff] %v249
                %v251 = vld [vmem:[%s207 + $0x128] sm:$0xff]
                %252 = vst [vmem:[%s208 + $0xa8] sm:$0xff] %v251
                %v253 = vld [vmem:[%s207 + $0x130] sm:$0xff]
                %254 = vst [vmem:[%s208 + $0xb0] sm:$0xff] %v253
                %v255 = vld [vmem:[%s207 + $0x138] sm:$0xff]
                %256 = vst [vmem:[%s208 + $0xb8] sm:$0xff] %v255
              $region33: #{discriminator_forward.8} parent=27 // loop_footer
                %s206 = sadd.s32 1, %s202
              $region34: #{discriminator_forward.8} parent=27 // loop_footer_branch
                %201 = sbr.rel target = $region30
              $region35: #{discriminator_forward.8} parent=27 // loop_exit
                _
            $region28: #{discriminator_forward.8} parent=23 // pred_fallthru
              _
            // Predicated region
            $region36: #{discriminator_forward.8} parent=23 // pred_check
              _
            $region37: #{discriminator_forward.8} parent=23 // pred_check_branch
              %258 = sbr.rel target = $region39
            $region38: #{discriminator_forward.8} parent=23 // pred_region
              _
            $region39: #{discriminator_forward.8} parent=23 // pred_fallthru
              _
          $region24: #{discriminator_forward.8} parent=19 // pred_fallthru
            _
          %259 = vnop
        $region20: #{discriminator_forward.8} parent=15 // pred_fallthru
          _
        // Predicated region
        $region40: #{discriminator_forward.8} parent=15 // pred_check
          %p260 = pneg %p79
        $region41: #{discriminator_forward.8} parent=15 // pred_check_branch
          %262 = sbr.rel (%p260) target = $region43
        $region42: #{discriminator_forward.8} parent=15 // pred_region
          %s263 = sand.u32 %s69, 1
          %s264 = sand.u32 %s69, 1
          %s265 = smul.addr %s264, 2048
          %s266 = scalar_lea.vmem [#allocation4], %s265
          %s267 = smul.u32 256, %s19
          %s268 = smul.u32 2, %s18
          %s269 = smul.addr %s267, 4
          %s270 = sadd.s32 %s268, %s269
          %s271 = smul.addr %s270, 4
          %s272 = scalar_lea.vmem %s1, %s271
          // Predicated region
          $region44: #{discriminator_forward.8} parent=42 // pred_check
            _
          $region45: #{discriminator_forward.8} parent=42 // pred_check_branch
            %274 = sbr.rel (0) target = $region47
          $region46: #{discriminator_forward.8} parent=42 // pred_region
            // Predicated region
            $region48: #{discriminator_forward.8} parent=46 // pred_check
              _
            $region49: #{discriminator_forward.8} parent=46 // pred_check_branch
              %276 = sbr.rel (0) target = $region51
            $region50: #{discriminator_forward.8} parent=46 // pred_region
              // Predicated region
              $region63: #{discriminator_forward.8} parent=50 // pred_check
                _
              $region64: #{discriminator_forward.8} parent=50 // pred_check_branch
                %802 = sbr.rel (0) target = $region66
              $region65: #{discriminator_forward.8} parent=50 // pred_region
                loop: start=0, step=1, limit=1
                $region67: #{discriminator_forward.8} parent=65 // loop_pre_header
                  _
                $region68: #{discriminator_forward.8} parent=65 // loop_header
                  %s804 = sphi 0, %s808
                  %p805 = scmp.ge.s32.totalorder %s804, 1
                  %s809 = sphi 0, %s1326
                  %s810 = sphi %s272, %s1329
                  %s811 = sphi %s266, %s1330
                $region69: #{discriminator_forward.8} parent=65 // loop_header_branch
                  %807 = sbr.rel (%p805) target = $region73
                $region70: #{discriminator_forward.8} parent=65 // loop_body
                  %v812 = vld [vmem:[%s810] sm:$0xff]
                  %813 = vst [vmem:[%s811] sm:$0xff] %v812
                  %v814 = vld [vmem:[%s810 + $0x10] sm:$0xff]
                  %815 = vst [vmem:[%s811 + $0x8] sm:$0xff] %v814
                  %v816 = vld [vmem:[%s810 + $0x20] sm:$0xff]
                  %817 = vst [vmem:[%s811 + $0x10] sm:$0xff] %v816
                  %v818 = vld [vmem:[%s810 + $0x30] sm:$0xff]
                  %819 = vst [vmem:[%s811 + $0x18] sm:$0xff] %v818
                  %v820 = vld [vmem:[%s810 + $0x40] sm:$0xff]
                  %821 = vst [vmem:[%s811 + $0x20] sm:$0xff] %v820
                  %v822 = vld [vmem:[%s810 + $0x50] sm:$0xff]
                  %823 = vst [vmem:[%s811 + $0x28] sm:$0xff] %v822
                  %v824 = vld [vmem:[%s810 + $0x60] sm:$0xff]
                  %825 = vst [vmem:[%s811 + $0x30] sm:$0xff] %v824
                  %v826 = vld [vmem:[%s810 + $0x70] sm:$0xff]
                  %827 = vst [vmem:[%s811 + $0x38] sm:$0xff] %v826
                  %v828 = vld [vmem:[%s810 + $0x80] sm:$0xff]
                  %829 = vst [vmem:[%s811 + $0x40] sm:$0xff] %v828
                  %v830 = vld [vmem:[%s810 + $0x90] sm:$0xff]
                  %831 = vst [vmem:[%s811 + $0x48] sm:$0xff] %v830
                  %v832 = vld [vmem:[%s810 + $0xa0] sm:$0xff]
                  %833 = vst [vmem:[%s811 + $0x50] sm:$0xff] %v832
                  %v834 = vld [vmem:[%s810 + $0xb0] sm:$0xff]
                  %835 = vst [vmem:[%s811 + $0x58] sm:$0xff] %v834
                  %v836 = vld [vmem:[%s810 + $0xc0] sm:$0xff]
                  %837 = vst [vmem:[%s811 + $0x60] sm:$0xff] %v836
                  %v838 = vld [vmem:[%s810 + $0xd0] sm:$0xff]
                  %839 = vst [vmem:[%s811 + $0x68] sm:$0xff] %v838
                  %v840 = vld [vmem:[%s810 + $0xe0] sm:$0xff]
                  %841 = vst [vmem:[%s811 + $0x70] sm:$0xff] %v840
                  %v842 = vld [vmem:[%s810 + $0xf0] sm:$0xff]
                  %843 = vst [vmem:[%s811 + $0x78] sm:$0xff] %v842
                  %v844 = vld [vmem:[%s810 + $0x100] sm:$0xff]
                  %845 = vst [vmem:[%s811 + $0x80] sm:$0xff] %v844
                  %v846 = vld [vmem:[%s810 + $0x110] sm:$0xff]
                  %847 = vst [vmem:[%s811 + $0x88] sm:$0xff] %v846
                  %v848 = vld [vmem:[%s810 + $0x120] sm:$0xff]
                  %849 = vst [vmem:[%s811 + $0x90] sm:$0xff] %v848
                  %v850 = vld [vmem:[%s810 + $0x130] sm:$0xff]
                  %851 = vst [vmem:[%s811 + $0x98] sm:$0xff] %v850
                  %v852 = vld [vmem:[%s810 + $0x140] sm:$0xff]
                  %853 = vst [vmem:[%s811 + $0xa0] sm:$0xff] %v852
                  %v854 = vld [vmem:[%s810 + $0x150] sm:$0xff]
                  %855 = vst [vmem:[%s811 + $0xa8] sm:$0xff] %v854
                  %v856 = vld [vmem:[%s810 + $0x160] sm:$0xff]
                  %857 = vst [vmem:[%s811 + $0xb0] sm:$0xff] %v856
                  %v858 = vld [vmem:[%s810 + $0x170] sm:$0xff]
                  %859 = vst [vmem:[%s811 + $0xb8] sm:$0xff] %v858
                  %v860 = vld [vmem:[%s810 + $0x180] sm:$0xff]
                  %861 = vst [vmem:[%s811 + $0xc0] sm:$0xff] %v860
                  %v862 = vld [vmem:[%s810 + $0x190] sm:$0xff]
                  %863 = vst [vmem:[%s811 + $0xc8] sm:$0xff] %v862
                  %v864 = vld [vmem:[%s810 + $0x1a0] sm:$0xff]
                  %865 = vst [vmem:[%s811 + $0xd0] sm:$0xff] %v864
                  %v866 = vld [vmem:[%s810 + $0x1b0] sm:$0xff]
                  %867 = vst [vmem:[%s811 + $0xd8] sm:$0xff] %v866
                  %v868 = vld [vmem:[%s810 + $0x1c0] sm:$0xff]
                  %869 = vst [vmem:[%s811 + $0xe0] sm:$0xff] %v868
                  %v870 = vld [vmem:[%s810 + $0x1d0] sm:$0xff]
                  %871 = vst [vmem:[%s811 + $0xe8] sm:$0xff] %v870
                  %v872 = vld [vmem:[%s810 + $0x1e0] sm:$0xff]
                  %873 = vst [vmem:[%s811 + $0xf0] sm:$0xff] %v872
                  %v874 = vld [vmem:[%s810 + $0x1f0] sm:$0xff]
                  %875 = vst [vmem:[%s811 + $0xf8] sm:$0xff] %v874
                  %v876 = vld [vmem:[%s810 + $0x200] sm:$0xff]
                  %877 = vst [vmem:[%s811 + $0x100] sm:$0xff] %v876
                  %v878 = vld [vmem:[%s810 + $0x210] sm:$0xff]
                  %879 = vst [vmem:[%s811 + $0x108] sm:$0xff] %v878
                  %v880 = vld [vmem:[%s810 + $0x220] sm:$0xff]
                  %881 = vst [vmem:[%s811 + $0x110] sm:$0xff] %v880
                  %v882 = vld [vmem:[%s810 + $0x230] sm:$0xff]
                  %883 = vst [vmem:[%s811 + $0x118] sm:$0xff] %v882
                  %v884 = vld [vmem:[%s810 + $0x240] sm:$0xff]
                  %885 = vst [vmem:[%s811 + $0x120] sm:$0xff] %v884
                  %v886 = vld [vmem:[%s810 + $0x250] sm:$0xff]
                  %887 = vst [vmem:[%s811 + $0x128] sm:$0xff] %v886
                  %v888 = vld [vmem:[%s810 + $0x260] sm:$0xff]
                  %889 = vst [vmem:[%s811 + $0x130] sm:$0xff] %v888
                  %v890 = vld [vmem:[%s810 + $0x270] sm:$0xff]
                  %891 = vst [vmem:[%s811 + $0x138] sm:$0xff] %v890
                  %v892 = vld [vmem:[%s810 + $0x280] sm:$0xff]
                  %893 = vst [vmem:[%s811 + $0x140] sm:$0xff] %v892
                  %v894 = vld [vmem:[%s810 + $0x290] sm:$0xff]
                  %895 = vst [vmem:[%s811 + $0x148] sm:$0xff] %v894
                  %v896 = vld [vmem:[%s810 + $0x2a0] sm:$0xff]
                  %897 = vst [vmem:[%s811 + $0x150] sm:$0xff] %v896
                  %v898 = vld [vmem:[%s810 + $0x2b0] sm:$0xff]
                  %899 = vst [vmem:[%s811 + $0x158] sm:$0xff] %v898
                  %v900 = vld [vmem:[%s810 + $0x2c0] sm:$0xff]
                  %901 = vst [vmem:[%s811 + $0x160] sm:$0xff] %v900
                  %v902 = vld [vmem:[%s810 + $0x2d0] sm:$0xff]
                  %903 = vst [vmem:[%s811 + $0x168] sm:$0xff] %v902
                  %v904 = vld [vmem:[%s810 + $0x2e0] sm:$0xff]
                  %905 = vst [vmem:[%s811 + $0x170] sm:$0xff] %v904
                  %v906 = vld [vmem:[%s810 + $0x2f0] sm:$0xff]
                  %907 = vst [vmem:[%s811 + $0x178] sm:$0xff] %v906
                  %v908 = vld [vmem:[%s810 + $0x300] sm:$0xff]
                  %909 = vst [vmem:[%s811 + $0x180] sm:$0xff] %v908
                  %v910 = vld [vmem:[%s810 + $0x310] sm:$0xff]
                  %911 = vst [vmem:[%s811 + $0x188] sm:$0xff] %v910
                  %v912 = vld [vmem:[%s810 + $0x320] sm:$0xff]
                  %913 = vst [vmem:[%s811 + $0x190] sm:$0xff] %v912
                  %v914 = vld [vmem:[%s810 + $0x330] sm:$0xff]
                  %915 = vst [vmem:[%s811 + $0x198] sm:$0xff] %v914
                  %v916 = vld [vmem:[%s810 + $0x340] sm:$0xff]
                  %917 = vst [vmem:[%s811 + $0x1a0] sm:$0xff] %v916
                  %v918 = vld [vmem:[%s810 + $0x350] sm:$0xff]
                  %919 = vst [vmem:[%s811 + $0x1a8] sm:$0xff] %v918
                  %v920 = vld [vmem:[%s810 + $0x360] sm:$0xff]
                  %921 = vst [vmem:[%s811 + $0x1b0] sm:$0xff] %v920
                  %v922 = vld [vmem:[%s810 + $0x370] sm:$0xff]
                  %923 = vst [vmem:[%s811 + $0x1b8] sm:$0xff] %v922
                  %v924 = vld [vmem:[%s810 + $0x380] sm:$0xff]
                  %925 = vst [vmem:[%s811 + $0x1c0] sm:$0xff] %v924
                  %v926 = vld [vmem:[%s810 + $0x390] sm:$0xff]
                  %927 = vst [vmem:[%s811 + $0x1c8] sm:$0xff] %v926
                  %v928 = vld [vmem:[%s810 + $0x3a0] sm:$0xff]
                  %929 = vst [vmem:[%s811 + $0x1d0] sm:$0xff] %v928
                  %v930 = vld [vmem:[%s810 + $0x3b0] sm:$0xff]
                  %931 = vst [vmem:[%s811 + $0x1d8] sm:$0xff] %v930
                  %v932 = vld [vmem:[%s810 + $0x3c0] sm:$0xff]
                  %933 = vst [vmem:[%s811 + $0x1e0] sm:$0xff] %v932
                  %v934 = vld [vmem:[%s810 + $0x3d0] sm:$0xff]
                  %935 = vst [vmem:[%s811 + $0x1e8] sm:$0xff] %v934
                  %v936 = vld [vmem:[%s810 + $0x3e0] sm:$0xff]
                  %937 = vst [vmem:[%s811 + $0x1f0] sm:$0xff] %v936
                  %v938 = vld [vmem:[%s810 + $0x3f0] sm:$0xff]
                  %939 = vst [vmem:[%s811 + $0x1f8] sm:$0xff] %v938
                  %v940 = vld [vmem:[%s810 + $0x400] sm:$0xff]
                  %941 = vst [vmem:[%s811 + $0x200] sm:$0xff] %v940
                  %v942 = vld [vmem:[%s810 + $0x410] sm:$0xff]
                  %943 = vst [vmem:[%s811 + $0x208] sm:$0xff] %v942
                  %v944 = vld [vmem:[%s810 + $0x420] sm:$0xff]
                  %945 = vst [vmem:[%s811 + $0x210] sm:$0xff] %v944
                  %v946 = vld [vmem:[%s810 + $0x430] sm:$0xff]
                  %947 = vst [vmem:[%s811 + $0x218] sm:$0xff] %v946
                  %v948 = vld [vmem:[%s810 + $0x440] sm:$0xff]
                  %949 = vst [vmem:[%s811 + $0x220] sm:$0xff] %v948
                  %v950 = vld [vmem:[%s810 + $0x450] sm:$0xff]
                  %951 = vst [vmem:[%s811 + $0x228] sm:$0xff] %v950
                  %v952 = vld [vmem:[%s810 + $0x460] sm:$0xff]
                  %953 = vst [vmem:[%s811 + $0x230] sm:$0xff] %v952
                  %v954 = vld [vmem:[%s810 + $0x470] sm:$0xff]
                  %955 = vst [vmem:[%s811 + $0x238] sm:$0xff] %v954
                  %v956 = vld [vmem:[%s810 + $0x480] sm:$0xff]
                  %957 = vst [vmem:[%s811 + $0x240] sm:$0xff] %v956
                  %v958 = vld [vmem:[%s810 + $0x490] sm:$0xff]
                  %959 = vst [vmem:[%s811 + $0x248] sm:$0xff] %v958
                  %v960 = vld [vmem:[%s810 + $0x4a0] sm:$0xff]
                  %961 = vst [vmem:[%s811 + $0x250] sm:$0xff] %v960
                  %v962 = vld [vmem:[%s810 + $0x4b0] sm:$0xff]
                  %963 = vst [vmem:[%s811 + $0x258] sm:$0xff] %v962
                  %v964 = vld [vmem:[%s810 + $0x4c0] sm:$0xff]
                  %965 = vst [vmem:[%s811 + $0x260] sm:$0xff] %v964
                  %v966 = vld [vmem:[%s810 + $0x4d0] sm:$0xff]
                  %967 = vst [vmem:[%s811 + $0x268] sm:$0xff] %v966
                  %v968 = vld [vmem:[%s810 + $0x4e0] sm:$0xff]
                  %969 = vst [vmem:[%s811 + $0x270] sm:$0xff] %v968
                  %v970 = vld [vmem:[%s810 + $0x4f0] sm:$0xff]
                  %971 = vst [vmem:[%s811 + $0x278] sm:$0xff] %v970
                  %v972 = vld [vmem:[%s810 + $0x500] sm:$0xff]
                  %973 = vst [vmem:[%s811 + $0x280] sm:$0xff] %v972
                  %v974 = vld [vmem:[%s810 + $0x510] sm:$0xff]
                  %975 = vst [vmem:[%s811 + $0x288] sm:$0xff] %v974
                  %v976 = vld [vmem:[%s810 + $0x520] sm:$0xff]
                  %977 = vst [vmem:[%s811 + $0x290] sm:$0xff] %v976
                  %v978 = vld [vmem:[%s810 + $0x530] sm:$0xff]
                  %979 = vst [vmem:[%s811 + $0x298] sm:$0xff] %v978
                  %v980 = vld [vmem:[%s810 + $0x540] sm:$0xff]
                  %981 = vst [vmem:[%s811 + $0x2a0] sm:$0xff] %v980
                  %v982 = vld [vmem:[%s810 + $0x550] sm:$0xff]
                  %983 = vst [vmem:[%s811 + $0x2a8] sm:$0xff] %v982
                  %v984 = vld [vmem:[%s810 + $0x560] sm:$0xff]
                  %985 = vst [vmem:[%s811 + $0x2b0] sm:$0xff] %v984
                  %v986 = vld [vmem:[%s810 + $0x570] sm:$0xff]
                  %987 = vst [vmem:[%s811 + $0x2b8] sm:$0xff] %v986
                  %v988 = vld [vmem:[%s810 + $0x580] sm:$0xff]
                  %989 = vst [vmem:[%s811 + $0x2c0] sm:$0xff] %v988
                  %v990 = vld [vmem:[%s810 + $0x590] sm:$0xff]
                  %991 = vst [vmem:[%s811 + $0x2c8] sm:$0xff] %v990
                  %v992 = vld [vmem:[%s810 + $0x5a0] sm:$0xff]
                  %993 = vst [vmem:[%s811 + $0x2d0] sm:$0xff] %v992
                  %v994 = vld [vmem:[%s810 + $0x5b0] sm:$0xff]
                  %995 = vst [vmem:[%s811 + $0x2d8] sm:$0xff] %v994
                  %v996 = vld [vmem:[%s810 + $0x5c0] sm:$0xff]
                  %997 = vst [vmem:[%s811 + $0x2e0] sm:$0xff] %v996
                  %v998 = vld [vmem:[%s810 + $0x5d0] sm:$0xff]
                  %999 = vst [vmem:[%s811 + $0x2e8] sm:$0xff] %v998
                  %v1000 = vld [vmem:[%s810 + $0x5e0] sm:$0xff]
                  %1001 = vst [vmem:[%s811 + $0x2f0] sm:$0xff] %v1000
                  %v1002 = vld [vmem:[%s810 + $0x5f0] sm:$0xff]
                  %1003 = vst [vmem:[%s811 + $0x2f8] sm:$0xff] %v1002
                  %v1004 = vld [vmem:[%s810 + $0x600] sm:$0xff]
                  %1005 = vst [vmem:[%s811 + $0x300] sm:$0xff] %v1004
                  %v1006 = vld [vmem:[%s810 + $0x610] sm:$0xff]
                  %1007 = vst [vmem:[%s811 + $0x308] sm:$0xff] %v1006
                  %v1008 = vld [vmem:[%s810 + $0x620] sm:$0xff]
                  %1009 = vst [vmem:[%s811 + $0x310] sm:$0xff] %v1008
                  %v1010 = vld [vmem:[%s810 + $0x630] sm:$0xff]
                  %1011 = vst [vmem:[%s811 + $0x318] sm:$0xff] %v1010
                  %v1012 = vld [vmem:[%s810 + $0x640] sm:$0xff]
                  %1013 = vst [vmem:[%s811 + $0x320] sm:$0xff] %v1012
                  %v1014 = vld [vmem:[%s810 + $0x650] sm:$0xff]
                  %1015 = vst [vmem:[%s811 + $0x328] sm:$0xff] %v1014
                  %v1016 = vld [vmem:[%s810 + $0x660] sm:$0xff]
                  %1017 = vst [vmem:[%s811 + $0x330] sm:$0xff] %v1016
                  %v1018 = vld [vmem:[%s810 + $0x670] sm:$0xff]
                  %1019 = vst [vmem:[%s811 + $0x338] sm:$0xff] %v1018
                  %v1020 = vld [vmem:[%s810 + $0x680] sm:$0xff]
                  %1021 = vst [vmem:[%s811 + $0x340] sm:$0xff] %v1020
                  %v1022 = vld [vmem:[%s810 + $0x690] sm:$0xff]
                  %1023 = vst [vmem:[%s811 + $0x348] sm:$0xff] %v1022
                  %v1024 = vld [vmem:[%s810 + $0x6a0] sm:$0xff]
                  %1025 = vst [vmem:[%s811 + $0x350] sm:$0xff] %v1024
                  %v1026 = vld [vmem:[%s810 + $0x6b0] sm:$0xff]
                  %1027 = vst [vmem:[%s811 + $0x358] sm:$0xff] %v1026
                  %v1028 = vld [vmem:[%s810 + $0x6c0] sm:$0xff]
                  %1029 = vst [vmem:[%s811 + $0x360] sm:$0xff] %v1028
                  %v1030 = vld [vmem:[%s810 + $0x6d0] sm:$0xff]
                  %1031 = vst [vmem:[%s811 + $0x368] sm:$0xff] %v1030
                  %v1032 = vld [vmem:[%s810 + $0x6e0] sm:$0xff]
                  %1033 = vst [vmem:[%s811 + $0x370] sm:$0xff] %v1032
                  %v1034 = vld [vmem:[%s810 + $0x6f0] sm:$0xff]
                  %1035 = vst [vmem:[%s811 + $0x378] sm:$0xff] %v1034
                  %v1036 = vld [vmem:[%s810 + $0x700] sm:$0xff]
                  %1037 = vst [vmem:[%s811 + $0x380] sm:$0xff] %v1036
                  %v1038 = vld [vmem:[%s810 + $0x710] sm:$0xff]
                  %1039 = vst [vmem:[%s811 + $0x388] sm:$0xff] %v1038
                  %v1040 = vld [vmem:[%s810 + $0x720] sm:$0xff]
                  %1041 = vst [vmem:[%s811 + $0x390] sm:$0xff] %v1040
                  %v1042 = vld [vmem:[%s810 + $0x730] sm:$0xff]
                  %1043 = vst [vmem:[%s811 + $0x398] sm:$0xff] %v1042
                  %v1044 = vld [vmem:[%s810 + $0x740] sm:$0xff]
                  %1045 = vst [vmem:[%s811 + $0x3a0] sm:$0xff] %v1044
                  %v1046 = vld [vmem:[%s810 + $0x750] sm:$0xff]
                  %1047 = vst [vmem:[%s811 + $0x3a8] sm:$0xff] %v1046
                  %v1048 = vld [vmem:[%s810 + $0x760] sm:$0xff]
                  %1049 = vst [vmem:[%s811 + $0x3b0] sm:$0xff] %v1048
                  %v1050 = vld [vmem:[%s810 + $0x770] sm:$0xff]
                  %1051 = vst [vmem:[%s811 + $0x3b8] sm:$0xff] %v1050
                  %v1052 = vld [vmem:[%s810 + $0x780] sm:$0xff]
                  %1053 = vst [vmem:[%s811 + $0x3c0] sm:$0xff] %v1052
                  %v1054 = vld [vmem:[%s810 + $0x790] sm:$0xff]
                  %1055 = vst [vmem:[%s811 + $0x3c8] sm:$0xff] %v1054
                  %v1056 = vld [vmem:[%s810 + $0x7a0] sm:$0xff]
                  %1057 = vst [vmem:[%s811 + $0x3d0] sm:$0xff] %v1056
                  %v1058 = vld [vmem:[%s810 + $0x7b0] sm:$0xff]
                  %1059 = vst [vmem:[%s811 + $0x3d8] sm:$0xff] %v1058
                  %v1060 = vld [vmem:[%s810 + $0x7c0] sm:$0xff]
                  %1061 = vst [vmem:[%s811 + $0x3e0] sm:$0xff] %v1060
                  %v1062 = vld [vmem:[%s810 + $0x7d0] sm:$0xff]
                  %1063 = vst [vmem:[%s811 + $0x3e8] sm:$0xff] %v1062
                  %v1064 = vld [vmem:[%s810 + $0x7e0] sm:$0xff]
                  %1065 = vst [vmem:[%s811 + $0x3f0] sm:$0xff] %v1064
                  %v1066 = vld [vmem:[%s810 + $0x7f0] sm:$0xff]
                  %1067 = vst [vmem:[%s811 + $0x3f8] sm:$0xff] %v1066
                  %v1068 = vld [vmem:[%s810 + $0x800] sm:$0xff]
                  %1069 = vst [vmem:[%s811 + $0x400] sm:$0xff] %v1068
                  %v1070 = vld [vmem:[%s810 + $0x810] sm:$0xff]
                  %1071 = vst [vmem:[%s811 + $0x408] sm:$0xff] %v1070
                  %v1072 = vld [vmem:[%s810 + $0x820] sm:$0xff]
                  %1073 = vst [vmem:[%s811 + $0x410] sm:$0xff] %v1072
                  %v1074 = vld [vmem:[%s810 + $0x830] sm:$0xff]
                  %1075 = vst [vmem:[%s811 + $0x418] sm:$0xff] %v1074
                  %v1076 = vld [vmem:[%s810 + $0x840] sm:$0xff]
                  %1077 = vst [vmem:[%s811 + $0x420] sm:$0xff] %v1076
                  %v1078 = vld [vmem:[%s810 + $0x850] sm:$0xff]
                  %1079 = vst [vmem:[%s811 + $0x428] sm:$0xff] %v1078
                  %v1080 = vld [vmem:[%s810 + $0x860] sm:$0xff]
                  %1081 = vst [vmem:[%s811 + $0x430] sm:$0xff] %v1080
                  %v1082 = vld [vmem:[%s810 + $0x870] sm:$0xff]
                  %1083 = vst [vmem:[%s811 + $0x438] sm:$0xff] %v1082
                  %v1084 = vld [vmem:[%s810 + $0x880] sm:$0xff]
                  %1085 = vst [vmem:[%s811 + $0x440] sm:$0xff] %v1084
                  %v1086 = vld [vmem:[%s810 + $0x890] sm:$0xff]
                  %1087 = vst [vmem:[%s811 + $0x448] sm:$0xff] %v1086
                  %v1088 = vld [vmem:[%s810 + $0x8a0] sm:$0xff]
                  %1089 = vst [vmem:[%s811 + $0x450] sm:$0xff] %v1088
                  %v1090 = vld [vmem:[%s810 + $0x8b0] sm:$0xff]
                  %1091 = vst [vmem:[%s811 + $0x458] sm:$0xff] %v1090
                  %v1092 = vld [vmem:[%s810 + $0x8c0] sm:$0xff]
                  %1093 = vst [vmem:[%s811 + $0x460] sm:$0xff] %v1092
                  %v1094 = vld [vmem:[%s810 + $0x8d0] sm:$0xff]
                  %1095 = vst [vmem:[%s811 + $0x468] sm:$0xff] %v1094
                  %v1096 = vld [vmem:[%s810 + $0x8e0] sm:$0xff]
                  %1097 = vst [vmem:[%s811 + $0x470] sm:$0xff] %v1096
                  %v1098 = vld [vmem:[%s810 + $0x8f0] sm:$0xff]
                  %1099 = vst [vmem:[%s811 + $0x478] sm:$0xff] %v1098
                  %v1100 = vld [vmem:[%s810 + $0x900] sm:$0xff]
                  %1101 = vst [vmem:[%s811 + $0x480] sm:$0xff] %v1100
                  %v1102 = vld [vmem:[%s810 + $0x910] sm:$0xff]
                  %1103 = vst [vmem:[%s811 + $0x488] sm:$0xff] %v1102
                  %v1104 = vld [vmem:[%s810 + $0x920] sm:$0xff]
                  %1105 = vst [vmem:[%s811 + $0x490] sm:$0xff] %v1104
                  %v1106 = vld [vmem:[%s810 + $0x930] sm:$0xff]
                  %1107 = vst [vmem:[%s811 + $0x498] sm:$0xff] %v1106
                  %v1108 = vld [vmem:[%s810 + $0x940] sm:$0xff]
                  %1109 = vst [vmem:[%s811 + $0x4a0] sm:$0xff] %v1108
                  %v1110 = vld [vmem:[%s810 + $0x950] sm:$0xff]
                  %1111 = vst [vmem:[%s811 + $0x4a8] sm:$0xff] %v1110
                  %v1112 = vld [vmem:[%s810 + $0x960] sm:$0xff]
                  %1113 = vst [vmem:[%s811 + $0x4b0] sm:$0xff] %v1112
                  %v1114 = vld [vmem:[%s810 + $0x970] sm:$0xff]
                  %1115 = vst [vmem:[%s811 + $0x4b8] sm:$0xff] %v1114
                  %v1116 = vld [vmem:[%s810 + $0x980] sm:$0xff]
                  %1117 = vst [vmem:[%s811 + $0x4c0] sm:$0xff] %v1116
                  %v1118 = vld [vmem:[%s810 + $0x990] sm:$0xff]
                  %1119 = vst [vmem:[%s811 + $0x4c8] sm:$0xff] %v1118
                  %v1120 = vld [vmem:[%s810 + $0x9a0] sm:$0xff]
                  %1121 = vst [vmem:[%s811 + $0x4d0] sm:$0xff] %v1120
                  %v1122 = vld [vmem:[%s810 + $0x9b0] sm:$0xff]
                  %1123 = vst [vmem:[%s811 + $0x4d8] sm:$0xff] %v1122
                  %v1124 = vld [vmem:[%s810 + $0x9c0] sm:$0xff]
                  %1125 = vst [vmem:[%s811 + $0x4e0] sm:$0xff] %v1124
                  %v1126 = vld [vmem:[%s810 + $0x9d0] sm:$0xff]
                  %1127 = vst [vmem:[%s811 + $0x4e8] sm:$0xff] %v1126
                  %v1128 = vld [vmem:[%s810 + $0x9e0] sm:$0xff]
                  %1129 = vst [vmem:[%s811 + $0x4f0] sm:$0xff] %v1128
                  %v1130 = vld [vmem:[%s810 + $0x9f0] sm:$0xff]
                  %1131 = vst [vmem:[%s811 + $0x4f8] sm:$0xff] %v1130
                  %v1132 = vld [vmem:[%s810 + $0xa00] sm:$0xff]
                  %1133 = vst [vmem:[%s811 + $0x500] sm:$0xff] %v1132
                  %v1134 = vld [vmem:[%s810 + $0xa10] sm:$0xff]
                  %1135 = vst [vmem:[%s811 + $0x508] sm:$0xff] %v1134
                  %v1136 = vld [vmem:[%s810 + $0xa20] sm:$0xff]
                  %1137 = vst [vmem:[%s811 + $0x510] sm:$0xff] %v1136
                  %v1138 = vld [vmem:[%s810 + $0xa30] sm:$0xff]
                  %1139 = vst [vmem:[%s811 + $0x518] sm:$0xff] %v1138
                  %v1140 = vld [vmem:[%s810 + $0xa40] sm:$0xff]
                  %1141 = vst [vmem:[%s811 + $0x520] sm:$0xff] %v1140
                  %v1142 = vld [vmem:[%s810 + $0xa50] sm:$0xff]
                  %1143 = vst [vmem:[%s811 + $0x528] sm:$0xff] %v1142
                  %v1144 = vld [vmem:[%s810 + $0xa60] sm:$0xff]
                  %1145 = vst [vmem:[%s811 + $0x530] sm:$0xff] %v1144
                  %v1146 = vld [vmem:[%s810 + $0xa70] sm:$0xff]
                  %1147 = vst [vmem:[%s811 + $0x538] sm:$0xff] %v1146
                  %v1148 = vld [vmem:[%s810 + $0xa80] sm:$0xff]
                  %1149 = vst [vmem:[%s811 + $0x540] sm:$0xff] %v1148
                  %v1150 = vld [vmem:[%s810 + $0xa90] sm:$0xff]
                  %1151 = vst [vmem:[%s811 + $0x548] sm:$0xff] %v1150
                  %v1152 = vld [vmem:[%s810 + $0xaa0] sm:$0xff]
                  %1153 = vst [vmem:[%s811 + $0x550] sm:$0xff] %v1152
                  %v1154 = vld [vmem:[%s810 + $0xab0] sm:$0xff]
                  %1155 = vst [vmem:[%s811 + $0x558] sm:$0xff] %v1154
                  %v1156 = vld [vmem:[%s810 + $0xac0] sm:$0xff]
                  %1157 = vst [vmem:[%s811 + $0x560] sm:$0xff] %v1156
                  %v1158 = vld [vmem:[%s810 + $0xad0] sm:$0xff]
                  %1159 = vst [vmem:[%s811 + $0x568] sm:$0xff] %v1158
                  %v1160 = vld [vmem:[%s810 + $0xae0] sm:$0xff]
                  %1161 = vst [vmem:[%s811 + $0x570] sm:$0xff] %v1160
                  %v1162 = vld [vmem:[%s810 + $0xaf0] sm:$0xff]
                  %1163 = vst [vmem:[%s811 + $0x578] sm:$0xff] %v1162
                  %v1164 = vld [vmem:[%s810 + $0xb00] sm:$0xff]
                  %1165 = vst [vmem:[%s811 + $0x580] sm:$0xff] %v1164
                  %v1166 = vld [vmem:[%s810 + $0xb10] sm:$0xff]
                  %1167 = vst [vmem:[%s811 + $0x588] sm:$0xff] %v1166
                  %v1168 = vld [vmem:[%s810 + $0xb20] sm:$0xff]
                  %1169 = vst [vmem:[%s811 + $0x590] sm:$0xff] %v1168
                  %v1170 = vld [vmem:[%s810 + $0xb30] sm:$0xff]
                  %1171 = vst [vmem:[%s811 + $0x598] sm:$0xff] %v1170
                  %v1172 = vld [vmem:[%s810 + $0xb40] sm:$0xff]
                  %1173 = vst [vmem:[%s811 + $0x5a0] sm:$0xff] %v1172
                  %v1174 = vld [vmem:[%s810 + $0xb50] sm:$0xff]
                  %1175 = vst [vmem:[%s811 + $0x5a8] sm:$0xff] %v1174
                  %v1176 = vld [vmem:[%s810 + $0xb60] sm:$0xff]
                  %1177 = vst [vmem:[%s811 + $0x5b0] sm:$0xff] %v1176
                  %v1178 = vld [vmem:[%s810 + $0xb70] sm:$0xff]
                  %1179 = vst [vmem:[%s811 + $0x5b8] sm:$0xff] %v1178
                  %v1180 = vld [vmem:[%s810 + $0xb80] sm:$0xff]
                  %1181 = vst [vmem:[%s811 + $0x5c0] sm:$0xff] %v1180
                  %v1182 = vld [vmem:[%s810 + $0xb90] sm:$0xff]
                  %1183 = vst [vmem:[%s811 + $0x5c8] sm:$0xff] %v1182
                  %v1184 = vld [vmem:[%s810 + $0xba0] sm:$0xff]
                  %1185 = vst [vmem:[%s811 + $0x5d0] sm:$0xff] %v1184
                  %v1186 = vld [vmem:[%s810 + $0xbb0] sm:$0xff]
                  %1187 = vst [vmem:[%s811 + $0x5d8] sm:$0xff] %v1186
                  %v1188 = vld [vmem:[%s810 + $0xbc0] sm:$0xff]
                  %1189 = vst [vmem:[%s811 + $0x5e0] sm:$0xff] %v1188
                  %v1190 = vld [vmem:[%s810 + $0xbd0] sm:$0xff]
                  %1191 = vst [vmem:[%s811 + $0x5e8] sm:$0xff] %v1190
                  %v1192 = vld [vmem:[%s810 + $0xbe0] sm:$0xff]
                  %1193 = vst [vmem:[%s811 + $0x5f0] sm:$0xff] %v1192
                  %v1194 = vld [vmem:[%s810 + $0xbf0] sm:$0xff]
                  %1195 = vst [vmem:[%s811 + $0x5f8] sm:$0xff] %v1194
                  %v1196 = vld [vmem:[%s810 + $0xc00] sm:$0xff]
                  %1197 = vst [vmem:[%s811 + $0x600] sm:$0xff] %v1196
                  %v1198 = vld [vmem:[%s810 + $0xc10] sm:$0xff]
                  %1199 = vst [vmem:[%s811 + $0x608] sm:$0xff] %v1198
                  %v1200 = vld [vmem:[%s810 + $0xc20] sm:$0xff]
                  %1201 = vst [vmem:[%s811 + $0x610] sm:$0xff] %v1200
                  %v1202 = vld [vmem:[%s810 + $0xc30] sm:$0xff]
                  %1203 = vst [vmem:[%s811 + $0x618] sm:$0xff] %v1202
                  %v1204 = vld [vmem:[%s810 + $0xc40] sm:$0xff]
                  %1205 = vst [vmem:[%s811 + $0x620] sm:$0xff] %v1204
                  %v1206 = vld [vmem:[%s810 + $0xc50] sm:$0xff]
                  %1207 = vst [vmem:[%s811 + $0x628] sm:$0xff] %v1206
                  %v1208 = vld [vmem:[%s810 + $0xc60] sm:$0xff]
                  %1209 = vst [vmem:[%s811 + $0x630] sm:$0xff] %v1208
                  %v1210 = vld [vmem:[%s810 + $0xc70] sm:$0xff]
                  %1211 = vst [vmem:[%s811 + $0x638] sm:$0xff] %v1210
                  %v1212 = vld [vmem:[%s810 + $0xc80] sm:$0xff]
                  %1213 = vst [vmem:[%s811 + $0x640] sm:$0xff] %v1212
                  %v1214 = vld [vmem:[%s810 + $0xc90] sm:$0xff]
                  %1215 = vst [vmem:[%s811 + $0x648] sm:$0xff] %v1214
                  %v1216 = vld [vmem:[%s810 + $0xca0] sm:$0xff]
                  %1217 = vst [vmem:[%s811 + $0x650] sm:$0xff] %v1216
                  %v1218 = vld [vmem:[%s810 + $0xcb0] sm:$0xff]
                  %1219 = vst [vmem:[%s811 + $0x658] sm:$0xff] %v1218
                  %v1220 = vld [vmem:[%s810 + $0xcc0] sm:$0xff]
                  %1221 = vst [vmem:[%s811 + $0x660] sm:$0xff] %v1220
                  %v1222 = vld [vmem:[%s810 + $0xcd0] sm:$0xff]
                  %1223 = vst [vmem:[%s811 + $0x668] sm:$0xff] %v1222
                  %v1224 = vld [vmem:[%s810 + $0xce0] sm:$0xff]
                  %1225 = vst [vmem:[%s811 + $0x670] sm:$0xff] %v1224
                  %v1226 = vld [vmem:[%s810 + $0xcf0] sm:$0xff]
                  %1227 = vst [vmem:[%s811 + $0x678] sm:$0xff] %v1226
                  %v1228 = vld [vmem:[%s810 + $0xd00] sm:$0xff]
                  %1229 = vst [vmem:[%s811 + $0x680] sm:$0xff] %v1228
                  %v1230 = vld [vmem:[%s810 + $0xd10] sm:$0xff]
                  %1231 = vst [vmem:[%s811 + $0x688] sm:$0xff] %v1230
                  %v1232 = vld [vmem:[%s810 + $0xd20] sm:$0xff]
                  %1233 = vst [vmem:[%s811 + $0x690] sm:$0xff] %v1232
                  %v1234 = vld [vmem:[%s810 + $0xd30] sm:$0xff]
                  %1235 = vst [vmem:[%s811 + $0x698] sm:$0xff] %v1234
                  %v1236 = vld [vmem:[%s810 + $0xd40] sm:$0xff]
                  %1237 = vst [vmem:[%s811 + $0x6a0] sm:$0xff] %v1236
                  %v1238 = vld [vmem:[%s810 + $0xd50] sm:$0xff]
                  %1239 = vst [vmem:[%s811 + $0x6a8] sm:$0xff] %v1238
                  %v1240 = vld [vmem:[%s810 + $0xd60] sm:$0xff]
                  %1241 = vst [vmem:[%s811 + $0x6b0] sm:$0xff] %v1240
                  %v1242 = vld [vmem:[%s810 + $0xd70] sm:$0xff]
                  %1243 = vst [vmem:[%s811 + $0x6b8] sm:$0xff] %v1242
                  %v1244 = vld [vmem:[%s810 + $0xd80] sm:$0xff]
                  %1245 = vst [vmem:[%s811 + $0x6c0] sm:$0xff] %v1244
                  %v1246 = vld [vmem:[%s810 + $0xd90] sm:$0xff]
                  %1247 = vst [vmem:[%s811 + $0x6c8] sm:$0xff] %v1246
                  %v1248 = vld [vmem:[%s810 + $0xda0] sm:$0xff]
                  %1249 = vst [vmem:[%s811 + $0x6d0] sm:$0xff] %v1248
                  %v1250 = vld [vmem:[%s810 + $0xdb0] sm:$0xff]
                  %1251 = vst [vmem:[%s811 + $0x6d8] sm:$0xff] %v1250
                  %v1252 = vld [vmem:[%s810 + $0xdc0] sm:$0xff]
                  %1253 = vst [vmem:[%s811 + $0x6e0] sm:$0xff] %v1252
                  %v1254 = vld [vmem:[%s810 + $0xdd0] sm:$0xff]
                  %1255 = vst [vmem:[%s811 + $0x6e8] sm:$0xff] %v1254
                  %v1256 = vld [vmem:[%s810 + $0xde0] sm:$0xff]
                  %1257 = vst [vmem:[%s811 + $0x6f0] sm:$0xff] %v1256
                  %v1258 = vld [vmem:[%s810 + $0xdf0] sm:$0xff]
                  %1259 = vst [vmem:[%s811 + $0x6f8] sm:$0xff] %v1258
                  %v1260 = vld [vmem:[%s810 + $0xe00] sm:$0xff]
                  %1261 = vst [vmem:[%s811 + $0x700] sm:$0xff] %v1260
                  %v1262 = vld [vmem:[%s810 + $0xe10] sm:$0xff]
                  %1263 = vst [vmem:[%s811 + $0x708] sm:$0xff] %v1262
                  %v1264 = vld [vmem:[%s810 + $0xe20] sm:$0xff]
                  %1265 = vst [vmem:[%s811 + $0x710] sm:$0xff] %v1264
                  %v1266 = vld [vmem:[%s810 + $0xe30] sm:$0xff]
                  %1267 = vst [vmem:[%s811 + $0x718] sm:$0xff] %v1266
                  %v1268 = vld [vmem:[%s810 + $0xe40] sm:$0xff]
                  %1269 = vst [vmem:[%s811 + $0x720] sm:$0xff] %v1268
                  %v1270 = vld [vmem:[%s810 + $0xe50] sm:$0xff]
                  %1271 = vst [vmem:[%s811 + $0x728] sm:$0xff] %v1270
                  %v1272 = vld [vmem:[%s810 + $0xe60] sm:$0xff]
                  %1273 = vst [vmem:[%s811 + $0x730] sm:$0xff] %v1272
                  %v1274 = vld [vmem:[%s810 + $0xe70] sm:$0xff]
                  %1275 = vst [vmem:[%s811 + $0x738] sm:$0xff] %v1274
                  %v1276 = vld [vmem:[%s810 + $0xe80] sm:$0xff]
                  %1277 = vst [vmem:[%s811 + $0x740] sm:$0xff] %v1276
                  %v1278 = vld [vmem:[%s810 + $0xe90] sm:$0xff]
                  %1279 = vst [vmem:[%s811 + $0x748] sm:$0xff] %v1278
                  %v1280 = vld [vmem:[%s810 + $0xea0] sm:$0xff]
                  %1281 = vst [vmem:[%s811 + $0x750] sm:$0xff] %v1280
                  %v1282 = vld [vmem:[%s810 + $0xeb0] sm:$0xff]
                  %1283 = vst [vmem:[%s811 + $0x758] sm:$0xff] %v1282
                  %v1284 = vld [vmem:[%s810 + $0xec0] sm:$0xff]
                  %1285 = vst [vmem:[%s811 + $0x760] sm:$0xff] %v1284
                  %v1286 = vld [vmem:[%s810 + $0xed0] sm:$0xff]
                  %1287 = vst [vmem:[%s811 + $0x768] sm:$0xff] %v1286
                  %v1288 = vld [vmem:[%s810 + $0xee0] sm:$0xff]
                  %1289 = vst [vmem:[%s811 + $0x770] sm:$0xff] %v1288
                  %v1290 = vld [vmem:[%s810 + $0xef0] sm:$0xff]
                  %1291 = vst [vmem:[%s811 + $0x778] sm:$0xff] %v1290
                  %v1292 = vld [vmem:[%s810 + $0xf00] sm:$0xff]
                  %1293 = vst [vmem:[%s811 + $0x780] sm:$0xff] %v1292
                  %v1294 = vld [vmem:[%s810 + $0xf10] sm:$0xff]
                  %1295 = vst [vmem:[%s811 + $0x788] sm:$0xff] %v1294
                  %v1296 = vld [vmem:[%s810 + $0xf20] sm:$0xff]
                  %1297 = vst [vmem:[%s811 + $0x790] sm:$0xff] %v1296
                  %v1298 = vld [vmem:[%s810 + $0xf30] sm:$0xff]
                  %1299 = vst [vmem:[%s811 + $0x798] sm:$0xff] %v1298
                  %v1300 = vld [vmem:[%s810 + $0xf40] sm:$0xff]
                  %1301 = vst [vmem:[%s811 + $0x7a0] sm:$0xff] %v1300
                  %v1302 = vld [vmem:[%s810 + $0xf50] sm:$0xff]
                  %1303 = vst [vmem:[%s811 + $0x7a8] sm:$0xff] %v1302
                  %v1304 = vld [vmem:[%s810 + $0xf60] sm:$0xff]
                  %1305 = vst [vmem:[%s811 + $0x7b0] sm:$0xff] %v1304
                  %v1306 = vld [vmem:[%s810 + $0xf70] sm:$0xff]
                  %1307 = vst [vmem:[%s811 + $0x7b8] sm:$0xff] %v1306
                  %v1308 = vld [vmem:[%s810 + $0xf80] sm:$0xff]
                  %1309 = vst [vmem:[%s811 + $0x7c0] sm:$0xff] %v1308
                  %v1310 = vld [vmem:[%s810 + $0xf90] sm:$0xff]
                  %1311 = vst [vmem:[%s811 + $0x7c8] sm:$0xff] %v1310
                  %v1312 = vld [vmem:[%s810 + $0xfa0] sm:$0xff]
                  %1313 = vst [vmem:[%s811 + $0x7d0] sm:$0xff] %v1312
                  %v1314 = vld [vmem:[%s810 + $0xfb0] sm:$0xff]
                  %1315 = vst [vmem:[%s811 + $0x7d8] sm:$0xff] %v1314
                  %v1316 = vld [vmem:[%s810 + $0xfc0] sm:$0xff]
                  %1317 = vst [vmem:[%s811 + $0x7e0] sm:$0xff] %v1316
                  %v1318 = vld [vmem:[%s810 + $0xfd0] sm:$0xff]
                  %1319 = vst [vmem:[%s811 + $0x7e8] sm:$0xff] %v1318
                  %v1320 = vld [vmem:[%s810 + $0xfe0] sm:$0xff]
                  %1321 = vst [vmem:[%s811 + $0x7f0] sm:$0xff] %v1320
                  %v1322 = vld [vmem:[%s810 + $0xff0] sm:$0xff]
                  %1323 = vst [vmem:[%s811 + $0x7f8] sm:$0xff] %v1322
                  %s1324 = sadd.s32 1, %s809
                  %p1325 = scmp.ge.s32.totalorder %s1324, 1
                  %s1326 = scalar_select %p1325, 0, %s1324
                  %s1327 = smul.u32 %s1326, 8
                  %s1328 = smul.u32 %s1326, 8
                  %s1329 = scalar_lea.vmem %s272, %s1327
                  %s1330 = scalar_lea.vmem %s266, %s1328 [#allocation4]
                $region71: #{discriminator_forward.8} parent=65 // loop_footer
                  %s808 = sadd.s32 1, %s804
                $region72: #{discriminator_forward.8} parent=65 // loop_footer_branch
                  %803 = sbr.rel target = $region68
                $region73: #{discriminator_forward.8} parent=65 // loop_exit
                  _
              $region66: #{discriminator_forward.8} parent=50 // pred_fallthru
                _
              // Predicated region
              $region74: #{discriminator_forward.8} parent=50 // pred_check
                _
              $region75: #{discriminator_forward.8} parent=50 // pred_check_branch
                %1332 = sbr.rel target = $region77
              $region76: #{discriminator_forward.8} parent=50 // pred_region
                %s1333 = scalar_lea.vmem %s272, 8
                %s1334 = scalar_lea.vmem %s266, 8 [#allocation4]
                loop: start=0, step=1, limit=1
                $region78: #{discriminator_forward.8} parent=76 // loop_pre_header
                  _
                $region79: #{discriminator_forward.8} parent=76 // loop_header
                  %s1336 = sphi 0, %s1340
                  %p1337 = scmp.ge.s32.totalorder %s1336, 1
                  %s1341 = sphi 0, %s1858
                  %s1342 = sphi %s272, %s1861
                  %s1343 = sphi %s266, %s1862
                $region80: #{discriminator_forward.8} parent=76 // loop_header_branch
                  %1339 = sbr.rel (%p1337) target = $region84
                $region81: #{discriminator_forward.8} parent=76 // loop_body
                  %v1344 = vld [vmem:[%s1342] sm:$0xff]
                  %1345 = vst [vmem:[%s1343] sm:$0xff] %v1344
                  %v1346 = vld [vmem:[%s1342 + $0x10] sm:$0xff]
                  %1347 = vst [vmem:[%s1343 + $0x8] sm:$0xff] %v1346
                  %v1348 = vld [vmem:[%s1342 + $0x20] sm:$0xff]
                  %1349 = vst [vmem:[%s1343 + $0x10] sm:$0xff] %v1348
                  %v1350 = vld [vmem:[%s1342 + $0x30] sm:$0xff]
                  %1351 = vst [vmem:[%s1343 + $0x18] sm:$0xff] %v1350
                  %v1352 = vld [vmem:[%s1342 + $0x40] sm:$0xff]
                  %1353 = vst [vmem:[%s1343 + $0x20] sm:$0xff] %v1352
                  %v1354 = vld [vmem:[%s1342 + $0x50] sm:$0xff]
                  %1355 = vst [vmem:[%s1343 + $0x28] sm:$0xff] %v1354
                  %v1356 = vld [vmem:[%s1342 + $0x60] sm:$0xff]
                  %1357 = vst [vmem:[%s1343 + $0x30] sm:$0xff] %v1356
                  %v1358 = vld [vmem:[%s1342 + $0x70] sm:$0xff]
                  %1359 = vst [vmem:[%s1343 + $0x38] sm:$0xff] %v1358
                  %v1360 = vld [vmem:[%s1342 + $0x80] sm:$0xff]
                  %1361 = vst [vmem:[%s1343 + $0x40] sm:$0xff] %v1360
                  %v1362 = vld [vmem:[%s1342 + $0x90] sm:$0xff]
                  %1363 = vst [vmem:[%s1343 + $0x48] sm:$0xff] %v1362
                  %v1364 = vld [vmem:[%s1342 + $0xa0] sm:$0xff]
                  %1365 = vst [vmem:[%s1343 + $0x50] sm:$0xff] %v1364
                  %v1366 = vld [vmem:[%s1342 + $0xb0] sm:$0xff]
                  %1367 = vst [vmem:[%s1343 + $0x58] sm:$0xff] %v1366
                  %v1368 = vld [vmem:[%s1342 + $0xc0] sm:$0xff]
                  %1369 = vst [vmem:[%s1343 + $0x60] sm:$0xff] %v1368
                  %v1370 = vld [vmem:[%s1342 + $0xd0] sm:$0xff]
                  %1371 = vst [vmem:[%s1343 + $0x68] sm:$0xff] %v1370
                  %v1372 = vld [vmem:[%s1342 + $0xe0] sm:$0xff]
                  %1373 = vst [vmem:[%s1343 + $0x70] sm:$0xff] %v1372
                  %v1374 = vld [vmem:[%s1342 + $0xf0] sm:$0xff]
                  %1375 = vst [vmem:[%s1343 + $0x78] sm:$0xff] %v1374
                  %v1376 = vld [vmem:[%s1342 + $0x100] sm:$0xff]
                  %1377 = vst [vmem:[%s1343 + $0x80] sm:$0xff] %v1376
                  %v1378 = vld [vmem:[%s1342 + $0x110] sm:$0xff]
                  %1379 = vst [vmem:[%s1343 + $0x88] sm:$0xff] %v1378
                  %v1380 = vld [vmem:[%s1342 + $0x120] sm:$0xff]
                  %1381 = vst [vmem:[%s1343 + $0x90] sm:$0xff] %v1380
                  %v1382 = vld [vmem:[%s1342 + $0x130] sm:$0xff]
                  %1383 = vst [vmem:[%s1343 + $0x98] sm:$0xff] %v1382
                  %v1384 = vld [vmem:[%s1342 + $0x140] sm:$0xff]
                  %1385 = vst [vmem:[%s1343 + $0xa0] sm:$0xff] %v1384
                  %v1386 = vld [vmem:[%s1342 + $0x150] sm:$0xff]
                  %1387 = vst [vmem:[%s1343 + $0xa8] sm:$0xff] %v1386
                  %v1388 = vld [vmem:[%s1342 + $0x160] sm:$0xff]
                  %1389 = vst [vmem:[%s1343 + $0xb0] sm:$0xff] %v1388
                  %v1390 = vld [vmem:[%s1342 + $0x170] sm:$0xff]
                  %1391 = vst [vmem:[%s1343 + $0xb8] sm:$0xff] %v1390
                  %v1392 = vld [vmem:[%s1342 + $0x180] sm:$0xff]
                  %1393 = vst [vmem:[%s1343 + $0xc0] sm:$0xff] %v1392
                  %v1394 = vld [vmem:[%s1342 + $0x190] sm:$0xff]
                  %1395 = vst [vmem:[%s1343 + $0xc8] sm:$0xff] %v1394
                  %v1396 = vld [vmem:[%s1342 + $0x1a0] sm:$0xff]
                  %1397 = vst [vmem:[%s1343 + $0xd0] sm:$0xff] %v1396
                  %v1398 = vld [vmem:[%s1342 + $0x1b0] sm:$0xff]
                  %1399 = vst [vmem:[%s1343 + $0xd8] sm:$0xff] %v1398
                  %v1400 = vld [vmem:[%s1342 + $0x1c0] sm:$0xff]
                  %1401 = vst [vmem:[%s1343 + $0xe0] sm:$0xff] %v1400
                  %v1402 = vld [vmem:[%s1342 + $0x1d0] sm:$0xff]
                  %1403 = vst [vmem:[%s1343 + $0xe8] sm:$0xff] %v1402
                  %v1404 = vld [vmem:[%s1342 + $0x1e0] sm:$0xff]
                  %1405 = vst [vmem:[%s1343 + $0xf0] sm:$0xff] %v1404
                  %v1406 = vld [vmem:[%s1342 + $0x1f0] sm:$0xff]
                  %1407 = vst [vmem:[%s1343 + $0xf8] sm:$0xff] %v1406
                  %v1408 = vld [vmem:[%s1342 + $0x200] sm:$0xff]
                  %1409 = vst [vmem:[%s1343 + $0x100] sm:$0xff] %v1408
                  %v1410 = vld [vmem:[%s1342 + $0x210] sm:$0xff]
                  %1411 = vst [vmem:[%s1343 + $0x108] sm:$0xff] %v1410
                  %v1412 = vld [vmem:[%s1342 + $0x220] sm:$0xff]
                  %1413 = vst [vmem:[%s1343 + $0x110] sm:$0xff] %v1412
                  %v1414 = vld [vmem:[%s1342 + $0x230] sm:$0xff]
                  %1415 = vst [vmem:[%s1343 + $0x118] sm:$0xff] %v1414
                  %v1416 = vld [vmem:[%s1342 + $0x240] sm:$0xff]
                  %1417 = vst [vmem:[%s1343 + $0x120] sm:$0xff] %v1416
                  %v1418 = vld [vmem:[%s1342 + $0x250] sm:$0xff]
                  %1419 = vst [vmem:[%s1343 + $0x128] sm:$0xff] %v1418
                  %v1420 = vld [vmem:[%s1342 + $0x260] sm:$0xff]
                  %1421 = vst [vmem:[%s1343 + $0x130] sm:$0xff] %v1420
                  %v1422 = vld [vmem:[%s1342 + $0x270] sm:$0xff]
                  %1423 = vst [vmem:[%s1343 + $0x138] sm:$0xff] %v1422
                  %v1424 = vld [vmem:[%s1342 + $0x280] sm:$0xff]
                  %1425 = vst [vmem:[%s1343 + $0x140] sm:$0xff] %v1424
                  %v1426 = vld [vmem:[%s1342 + $0x290] sm:$0xff]
                  %1427 = vst [vmem:[%s1343 + $0x148] sm:$0xff] %v1426
                  %v1428 = vld [vmem:[%s1342 + $0x2a0] sm:$0xff]
                  %1429 = vst [vmem:[%s1343 + $0x150] sm:$0xff] %v1428
                  %v1430 = vld [vmem:[%s1342 + $0x2b0] sm:$0xff]
                  %1431 = vst [vmem:[%s1343 + $0x158] sm:$0xff] %v1430
                  %v1432 = vld [vmem:[%s1342 + $0x2c0] sm:$0xff]
                  %1433 = vst [vmem:[%s1343 + $0x160] sm:$0xff] %v1432
                  %v1434 = vld [vmem:[%s1342 + $0x2d0] sm:$0xff]
                  %1435 = vst [vmem:[%s1343 + $0x168] sm:$0xff] %v1434
                  %v1436 = vld [vmem:[%s1342 + $0x2e0] sm:$0xff]
                  %1437 = vst [vmem:[%s1343 + $0x170] sm:$0xff] %v1436
                  %v1438 = vld [vmem:[%s1342 + $0x2f0] sm:$0xff]
                  %1439 = vst [vmem:[%s1343 + $0x178] sm:$0xff] %v1438
                  %v1440 = vld [vmem:[%s1342 + $0x300] sm:$0xff]
                  %1441 = vst [vmem:[%s1343 + $0x180] sm:$0xff] %v1440
                  %v1442 = vld [vmem:[%s1342 + $0x310] sm:$0xff]
                  %1443 = vst [vmem:[%s1343 + $0x188] sm:$0xff] %v1442
                  %v1444 = vld [vmem:[%s1342 + $0x320] sm:$0xff]
                  %1445 = vst [vmem:[%s1343 + $0x190] sm:$0xff] %v1444
                  %v1446 = vld [vmem:[%s1342 + $0x330] sm:$0xff]
                  %1447 = vst [vmem:[%s1343 + $0x198] sm:$0xff] %v1446
                  %v1448 = vld [vmem:[%s1342 + $0x340] sm:$0xff]
                  %1449 = vst [vmem:[%s1343 + $0x1a0] sm:$0xff] %v1448
                  %v1450 = vld [vmem:[%s1342 + $0x350] sm:$0xff]
                  %1451 = vst [vmem:[%s1343 + $0x1a8] sm:$0xff] %v1450
                  %v1452 = vld [vmem:[%s1342 + $0x360] sm:$0xff]
                  %1453 = vst [vmem:[%s1343 + $0x1b0] sm:$0xff] %v1452
                  %v1454 = vld [vmem:[%s1342 + $0x370] sm:$0xff]
                  %1455 = vst [vmem:[%s1343 + $0x1b8] sm:$0xff] %v1454
                  %v1456 = vld [vmem:[%s1342 + $0x380] sm:$0xff]
                  %1457 = vst [vmem:[%s1343 + $0x1c0] sm:$0xff] %v1456
                  %v1458 = vld [vmem:[%s1342 + $0x390] sm:$0xff]
                  %1459 = vst [vmem:[%s1343 + $0x1c8] sm:$0xff] %v1458
                  %v1460 = vld [vmem:[%s1342 + $0x3a0] sm:$0xff]
                  %1461 = vst [vmem:[%s1343 + $0x1d0] sm:$0xff] %v1460
                  %v1462 = vld [vmem:[%s1342 + $0x3b0] sm:$0xff]
                  %1463 = vst [vmem:[%s1343 + $0x1d8] sm:$0xff] %v1462
                  %v1464 = vld [vmem:[%s1342 + $0x3c0] sm:$0xff]
                  %1465 = vst [vmem:[%s1343 + $0x1e0] sm:$0xff] %v1464
                  %v1466 = vld [vmem:[%s1342 + $0x3d0] sm:$0xff]
                  %1467 = vst [vmem:[%s1343 + $0x1e8] sm:$0xff] %v1466
                  %v1468 = vld [vmem:[%s1342 + $0x3e0] sm:$0xff]
                  %1469 = vst [vmem:[%s1343 + $0x1f0] sm:$0xff] %v1468
                  %v1470 = vld [vmem:[%s1342 + $0x3f0] sm:$0xff]
                  %1471 = vst [vmem:[%s1343 + $0x1f8] sm:$0xff] %v1470
                  %v1472 = vld [vmem:[%s1342 + $0x400] sm:$0xff]
                  %1473 = vst [vmem:[%s1343 + $0x200] sm:$0xff] %v1472
                  %v1474 = vld [vmem:[%s1342 + $0x410] sm:$0xff]
                  %1475 = vst [vmem:[%s1343 + $0x208] sm:$0xff] %v1474
                  %v1476 = vld [vmem:[%s1342 + $0x420] sm:$0xff]
                  %1477 = vst [vmem:[%s1343 + $0x210] sm:$0xff] %v1476
                  %v1478 = vld [vmem:[%s1342 + $0x430] sm:$0xff]
                  %1479 = vst [vmem:[%s1343 + $0x218] sm:$0xff] %v1478
                  %v1480 = vld [vmem:[%s1342 + $0x440] sm:$0xff]
                  %1481 = vst [vmem:[%s1343 + $0x220] sm:$0xff] %v1480
                  %v1482 = vld [vmem:[%s1342 + $0x450] sm:$0xff]
                  %1483 = vst [vmem:[%s1343 + $0x228] sm:$0xff] %v1482
                  %v1484 = vld [vmem:[%s1342 + $0x460] sm:$0xff]
                  %1485 = vst [vmem:[%s1343 + $0x230] sm:$0xff] %v1484
                  %v1486 = vld [vmem:[%s1342 + $0x470] sm:$0xff]
                  %1487 = vst [vmem:[%s1343 + $0x238] sm:$0xff] %v1486
                  %v1488 = vld [vmem:[%s1342 + $0x480] sm:$0xff]
                  %1489 = vst [vmem:[%s1343 + $0x240] sm:$0xff] %v1488
                  %v1490 = vld [vmem:[%s1342 + $0x490] sm:$0xff]
                  %1491 = vst [vmem:[%s1343 + $0x248] sm:$0xff] %v1490
                  %v1492 = vld [vmem:[%s1342 + $0x4a0] sm:$0xff]
                  %1493 = vst [vmem:[%s1343 + $0x250] sm:$0xff] %v1492
                  %v1494 = vld [vmem:[%s1342 + $0x4b0] sm:$0xff]
                  %1495 = vst [vmem:[%s1343 + $0x258] sm:$0xff] %v1494
                  %v1496 = vld [vmem:[%s1342 + $0x4c0] sm:$0xff]
                  %1497 = vst [vmem:[%s1343 + $0x260] sm:$0xff] %v1496
                  %v1498 = vld [vmem:[%s1342 + $0x4d0] sm:$0xff]
                  %1499 = vst [vmem:[%s1343 + $0x268] sm:$0xff] %v1498
                  %v1500 = vld [vmem:[%s1342 + $0x4e0] sm:$0xff]
                  %1501 = vst [vmem:[%s1343 + $0x270] sm:$0xff] %v1500
                  %v1502 = vld [vmem:[%s1342 + $0x4f0] sm:$0xff]
                  %1503 = vst [vmem:[%s1343 + $0x278] sm:$0xff] %v1502
                  %v1504 = vld [vmem:[%s1342 + $0x500] sm:$0xff]
                  %1505 = vst [vmem:[%s1343 + $0x280] sm:$0xff] %v1504
                  %v1506 = vld [vmem:[%s1342 + $0x510] sm:$0xff]
                  %1507 = vst [vmem:[%s1343 + $0x288] sm:$0xff] %v1506
                  %v1508 = vld [vmem:[%s1342 + $0x520] sm:$0xff]
                  %1509 = vst [vmem:[%s1343 + $0x290] sm:$0xff] %v1508
                  %v1510 = vld [vmem:[%s1342 + $0x530] sm:$0xff]
                  %1511 = vst [vmem:[%s1343 + $0x298] sm:$0xff] %v1510
                  %v1512 = vld [vmem:[%s1342 + $0x540] sm:$0xff]
                  %1513 = vst [vmem:[%s1343 + $0x2a0] sm:$0xff] %v1512
                  %v1514 = vld [vmem:[%s1342 + $0x550] sm:$0xff]
                  %1515 = vst [vmem:[%s1343 + $0x2a8] sm:$0xff] %v1514
                  %v1516 = vld [vmem:[%s1342 + $0x560] sm:$0xff]
                  %1517 = vst [vmem:[%s1343 + $0x2b0] sm:$0xff] %v1516
                  %v1518 = vld [vmem:[%s1342 + $0x570] sm:$0xff]
                  %1519 = vst [vmem:[%s1343 + $0x2b8] sm:$0xff] %v1518
                  %v1520 = vld [vmem:[%s1342 + $0x580] sm:$0xff]
                  %1521 = vst [vmem:[%s1343 + $0x2c0] sm:$0xff] %v1520
                  %v1522 = vld [vmem:[%s1342 + $0x590] sm:$0xff]
                  %1523 = vst [vmem:[%s1343 + $0x2c8] sm:$0xff] %v1522
                  %v1524 = vld [vmem:[%s1342 + $0x5a0] sm:$0xff]
                  %1525 = vst [vmem:[%s1343 + $0x2d0] sm:$0xff] %v1524
                  %v1526 = vld [vmem:[%s1342 + $0x5b0] sm:$0xff]
                  %1527 = vst [vmem:[%s1343 + $0x2d8] sm:$0xff] %v1526
                  %v1528 = vld [vmem:[%s1342 + $0x5c0] sm:$0xff]
                  %1529 = vst [vmem:[%s1343 + $0x2e0] sm:$0xff] %v1528
                  %v1530 = vld [vmem:[%s1342 + $0x5d0] sm:$0xff]
                  %1531 = vst [vmem:[%s1343 + $0x2e8] sm:$0xff] %v1530
                  %v1532 = vld [vmem:[%s1342 + $0x5e0] sm:$0xff]
                  %1533 = vst [vmem:[%s1343 + $0x2f0] sm:$0xff] %v1532
                  %v1534 = vld [vmem:[%s1342 + $0x5f0] sm:$0xff]
                  %1535 = vst [vmem:[%s1343 + $0x2f8] sm:$0xff] %v1534
                  %v1536 = vld [vmem:[%s1342 + $0x600] sm:$0xff]
                  %1537 = vst [vmem:[%s1343 + $0x300] sm:$0xff] %v1536
                  %v1538 = vld [vmem:[%s1342 + $0x610] sm:$0xff]
                  %1539 = vst [vmem:[%s1343 + $0x308] sm:$0xff] %v1538
                  %v1540 = vld [vmem:[%s1342 + $0x620] sm:$0xff]
                  %1541 = vst [vmem:[%s1343 + $0x310] sm:$0xff] %v1540
                  %v1542 = vld [vmem:[%s1342 + $0x630] sm:$0xff]
                  %1543 = vst [vmem:[%s1343 + $0x318] sm:$0xff] %v1542
                  %v1544 = vld [vmem:[%s1342 + $0x640] sm:$0xff]
                  %1545 = vst [vmem:[%s1343 + $0x320] sm:$0xff] %v1544
                  %v1546 = vld [vmem:[%s1342 + $0x650] sm:$0xff]
                  %1547 = vst [vmem:[%s1343 + $0x328] sm:$0xff] %v1546
                  %v1548 = vld [vmem:[%s1342 + $0x660] sm:$0xff]
                  %1549 = vst [vmem:[%s1343 + $0x330] sm:$0xff] %v1548
                  %v1550 = vld [vmem:[%s1342 + $0x670] sm:$0xff]
                  %1551 = vst [vmem:[%s1343 + $0x338] sm:$0xff] %v1550
                  %v1552 = vld [vmem:[%s1342 + $0x680] sm:$0xff]
                  %1553 = vst [vmem:[%s1343 + $0x340] sm:$0xff] %v1552
                  %v1554 = vld [vmem:[%s1342 + $0x690] sm:$0xff]
                  %1555 = vst [vmem:[%s1343 + $0x348] sm:$0xff] %v1554
                  %v1556 = vld [vmem:[%s1342 + $0x6a0] sm:$0xff]
                  %1557 = vst [vmem:[%s1343 + $0x350] sm:$0xff] %v1556
                  %v1558 = vld [vmem:[%s1342 + $0x6b0] sm:$0xff]
                  %1559 = vst [vmem:[%s1343 + $0x358] sm:$0xff] %v1558
                  %v1560 = vld [vmem:[%s1342 + $0x6c0] sm:$0xff]
                  %1561 = vst [vmem:[%s1343 + $0x360] sm:$0xff] %v1560
                  %v1562 = vld [vmem:[%s1342 + $0x6d0] sm:$0xff]
                  %1563 = vst [vmem:[%s1343 + $0x368] sm:$0xff] %v1562
                  %v1564 = vld [vmem:[%s1342 + $0x6e0] sm:$0xff]
                  %1565 = vst [vmem:[%s1343 + $0x370] sm:$0xff] %v1564
                  %v1566 = vld [vmem:[%s1342 + $0x6f0] sm:$0xff]
                  %1567 = vst [vmem:[%s1343 + $0x378] sm:$0xff] %v1566
                  %v1568 = vld [vmem:[%s1342 + $0x700] sm:$0xff]
                  %1569 = vst [vmem:[%s1343 + $0x380] sm:$0xff] %v1568
                  %v1570 = vld [vmem:[%s1342 + $0x710] sm:$0xff]
                  %1571 = vst [vmem:[%s1343 + $0x388] sm:$0xff] %v1570
                  %v1572 = vld [vmem:[%s1342 + $0x720] sm:$0xff]
                  %1573 = vst [vmem:[%s1343 + $0x390] sm:$0xff] %v1572
                  %v1574 = vld [vmem:[%s1342 + $0x730] sm:$0xff]
                  %1575 = vst [vmem:[%s1343 + $0x398] sm:$0xff] %v1574
                  %v1576 = vld [vmem:[%s1342 + $0x740] sm:$0xff]
                  %1577 = vst [vmem:[%s1343 + $0x3a0] sm:$0xff] %v1576
                  %v1578 = vld [vmem:[%s1342 + $0x750] sm:$0xff]
                  %1579 = vst [vmem:[%s1343 + $0x3a8] sm:$0xff] %v1578
                  %v1580 = vld [vmem:[%s1342 + $0x760] sm:$0xff]
                  %1581 = vst [vmem:[%s1343 + $0x3b0] sm:$0xff] %v1580
                  %v1582 = vld [vmem:[%s1342 + $0x770] sm:$0xff]
                  %1583 = vst [vmem:[%s1343 + $0x3b8] sm:$0xff] %v1582
                  %v1584 = vld [vmem:[%s1342 + $0x780] sm:$0xff]
                  %1585 = vst [vmem:[%s1343 + $0x3c0] sm:$0xff] %v1584
                  %v1586 = vld [vmem:[%s1342 + $0x790] sm:$0xff]
                  %1587 = vst [vmem:[%s1343 + $0x3c8] sm:$0xff] %v1586
                  %v1588 = vld [vmem:[%s1342 + $0x7a0] sm:$0xff]
                  %1589 = vst [vmem:[%s1343 + $0x3d0] sm:$0xff] %v1588
                  %v1590 = vld [vmem:[%s1342 + $0x7b0] sm:$0xff]
                  %1591 = vst [vmem:[%s1343 + $0x3d8] sm:$0xff] %v1590
                  %v1592 = vld [vmem:[%s1342 + $0x7c0] sm:$0xff]
                  %1593 = vst [vmem:[%s1343 + $0x3e0] sm:$0xff] %v1592
                  %v1594 = vld [vmem:[%s1342 + $0x7d0] sm:$0xff]
                  %1595 = vst [vmem:[%s1343 + $0x3e8] sm:$0xff] %v1594
                  %v1596 = vld [vmem:[%s1342 + $0x7e0] sm:$0xff]
                  %1597 = vst [vmem:[%s1343 + $0x3f0] sm:$0xff] %v1596
                  %v1598 = vld [vmem:[%s1342 + $0x7f0] sm:$0xff]
                  %1599 = vst [vmem:[%s1343 + $0x3f8] sm:$0xff] %v1598
                  %v1600 = vld [vmem:[%s1342 + $0x800] sm:$0xff]
                  %1601 = vst [vmem:[%s1343 + $0x400] sm:$0xff] %v1600
                  %v1602 = vld [vmem:[%s1342 + $0x810] sm:$0xff]
                  %1603 = vst [vmem:[%s1343 + $0x408] sm:$0xff] %v1602
                  %v1604 = vld [vmem:[%s1342 + $0x820] sm:$0xff]
                  %1605 = vst [vmem:[%s1343 + $0x410] sm:$0xff] %v1604
                  %v1606 = vld [vmem:[%s1342 + $0x830] sm:$0xff]
                  %1607 = vst [vmem:[%s1343 + $0x418] sm:$0xff] %v1606
                  %v1608 = vld [vmem:[%s1342 + $0x840] sm:$0xff]
                  %1609 = vst [vmem:[%s1343 + $0x420] sm:$0xff] %v1608
                  %v1610 = vld [vmem:[%s1342 + $0x850] sm:$0xff]
                  %1611 = vst [vmem:[%s1343 + $0x428] sm:$0xff] %v1610
                  %v1612 = vld [vmem:[%s1342 + $0x860] sm:$0xff]
                  %1613 = vst [vmem:[%s1343 + $0x430] sm:$0xff] %v1612
                  %v1614 = vld [vmem:[%s1342 + $0x870] sm:$0xff]
                  %1615 = vst [vmem:[%s1343 + $0x438] sm:$0xff] %v1614
                  %v1616 = vld [vmem:[%s1342 + $0x880] sm:$0xff]
                  %1617 = vst [vmem:[%s1343 + $0x440] sm:$0xff] %v1616
                  %v1618 = vld [vmem:[%s1342 + $0x890] sm:$0xff]
                  %1619 = vst [vmem:[%s1343 + $0x448] sm:$0xff] %v1618
                  %v1620 = vld [vmem:[%s1342 + $0x8a0] sm:$0xff]
                  %1621 = vst [vmem:[%s1343 + $0x450] sm:$0xff] %v1620
                  %v1622 = vld [vmem:[%s1342 + $0x8b0] sm:$0xff]
                  %1623 = vst [vmem:[%s1343 + $0x458] sm:$0xff] %v1622
                  %v1624 = vld [vmem:[%s1342 + $0x8c0] sm:$0xff]
                  %1625 = vst [vmem:[%s1343 + $0x460] sm:$0xff] %v1624
                  %v1626 = vld [vmem:[%s1342 + $0x8d0] sm:$0xff]
                  %1627 = vst [vmem:[%s1343 + $0x468] sm:$0xff] %v1626
                  %v1628 = vld [vmem:[%s1342 + $0x8e0] sm:$0xff]
                  %1629 = vst [vmem:[%s1343 + $0x470] sm:$0xff] %v1628
                  %v1630 = vld [vmem:[%s1342 + $0x8f0] sm:$0xff]
                  %1631 = vst [vmem:[%s1343 + $0x478] sm:$0xff] %v1630
                  %v1632 = vld [vmem:[%s1342 + $0x900] sm:$0xff]
                  %1633 = vst [vmem:[%s1343 + $0x480] sm:$0xff] %v1632
                  %v1634 = vld [vmem:[%s1342 + $0x910] sm:$0xff]
                  %1635 = vst [vmem:[%s1343 + $0x488] sm:$0xff] %v1634
                  %v1636 = vld [vmem:[%s1342 + $0x920] sm:$0xff]
                  %1637 = vst [vmem:[%s1343 + $0x490] sm:$0xff] %v1636
                  %v1638 = vld [vmem:[%s1342 + $0x930] sm:$0xff]
                  %1639 = vst [vmem:[%s1343 + $0x498] sm:$0xff] %v1638
                  %v1640 = vld [vmem:[%s1342 + $0x940] sm:$0xff]
                  %1641 = vst [vmem:[%s1343 + $0x4a0] sm:$0xff] %v1640
                  %v1642 = vld [vmem:[%s1342 + $0x950] sm:$0xff]
                  %1643 = vst [vmem:[%s1343 + $0x4a8] sm:$0xff] %v1642
                  %v1644 = vld [vmem:[%s1342 + $0x960] sm:$0xff]
                  %1645 = vst [vmem:[%s1343 + $0x4b0] sm:$0xff] %v1644
                  %v1646 = vld [vmem:[%s1342 + $0x970] sm:$0xff]
                  %1647 = vst [vmem:[%s1343 + $0x4b8] sm:$0xff] %v1646
                  %v1648 = vld [vmem:[%s1342 + $0x980] sm:$0xff]
                  %1649 = vst [vmem:[%s1343 + $0x4c0] sm:$0xff] %v1648
                  %v1650 = vld [vmem:[%s1342 + $0x990] sm:$0xff]
                  %1651 = vst [vmem:[%s1343 + $0x4c8] sm:$0xff] %v1650
                  %v1652 = vld [vmem:[%s1342 + $0x9a0] sm:$0xff]
                  %1653 = vst [vmem:[%s1343 + $0x4d0] sm:$0xff] %v1652
                  %v1654 = vld [vmem:[%s1342 + $0x9b0] sm:$0xff]
                  %1655 = vst [vmem:[%s1343 + $0x4d8] sm:$0xff] %v1654
                  %v1656 = vld [vmem:[%s1342 + $0x9c0] sm:$0xff]
                  %1657 = vst [vmem:[%s1343 + $0x4e0] sm:$0xff] %v1656
                  %v1658 = vld [vmem:[%s1342 + $0x9d0] sm:$0xff]
                  %1659 = vst [vmem:[%s1343 + $0x4e8] sm:$0xff] %v1658
                  %v1660 = vld [vmem:[%s1342 + $0x9e0] sm:$0xff]
                  %1661 = vst [vmem:[%s1343 + $0x4f0] sm:$0xff] %v1660
                  %v1662 = vld [vmem:[%s1342 + $0x9f0] sm:$0xff]
                  %1663 = vst [vmem:[%s1343 + $0x4f8] sm:$0xff] %v1662
                  %v1664 = vld [vmem:[%s1342 + $0xa00] sm:$0xff]
                  %1665 = vst [vmem:[%s1343 + $0x500] sm:$0xff] %v1664
                  %v1666 = vld [vmem:[%s1342 + $0xa10] sm:$0xff]
                  %1667 = vst [vmem:[%s1343 + $0x508] sm:$0xff] %v1666
                  %v1668 = vld [vmem:[%s1342 + $0xa20] sm:$0xff]
                  %1669 = vst [vmem:[%s1343 + $0x510] sm:$0xff] %v1668
                  %v1670 = vld [vmem:[%s1342 + $0xa30] sm:$0xff]
                  %1671 = vst [vmem:[%s1343 + $0x518] sm:$0xff] %v1670
                  %v1672 = vld [vmem:[%s1342 + $0xa40] sm:$0xff]
                  %1673 = vst [vmem:[%s1343 + $0x520] sm:$0xff] %v1672
                  %v1674 = vld [vmem:[%s1342 + $0xa50] sm:$0xff]
                  %1675 = vst [vmem:[%s1343 + $0x528] sm:$0xff] %v1674
                  %v1676 = vld [vmem:[%s1342 + $0xa60] sm:$0xff]
                  %1677 = vst [vmem:[%s1343 + $0x530] sm:$0xff] %v1676
                  %v1678 = vld [vmem:[%s1342 + $0xa70] sm:$0xff]
                  %1679 = vst [vmem:[%s1343 + $0x538] sm:$0xff] %v1678
                  %v1680 = vld [vmem:[%s1342 + $0xa80] sm:$0xff]
                  %1681 = vst [vmem:[%s1343 + $0x540] sm:$0xff] %v1680
                  %v1682 = vld [vmem:[%s1342 + $0xa90] sm:$0xff]
                  %1683 = vst [vmem:[%s1343 + $0x548] sm:$0xff] %v1682
                  %v1684 = vld [vmem:[%s1342 + $0xaa0] sm:$0xff]
                  %1685 = vst [vmem:[%s1343 + $0x550] sm:$0xff] %v1684
                  %v1686 = vld [vmem:[%s1342 + $0xab0] sm:$0xff]
                  %1687 = vst [vmem:[%s1343 + $0x558] sm:$0xff] %v1686
                  %v1688 = vld [vmem:[%s1342 + $0xac0] sm:$0xff]
                  %1689 = vst [vmem:[%s1343 + $0x560] sm:$0xff] %v1688
                  %v1690 = vld [vmem:[%s1342 + $0xad0] sm:$0xff]
                  %1691 = vst [vmem:[%s1343 + $0x568] sm:$0xff] %v1690
                  %v1692 = vld [vmem:[%s1342 + $0xae0] sm:$0xff]
                  %1693 = vst [vmem:[%s1343 + $0x570] sm:$0xff] %v1692
                  %v1694 = vld [vmem:[%s1342 + $0xaf0] sm:$0xff]
                  %1695 = vst [vmem:[%s1343 + $0x578] sm:$0xff] %v1694
                  %v1696 = vld [vmem:[%s1342 + $0xb00] sm:$0xff]
                  %1697 = vst [vmem:[%s1343 + $0x580] sm:$0xff] %v1696
                  %v1698 = vld [vmem:[%s1342 + $0xb10] sm:$0xff]
                  %1699 = vst [vmem:[%s1343 + $0x588] sm:$0xff] %v1698
                  %v1700 = vld [vmem:[%s1342 + $0xb20] sm:$0xff]
                  %1701 = vst [vmem:[%s1343 + $0x590] sm:$0xff] %v1700
                  %v1702 = vld [vmem:[%s1342 + $0xb30] sm:$0xff]
                  %1703 = vst [vmem:[%s1343 + $0x598] sm:$0xff] %v1702
                  %v1704 = vld [vmem:[%s1342 + $0xb40] sm:$0xff]
                  %1705 = vst [vmem:[%s1343 + $0x5a0] sm:$0xff] %v1704
                  %v1706 = vld [vmem:[%s1342 + $0xb50] sm:$0xff]
                  %1707 = vst [vmem:[%s1343 + $0x5a8] sm:$0xff] %v1706
                  %v1708 = vld [vmem:[%s1342 + $0xb60] sm:$0xff]
                  %1709 = vst [vmem:[%s1343 + $0x5b0] sm:$0xff] %v1708
                  %v1710 = vld [vmem:[%s1342 + $0xb70] sm:$0xff]
                  %1711 = vst [vmem:[%s1343 + $0x5b8] sm:$0xff] %v1710
                  %v1712 = vld [vmem:[%s1342 + $0xb80] sm:$0xff]
                  %1713 = vst [vmem:[%s1343 + $0x5c0] sm:$0xff] %v1712
                  %v1714 = vld [vmem:[%s1342 + $0xb90] sm:$0xff]
                  %1715 = vst [vmem:[%s1343 + $0x5c8] sm:$0xff] %v1714
                  %v1716 = vld [vmem:[%s1342 + $0xba0] sm:$0xff]
                  %1717 = vst [vmem:[%s1343 + $0x5d0] sm:$0xff] %v1716
                  %v1718 = vld [vmem:[%s1342 + $0xbb0] sm:$0xff]
                  %1719 = vst [vmem:[%s1343 + $0x5d8] sm:$0xff] %v1718
                  %v1720 = vld [vmem:[%s1342 + $0xbc0] sm:$0xff]
                  %1721 = vst [vmem:[%s1343 + $0x5e0] sm:$0xff] %v1720
                  %v1722 = vld [vmem:[%s1342 + $0xbd0] sm:$0xff]
                  %1723 = vst [vmem:[%s1343 + $0x5e8] sm:$0xff] %v1722
                  %v1724 = vld [vmem:[%s1342 + $0xbe0] sm:$0xff]
                  %1725 = vst [vmem:[%s1343 + $0x5f0] sm:$0xff] %v1724
                  %v1726 = vld [vmem:[%s1342 + $0xbf0] sm:$0xff]
                  %1727 = vst [vmem:[%s1343 + $0x5f8] sm:$0xff] %v1726
                  %v1728 = vld [vmem:[%s1342 + $0xc00] sm:$0xff]
                  %1729 = vst [vmem:[%s1343 + $0x600] sm:$0xff] %v1728
                  %v1730 = vld [vmem:[%s1342 + $0xc10] sm:$0xff]
                  %1731 = vst [vmem:[%s1343 + $0x608] sm:$0xff] %v1730
                  %v1732 = vld [vmem:[%s1342 + $0xc20] sm:$0xff]
                  %1733 = vst [vmem:[%s1343 + $0x610] sm:$0xff] %v1732
                  %v1734 = vld [vmem:[%s1342 + $0xc30] sm:$0xff]
                  %1735 = vst [vmem:[%s1343 + $0x618] sm:$0xff] %v1734
                  %v1736 = vld [vmem:[%s1342 + $0xc40] sm:$0xff]
                  %1737 = vst [vmem:[%s1343 + $0x620] sm:$0xff] %v1736
                  %v1738 = vld [vmem:[%s1342 + $0xc50] sm:$0xff]
                  %1739 = vst [vmem:[%s1343 + $0x628] sm:$0xff] %v1738
                  %v1740 = vld [vmem:[%s1342 + $0xc60] sm:$0xff]
                  %1741 = vst [vmem:[%s1343 + $0x630] sm:$0xff] %v1740
                  %v1742 = vld [vmem:[%s1342 + $0xc70] sm:$0xff]
                  %1743 = vst [vmem:[%s1343 + $0x638] sm:$0xff] %v1742
                  %v1744 = vld [vmem:[%s1342 + $0xc80] sm:$0xff]
                  %1745 = vst [vmem:[%s1343 + $0x640] sm:$0xff] %v1744
                  %v1746 = vld [vmem:[%s1342 + $0xc90] sm:$0xff]
                  %1747 = vst [vmem:[%s1343 + $0x648] sm:$0xff] %v1746
                  %v1748 = vld [vmem:[%s1342 + $0xca0] sm:$0xff]
                  %1749 = vst [vmem:[%s1343 + $0x650] sm:$0xff] %v1748
                  %v1750 = vld [vmem:[%s1342 + $0xcb0] sm:$0xff]
                  %1751 = vst [vmem:[%s1343 + $0x658] sm:$0xff] %v1750
                  %v1752 = vld [vmem:[%s1342 + $0xcc0] sm:$0xff]
                  %1753 = vst [vmem:[%s1343 + $0x660] sm:$0xff] %v1752
                  %v1754 = vld [vmem:[%s1342 + $0xcd0] sm:$0xff]
                  %1755 = vst [vmem:[%s1343 + $0x668] sm:$0xff] %v1754
                  %v1756 = vld [vmem:[%s1342 + $0xce0] sm:$0xff]
                  %1757 = vst [vmem:[%s1343 + $0x670] sm:$0xff] %v1756
                  %v1758 = vld [vmem:[%s1342 + $0xcf0] sm:$0xff]
                  %1759 = vst [vmem:[%s1343 + $0x678] sm:$0xff] %v1758
                  %v1760 = vld [vmem:[%s1342 + $0xd00] sm:$0xff]
                  %1761 = vst [vmem:[%s1343 + $0x680] sm:$0xff] %v1760
                  %v1762 = vld [vmem:[%s1342 + $0xd10] sm:$0xff]
                  %1763 = vst [vmem:[%s1343 + $0x688] sm:$0xff] %v1762
                  %v1764 = vld [vmem:[%s1342 + $0xd20] sm:$0xff]
                  %1765 = vst [vmem:[%s1343 + $0x690] sm:$0xff] %v1764
                  %v1766 = vld [vmem:[%s1342 + $0xd30] sm:$0xff]
                  %1767 = vst [vmem:[%s1343 + $0x698] sm:$0xff] %v1766
                  %v1768 = vld [vmem:[%s1342 + $0xd40] sm:$0xff]
                  %1769 = vst [vmem:[%s1343 + $0x6a0] sm:$0xff] %v1768
                  %v1770 = vld [vmem:[%s1342 + $0xd50] sm:$0xff]
                  %1771 = vst [vmem:[%s1343 + $0x6a8] sm:$0xff] %v1770
                  %v1772 = vld [vmem:[%s1342 + $0xd60] sm:$0xff]
                  %1773 = vst [vmem:[%s1343 + $0x6b0] sm:$0xff] %v1772
                  %v1774 = vld [vmem:[%s1342 + $0xd70] sm:$0xff]
                  %1775 = vst [vmem:[%s1343 + $0x6b8] sm:$0xff] %v1774
                  %v1776 = vld [vmem:[%s1342 + $0xd80] sm:$0xff]
                  %1777 = vst [vmem:[%s1343 + $0x6c0] sm:$0xff] %v1776
                  %v1778 = vld [vmem:[%s1342 + $0xd90] sm:$0xff]
                  %1779 = vst [vmem:[%s1343 + $0x6c8] sm:$0xff] %v1778
                  %v1780 = vld [vmem:[%s1342 + $0xda0] sm:$0xff]
                  %1781 = vst [vmem:[%s1343 + $0x6d0] sm:$0xff] %v1780
                  %v1782 = vld [vmem:[%s1342 + $0xdb0] sm:$0xff]
                  %1783 = vst [vmem:[%s1343 + $0x6d8] sm:$0xff] %v1782
                  %v1784 = vld [vmem:[%s1342 + $0xdc0] sm:$0xff]
                  %1785 = vst [vmem:[%s1343 + $0x6e0] sm:$0xff] %v1784
                  %v1786 = vld [vmem:[%s1342 + $0xdd0] sm:$0xff]
                  %1787 = vst [vmem:[%s1343 + $0x6e8] sm:$0xff] %v1786
                  %v1788 = vld [vmem:[%s1342 + $0xde0] sm:$0xff]
                  %1789 = vst [vmem:[%s1343 + $0x6f0] sm:$0xff] %v1788
                  %v1790 = vld [vmem:[%s1342 + $0xdf0] sm:$0xff]
                  %1791 = vst [vmem:[%s1343 + $0x6f8] sm:$0xff] %v1790
                  %v1792 = vld [vmem:[%s1342 + $0xe00] sm:$0xff]
                  %1793 = vst [vmem:[%s1343 + $0x700] sm:$0xff] %v1792
                  %v1794 = vld [vmem:[%s1342 + $0xe10] sm:$0xff]
                  %1795 = vst [vmem:[%s1343 + $0x708] sm:$0xff] %v1794
                  %v1796 = vld [vmem:[%s1342 + $0xe20] sm:$0xff]
                  %1797 = vst [vmem:[%s1343 + $0x710] sm:$0xff] %v1796
                  %v1798 = vld [vmem:[%s1342 + $0xe30] sm:$0xff]
                  %1799 = vst [vmem:[%s1343 + $0x718] sm:$0xff] %v1798
                  %v1800 = vld [vmem:[%s1342 + $0xe40] sm:$0xff]
                  %1801 = vst [vmem:[%s1343 + $0x720] sm:$0xff] %v1800
                  %v1802 = vld [vmem:[%s1342 + $0xe50] sm:$0xff]
                  %1803 = vst [vmem:[%s1343 + $0x728] sm:$0xff] %v1802
                  %v1804 = vld [vmem:[%s1342 + $0xe60] sm:$0xff]
                  %1805 = vst [vmem:[%s1343 + $0x730] sm:$0xff] %v1804
                  %v1806 = vld [vmem:[%s1342 + $0xe70] sm:$0xff]
                  %1807 = vst [vmem:[%s1343 + $0x738] sm:$0xff] %v1806
                  %v1808 = vld [vmem:[%s1342 + $0xe80] sm:$0xff]
                  %1809 = vst [vmem:[%s1343 + $0x740] sm:$0xff] %v1808
                  %v1810 = vld [vmem:[%s1342 + $0xe90] sm:$0xff]
                  %1811 = vst [vmem:[%s1343 + $0x748] sm:$0xff] %v1810
                  %v1812 = vld [vmem:[%s1342 + $0xea0] sm:$0xff]
                  %1813 = vst [vmem:[%s1343 + $0x750] sm:$0xff] %v1812
                  %v1814 = vld [vmem:[%s1342 + $0xeb0] sm:$0xff]
                  %1815 = vst [vmem:[%s1343 + $0x758] sm:$0xff] %v1814
                  %v1816 = vld [vmem:[%s1342 + $0xec0] sm:$0xff]
                  %1817 = vst [vmem:[%s1343 + $0x760] sm:$0xff] %v1816
                  %v1818 = vld [vmem:[%s1342 + $0xed0] sm:$0xff]
                  %1819 = vst [vmem:[%s1343 + $0x768] sm:$0xff] %v1818
                  %v1820 = vld [vmem:[%s1342 + $0xee0] sm:$0xff]
                  %1821 = vst [vmem:[%s1343 + $0x770] sm:$0xff] %v1820
                  %v1822 = vld [vmem:[%s1342 + $0xef0] sm:$0xff]
                  %1823 = vst [vmem:[%s1343 + $0x778] sm:$0xff] %v1822
                  %v1824 = vld [vmem:[%s1342 + $0xf00] sm:$0xff]
                  %1825 = vst [vmem:[%s1343 + $0x780] sm:$0xff] %v1824
                  %v1826 = vld [vmem:[%s1342 + $0xf10] sm:$0xff]
                  %1827 = vst [vmem:[%s1343 + $0x788] sm:$0xff] %v1826
                  %v1828 = vld [vmem:[%s1342 + $0xf20] sm:$0xff]
                  %1829 = vst [vmem:[%s1343 + $0x790] sm:$0xff] %v1828
                  %v1830 = vld [vmem:[%s1342 + $0xf30] sm:$0xff]
                  %1831 = vst [vmem:[%s1343 + $0x798] sm:$0xff] %v1830
                  %v1832 = vld [vmem:[%s1342 + $0xf40] sm:$0xff]
                  %1833 = vst [vmem:[%s1343 + $0x7a0] sm:$0xff] %v1832
                  %v1834 = vld [vmem:[%s1342 + $0xf50] sm:$0xff]
                  %1835 = vst [vmem:[%s1343 + $0x7a8] sm:$0xff] %v1834
                  %v1836 = vld [vmem:[%s1342 + $0xf60] sm:$0xff]
                  %1837 = vst [vmem:[%s1343 + $0x7b0] sm:$0xff] %v1836
                  %v1838 = vld [vmem:[%s1342 + $0xf70] sm:$0xff]
                  %1839 = vst [vmem:[%s1343 + $0x7b8] sm:$0xff] %v1838
                  %v1840 = vld [vmem:[%s1342 + $0xf80] sm:$0xff]
                  %1841 = vst [vmem:[%s1343 + $0x7c0] sm:$0xff] %v1840
                  %v1842 = vld [vmem:[%s1342 + $0xf90] sm:$0xff]
                  %1843 = vst [vmem:[%s1343 + $0x7c8] sm:$0xff] %v1842
                  %v1844 = vld [vmem:[%s1342 + $0xfa0] sm:$0xff]
                  %1845 = vst [vmem:[%s1343 + $0x7d0] sm:$0xff] %v1844
                  %v1846 = vld [vmem:[%s1342 + $0xfb0] sm:$0xff]
                  %1847 = vst [vmem:[%s1343 + $0x7d8] sm:$0xff] %v1846
                  %v1848 = vld [vmem:[%s1342 + $0xfc0] sm:$0xff]
                  %1849 = vst [vmem:[%s1343 + $0x7e0] sm:$0xff] %v1848
                  %v1850 = vld [vmem:[%s1342 + $0xfd0] sm:$0xff]
                  %1851 = vst [vmem:[%s1343 + $0x7e8] sm:$0xff] %v1850
                  %v1852 = vld [vmem:[%s1342 + $0xfe0] sm:$0xff]
                  %1853 = vst [vmem:[%s1343 + $0x7f0] sm:$0xff] %v1852
                  %v1854 = vld [vmem:[%s1342 + $0xff0] sm:$0xff]
                  %1855 = vst [vmem:[%s1343 + $0x7f8] sm:$0xff] %v1854
                  %s1856 = sadd.s32 1, %s1341
                  %p1857 = scmp.ge.s32.totalorder %s1856, 1
                  %s1858 = scalar_select %p1857, 0, %s1856
                  %s1859 = smul.u32 %s1858, 8
                  %s1860 = smul.u32 %s1858, 8
                  %s1861 = scalar_lea.vmem %s272, %s1859
                  %s1862 = scalar_lea.vmem %s266, %s1860 [#allocation4]
                $region82: #{discriminator_forward.8} parent=76 // loop_footer
                  %s1340 = sadd.s32 1, %s1336
                $region83: #{discriminator_forward.8} parent=76 // loop_footer_branch
                  %1335 = sbr.rel target = $region79
                $region84: #{discriminator_forward.8} parent=76 // loop_exit
                  _
                %s1864 = ssub.s32 1, 1
                loop: start=0, step=1, limit=1
                $region85: #{discriminator_forward.8} parent=76 // loop_pre_header
                  _
                $region86: #{discriminator_forward.8} parent=76 // loop_header
                  %s1866 = sphi 0, %s1870
                  %p1867 = scmp.ge.s32.totalorder %s1866, 1
                  %s1871 = sphi %s1333, %s1333
                  %s1872 = sphi %s1334, %s1334
                $region87: #{discriminator_forward.8} parent=76 // loop_header_branch
                  %1869 = sbr.rel (%p1867) target = $region91
                $region88: #{discriminator_forward.8} parent=76 // loop_body
                  %v1873 = vld [vmem:[%s1871] sm:%s1864]
                  %1874 = vst [vmem:[%s1872] sm:%s1864] %v1873
                  %v1875 = vld [vmem:[%s1871 + $0x10] sm:%s1864]
                  %1876 = vst [vmem:[%s1872 + $0x8] sm:%s1864] %v1875
                  %v1877 = vld [vmem:[%s1871 + $0x20] sm:%s1864]
                  %1878 = vst [vmem:[%s1872 + $0x10] sm:%s1864] %v1877
                  %v1879 = vld [vmem:[%s1871 + $0x30] sm:%s1864]
                  %1880 = vst [vmem:[%s1872 + $0x18] sm:%s1864] %v1879
                  %v1881 = vld [vmem:[%s1871 + $0x40] sm:%s1864]
                  %1882 = vst [vmem:[%s1872 + $0x20] sm:%s1864] %v1881
                  %v1883 = vld [vmem:[%s1871 + $0x50] sm:%s1864]
                  %1884 = vst [vmem:[%s1872 + $0x28] sm:%s1864] %v1883
                  %v1885 = vld [vmem:[%s1871 + $0x60] sm:%s1864]
                  %1886 = vst [vmem:[%s1872 + $0x30] sm:%s1864] %v1885
                  %v1887 = vld [vmem:[%s1871 + $0x70] sm:%s1864]
                  %1888 = vst [vmem:[%s1872 + $0x38] sm:%s1864] %v1887
                  %v1889 = vld [vmem:[%s1871 + $0x80] sm:%s1864]
                  %1890 = vst [vmem:[%s1872 + $0x40] sm:%s1864] %v1889
                  %v1891 = vld [vmem:[%s1871 + $0x90] sm:%s1864]
                  %1892 = vst [vmem:[%s1872 + $0x48] sm:%s1864] %v1891
                  %v1893 = vld [vmem:[%s1871 + $0xa0] sm:%s1864]
                  %1894 = vst [vmem:[%s1872 + $0x50] sm:%s1864] %v1893
                  %v1895 = vld [vmem:[%s1871 + $0xb0] sm:%s1864]
                  %1896 = vst [vmem:[%s1872 + $0x58] sm:%s1864] %v1895
                  %v1897 = vld [vmem:[%s1871 + $0xc0] sm:%s1864]
                  %1898 = vst [vmem:[%s1872 + $0x60] sm:%s1864] %v1897
                  %v1899 = vld [vmem:[%s1871 + $0xd0] sm:%s1864]
                  %1900 = vst [vmem:[%s1872 + $0x68] sm:%s1864] %v1899
                  %v1901 = vld [vmem:[%s1871 + $0xe0] sm:%s1864]
                  %1902 = vst [vmem:[%s1872 + $0x70] sm:%s1864] %v1901
                  %v1903 = vld [vmem:[%s1871 + $0xf0] sm:%s1864]
                  %1904 = vst [vmem:[%s1872 + $0x78] sm:%s1864] %v1903
                  %v1905 = vld [vmem:[%s1871 + $0x100] sm:%s1864]
                  %1906 = vst [vmem:[%s1872 + $0x80] sm:%s1864] %v1905
                  %v1907 = vld [vmem:[%s1871 + $0x110] sm:%s1864]
                  %1908 = vst [vmem:[%s1872 + $0x88] sm:%s1864] %v1907
                  %v1909 = vld [vmem:[%s1871 + $0x120] sm:%s1864]
                  %1910 = vst [vmem:[%s1872 + $0x90] sm:%s1864] %v1909
                  %v1911 = vld [vmem:[%s1871 + $0x130] sm:%s1864]
                  %1912 = vst [vmem:[%s1872 + $0x98] sm:%s1864] %v1911
                  %v1913 = vld [vmem:[%s1871 + $0x140] sm:%s1864]
                  %1914 = vst [vmem:[%s1872 + $0xa0] sm:%s1864] %v1913
                  %v1915 = vld [vmem:[%s1871 + $0x150] sm:%s1864]
                  %1916 = vst [vmem:[%s1872 + $0xa8] sm:%s1864] %v1915
                  %v1917 = vld [vmem:[%s1871 + $0x160] sm:%s1864]
                  %1918 = vst [vmem:[%s1872 + $0xb0] sm:%s1864] %v1917
                  %v1919 = vld [vmem:[%s1871 + $0x170] sm:%s1864]
                  %1920 = vst [vmem:[%s1872 + $0xb8] sm:%s1864] %v1919
                  %v1921 = vld [vmem:[%s1871 + $0x180] sm:%s1864]
                  %1922 = vst [vmem:[%s1872 + $0xc0] sm:%s1864] %v1921
                  %v1923 = vld [vmem:[%s1871 + $0x190] sm:%s1864]
                  %1924 = vst [vmem:[%s1872 + $0xc8] sm:%s1864] %v1923
                  %v1925 = vld [vmem:[%s1871 + $0x1a0] sm:%s1864]
                  %1926 = vst [vmem:[%s1872 + $0xd0] sm:%s1864] %v1925
                  %v1927 = vld [vmem:[%s1871 + $0x1b0] sm:%s1864]
                  %1928 = vst [vmem:[%s1872 + $0xd8] sm:%s1864] %v1927
                  %v1929 = vld [vmem:[%s1871 + $0x1c0] sm:%s1864]
                  %1930 = vst [vmem:[%s1872 + $0xe0] sm:%s1864] %v1929
                  %v1931 = vld [vmem:[%s1871 + $0x1d0] sm:%s1864]
                  %1932 = vst [vmem:[%s1872 + $0xe8] sm:%s1864] %v1931
                  %v1933 = vld [vmem:[%s1871 + $0x1e0] sm:%s1864]
                  %1934 = vst [vmem:[%s1872 + $0xf0] sm:%s1864] %v1933
                  %v1935 = vld [vmem:[%s1871 + $0x1f0] sm:%s1864]
                  %1936 = vst [vmem:[%s1872 + $0xf8] sm:%s1864] %v1935
                  %v1937 = vld [vmem:[%s1871 + $0x200] sm:%s1864]
                  %1938 = vst [vmem:[%s1872 + $0x100] sm:%s1864] %v1937
                  %v1939 = vld [vmem:[%s1871 + $0x210] sm:%s1864]
                  %1940 = vst [vmem:[%s1872 + $0x108] sm:%s1864] %v1939
                  %v1941 = vld [vmem:[%s1871 + $0x220] sm:%s1864]
                  %1942 = vst [vmem:[%s1872 + $0x110] sm:%s1864] %v1941
                  %v1943 = vld [vmem:[%s1871 + $0x230] sm:%s1864]
                  %1944 = vst [vmem:[%s1872 + $0x118] sm:%s1864] %v1943
                  %v1945 = vld [vmem:[%s1871 + $0x240] sm:%s1864]
                  %1946 = vst [vmem:[%s1872 + $0x120] sm:%s1864] %v1945
                  %v1947 = vld [vmem:[%s1871 + $0x250] sm:%s1864]
                  %1948 = vst [vmem:[%s1872 + $0x128] sm:%s1864] %v1947
                  %v1949 = vld [vmem:[%s1871 + $0x260] sm:%s1864]
                  %1950 = vst [vmem:[%s1872 + $0x130] sm:%s1864] %v1949
                  %v1951 = vld [vmem:[%s1871 + $0x270] sm:%s1864]
                  %1952 = vst [vmem:[%s1872 + $0x138] sm:%s1864] %v1951
                  %v1953 = vld [vmem:[%s1871 + $0x280] sm:%s1864]
                  %1954 = vst [vmem:[%s1872 + $0x140] sm:%s1864] %v1953
                  %v1955 = vld [vmem:[%s1871 + $0x290] sm:%s1864]
                  %1956 = vst [vmem:[%s1872 + $0x148] sm:%s1864] %v1955
                  %v1957 = vld [vmem:[%s1871 + $0x2a0] sm:%s1864]
                  %1958 = vst [vmem:[%s1872 + $0x150] sm:%s1864] %v1957
                  %v1959 = vld [vmem:[%s1871 + $0x2b0] sm:%s1864]
                  %1960 = vst [vmem:[%s1872 + $0x158] sm:%s1864] %v1959
                  %v1961 = vld [vmem:[%s1871 + $0x2c0] sm:%s1864]
                  %1962 = vst [vmem:[%s1872 + $0x160] sm:%s1864] %v1961
                  %v1963 = vld [vmem:[%s1871 + $0x2d0] sm:%s1864]
                  %1964 = vst [vmem:[%s1872 + $0x168] sm:%s1864] %v1963
                  %v1965 = vld [vmem:[%s1871 + $0x2e0] sm:%s1864]
                  %1966 = vst [vmem:[%s1872 + $0x170] sm:%s1864] %v1965
                  %v1967 = vld [vmem:[%s1871 + $0x2f0] sm:%s1864]
                  %1968 = vst [vmem:[%s1872 + $0x178] sm:%s1864] %v1967
                  %v1969 = vld [vmem:[%s1871 + $0x300] sm:%s1864]
                  %1970 = vst [vmem:[%s1872 + $0x180] sm:%s1864] %v1969
                  %v1971 = vld [vmem:[%s1871 + $0x310] sm:%s1864]
                  %1972 = vst [vmem:[%s1872 + $0x188] sm:%s1864] %v1971
                  %v1973 = vld [vmem:[%s1871 + $0x320] sm:%s1864]
                  %1974 = vst [vmem:[%s1872 + $0x190] sm:%s1864] %v1973
                  %v1975 = vld [vmem:[%s1871 + $0x330] sm:%s1864]
                  %1976 = vst [vmem:[%s1872 + $0x198] sm:%s1864] %v1975
                  %v1977 = vld [vmem:[%s1871 + $0x340] sm:%s1864]
                  %1978 = vst [vmem:[%s1872 + $0x1a0] sm:%s1864] %v1977
                  %v1979 = vld [vmem:[%s1871 + $0x350] sm:%s1864]
                  %1980 = vst [vmem:[%s1872 + $0x1a8] sm:%s1864] %v1979
                  %v1981 = vld [vmem:[%s1871 + $0x360] sm:%s1864]
                  %1982 = vst [vmem:[%s1872 + $0x1b0] sm:%s1864] %v1981
                  %v1983 = vld [vmem:[%s1871 + $0x370] sm:%s1864]
                  %1984 = vst [vmem:[%s1872 + $0x1b8] sm:%s1864] %v1983
                  %v1985 = vld [vmem:[%s1871 + $0x380] sm:%s1864]
                  %1986 = vst [vmem:[%s1872 + $0x1c0] sm:%s1864] %v1985
                  %v1987 = vld [vmem:[%s1871 + $0x390] sm:%s1864]
                  %1988 = vst [vmem:[%s1872 + $0x1c8] sm:%s1864] %v1987
                  %v1989 = vld [vmem:[%s1871 + $0x3a0] sm:%s1864]
                  %1990 = vst [vmem:[%s1872 + $0x1d0] sm:%s1864] %v1989
                  %v1991 = vld [vmem:[%s1871 + $0x3b0] sm:%s1864]
                  %1992 = vst [vmem:[%s1872 + $0x1d8] sm:%s1864] %v1991
                  %v1993 = vld [vmem:[%s1871 + $0x3c0] sm:%s1864]
                  %1994 = vst [vmem:[%s1872 + $0x1e0] sm:%s1864] %v1993
                  %v1995 = vld [vmem:[%s1871 + $0x3d0] sm:%s1864]
                  %1996 = vst [vmem:[%s1872 + $0x1e8] sm:%s1864] %v1995
                  %v1997 = vld [vmem:[%s1871 + $0x3e0] sm:%s1864]
                  %1998 = vst [vmem:[%s1872 + $0x1f0] sm:%s1864] %v1997
                  %v1999 = vld [vmem:[%s1871 + $0x3f0] sm:%s1864]
                  %2000 = vst [vmem:[%s1872 + $0x1f8] sm:%s1864] %v1999
                  %v2001 = vld [vmem:[%s1871 + $0x400] sm:%s1864]
                  %2002 = vst [vmem:[%s1872 + $0x200] sm:%s1864] %v2001
                  %v2003 = vld [vmem:[%s1871 + $0x410] sm:%s1864]
                  %2004 = vst [vmem:[%s1872 + $0x208] sm:%s1864] %v2003
                  %v2005 = vld [vmem:[%s1871 + $0x420] sm:%s1864]
                  %2006 = vst [vmem:[%s1872 + $0x210] sm:%s1864] %v2005
                  %v2007 = vld [vmem:[%s1871 + $0x430] sm:%s1864]
                  %2008 = vst [vmem:[%s1872 + $0x218] sm:%s1864] %v2007
                  %v2009 = vld [vmem:[%s1871 + $0x440] sm:%s1864]
                  %2010 = vst [vmem:[%s1872 + $0x220] sm:%s1864] %v2009
                  %v2011 = vld [vmem:[%s1871 + $0x450] sm:%s1864]
                  %2012 = vst [vmem:[%s1872 + $0x228] sm:%s1864] %v2011
                  %v2013 = vld [vmem:[%s1871 + $0x460] sm:%s1864]
                  %2014 = vst [vmem:[%s1872 + $0x230] sm:%s1864] %v2013
                  %v2015 = vld [vmem:[%s1871 + $0x470] sm:%s1864]
                  %2016 = vst [vmem:[%s1872 + $0x238] sm:%s1864] %v2015
                  %v2017 = vld [vmem:[%s1871 + $0x480] sm:%s1864]
                  %2018 = vst [vmem:[%s1872 + $0x240] sm:%s1864] %v2017
                  %v2019 = vld [vmem:[%s1871 + $0x490] sm:%s1864]
                  %2020 = vst [vmem:[%s1872 + $0x248] sm:%s1864] %v2019
                  %v2021 = vld [vmem:[%s1871 + $0x4a0] sm:%s1864]
                  %2022 = vst [vmem:[%s1872 + $0x250] sm:%s1864] %v2021
                  %v2023 = vld [vmem:[%s1871 + $0x4b0] sm:%s1864]
                  %2024 = vst [vmem:[%s1872 + $0x258] sm:%s1864] %v2023
                  %v2025 = vld [vmem:[%s1871 + $0x4c0] sm:%s1864]
                  %2026 = vst [vmem:[%s1872 + $0x260] sm:%s1864] %v2025
                  %v2027 = vld [vmem:[%s1871 + $0x4d0] sm:%s1864]
                  %2028 = vst [vmem:[%s1872 + $0x268] sm:%s1864] %v2027
                  %v2029 = vld [vmem:[%s1871 + $0x4e0] sm:%s1864]
                  %2030 = vst [vmem:[%s1872 + $0x270] sm:%s1864] %v2029
                  %v2031 = vld [vmem:[%s1871 + $0x4f0] sm:%s1864]
                  %2032 = vst [vmem:[%s1872 + $0x278] sm:%s1864] %v2031
                  %v2033 = vld [vmem:[%s1871 + $0x500] sm:%s1864]
                  %2034 = vst [vmem:[%s1872 + $0x280] sm:%s1864] %v2033
                  %v2035 = vld [vmem:[%s1871 + $0x510] sm:%s1864]
                  %2036 = vst [vmem:[%s1872 + $0x288] sm:%s1864] %v2035
                  %v2037 = vld [vmem:[%s1871 + $0x520] sm:%s1864]
                  %2038 = vst [vmem:[%s1872 + $0x290] sm:%s1864] %v2037
                  %v2039 = vld [vmem:[%s1871 + $0x530] sm:%s1864]
                  %2040 = vst [vmem:[%s1872 + $0x298] sm:%s1864] %v2039
                  %v2041 = vld [vmem:[%s1871 + $0x540] sm:%s1864]
                  %2042 = vst [vmem:[%s1872 + $0x2a0] sm:%s1864] %v2041
                  %v2043 = vld [vmem:[%s1871 + $0x550] sm:%s1864]
                  %2044 = vst [vmem:[%s1872 + $0x2a8] sm:%s1864] %v2043
                  %v2045 = vld [vmem:[%s1871 + $0x560] sm:%s1864]
                  %2046 = vst [vmem:[%s1872 + $0x2b0] sm:%s1864] %v2045
                  %v2047 = vld [vmem:[%s1871 + $0x570] sm:%s1864]
                  %2048 = vst [vmem:[%s1872 + $0x2b8] sm:%s1864] %v2047
                  %v2049 = vld [vmem:[%s1871 + $0x580] sm:%s1864]
                  %2050 = vst [vmem:[%s1872 + $0x2c0] sm:%s1864] %v2049
                  %v2051 = vld [vmem:[%s1871 + $0x590] sm:%s1864]
                  %2052 = vst [vmem:[%s1872 + $0x2c8] sm:%s1864] %v2051
                  %v2053 = vld [vmem:[%s1871 + $0x5a0] sm:%s1864]
                  %2054 = vst [vmem:[%s1872 + $0x2d0] sm:%s1864] %v2053
                  %v2055 = vld [vmem:[%s1871 + $0x5b0] sm:%s1864]
                  %2056 = vst [vmem:[%s1872 + $0x2d8] sm:%s1864] %v2055
                  %v2057 = vld [vmem:[%s1871 + $0x5c0] sm:%s1864]
                  %2058 = vst [vmem:[%s1872 + $0x2e0] sm:%s1864] %v2057
                  %v2059 = vld [vmem:[%s1871 + $0x5d0] sm:%s1864]
                  %2060 = vst [vmem:[%s1872 + $0x2e8] sm:%s1864] %v2059
                  %v2061 = vld [vmem:[%s1871 + $0x5e0] sm:%s1864]
                  %2062 = vst [vmem:[%s1872 + $0x2f0] sm:%s1864] %v2061
                  %v2063 = vld [vmem:[%s1871 + $0x5f0] sm:%s1864]
                  %2064 = vst [vmem:[%s1872 + $0x2f8] sm:%s1864] %v2063
                  %v2065 = vld [vmem:[%s1871 + $0x600] sm:%s1864]
                  %2066 = vst [vmem:[%s1872 + $0x300] sm:%s1864] %v2065
                  %v2067 = vld [vmem:[%s1871 + $0x610] sm:%s1864]
                  %2068 = vst [vmem:[%s1872 + $0x308] sm:%s1864] %v2067
                  %v2069 = vld [vmem:[%s1871 + $0x620] sm:%s1864]
                  %2070 = vst [vmem:[%s1872 + $0x310] sm:%s1864] %v2069
                  %v2071 = vld [vmem:[%s1871 + $0x630] sm:%s1864]
                  %2072 = vst [vmem:[%s1872 + $0x318] sm:%s1864] %v2071
                  %v2073 = vld [vmem:[%s1871 + $0x640] sm:%s1864]
                  %2074 = vst [vmem:[%s1872 + $0x320] sm:%s1864] %v2073
                  %v2075 = vld [vmem:[%s1871 + $0x650] sm:%s1864]
                  %2076 = vst [vmem:[%s1872 + $0x328] sm:%s1864] %v2075
                  %v2077 = vld [vmem:[%s1871 + $0x660] sm:%s1864]
                  %2078 = vst [vmem:[%s1872 + $0x330] sm:%s1864] %v2077
                  %v2079 = vld [vmem:[%s1871 + $0x670] sm:%s1864]
                  %2080 = vst [vmem:[%s1872 + $0x338] sm:%s1864] %v2079
                  %v2081 = vld [vmem:[%s1871 + $0x680] sm:%s1864]
                  %2082 = vst [vmem:[%s1872 + $0x340] sm:%s1864] %v2081
                  %v2083 = vld [vmem:[%s1871 + $0x690] sm:%s1864]
                  %2084 = vst [vmem:[%s1872 + $0x348] sm:%s1864] %v2083
                  %v2085 = vld [vmem:[%s1871 + $0x6a0] sm:%s1864]
                  %2086 = vst [vmem:[%s1872 + $0x350] sm:%s1864] %v2085
                  %v2087 = vld [vmem:[%s1871 + $0x6b0] sm:%s1864]
                  %2088 = vst [vmem:[%s1872 + $0x358] sm:%s1864] %v2087
                  %v2089 = vld [vmem:[%s1871 + $0x6c0] sm:%s1864]
                  %2090 = vst [vmem:[%s1872 + $0x360] sm:%s1864] %v2089
                  %v2091 = vld [vmem:[%s1871 + $0x6d0] sm:%s1864]
                  %2092 = vst [vmem:[%s1872 + $0x368] sm:%s1864] %v2091
                  %v2093 = vld [vmem:[%s1871 + $0x6e0] sm:%s1864]
                  %2094 = vst [vmem:[%s1872 + $0x370] sm:%s1864] %v2093
                  %v2095 = vld [vmem:[%s1871 + $0x6f0] sm:%s1864]
                  %2096 = vst [vmem:[%s1872 + $0x378] sm:%s1864] %v2095
                  %v2097 = vld [vmem:[%s1871 + $0x700] sm:%s1864]
                  %2098 = vst [vmem:[%s1872 + $0x380] sm:%s1864] %v2097
                  %v2099 = vld [vmem:[%s1871 + $0x710] sm:%s1864]
                  %2100 = vst [vmem:[%s1872 + $0x388] sm:%s1864] %v2099
                  %v2101 = vld [vmem:[%s1871 + $0x720] sm:%s1864]
                  %2102 = vst [vmem:[%s1872 + $0x390] sm:%s1864] %v2101
                  %v2103 = vld [vmem:[%s1871 + $0x730] sm:%s1864]
                  %2104 = vst [vmem:[%s1872 + $0x398] sm:%s1864] %v2103
                  %v2105 = vld [vmem:[%s1871 + $0x740] sm:%s1864]
                  %2106 = vst [vmem:[%s1872 + $0x3a0] sm:%s1864] %v2105
                  %v2107 = vld [vmem:[%s1871 + $0x750] sm:%s1864]
                  %2108 = vst [vmem:[%s1872 + $0x3a8] sm:%s1864] %v2107
                  %v2109 = vld [vmem:[%s1871 + $0x760] sm:%s1864]
                  %2110 = vst [vmem:[%s1872 + $0x3b0] sm:%s1864] %v2109
                  %v2111 = vld [vmem:[%s1871 + $0x770] sm:%s1864]
                  %2112 = vst [vmem:[%s1872 + $0x3b8] sm:%s1864] %v2111
                  %v2113 = vld [vmem:[%s1871 + $0x780] sm:%s1864]
                  %2114 = vst [vmem:[%s1872 + $0x3c0] sm:%s1864] %v2113
                  %v2115 = vld [vmem:[%s1871 + $0x790] sm:%s1864]
                  %2116 = vst [vmem:[%s1872 + $0x3c8] sm:%s1864] %v2115
                  %v2117 = vld [vmem:[%s1871 + $0x7a0] sm:%s1864]
                  %2118 = vst [vmem:[%s1872 + $0x3d0] sm:%s1864] %v2117
                  %v2119 = vld [vmem:[%s1871 + $0x7b0] sm:%s1864]
                  %2120 = vst [vmem:[%s1872 + $0x3d8] sm:%s1864] %v2119
                  %v2121 = vld [vmem:[%s1871 + $0x7c0] sm:%s1864]
                  %2122 = vst [vmem:[%s1872 + $0x3e0] sm:%s1864] %v2121
                  %v2123 = vld [vmem:[%s1871 + $0x7d0] sm:%s1864]
                  %2124 = vst [vmem:[%s1872 + $0x3e8] sm:%s1864] %v2123
                  %v2125 = vld [vmem:[%s1871 + $0x7e0] sm:%s1864]
                  %2126 = vst [vmem:[%s1872 + $0x3f0] sm:%s1864] %v2125
                  %v2127 = vld [vmem:[%s1871 + $0x7f0] sm:%s1864]
                  %2128 = vst [vmem:[%s1872 + $0x3f8] sm:%s1864] %v2127
                  %v2129 = vld [vmem:[%s1871 + $0x800] sm:%s1864]
                  %2130 = vst [vmem:[%s1872 + $0x400] sm:%s1864] %v2129
                  %v2131 = vld [vmem:[%s1871 + $0x810] sm:%s1864]
                  %2132 = vst [vmem:[%s1872 + $0x408] sm:%s1864] %v2131
                  %v2133 = vld [vmem:[%s1871 + $0x820] sm:%s1864]
                  %2134 = vst [vmem:[%s1872 + $0x410] sm:%s1864] %v2133
                  %v2135 = vld [vmem:[%s1871 + $0x830] sm:%s1864]
                  %2136 = vst [vmem:[%s1872 + $0x418] sm:%s1864] %v2135
                  %v2137 = vld [vmem:[%s1871 + $0x840] sm:%s1864]
                  %2138 = vst [vmem:[%s1872 + $0x420] sm:%s1864] %v2137
                  %v2139 = vld [vmem:[%s1871 + $0x850] sm:%s1864]
                  %2140 = vst [vmem:[%s1872 + $0x428] sm:%s1864] %v2139
                  %v2141 = vld [vmem:[%s1871 + $0x860] sm:%s1864]
                  %2142 = vst [vmem:[%s1872 + $0x430] sm:%s1864] %v2141
                  %v2143 = vld [vmem:[%s1871 + $0x870] sm:%s1864]
                  %2144 = vst [vmem:[%s1872 + $0x438] sm:%s1864] %v2143
                  %v2145 = vld [vmem:[%s1871 + $0x880] sm:%s1864]
                  %2146 = vst [vmem:[%s1872 + $0x440] sm:%s1864] %v2145
                  %v2147 = vld [vmem:[%s1871 + $0x890] sm:%s1864]
                  %2148 = vst [vmem:[%s1872 + $0x448] sm:%s1864] %v2147
                  %v2149 = vld [vmem:[%s1871 + $0x8a0] sm:%s1864]
                  %2150 = vst [vmem:[%s1872 + $0x450] sm:%s1864] %v2149
                  %v2151 = vld [vmem:[%s1871 + $0x8b0] sm:%s1864]
                  %2152 = vst [vmem:[%s1872 + $0x458] sm:%s1864] %v2151
                  %v2153 = vld [vmem:[%s1871 + $0x8c0] sm:%s1864]
                  %2154 = vst [vmem:[%s1872 + $0x460] sm:%s1864] %v2153
                  %v2155 = vld [vmem:[%s1871 + $0x8d0] sm:%s1864]
                  %2156 = vst [vmem:[%s1872 + $0x468] sm:%s1864] %v2155
                  %v2157 = vld [vmem:[%s1871 + $0x8e0] sm:%s1864]
                  %2158 = vst [vmem:[%s1872 + $0x470] sm:%s1864] %v2157
                  %v2159 = vld [vmem:[%s1871 + $0x8f0] sm:%s1864]
                  %2160 = vst [vmem:[%s1872 + $0x478] sm:%s1864] %v2159
                  %v2161 = vld [vmem:[%s1871 + $0x900] sm:%s1864]
                  %2162 = vst [vmem:[%s1872 + $0x480] sm:%s1864] %v2161
                  %v2163 = vld [vmem:[%s1871 + $0x910] sm:%s1864]
                  %2164 = vst [vmem:[%s1872 + $0x488] sm:%s1864] %v2163
                  %v2165 = vld [vmem:[%s1871 + $0x920] sm:%s1864]
                  %2166 = vst [vmem:[%s1872 + $0x490] sm:%s1864] %v2165
                  %v2167 = vld [vmem:[%s1871 + $0x930] sm:%s1864]
                  %2168 = vst [vmem:[%s1872 + $0x498] sm:%s1864] %v2167
                  %v2169 = vld [vmem:[%s1871 + $0x940] sm:%s1864]
                  %2170 = vst [vmem:[%s1872 + $0x4a0] sm:%s1864] %v2169
                  %v2171 = vld [vmem:[%s1871 + $0x950] sm:%s1864]
                  %2172 = vst [vmem:[%s1872 + $0x4a8] sm:%s1864] %v2171
                  %v2173 = vld [vmem:[%s1871 + $0x960] sm:%s1864]
                  %2174 = vst [vmem:[%s1872 + $0x4b0] sm:%s1864] %v2173
                  %v2175 = vld [vmem:[%s1871 + $0x970] sm:%s1864]
                  %2176 = vst [vmem:[%s1872 + $0x4b8] sm:%s1864] %v2175
                  %v2177 = vld [vmem:[%s1871 + $0x980] sm:%s1864]
                  %2178 = vst [vmem:[%s1872 + $0x4c0] sm:%s1864] %v2177
                  %v2179 = vld [vmem:[%s1871 + $0x990] sm:%s1864]
                  %2180 = vst [vmem:[%s1872 + $0x4c8] sm:%s1864] %v2179
                  %v2181 = vld [vmem:[%s1871 + $0x9a0] sm:%s1864]
                  %2182 = vst [vmem:[%s1872 + $0x4d0] sm:%s1864] %v2181
                  %v2183 = vld [vmem:[%s1871 + $0x9b0] sm:%s1864]
                  %2184 = vst [vmem:[%s1872 + $0x4d8] sm:%s1864] %v2183
                  %v2185 = vld [vmem:[%s1871 + $0x9c0] sm:%s1864]
                  %2186 = vst [vmem:[%s1872 + $0x4e0] sm:%s1864] %v2185
                  %v2187 = vld [vmem:[%s1871 + $0x9d0] sm:%s1864]
                  %2188 = vst [vmem:[%s1872 + $0x4e8] sm:%s1864] %v2187
                  %v2189 = vld [vmem:[%s1871 + $0x9e0] sm:%s1864]
                  %2190 = vst [vmem:[%s1872 + $0x4f0] sm:%s1864] %v2189
                  %v2191 = vld [vmem:[%s1871 + $0x9f0] sm:%s1864]
                  %2192 = vst [vmem:[%s1872 + $0x4f8] sm:%s1864] %v2191
                  %v2193 = vld [vmem:[%s1871 + $0xa00] sm:%s1864]
                  %2194 = vst [vmem:[%s1872 + $0x500] sm:%s1864] %v2193
                  %v2195 = vld [vmem:[%s1871 + $0xa10] sm:%s1864]
                  %2196 = vst [vmem:[%s1872 + $0x508] sm:%s1864] %v2195
                  %v2197 = vld [vmem:[%s1871 + $0xa20] sm:%s1864]
                  %2198 = vst [vmem:[%s1872 + $0x510] sm:%s1864] %v2197
                  %v2199 = vld [vmem:[%s1871 + $0xa30] sm:%s1864]
                  %2200 = vst [vmem:[%s1872 + $0x518] sm:%s1864] %v2199
                  %v2201 = vld [vmem:[%s1871 + $0xa40] sm:%s1864]
                  %2202 = vst [vmem:[%s1872 + $0x520] sm:%s1864] %v2201
                  %v2203 = vld [vmem:[%s1871 + $0xa50] sm:%s1864]
                  %2204 = vst [vmem:[%s1872 + $0x528] sm:%s1864] %v2203
                  %v2205 = vld [vmem:[%s1871 + $0xa60] sm:%s1864]
                  %2206 = vst [vmem:[%s1872 + $0x530] sm:%s1864] %v2205
                  %v2207 = vld [vmem:[%s1871 + $0xa70] sm:%s1864]
                  %2208 = vst [vmem:[%s1872 + $0x538] sm:%s1864] %v2207
                  %v2209 = vld [vmem:[%s1871 + $0xa80] sm:%s1864]
                  %2210 = vst [vmem:[%s1872 + $0x540] sm:%s1864] %v2209
                  %v2211 = vld [vmem:[%s1871 + $0xa90] sm:%s1864]
                  %2212 = vst [vmem:[%s1872 + $0x548] sm:%s1864] %v2211
                  %v2213 = vld [vmem:[%s1871 + $0xaa0] sm:%s1864]
                  %2214 = vst [vmem:[%s1872 + $0x550] sm:%s1864] %v2213
                  %v2215 = vld [vmem:[%s1871 + $0xab0] sm:%s1864]
                  %2216 = vst [vmem:[%s1872 + $0x558] sm:%s1864] %v2215
                  %v2217 = vld [vmem:[%s1871 + $0xac0] sm:%s1864]
                  %2218 = vst [vmem:[%s1872 + $0x560] sm:%s1864] %v2217
                  %v2219 = vld [vmem:[%s1871 + $0xad0] sm:%s1864]
                  %2220 = vst [vmem:[%s1872 + $0x568] sm:%s1864] %v2219
                  %v2221 = vld [vmem:[%s1871 + $0xae0] sm:%s1864]
                  %2222 = vst [vmem:[%s1872 + $0x570] sm:%s1864] %v2221
                  %v2223 = vld [vmem:[%s1871 + $0xaf0] sm:%s1864]
                  %2224 = vst [vmem:[%s1872 + $0x578] sm:%s1864] %v2223
                  %v2225 = vld [vmem:[%s1871 + $0xb00] sm:%s1864]
                  %2226 = vst [vmem:[%s1872 + $0x580] sm:%s1864] %v2225
                  %v2227 = vld [vmem:[%s1871 + $0xb10] sm:%s1864]
                  %2228 = vst [vmem:[%s1872 + $0x588] sm:%s1864] %v2227
                  %v2229 = vld [vmem:[%s1871 + $0xb20] sm:%s1864]
                  %2230 = vst [vmem:[%s1872 + $0x590] sm:%s1864] %v2229
                  %v2231 = vld [vmem:[%s1871 + $0xb30] sm:%s1864]
                  %2232 = vst [vmem:[%s1872 + $0x598] sm:%s1864] %v2231
                  %v2233 = vld [vmem:[%s1871 + $0xb40] sm:%s1864]
                  %2234 = vst [vmem:[%s1872 + $0x5a0] sm:%s1864] %v2233
                  %v2235 = vld [vmem:[%s1871 + $0xb50] sm:%s1864]
                  %2236 = vst [vmem:[%s1872 + $0x5a8] sm:%s1864] %v2235
                  %v2237 = vld [vmem:[%s1871 + $0xb60] sm:%s1864]
                  %2238 = vst [vmem:[%s1872 + $0x5b0] sm:%s1864] %v2237
                  %v2239 = vld [vmem:[%s1871 + $0xb70] sm:%s1864]
                  %2240 = vst [vmem:[%s1872 + $0x5b8] sm:%s1864] %v2239
                  %v2241 = vld [vmem:[%s1871 + $0xb80] sm:%s1864]
                  %2242 = vst [vmem:[%s1872 + $0x5c0] sm:%s1864] %v2241
                  %v2243 = vld [vmem:[%s1871 + $0xb90] sm:%s1864]
                  %2244 = vst [vmem:[%s1872 + $0x5c8] sm:%s1864] %v2243
                  %v2245 = vld [vmem:[%s1871 + $0xba0] sm:%s1864]
                  %2246 = vst [vmem:[%s1872 + $0x5d0] sm:%s1864] %v2245
                  %v2247 = vld [vmem:[%s1871 + $0xbb0] sm:%s1864]
                  %2248 = vst [vmem:[%s1872 + $0x5d8] sm:%s1864] %v2247
                  %v2249 = vld [vmem:[%s1871 + $0xbc0] sm:%s1864]
                  %2250 = vst [vmem:[%s1872 + $0x5e0] sm:%s1864] %v2249
                  %v2251 = vld [vmem:[%s1871 + $0xbd0] sm:%s1864]
                  %2252 = vst [vmem:[%s1872 + $0x5e8] sm:%s1864] %v2251
                  %v2253 = vld [vmem:[%s1871 + $0xbe0] sm:%s1864]
                  %2254 = vst [vmem:[%s1872 + $0x5f0] sm:%s1864] %v2253
                  %v2255 = vld [vmem:[%s1871 + $0xbf0] sm:%s1864]
                  %2256 = vst [vmem:[%s1872 + $0x5f8] sm:%s1864] %v2255
                  %v2257 = vld [vmem:[%s1871 + $0xc00] sm:%s1864]
                  %2258 = vst [vmem:[%s1872 + $0x600] sm:%s1864] %v2257
                  %v2259 = vld [vmem:[%s1871 + $0xc10] sm:%s1864]
                  %2260 = vst [vmem:[%s1872 + $0x608] sm:%s1864] %v2259
                  %v2261 = vld [vmem:[%s1871 + $0xc20] sm:%s1864]
                  %2262 = vst [vmem:[%s1872 + $0x610] sm:%s1864] %v2261
                  %v2263 = vld [vmem:[%s1871 + $0xc30] sm:%s1864]
                  %2264 = vst [vmem:[%s1872 + $0x618] sm:%s1864] %v2263
                  %v2265 = vld [vmem:[%s1871 + $0xc40] sm:%s1864]
                  %2266 = vst [vmem:[%s1872 + $0x620] sm:%s1864] %v2265
                  %v2267 = vld [vmem:[%s1871 + $0xc50] sm:%s1864]
                  %2268 = vst [vmem:[%s1872 + $0x628] sm:%s1864] %v2267
                  %v2269 = vld [vmem:[%s1871 + $0xc60] sm:%s1864]
                  %2270 = vst [vmem:[%s1872 + $0x630] sm:%s1864] %v2269
                  %v2271 = vld [vmem:[%s1871 + $0xc70] sm:%s1864]
                  %2272 = vst [vmem:[%s1872 + $0x638] sm:%s1864] %v2271
                  %v2273 = vld [vmem:[%s1871 + $0xc80] sm:%s1864]
                  %2274 = vst [vmem:[%s1872 + $0x640] sm:%s1864] %v2273
                  %v2275 = vld [vmem:[%s1871 + $0xc90] sm:%s1864]
                  %2276 = vst [vmem:[%s1872 + $0x648] sm:%s1864] %v2275
                  %v2277 = vld [vmem:[%s1871 + $0xca0] sm:%s1864]
                  %2278 = vst [vmem:[%s1872 + $0x650] sm:%s1864] %v2277
                  %v2279 = vld [vmem:[%s1871 + $0xcb0] sm:%s1864]
                  %2280 = vst [vmem:[%s1872 + $0x658] sm:%s1864] %v2279
                  %v2281 = vld [vmem:[%s1871 + $0xcc0] sm:%s1864]
                  %2282 = vst [vmem:[%s1872 + $0x660] sm:%s1864] %v2281
                  %v2283 = vld [vmem:[%s1871 + $0xcd0] sm:%s1864]
                  %2284 = vst [vmem:[%s1872 + $0x668] sm:%s1864] %v2283
                  %v2285 = vld [vmem:[%s1871 + $0xce0] sm:%s1864]
                  %2286 = vst [vmem:[%s1872 + $0x670] sm:%s1864] %v2285
                  %v2287 = vld [vmem:[%s1871 + $0xcf0] sm:%s1864]
                  %2288 = vst [vmem:[%s1872 + $0x678] sm:%s1864] %v2287
                  %v2289 = vld [vmem:[%s1871 + $0xd00] sm:%s1864]
                  %2290 = vst [vmem:[%s1872 + $0x680] sm:%s1864] %v2289
                  %v2291 = vld [vmem:[%s1871 + $0xd10] sm:%s1864]
                  %2292 = vst [vmem:[%s1872 + $0x688] sm:%s1864] %v2291
                  %v2293 = vld [vmem:[%s1871 + $0xd20] sm:%s1864]
                  %2294 = vst [vmem:[%s1872 + $0x690] sm:%s1864] %v2293
                  %v2295 = vld [vmem:[%s1871 + $0xd30] sm:%s1864]
                  %2296 = vst [vmem:[%s1872 + $0x698] sm:%s1864] %v2295
                  %v2297 = vld [vmem:[%s1871 + $0xd40] sm:%s1864]
                  %2298 = vst [vmem:[%s1872 + $0x6a0] sm:%s1864] %v2297
                  %v2299 = vld [vmem:[%s1871 + $0xd50] sm:%s1864]
                  %2300 = vst [vmem:[%s1872 + $0x6a8] sm:%s1864] %v2299
                  %v2301 = vld [vmem:[%s1871 + $0xd60] sm:%s1864]
                  %2302 = vst [vmem:[%s1872 + $0x6b0] sm:%s1864] %v2301
                  %v2303 = vld [vmem:[%s1871 + $0xd70] sm:%s1864]
                  %2304 = vst [vmem:[%s1872 + $0x6b8] sm:%s1864] %v2303
                  %v2305 = vld [vmem:[%s1871 + $0xd80] sm:%s1864]
                  %2306 = vst [vmem:[%s1872 + $0x6c0] sm:%s1864] %v2305
                  %v2307 = vld [vmem:[%s1871 + $0xd90] sm:%s1864]
                  %2308 = vst [vmem:[%s1872 + $0x6c8] sm:%s1864] %v2307
                  %v2309 = vld [vmem:[%s1871 + $0xda0] sm:%s1864]
                  %2310 = vst [vmem:[%s1872 + $0x6d0] sm:%s1864] %v2309
                  %v2311 = vld [vmem:[%s1871 + $0xdb0] sm:%s1864]
                  %2312 = vst [vmem:[%s1872 + $0x6d8] sm:%s1864] %v2311
                  %v2313 = vld [vmem:[%s1871 + $0xdc0] sm:%s1864]
                  %2314 = vst [vmem:[%s1872 + $0x6e0] sm:%s1864] %v2313
                  %v2315 = vld [vmem:[%s1871 + $0xdd0] sm:%s1864]
                  %2316 = vst [vmem:[%s1872 + $0x6e8] sm:%s1864] %v2315
                  %v2317 = vld [vmem:[%s1871 + $0xde0] sm:%s1864]
                  %2318 = vst [vmem:[%s1872 + $0x6f0] sm:%s1864] %v2317
                  %v2319 = vld [vmem:[%s1871 + $0xdf0] sm:%s1864]
                  %2320 = vst [vmem:[%s1872 + $0x6f8] sm:%s1864] %v2319
                  %v2321 = vld [vmem:[%s1871 + $0xe00] sm:%s1864]
                  %2322 = vst [vmem:[%s1872 + $0x700] sm:%s1864] %v2321
                  %v2323 = vld [vmem:[%s1871 + $0xe10] sm:%s1864]
                  %2324 = vst [vmem:[%s1872 + $0x708] sm:%s1864] %v2323
                  %v2325 = vld [vmem:[%s1871 + $0xe20] sm:%s1864]
                  %2326 = vst [vmem:[%s1872 + $0x710] sm:%s1864] %v2325
                  %v2327 = vld [vmem:[%s1871 + $0xe30] sm:%s1864]
                  %2328 = vst [vmem:[%s1872 + $0x718] sm:%s1864] %v2327
                  %v2329 = vld [vmem:[%s1871 + $0xe40] sm:%s1864]
                  %2330 = vst [vmem:[%s1872 + $0x720] sm:%s1864] %v2329
                  %v2331 = vld [vmem:[%s1871 + $0xe50] sm:%s1864]
                  %2332 = vst [vmem:[%s1872 + $0x728] sm:%s1864] %v2331
                  %v2333 = vld [vmem:[%s1871 + $0xe60] sm:%s1864]
                  %2334 = vst [vmem:[%s1872 + $0x730] sm:%s1864] %v2333
                  %v2335 = vld [vmem:[%s1871 + $0xe70] sm:%s1864]
                  %2336 = vst [vmem:[%s1872 + $0x738] sm:%s1864] %v2335
                  %v2337 = vld [vmem:[%s1871 + $0xe80] sm:%s1864]
                  %2338 = vst [vmem:[%s1872 + $0x740] sm:%s1864] %v2337
                  %v2339 = vld [vmem:[%s1871 + $0xe90] sm:%s1864]
                  %2340 = vst [vmem:[%s1872 + $0x748] sm:%s1864] %v2339
                  %v2341 = vld [vmem:[%s1871 + $0xea0] sm:%s1864]
                  %2342 = vst [vmem:[%s1872 + $0x750] sm:%s1864] %v2341
                  %v2343 = vld [vmem:[%s1871 + $0xeb0] sm:%s1864]
                  %2344 = vst [vmem:[%s1872 + $0x758] sm:%s1864] %v2343
                  %v2345 = vld [vmem:[%s1871 + $0xec0] sm:%s1864]
                  %2346 = vst [vmem:[%s1872 + $0x760] sm:%s1864] %v2345
                  %v2347 = vld [vmem:[%s1871 + $0xed0] sm:%s1864]
                  %2348 = vst [vmem:[%s1872 + $0x768] sm:%s1864] %v2347
                  %v2349 = vld [vmem:[%s1871 + $0xee0] sm:%s1864]
                  %2350 = vst [vmem:[%s1872 + $0x770] sm:%s1864] %v2349
                  %v2351 = vld [vmem:[%s1871 + $0xef0] sm:%s1864]
                  %2352 = vst [vmem:[%s1872 + $0x778] sm:%s1864] %v2351
                  %v2353 = vld [vmem:[%s1871 + $0xf00] sm:%s1864]
                  %2354 = vst [vmem:[%s1872 + $0x780] sm:%s1864] %v2353
                  %v2355 = vld [vmem:[%s1871 + $0xf10] sm:%s1864]
                  %2356 = vst [vmem:[%s1872 + $0x788] sm:%s1864] %v2355
                  %v2357 = vld [vmem:[%s1871 + $0xf20] sm:%s1864]
                  %2358 = vst [vmem:[%s1872 + $0x790] sm:%s1864] %v2357
                  %v2359 = vld [vmem:[%s1871 + $0xf30] sm:%s1864]
                  %2360 = vst [vmem:[%s1872 + $0x798] sm:%s1864] %v2359
                  %v2361 = vld [vmem:[%s1871 + $0xf40] sm:%s1864]
                  %2362 = vst [vmem:[%s1872 + $0x7a0] sm:%s1864] %v2361
                  %v2363 = vld [vmem:[%s1871 + $0xf50] sm:%s1864]
                  %2364 = vst [vmem:[%s1872 + $0x7a8] sm:%s1864] %v2363
                  %v2365 = vld [vmem:[%s1871 + $0xf60] sm:%s1864]
                  %2366 = vst [vmem:[%s1872 + $0x7b0] sm:%s1864] %v2365
                  %v2367 = vld [vmem:[%s1871 + $0xf70] sm:%s1864]
                  %2368 = vst [vmem:[%s1872 + $0x7b8] sm:%s1864] %v2367
                  %v2369 = vld [vmem:[%s1871 + $0xf80] sm:%s1864]
                  %2370 = vst [vmem:[%s1872 + $0x7c0] sm:%s1864] %v2369
                  %v2371 = vld [vmem:[%s1871 + $0xf90] sm:%s1864]
                  %2372 = vst [vmem:[%s1872 + $0x7c8] sm:%s1864] %v2371
                  %v2373 = vld [vmem:[%s1871 + $0xfa0] sm:%s1864]
                  %2374 = vst [vmem:[%s1872 + $0x7d0] sm:%s1864] %v2373
                  %v2375 = vld [vmem:[%s1871 + $0xfb0] sm:%s1864]
                  %2376 = vst [vmem:[%s1872 + $0x7d8] sm:%s1864] %v2375
                  %v2377 = vld [vmem:[%s1871 + $0xfc0] sm:%s1864]
                  %2378 = vst [vmem:[%s1872 + $0x7e0] sm:%s1864] %v2377
                  %v2379 = vld [vmem:[%s1871 + $0xfd0] sm:%s1864]
                  %2380 = vst [vmem:[%s1872 + $0x7e8] sm:%s1864] %v2379
                  %v2381 = vld [vmem:[%s1871 + $0xfe0] sm:%s1864]
                  %2382 = vst [vmem:[%s1872 + $0x7f0] sm:%s1864] %v2381
                  %v2383 = vld [vmem:[%s1871 + $0xff0] sm:%s1864]
                  %2384 = vst [vmem:[%s1872 + $0x7f8] sm:%s1864] %v2383
                $region89: #{discriminator_forward.8} parent=76 // loop_footer
                  %s1870 = sadd.s32 1, %s1866
                $region90: #{discriminator_forward.8} parent=76 // loop_footer_branch
                  %1865 = sbr.rel target = $region86
                $region91: #{discriminator_forward.8} parent=76 // loop_exit
                  _
              $region77: #{discriminator_forward.8} parent=50 // pred_fallthru
                _
            $region51: #{discriminator_forward.8} parent=46 // pred_fallthru
              _
            // Predicated region
            $region52: #{discriminator_forward.8} parent=46 // pred_check
              _
            $region53: #{discriminator_forward.8} parent=46 // pred_check_branch
              %278 = sbr.rel target = $region55
            $region54: #{discriminator_forward.8} parent=46 // pred_region
              %s280 = ssub.s32 256, 1
              loop: start=0, step=1, limit=1
              $region56: #{discriminator_forward.8} parent=54 // loop_pre_header
                _
              $region57: #{discriminator_forward.8} parent=54 // loop_header
                %s282 = sphi 0, %s286
                %p283 = scmp.ge.s32.totalorder %s282, 1
                %s287 = sphi %s272, %s272
                %s288 = sphi %s266, %s266
              $region58: #{discriminator_forward.8} parent=54 // loop_header_branch
                %285 = sbr.rel (%p283) target = $region62
              $region59: #{discriminator_forward.8} parent=54 // loop_body
                %v289 = vld [vmem:[%s287] sm:%s280]
                %290 = vst [vmem:[%s288] sm:%s280] %v289
                %v291 = vld [vmem:[%s287 + $0x10] sm:%s280]
                %292 = vst [vmem:[%s288 + $0x8] sm:%s280] %v291
                %v293 = vld [vmem:[%s287 + $0x20] sm:%s280]
                %294 = vst [vmem:[%s288 + $0x10] sm:%s280] %v293
                %v295 = vld [vmem:[%s287 + $0x30] sm:%s280]
                %296 = vst [vmem:[%s288 + $0x18] sm:%s280] %v295
                %v297 = vld [vmem:[%s287 + $0x40] sm:%s280]
                %298 = vst [vmem:[%s288 + $0x20] sm:%s280] %v297
                %v299 = vld [vmem:[%s287 + $0x50] sm:%s280]
                %300 = vst [vmem:[%s288 + $0x28] sm:%s280] %v299
                %v301 = vld [vmem:[%s287 + $0x60] sm:%s280]
                %302 = vst [vmem:[%s288 + $0x30] sm:%s280] %v301
                %v303 = vld [vmem:[%s287 + $0x70] sm:%s280]
                %304 = vst [vmem:[%s288 + $0x38] sm:%s280] %v303
                %v305 = vld [vmem:[%s287 + $0x80] sm:%s280]
                %306 = vst [vmem:[%s288 + $0x40] sm:%s280] %v305
                %v307 = vld [vmem:[%s287 + $0x90] sm:%s280]
                %308 = vst [vmem:[%s288 + $0x48] sm:%s280] %v307
                %v309 = vld [vmem:[%s287 + $0xa0] sm:%s280]
                %310 = vst [vmem:[%s288 + $0x50] sm:%s280] %v309
                %v311 = vld [vmem:[%s287 + $0xb0] sm:%s280]
                %312 = vst [vmem:[%s288 + $0x58] sm:%s280] %v311
                %v313 = vld [vmem:[%s287 + $0xc0] sm:%s280]
                %314 = vst [vmem:[%s288 + $0x60] sm:%s280] %v313
                %v315 = vld [vmem:[%s287 + $0xd0] sm:%s280]
                %316 = vst [vmem:[%s288 + $0x68] sm:%s280] %v315
                %v317 = vld [vmem:[%s287 + $0xe0] sm:%s280]
                %318 = vst [vmem:[%s288 + $0x70] sm:%s280] %v317
                %v319 = vld [vmem:[%s287 + $0xf0] sm:%s280]
                %320 = vst [vmem:[%s288 + $0x78] sm:%s280] %v319
                %v321 = vld [vmem:[%s287 + $0x100] sm:%s280]
                %322 = vst [vmem:[%s288 + $0x80] sm:%s280] %v321
                %v323 = vld [vmem:[%s287 + $0x110] sm:%s280]
                %324 = vst [vmem:[%s288 + $0x88] sm:%s280] %v323
                %v325 = vld [vmem:[%s287 + $0x120] sm:%s280]
                %326 = vst [vmem:[%s288 + $0x90] sm:%s280] %v325
                %v327 = vld [vmem:[%s287 + $0x130] sm:%s280]
                %328 = vst [vmem:[%s288 + $0x98] sm:%s280] %v327
                %v329 = vld [vmem:[%s287 + $0x140] sm:%s280]
                %330 = vst [vmem:[%s288 + $0xa0] sm:%s280] %v329
                %v331 = vld [vmem:[%s287 + $0x150] sm:%s280]
                %332 = vst [vmem:[%s288 + $0xa8] sm:%s280] %v331
                %v333 = vld [vmem:[%s287 + $0x160] sm:%s280]
                %334 = vst [vmem:[%s288 + $0xb0] sm:%s280] %v333
                %v335 = vld [vmem:[%s287 + $0x170] sm:%s280]
                %336 = vst [vmem:[%s288 + $0xb8] sm:%s280] %v335
                %v337 = vld [vmem:[%s287 + $0x180] sm:%s280]
                %338 = vst [vmem:[%s288 + $0xc0] sm:%s280] %v337
                %v339 = vld [vmem:[%s287 + $0x190] sm:%s280]
                %340 = vst [vmem:[%s288 + $0xc8] sm:%s280] %v339
                %v341 = vld [vmem:[%s287 + $0x1a0] sm:%s280]
                %342 = vst [vmem:[%s288 + $0xd0] sm:%s280] %v341
                %v343 = vld [vmem:[%s287 + $0x1b0] sm:%s280]
                %344 = vst [vmem:[%s288 + $0xd8] sm:%s280] %v343
                %v345 = vld [vmem:[%s287 + $0x1c0] sm:%s280]
                %346 = vst [vmem:[%s288 + $0xe0] sm:%s280] %v345
                %v347 = vld [vmem:[%s287 + $0x1d0] sm:%s280]
                %348 = vst [vmem:[%s288 + $0xe8] sm:%s280] %v347
                %v349 = vld [vmem:[%s287 + $0x1e0] sm:%s280]
                %350 = vst [vmem:[%s288 + $0xf0] sm:%s280] %v349
                %v351 = vld [vmem:[%s287 + $0x1f0] sm:%s280]
                %352 = vst [vmem:[%s288 + $0xf8] sm:%s280] %v351
                %v353 = vld [vmem:[%s287 + $0x200] sm:%s280]
                %354 = vst [vmem:[%s288 + $0x100] sm:%s280] %v353
                %v355 = vld [vmem:[%s287 + $0x210] sm:%s280]
                %356 = vst [vmem:[%s288 + $0x108] sm:%s280] %v355
                %v357 = vld [vmem:[%s287 + $0x220] sm:%s280]
                %358 = vst [vmem:[%s288 + $0x110] sm:%s280] %v357
                %v359 = vld [vmem:[%s287 + $0x230] sm:%s280]
                %360 = vst [vmem:[%s288 + $0x118] sm:%s280] %v359
                %v361 = vld [vmem:[%s287 + $0x240] sm:%s280]
                %362 = vst [vmem:[%s288 + $0x120] sm:%s280] %v361
                %v363 = vld [vmem:[%s287 + $0x250] sm:%s280]
                %364 = vst [vmem:[%s288 + $0x128] sm:%s280] %v363
                %v365 = vld [vmem:[%s287 + $0x260] sm:%s280]
                %366 = vst [vmem:[%s288 + $0x130] sm:%s280] %v365
                %v367 = vld [vmem:[%s287 + $0x270] sm:%s280]
                %368 = vst [vmem:[%s288 + $0x138] sm:%s280] %v367
                %v369 = vld [vmem:[%s287 + $0x280] sm:%s280]
                %370 = vst [vmem:[%s288 + $0x140] sm:%s280] %v369
                %v371 = vld [vmem:[%s287 + $0x290] sm:%s280]
                %372 = vst [vmem:[%s288 + $0x148] sm:%s280] %v371
                %v373 = vld [vmem:[%s287 + $0x2a0] sm:%s280]
                %374 = vst [vmem:[%s288 + $0x150] sm:%s280] %v373
                %v375 = vld [vmem:[%s287 + $0x2b0] sm:%s280]
                %376 = vst [vmem:[%s288 + $0x158] sm:%s280] %v375
                %v377 = vld [vmem:[%s287 + $0x2c0] sm:%s280]
                %378 = vst [vmem:[%s288 + $0x160] sm:%s280] %v377
                %v379 = vld [vmem:[%s287 + $0x2d0] sm:%s280]
                %380 = vst [vmem:[%s288 + $0x168] sm:%s280] %v379
                %v381 = vld [vmem:[%s287 + $0x2e0] sm:%s280]
                %382 = vst [vmem:[%s288 + $0x170] sm:%s280] %v381
                %v383 = vld [vmem:[%s287 + $0x2f0] sm:%s280]
                %384 = vst [vmem:[%s288 + $0x178] sm:%s280] %v383
                %v385 = vld [vmem:[%s287 + $0x300] sm:%s280]
                %386 = vst [vmem:[%s288 + $0x180] sm:%s280] %v385
                %v387 = vld [vmem:[%s287 + $0x310] sm:%s280]
                %388 = vst [vmem:[%s288 + $0x188] sm:%s280] %v387
                %v389 = vld [vmem:[%s287 + $0x320] sm:%s280]
                %390 = vst [vmem:[%s288 + $0x190] sm:%s280] %v389
                %v391 = vld [vmem:[%s287 + $0x330] sm:%s280]
                %392 = vst [vmem:[%s288 + $0x198] sm:%s280] %v391
                %v393 = vld [vmem:[%s287 + $0x340] sm:%s280]
                %394 = vst [vmem:[%s288 + $0x1a0] sm:%s280] %v393
                %v395 = vld [vmem:[%s287 + $0x350] sm:%s280]
                %396 = vst [vmem:[%s288 + $0x1a8] sm:%s280] %v395
                %v397 = vld [vmem:[%s287 + $0x360] sm:%s280]
                %398 = vst [vmem:[%s288 + $0x1b0] sm:%s280] %v397
                %v399 = vld [vmem:[%s287 + $0x370] sm:%s280]
                %400 = vst [vmem:[%s288 + $0x1b8] sm:%s280] %v399
                %v401 = vld [vmem:[%s287 + $0x380] sm:%s280]
                %402 = vst [vmem:[%s288 + $0x1c0] sm:%s280] %v401
                %v403 = vld [vmem:[%s287 + $0x390] sm:%s280]
                %404 = vst [vmem:[%s288 + $0x1c8] sm:%s280] %v403
                %v405 = vld [vmem:[%s287 + $0x3a0] sm:%s280]
                %406 = vst [vmem:[%s288 + $0x1d0] sm:%s280] %v405
                %v407 = vld [vmem:[%s287 + $0x3b0] sm:%s280]
                %408 = vst [vmem:[%s288 + $0x1d8] sm:%s280] %v407
                %v409 = vld [vmem:[%s287 + $0x3c0] sm:%s280]
                %410 = vst [vmem:[%s288 + $0x1e0] sm:%s280] %v409
                %v411 = vld [vmem:[%s287 + $0x3d0] sm:%s280]
                %412 = vst [vmem:[%s288 + $0x1e8] sm:%s280] %v411
                %v413 = vld [vmem:[%s287 + $0x3e0] sm:%s280]
                %414 = vst [vmem:[%s288 + $0x1f0] sm:%s280] %v413
                %v415 = vld [vmem:[%s287 + $0x3f0] sm:%s280]
                %416 = vst [vmem:[%s288 + $0x1f8] sm:%s280] %v415
                %v417 = vld [vmem:[%s287 + $0x400] sm:%s280]
                %418 = vst [vmem:[%s288 + $0x200] sm:%s280] %v417
                %v419 = vld [vmem:[%s287 + $0x410] sm:%s280]
                %420 = vst [vmem:[%s288 + $0x208] sm:%s280] %v419
                %v421 = vld [vmem:[%s287 + $0x420] sm:%s280]
                %422 = vst [vmem:[%s288 + $0x210] sm:%s280] %v421
                %v423 = vld [vmem:[%s287 + $0x430] sm:%s280]
                %424 = vst [vmem:[%s288 + $0x218] sm:%s280] %v423
                %v425 = vld [vmem:[%s287 + $0x440] sm:%s280]
                %426 = vst [vmem:[%s288 + $0x220] sm:%s280] %v425
                %v427 = vld [vmem:[%s287 + $0x450] sm:%s280]
                %428 = vst [vmem:[%s288 + $0x228] sm:%s280] %v427
                %v429 = vld [vmem:[%s287 + $0x460] sm:%s280]
                %430 = vst [vmem:[%s288 + $0x230] sm:%s280] %v429
                %v431 = vld [vmem:[%s287 + $0x470] sm:%s280]
                %432 = vst [vmem:[%s288 + $0x238] sm:%s280] %v431
                %v433 = vld [vmem:[%s287 + $0x480] sm:%s280]
                %434 = vst [vmem:[%s288 + $0x240] sm:%s280] %v433
                %v435 = vld [vmem:[%s287 + $0x490] sm:%s280]
                %436 = vst [vmem:[%s288 + $0x248] sm:%s280] %v435
                %v437 = vld [vmem:[%s287 + $0x4a0] sm:%s280]
                %438 = vst [vmem:[%s288 + $0x250] sm:%s280] %v437
                %v439 = vld [vmem:[%s287 + $0x4b0] sm:%s280]
                %440 = vst [vmem:[%s288 + $0x258] sm:%s280] %v439
                %v441 = vld [vmem:[%s287 + $0x4c0] sm:%s280]
                %442 = vst [vmem:[%s288 + $0x260] sm:%s280] %v441
                %v443 = vld [vmem:[%s287 + $0x4d0] sm:%s280]
                %444 = vst [vmem:[%s288 + $0x268] sm:%s280] %v443
                %v445 = vld [vmem:[%s287 + $0x4e0] sm:%s280]
                %446 = vst [vmem:[%s288 + $0x270] sm:%s280] %v445
                %v447 = vld [vmem:[%s287 + $0x4f0] sm:%s280]
                %448 = vst [vmem:[%s288 + $0x278] sm:%s280] %v447
                %v449 = vld [vmem:[%s287 + $0x500] sm:%s280]
                %450 = vst [vmem:[%s288 + $0x280] sm:%s280] %v449
                %v451 = vld [vmem:[%s287 + $0x510] sm:%s280]
                %452 = vst [vmem:[%s288 + $0x288] sm:%s280] %v451
                %v453 = vld [vmem:[%s287 + $0x520] sm:%s280]
                %454 = vst [vmem:[%s288 + $0x290] sm:%s280] %v453
                %v455 = vld [vmem:[%s287 + $0x530] sm:%s280]
                %456 = vst [vmem:[%s288 + $0x298] sm:%s280] %v455
                %v457 = vld [vmem:[%s287 + $0x540] sm:%s280]
                %458 = vst [vmem:[%s288 + $0x2a0] sm:%s280] %v457
                %v459 = vld [vmem:[%s287 + $0x550] sm:%s280]
                %460 = vst [vmem:[%s288 + $0x2a8] sm:%s280] %v459
                %v461 = vld [vmem:[%s287 + $0x560] sm:%s280]
                %462 = vst [vmem:[%s288 + $0x2b0] sm:%s280] %v461
                %v463 = vld [vmem:[%s287 + $0x570] sm:%s280]
                %464 = vst [vmem:[%s288 + $0x2b8] sm:%s280] %v463
                %v465 = vld [vmem:[%s287 + $0x580] sm:%s280]
                %466 = vst [vmem:[%s288 + $0x2c0] sm:%s280] %v465
                %v467 = vld [vmem:[%s287 + $0x590] sm:%s280]
                %468 = vst [vmem:[%s288 + $0x2c8] sm:%s280] %v467
                %v469 = vld [vmem:[%s287 + $0x5a0] sm:%s280]
                %470 = vst [vmem:[%s288 + $0x2d0] sm:%s280] %v469
                %v471 = vld [vmem:[%s287 + $0x5b0] sm:%s280]
                %472 = vst [vmem:[%s288 + $0x2d8] sm:%s280] %v471
                %v473 = vld [vmem:[%s287 + $0x5c0] sm:%s280]
                %474 = vst [vmem:[%s288 + $0x2e0] sm:%s280] %v473
                %v475 = vld [vmem:[%s287 + $0x5d0] sm:%s280]
                %476 = vst [vmem:[%s288 + $0x2e8] sm:%s280] %v475
                %v477 = vld [vmem:[%s287 + $0x5e0] sm:%s280]
                %478 = vst [vmem:[%s288 + $0x2f0] sm:%s280] %v477
                %v479 = vld [vmem:[%s287 + $0x5f0] sm:%s280]
                %480 = vst [vmem:[%s288 + $0x2f8] sm:%s280] %v479
                %v481 = vld [vmem:[%s287 + $0x600] sm:%s280]
                %482 = vst [vmem:[%s288 + $0x300] sm:%s280] %v481
                %v483 = vld [vmem:[%s287 + $0x610] sm:%s280]
                %484 = vst [vmem:[%s288 + $0x308] sm:%s280] %v483
                %v485 = vld [vmem:[%s287 + $0x620] sm:%s280]
                %486 = vst [vmem:[%s288 + $0x310] sm:%s280] %v485
                %v487 = vld [vmem:[%s287 + $0x630] sm:%s280]
                %488 = vst [vmem:[%s288 + $0x318] sm:%s280] %v487
                %v489 = vld [vmem:[%s287 + $0x640] sm:%s280]
                %490 = vst [vmem:[%s288 + $0x320] sm:%s280] %v489
                %v491 = vld [vmem:[%s287 + $0x650] sm:%s280]
                %492 = vst [vmem:[%s288 + $0x328] sm:%s280] %v491
                %v493 = vld [vmem:[%s287 + $0x660] sm:%s280]
                %494 = vst [vmem:[%s288 + $0x330] sm:%s280] %v493
                %v495 = vld [vmem:[%s287 + $0x670] sm:%s280]
                %496 = vst [vmem:[%s288 + $0x338] sm:%s280] %v495
                %v497 = vld [vmem:[%s287 + $0x680] sm:%s280]
                %498 = vst [vmem:[%s288 + $0x340] sm:%s280] %v497
                %v499 = vld [vmem:[%s287 + $0x690] sm:%s280]
                %500 = vst [vmem:[%s288 + $0x348] sm:%s280] %v499
                %v501 = vld [vmem:[%s287 + $0x6a0] sm:%s280]
                %502 = vst [vmem:[%s288 + $0x350] sm:%s280] %v501
                %v503 = vld [vmem:[%s287 + $0x6b0] sm:%s280]
                %504 = vst [vmem:[%s288 + $0x358] sm:%s280] %v503
                %v505 = vld [vmem:[%s287 + $0x6c0] sm:%s280]
                %506 = vst [vmem:[%s288 + $0x360] sm:%s280] %v505
                %v507 = vld [vmem:[%s287 + $0x6d0] sm:%s280]
                %508 = vst [vmem:[%s288 + $0x368] sm:%s280] %v507
                %v509 = vld [vmem:[%s287 + $0x6e0] sm:%s280]
                %510 = vst [vmem:[%s288 + $0x370] sm:%s280] %v509
                %v511 = vld [vmem:[%s287 + $0x6f0] sm:%s280]
                %512 = vst [vmem:[%s288 + $0x378] sm:%s280] %v511
                %v513 = vld [vmem:[%s287 + $0x700] sm:%s280]
                %514 = vst [vmem:[%s288 + $0x380] sm:%s280] %v513
                %v515 = vld [vmem:[%s287 + $0x710] sm:%s280]
                %516 = vst [vmem:[%s288 + $0x388] sm:%s280] %v515
                %v517 = vld [vmem:[%s287 + $0x720] sm:%s280]
                %518 = vst [vmem:[%s288 + $0x390] sm:%s280] %v517
                %v519 = vld [vmem:[%s287 + $0x730] sm:%s280]
                %520 = vst [vmem:[%s288 + $0x398] sm:%s280] %v519
                %v521 = vld [vmem:[%s287 + $0x740] sm:%s280]
                %522 = vst [vmem:[%s288 + $0x3a0] sm:%s280] %v521
                %v523 = vld [vmem:[%s287 + $0x750] sm:%s280]
                %524 = vst [vmem:[%s288 + $0x3a8] sm:%s280] %v523
                %v525 = vld [vmem:[%s287 + $0x760] sm:%s280]
                %526 = vst [vmem:[%s288 + $0x3b0] sm:%s280] %v525
                %v527 = vld [vmem:[%s287 + $0x770] sm:%s280]
                %528 = vst [vmem:[%s288 + $0x3b8] sm:%s280] %v527
                %v529 = vld [vmem:[%s287 + $0x780] sm:%s280]
                %530 = vst [vmem:[%s288 + $0x3c0] sm:%s280] %v529
                %v531 = vld [vmem:[%s287 + $0x790] sm:%s280]
                %532 = vst [vmem:[%s288 + $0x3c8] sm:%s280] %v531
                %v533 = vld [vmem:[%s287 + $0x7a0] sm:%s280]
                %534 = vst [vmem:[%s288 + $0x3d0] sm:%s280] %v533
                %v535 = vld [vmem:[%s287 + $0x7b0] sm:%s280]
                %536 = vst [vmem:[%s288 + $0x3d8] sm:%s280] %v535
                %v537 = vld [vmem:[%s287 + $0x7c0] sm:%s280]
                %538 = vst [vmem:[%s288 + $0x3e0] sm:%s280] %v537
                %v539 = vld [vmem:[%s287 + $0x7d0] sm:%s280]
                %540 = vst [vmem:[%s288 + $0x3e8] sm:%s280] %v539
                %v541 = vld [vmem:[%s287 + $0x7e0] sm:%s280]
                %542 = vst [vmem:[%s288 + $0x3f0] sm:%s280] %v541
                %v543 = vld [vmem:[%s287 + $0x7f0] sm:%s280]
                %544 = vst [vmem:[%s288 + $0x3f8] sm:%s280] %v543
                %v545 = vld [vmem:[%s287 + $0x800] sm:%s280]
                %546 = vst [vmem:[%s288 + $0x400] sm:%s280] %v545
                %v547 = vld [vmem:[%s287 + $0x810] sm:%s280]
                %548 = vst [vmem:[%s288 + $0x408] sm:%s280] %v547
                %v549 = vld [vmem:[%s287 + $0x820] sm:%s280]
                %550 = vst [vmem:[%s288 + $0x410] sm:%s280] %v549
                %v551 = vld [vmem:[%s287 + $0x830] sm:%s280]
                %552 = vst [vmem:[%s288 + $0x418] sm:%s280] %v551
                %v553 = vld [vmem:[%s287 + $0x840] sm:%s280]
                %554 = vst [vmem:[%s288 + $0x420] sm:%s280] %v553
                %v555 = vld [vmem:[%s287 + $0x850] sm:%s280]
                %556 = vst [vmem:[%s288 + $0x428] sm:%s280] %v555
                %v557 = vld [vmem:[%s287 + $0x860] sm:%s280]
                %558 = vst [vmem:[%s288 + $0x430] sm:%s280] %v557
                %v559 = vld [vmem:[%s287 + $0x870] sm:%s280]
                %560 = vst [vmem:[%s288 + $0x438] sm:%s280] %v559
                %v561 = vld [vmem:[%s287 + $0x880] sm:%s280]
                %562 = vst [vmem:[%s288 + $0x440] sm:%s280] %v561
                %v563 = vld [vmem:[%s287 + $0x890] sm:%s280]
                %564 = vst [vmem:[%s288 + $0x448] sm:%s280] %v563
                %v565 = vld [vmem:[%s287 + $0x8a0] sm:%s280]
                %566 = vst [vmem:[%s288 + $0x450] sm:%s280] %v565
                %v567 = vld [vmem:[%s287 + $0x8b0] sm:%s280]
                %568 = vst [vmem:[%s288 + $0x458] sm:%s280] %v567
                %v569 = vld [vmem:[%s287 + $0x8c0] sm:%s280]
                %570 = vst [vmem:[%s288 + $0x460] sm:%s280] %v569
                %v571 = vld [vmem:[%s287 + $0x8d0] sm:%s280]
                %572 = vst [vmem:[%s288 + $0x468] sm:%s280] %v571
                %v573 = vld [vmem:[%s287 + $0x8e0] sm:%s280]
                %574 = vst [vmem:[%s288 + $0x470] sm:%s280] %v573
                %v575 = vld [vmem:[%s287 + $0x8f0] sm:%s280]
                %576 = vst [vmem:[%s288 + $0x478] sm:%s280] %v575
                %v577 = vld [vmem:[%s287 + $0x900] sm:%s280]
                %578 = vst [vmem:[%s288 + $0x480] sm:%s280] %v577
                %v579 = vld [vmem:[%s287 + $0x910] sm:%s280]
                %580 = vst [vmem:[%s288 + $0x488] sm:%s280] %v579
                %v581 = vld [vmem:[%s287 + $0x920] sm:%s280]
                %582 = vst [vmem:[%s288 + $0x490] sm:%s280] %v581
                %v583 = vld [vmem:[%s287 + $0x930] sm:%s280]
                %584 = vst [vmem:[%s288 + $0x498] sm:%s280] %v583
                %v585 = vld [vmem:[%s287 + $0x940] sm:%s280]
                %586 = vst [vmem:[%s288 + $0x4a0] sm:%s280] %v585
                %v587 = vld [vmem:[%s287 + $0x950] sm:%s280]
                %588 = vst [vmem:[%s288 + $0x4a8] sm:%s280] %v587
                %v589 = vld [vmem:[%s287 + $0x960] sm:%s280]
                %590 = vst [vmem:[%s288 + $0x4b0] sm:%s280] %v589
                %v591 = vld [vmem:[%s287 + $0x970] sm:%s280]
                %592 = vst [vmem:[%s288 + $0x4b8] sm:%s280] %v591
                %v593 = vld [vmem:[%s287 + $0x980] sm:%s280]
                %594 = vst [vmem:[%s288 + $0x4c0] sm:%s280] %v593
                %v595 = vld [vmem:[%s287 + $0x990] sm:%s280]
                %596 = vst [vmem:[%s288 + $0x4c8] sm:%s280] %v595
                %v597 = vld [vmem:[%s287 + $0x9a0] sm:%s280]
                %598 = vst [vmem:[%s288 + $0x4d0] sm:%s280] %v597
                %v599 = vld [vmem:[%s287 + $0x9b0] sm:%s280]
                %600 = vst [vmem:[%s288 + $0x4d8] sm:%s280] %v599
                %v601 = vld [vmem:[%s287 + $0x9c0] sm:%s280]
                %602 = vst [vmem:[%s288 + $0x4e0] sm:%s280] %v601
                %v603 = vld [vmem:[%s287 + $0x9d0] sm:%s280]
                %604 = vst [vmem:[%s288 + $0x4e8] sm:%s280] %v603
                %v605 = vld [vmem:[%s287 + $0x9e0] sm:%s280]
                %606 = vst [vmem:[%s288 + $0x4f0] sm:%s280] %v605
                %v607 = vld [vmem:[%s287 + $0x9f0] sm:%s280]
                %608 = vst [vmem:[%s288 + $0x4f8] sm:%s280] %v607
                %v609 = vld [vmem:[%s287 + $0xa00] sm:%s280]
                %610 = vst [vmem:[%s288 + $0x500] sm:%s280] %v609
                %v611 = vld [vmem:[%s287 + $0xa10] sm:%s280]
                %612 = vst [vmem:[%s288 + $0x508] sm:%s280] %v611
                %v613 = vld [vmem:[%s287 + $0xa20] sm:%s280]
                %614 = vst [vmem:[%s288 + $0x510] sm:%s280] %v613
                %v615 = vld [vmem:[%s287 + $0xa30] sm:%s280]
                %616 = vst [vmem:[%s288 + $0x518] sm:%s280] %v615
                %v617 = vld [vmem:[%s287 + $0xa40] sm:%s280]
                %618 = vst [vmem:[%s288 + $0x520] sm:%s280] %v617
                %v619 = vld [vmem:[%s287 + $0xa50] sm:%s280]
                %620 = vst [vmem:[%s288 + $0x528] sm:%s280] %v619
                %v621 = vld [vmem:[%s287 + $0xa60] sm:%s280]
                %622 = vst [vmem:[%s288 + $0x530] sm:%s280] %v621
                %v623 = vld [vmem:[%s287 + $0xa70] sm:%s280]
                %624 = vst [vmem:[%s288 + $0x538] sm:%s280] %v623
                %v625 = vld [vmem:[%s287 + $0xa80] sm:%s280]
                %626 = vst [vmem:[%s288 + $0x540] sm:%s280] %v625
                %v627 = vld [vmem:[%s287 + $0xa90] sm:%s280]
                %628 = vst [vmem:[%s288 + $0x548] sm:%s280] %v627
                %v629 = vld [vmem:[%s287 + $0xaa0] sm:%s280]
                %630 = vst [vmem:[%s288 + $0x550] sm:%s280] %v629
                %v631 = vld [vmem:[%s287 + $0xab0] sm:%s280]
                %632 = vst [vmem:[%s288 + $0x558] sm:%s280] %v631
                %v633 = vld [vmem:[%s287 + $0xac0] sm:%s280]
                %634 = vst [vmem:[%s288 + $0x560] sm:%s280] %v633
                %v635 = vld [vmem:[%s287 + $0xad0] sm:%s280]
                %636 = vst [vmem:[%s288 + $0x568] sm:%s280] %v635
                %v637 = vld [vmem:[%s287 + $0xae0] sm:%s280]
                %638 = vst [vmem:[%s288 + $0x570] sm:%s280] %v637
                %v639 = vld [vmem:[%s287 + $0xaf0] sm:%s280]
                %640 = vst [vmem:[%s288 + $0x578] sm:%s280] %v639
                %v641 = vld [vmem:[%s287 + $0xb00] sm:%s280]
                %642 = vst [vmem:[%s288 + $0x580] sm:%s280] %v641
                %v643 = vld [vmem:[%s287 + $0xb10] sm:%s280]
                %644 = vst [vmem:[%s288 + $0x588] sm:%s280] %v643
                %v645 = vld [vmem:[%s287 + $0xb20] sm:%s280]
                %646 = vst [vmem:[%s288 + $0x590] sm:%s280] %v645
                %v647 = vld [vmem:[%s287 + $0xb30] sm:%s280]
                %648 = vst [vmem:[%s288 + $0x598] sm:%s280] %v647
                %v649 = vld [vmem:[%s287 + $0xb40] sm:%s280]
                %650 = vst [vmem:[%s288 + $0x5a0] sm:%s280] %v649
                %v651 = vld [vmem:[%s287 + $0xb50] sm:%s280]
                %652 = vst [vmem:[%s288 + $0x5a8] sm:%s280] %v651
                %v653 = vld [vmem:[%s287 + $0xb60] sm:%s280]
                %654 = vst [vmem:[%s288 + $0x5b0] sm:%s280] %v653
                %v655 = vld [vmem:[%s287 + $0xb70] sm:%s280]
                %656 = vst [vmem:[%s288 + $0x5b8] sm:%s280] %v655
                %v657 = vld [vmem:[%s287 + $0xb80] sm:%s280]
                %658 = vst [vmem:[%s288 + $0x5c0] sm:%s280] %v657
                %v659 = vld [vmem:[%s287 + $0xb90] sm:%s280]
                %660 = vst [vmem:[%s288 + $0x5c8] sm:%s280] %v659
                %v661 = vld [vmem:[%s287 + $0xba0] sm:%s280]
                %662 = vst [vmem:[%s288 + $0x5d0] sm:%s280] %v661
                %v663 = vld [vmem:[%s287 + $0xbb0] sm:%s280]
                %664 = vst [vmem:[%s288 + $0x5d8] sm:%s280] %v663
                %v665 = vld [vmem:[%s287 + $0xbc0] sm:%s280]
                %666 = vst [vmem:[%s288 + $0x5e0] sm:%s280] %v665
                %v667 = vld [vmem:[%s287 + $0xbd0] sm:%s280]
                %668 = vst [vmem:[%s288 + $0x5e8] sm:%s280] %v667
                %v669 = vld [vmem:[%s287 + $0xbe0] sm:%s280]
                %670 = vst [vmem:[%s288 + $0x5f0] sm:%s280] %v669
                %v671 = vld [vmem:[%s287 + $0xbf0] sm:%s280]
                %672 = vst [vmem:[%s288 + $0x5f8] sm:%s280] %v671
                %v673 = vld [vmem:[%s287 + $0xc00] sm:%s280]
                %674 = vst [vmem:[%s288 + $0x600] sm:%s280] %v673
                %v675 = vld [vmem:[%s287 + $0xc10] sm:%s280]
                %676 = vst [vmem:[%s288 + $0x608] sm:%s280] %v675
                %v677 = vld [vmem:[%s287 + $0xc20] sm:%s280]
                %678 = vst [vmem:[%s288 + $0x610] sm:%s280] %v677
                %v679 = vld [vmem:[%s287 + $0xc30] sm:%s280]
                %680 = vst [vmem:[%s288 + $0x618] sm:%s280] %v679
                %v681 = vld [vmem:[%s287 + $0xc40] sm:%s280]
                %682 = vst [vmem:[%s288 + $0x620] sm:%s280] %v681
                %v683 = vld [vmem:[%s287 + $0xc50] sm:%s280]
                %684 = vst [vmem:[%s288 + $0x628] sm:%s280] %v683
                %v685 = vld [vmem:[%s287 + $0xc60] sm:%s280]
                %686 = vst [vmem:[%s288 + $0x630] sm:%s280] %v685
                %v687 = vld [vmem:[%s287 + $0xc70] sm:%s280]
                %688 = vst [vmem:[%s288 + $0x638] sm:%s280] %v687
                %v689 = vld [vmem:[%s287 + $0xc80] sm:%s280]
                %690 = vst [vmem:[%s288 + $0x640] sm:%s280] %v689
                %v691 = vld [vmem:[%s287 + $0xc90] sm:%s280]
                %692 = vst [vmem:[%s288 + $0x648] sm:%s280] %v691
                %v693 = vld [vmem:[%s287 + $0xca0] sm:%s280]
                %694 = vst [vmem:[%s288 + $0x650] sm:%s280] %v693
                %v695 = vld [vmem:[%s287 + $0xcb0] sm:%s280]
                %696 = vst [vmem:[%s288 + $0x658] sm:%s280] %v695
                %v697 = vld [vmem:[%s287 + $0xcc0] sm:%s280]
                %698 = vst [vmem:[%s288 + $0x660] sm:%s280] %v697
                %v699 = vld [vmem:[%s287 + $0xcd0] sm:%s280]
                %700 = vst [vmem:[%s288 + $0x668] sm:%s280] %v699
                %v701 = vld [vmem:[%s287 + $0xce0] sm:%s280]
                %702 = vst [vmem:[%s288 + $0x670] sm:%s280] %v701
                %v703 = vld [vmem:[%s287 + $0xcf0] sm:%s280]
                %704 = vst [vmem:[%s288 + $0x678] sm:%s280] %v703
                %v705 = vld [vmem:[%s287 + $0xd00] sm:%s280]
                %706 = vst [vmem:[%s288 + $0x680] sm:%s280] %v705
                %v707 = vld [vmem:[%s287 + $0xd10] sm:%s280]
                %708 = vst [vmem:[%s288 + $0x688] sm:%s280] %v707
                %v709 = vld [vmem:[%s287 + $0xd20] sm:%s280]
                %710 = vst [vmem:[%s288 + $0x690] sm:%s280] %v709
                %v711 = vld [vmem:[%s287 + $0xd30] sm:%s280]
                %712 = vst [vmem:[%s288 + $0x698] sm:%s280] %v711
                %v713 = vld [vmem:[%s287 + $0xd40] sm:%s280]
                %714 = vst [vmem:[%s288 + $0x6a0] sm:%s280] %v713
                %v715 = vld [vmem:[%s287 + $0xd50] sm:%s280]
                %716 = vst [vmem:[%s288 + $0x6a8] sm:%s280] %v715
                %v717 = vld [vmem:[%s287 + $0xd60] sm:%s280]
                %718 = vst [vmem:[%s288 + $0x6b0] sm:%s280] %v717
                %v719 = vld [vmem:[%s287 + $0xd70] sm:%s280]
                %720 = vst [vmem:[%s288 + $0x6b8] sm:%s280] %v719
                %v721 = vld [vmem:[%s287 + $0xd80] sm:%s280]
                %722 = vst [vmem:[%s288 + $0x6c0] sm:%s280] %v721
                %v723 = vld [vmem:[%s287 + $0xd90] sm:%s280]
                %724 = vst [vmem:[%s288 + $0x6c8] sm:%s280] %v723
                %v725 = vld [vmem:[%s287 + $0xda0] sm:%s280]
                %726 = vst [vmem:[%s288 + $0x6d0] sm:%s280] %v725
                %v727 = vld [vmem:[%s287 + $0xdb0] sm:%s280]
                %728 = vst [vmem:[%s288 + $0x6d8] sm:%s280] %v727
                %v729 = vld [vmem:[%s287 + $0xdc0] sm:%s280]
                %730 = vst [vmem:[%s288 + $0x6e0] sm:%s280] %v729
                %v731 = vld [vmem:[%s287 + $0xdd0] sm:%s280]
                %732 = vst [vmem:[%s288 + $0x6e8] sm:%s280] %v731
                %v733 = vld [vmem:[%s287 + $0xde0] sm:%s280]
                %734 = vst [vmem:[%s288 + $0x6f0] sm:%s280] %v733
                %v735 = vld [vmem:[%s287 + $0xdf0] sm:%s280]
                %736 = vst [vmem:[%s288 + $0x6f8] sm:%s280] %v735
                %v737 = vld [vmem:[%s287 + $0xe00] sm:%s280]
                %738 = vst [vmem:[%s288 + $0x700] sm:%s280] %v737
                %v739 = vld [vmem:[%s287 + $0xe10] sm:%s280]
                %740 = vst [vmem:[%s288 + $0x708] sm:%s280] %v739
                %v741 = vld [vmem:[%s287 + $0xe20] sm:%s280]
                %742 = vst [vmem:[%s288 + $0x710] sm:%s280] %v741
                %v743 = vld [vmem:[%s287 + $0xe30] sm:%s280]
                %744 = vst [vmem:[%s288 + $0x718] sm:%s280] %v743
                %v745 = vld [vmem:[%s287 + $0xe40] sm:%s280]
                %746 = vst [vmem:[%s288 + $0x720] sm:%s280] %v745
                %v747 = vld [vmem:[%s287 + $0xe50] sm:%s280]
                %748 = vst [vmem:[%s288 + $0x728] sm:%s280] %v747
                %v749 = vld [vmem:[%s287 + $0xe60] sm:%s280]
                %750 = vst [vmem:[%s288 + $0x730] sm:%s280] %v749
                %v751 = vld [vmem:[%s287 + $0xe70] sm:%s280]
                %752 = vst [vmem:[%s288 + $0x738] sm:%s280] %v751
                %v753 = vld [vmem:[%s287 + $0xe80] sm:%s280]
                %754 = vst [vmem:[%s288 + $0x740] sm:%s280] %v753
                %v755 = vld [vmem:[%s287 + $0xe90] sm:%s280]
                %756 = vst [vmem:[%s288 + $0x748] sm:%s280] %v755
                %v757 = vld [vmem:[%s287 + $0xea0] sm:%s280]
                %758 = vst [vmem:[%s288 + $0x750] sm:%s280] %v757
                %v759 = vld [vmem:[%s287 + $0xeb0] sm:%s280]
                %760 = vst [vmem:[%s288 + $0x758] sm:%s280] %v759
                %v761 = vld [vmem:[%s287 + $0xec0] sm:%s280]
                %762 = vst [vmem:[%s288 + $0x760] sm:%s280] %v761
                %v763 = vld [vmem:[%s287 + $0xed0] sm:%s280]
                %764 = vst [vmem:[%s288 + $0x768] sm:%s280] %v763
                %v765 = vld [vmem:[%s287 + $0xee0] sm:%s280]
                %766 = vst [vmem:[%s288 + $0x770] sm:%s280] %v765
                %v767 = vld [vmem:[%s287 + $0xef0] sm:%s280]
                %768 = vst [vmem:[%s288 + $0x778] sm:%s280] %v767
                %v769 = vld [vmem:[%s287 + $0xf00] sm:%s280]
                %770 = vst [vmem:[%s288 + $0x780] sm:%s280] %v769
                %v771 = vld [vmem:[%s287 + $0xf10] sm:%s280]
                %772 = vst [vmem:[%s288 + $0x788] sm:%s280] %v771
                %v773 = vld [vmem:[%s287 + $0xf20] sm:%s280]
                %774 = vst [vmem:[%s288 + $0x790] sm:%s280] %v773
                %v775 = vld [vmem:[%s287 + $0xf30] sm:%s280]
                %776 = vst [vmem:[%s288 + $0x798] sm:%s280] %v775
                %v777 = vld [vmem:[%s287 + $0xf40] sm:%s280]
                %778 = vst [vmem:[%s288 + $0x7a0] sm:%s280] %v777
                %v779 = vld [vmem:[%s287 + $0xf50] sm:%s280]
                %780 = vst [vmem:[%s288 + $0x7a8] sm:%s280] %v779
                %v781 = vld [vmem:[%s287 + $0xf60] sm:%s280]
                %782 = vst [vmem:[%s288 + $0x7b0] sm:%s280] %v781
                %v783 = vld [vmem:[%s287 + $0xf70] sm:%s280]
                %784 = vst [vmem:[%s288 + $0x7b8] sm:%s280] %v783
                %v785 = vld [vmem:[%s287 + $0xf80] sm:%s280]
                %786 = vst [vmem:[%s288 + $0x7c0] sm:%s280] %v785
                %v787 = vld [vmem:[%s287 + $0xf90] sm:%s280]
                %788 = vst [vmem:[%s288 + $0x7c8] sm:%s280] %v787
                %v789 = vld [vmem:[%s287 + $0xfa0] sm:%s280]
                %790 = vst [vmem:[%s288 + $0x7d0] sm:%s280] %v789
                %v791 = vld [vmem:[%s287 + $0xfb0] sm:%s280]
                %792 = vst [vmem:[%s288 + $0x7d8] sm:%s280] %v791
                %v793 = vld [vmem:[%s287 + $0xfc0] sm:%s280]
                %794 = vst [vmem:[%s288 + $0x7e0] sm:%s280] %v793
                %v795 = vld [vmem:[%s287 + $0xfd0] sm:%s280]
                %796 = vst [vmem:[%s288 + $0x7e8] sm:%s280] %v795
                %v797 = vld [vmem:[%s287 + $0xfe0] sm:%s280]
                %798 = vst [vmem:[%s288 + $0x7f0] sm:%s280] %v797
                %v799 = vld [vmem:[%s287 + $0xff0] sm:%s280]
                %800 = vst [vmem:[%s288 + $0x7f8] sm:%s280] %v799
              $region60: #{discriminator_forward.8} parent=54 // loop_footer
                %s286 = sadd.s32 1, %s282
              $region61: #{discriminator_forward.8} parent=54 // loop_footer_branch
                %281 = sbr.rel target = $region57
              $region62: #{discriminator_forward.8} parent=54 // loop_exit
                _
            $region55: #{discriminator_forward.8} parent=46 // pred_fallthru
              _
          $region47: #{discriminator_forward.8} parent=42 // pred_fallthru
            _
          %2385 = vnop
        $region43: #{discriminator_forward.8} parent=15 // pred_fallthru
          _
        // Predicated region
        $region92: #{discriminator_forward.8} parent=15 // pred_check
          %p2386 = pneg %p105
        $region93: #{discriminator_forward.8} parent=15 // pred_check_branch
          %2388 = sbr.rel (%p2386) target = $region95
        $region94: #{discriminator_forward.8} parent=15 // pred_region
          %s2389 = smul.u32 2, %s18
          %p2390 = scmp.lt.s32.totalorder %s2389, 3
          %s2391 = scalar_select %p2390, %s2389, 3
          %s2392 = scalar_lea.vmem %s2, %s2391
          %s2393 = smul.u32 2, %s18
        $region95: #{discriminator_forward.8} parent=15 // pred_fallthru
          _
        // Predicated region
        $region96: #{discriminator_forward.8} parent=15 // pred_check
          %p2394 = pneg %p131
        $region97: #{discriminator_forward.8} parent=15 // pred_check_branch
          %2396 = sbr.rel (%p2394) target = $region99
        $region98: #{discriminator_forward.8} parent=15 // pred_region
          %s2397 = smul.u32 2, %s18
          %p2398 = scmp.lt.s32.totalorder %s2397, 3
          %s2399 = scalar_select %p2398, %s2397, 3
          %s2400 = scalar_lea.vmem %s3, %s2399
          %s2401 = smul.u32 2, %s18
        $region99: #{discriminator_forward.8} parent=15 // pred_fallthru
          _
      $region16: #{discriminator_forward.8} parent=5 // pred_fallthru
        _
      %p2402 = scmp.le.s32.totalorder 1, %s10
      %p2403 = scmp.lt.s32.totalorder %s10, 5
      %p2404 = pnand %p2402, %p2403
      %p2405 = pneg %p2404
      // Predicated region
      $region100: #{discriminator_forward.8} parent=5 // pred_check
        _
      $region101: #{discriminator_forward.8} parent=5 // pred_check_branch
        %2407 = sbr.rel (%p2404) target = $region103
      $region102: #{discriminator_forward.8} parent=5 // pred_region
        %s2408 = ssub.s32 %s10, 1
        %s2409 = sand.u32 %s44, 1
        %s2410 = sand.u32 %s44, 1
        %s2411 = smul.addr %s2410, 192
        %s2412 = scalar_lea.vmem [#allocation3], %s2411
        // Predicated region
        $region104: #{discriminator_forward.8} parent=102 // pred_check
          %p2413 = pneg %p57
        $region105: #{discriminator_forward.8} parent=102 // pred_check_branch
          %2415 = sbr.rel (%p2413) target = $region107
        $region106: #{discriminator_forward.8} parent=102 // pred_region
          _
        $region107: #{discriminator_forward.8} parent=102 // pred_fallthru
          _
        %s2416 = sand.u32 %s72, 1
        %s2417 = sand.u32 %s72, 1
        %s2418 = smul.addr %s2417, 2048
        %s2419 = scalar_lea.vmem [#allocation4], %s2418
        // Predicated region
        $region108: #{discriminator_forward.8} parent=102 // pred_check
          %p2420 = pneg %p85
        $region109: #{discriminator_forward.8} parent=102 // pred_check_branch
          %2422 = sbr.rel (%p2420) target = $region111
        $region110: #{discriminator_forward.8} parent=102 // pred_region
          _
        $region111: #{discriminator_forward.8} parent=102 // pred_fallthru
          _
        %s2423 = sand.u32 %s44, 1
        %s2424 = sand.u32 %s44, 1
        %s2425 = smul.addr %s2424, 192
        %s2426 = scalar_lea.vmem [#allocation3], %s2425
        %p2427 = pneg %p57
        %p2428 = pneg %p54
        %s2429 = sand.u32 %s72, 1
        %s2430 = sand.u32 %s72, 1
        %s2431 = smul.addr %s2430, 2048
        %s2432 = scalar_lea.vmem [#allocation4], %s2431
        %p2433 = pneg %p85
        %p2434 = pneg %p82
        %s2435 = smul.u32 2, %s21
        %p2436 = scmp.lt.s32.totalorder %s2435, 3
        %s2437 = scalar_select %p2436, %s2435, 3
        %s2438 = scalar_lea.vmem %s2, %s2437
        %p2439 = pneg %p111
        %p2440 = pneg %p108
        %s2441 = smul.u32 2, %s21
        %p2442 = scmp.lt.s32.totalorder %s2441, 3
        %s2443 = scalar_select %p2442, %s2441, 3
        %s2444 = scalar_lea.vmem %s3, %s2443
        %p2445 = pneg %p137
        %p2446 = pneg %p134
        %p2447 = pneg %p165
        %p2448 = pneg %p162
        %s2449 = sand.u32 %s152, 1
        %s2450 = sand.u32 %s152, 1
        %s2451 = smul.addr %s2450, 24
        %s2452 = scalar_lea.vmem [#allocation5], %s2451
        %s2453 = smul.u32 3, %s20
        %s2454 = smul.u32 16, %s22
        %s2455 = smul.u32 256, %s22
        %s2456 = smul.u32 2, %s21
        %s2457 = smul.u32 2, %s21
        %p2458 = scmp.lt.s32.totalorder %s2457, 3
        %s2459 = scalar_select %p2458, %s2457, 3
        %s2460 = scalar_lea.vmem %s2, %s2459
        %s2461 = smul.u32 2, %s21
        %s2462 = smul.u32 2, %s21
        %p2463 = scmp.lt.s32.totalorder %s2462, 3
        %s2464 = scalar_select %p2463, %s2462, 3
        %s2465 = scalar_lea.vmem %s3, %s2464
        %s2466 = smul.u32 2, %s21
        %s2467 = smul.u32 3, %s20
        %s2468 = smul.u32 2, %s21
        %p2469 = scmp.eq.s32.totalorder %s22, 0
        // Predicated region
        $region112: #{discriminator_forward.8} parent=102 // pred_check
          %p2470 = pneg %p2469
        $region113: #{discriminator_forward.8} parent=102 // pred_check_branch
          %2472 = sbr.rel (%p2470) target = $region115
        $region114: #{discriminator_forward.8} parent=102 // pred_region
          %2473 = vst [vmem:[#allocation2] sm:$0xff] 0.0
          %2474 = vst [vmem:[#allocation2 + $0x8] sm:$0xff] 0.0
          %2475 = vst [vmem:[#allocation2 + $0x10] sm:$0xff] 0.0
          %2476 = vst [vmem:[#allocation2 + $0x18] sm:$0xff] 0.0
          %2477 = vst [vmem:[#allocation2 + $0x20] sm:$0xff] 0.0
          %2478 = vst [vmem:[#allocation2 + $0x28] sm:$0xff] 0.0
        $region115: #{discriminator_forward.8} parent=102 // pred_fallthru
          _
        %v2479 = vld [vmem:[#allocation2] sm:$0xff]
        %v2480 = vld [vmem:[#allocation2 + $0x8] sm:$0xff]
        %v2481 = vld [vmem:[#allocation2 + $0x10] sm:$0xff]
        %v2482 = vld [vmem:[#allocation2 + $0x18] sm:$0xff]
        %v2483 = vld [vmem:[#allocation2 + $0x20] sm:$0xff]
        %v2484 = vld [vmem:[#allocation2 + $0x28] sm:$0xff]
        %v2485 = vld [vmem:[%s2412] sm:$0xff]
        %v2486 = vld [vmem:[%s2412 + $0x8] sm:$0xff]
        %v2487 = vld [vmem:[%s2412 + $0x10] sm:$0xff]
        %v2488 = vld [vmem:[%s2412 + $0x18] sm:$0xff]
        %v2489 = vld [vmem:[%s2412 + $0x20] sm:$0xff]
        %v2490 = vld [vmem:[%s2412 + $0x28] sm:$0xff]
        %v2491 = vld [vmem:[%s2412 + $0x30] sm:$0xff]
        %v2492 = vld [vmem:[%s2412 + $0x38] sm:$0xff]
        %v2493 = vld [vmem:[%s2412 + $0x40] sm:$0xff]
        %v2494 = vld [vmem:[%s2412 + $0x48] sm:$0xff]
        %v2495 = vld [vmem:[%s2412 + $0x50] sm:$0xff]
        %v2496 = vld [vmem:[%s2412 + $0x58] sm:$0xff]
        %v2497 = vld [vmem:[%s2412 + $0x60] sm:$0xff]
        %v2498 = vld [vmem:[%s2412 + $0x68] sm:$0xff]
        %v2499 = vld [vmem:[%s2412 + $0x70] sm:$0xff]
        %v2500 = vld [vmem:[%s2412 + $0x78] sm:$0xff]
        %v2501 = vld [vmem:[%s2412 + $0x80] sm:$0xff]
        %v2502 = vld [vmem:[%s2412 + $0x88] sm:$0xff]
        %v2503 = vld [vmem:[%s2412 + $0x90] sm:$0xff]
        %v2504 = vld [vmem:[%s2412 + $0x98] sm:$0xff]
        %v2505 = vld [vmem:[%s2412 + $0xa0] sm:$0xff]
        %v2506 = vld [vmem:[%s2412 + $0xa8] sm:$0xff]
        %v2507 = vld [vmem:[%s2412 + $0xb0] sm:$0xff]
        %v2508 = vld [vmem:[%s2412 + $0xb8] sm:$0xff]
        %v2509 = vld [vmem:[%s2419] sm:$0xff]
        %v2510 = vld [vmem:[%s2419 + $0x8] sm:$0xff]
        %v2511 = vld [vmem:[%s2419 + $0x10] sm:$0xff]
        %v2512 = vld [vmem:[%s2419 + $0x18] sm:$0xff]
        %v2513 = vld [vmem:[%s2419 + $0x20] sm:$0xff]
        %v2514 = vld [vmem:[%s2419 + $0x28] sm:$0xff]
        %v2515 = vld [vmem:[%s2419 + $0x30] sm:$0xff]
        %v2516 = vld [vmem:[%s2419 + $0x38] sm:$0xff]
        %v2517 = vld [vmem:[%s2419 + $0x40] sm:$0xff]
        %v2518 = vld [vmem:[%s2419 + $0x48] sm:$0xff]
        %v2519 = vld [vmem:[%s2419 + $0x50] sm:$0xff]
        %v2520 = vld [vmem:[%s2419 + $0x58] sm:$0xff]
        %v2521 = vld [vmem:[%s2419 + $0x60] sm:$0xff]
        %v2522 = vld [vmem:[%s2419 + $0x68] sm:$0xff]
        %v2523 = vld [vmem:[%s2419 + $0x70] sm:$0xff]
        %v2524 = vld [vmem:[%s2419 + $0x78] sm:$0xff]
        %v2525 = vld [vmem:[%s2419 + $0x80] sm:$0xff]
        %v2526 = vld [vmem:[%s2419 + $0x88] sm:$0xff]
        %v2527 = vld [vmem:[%s2419 + $0x90] sm:$0xff]
        %v2528 = vld [vmem:[%s2419 + $0x98] sm:$0xff]
        %v2529 = vld [vmem:[%s2419 + $0xa0] sm:$0xff]
        %v2530 = vld [vmem:[%s2419 + $0xa8] sm:$0xff]
        %v2531 = vld [vmem:[%s2419 + $0xb0] sm:$0xff]
        %v2532 = vld [vmem:[%s2419 + $0xb8] sm:$0xff]
        %v2533 = vld [vmem:[%s2419 + $0xc0] sm:$0xff]
        %v2534 = vld [vmem:[%s2419 + $0xc8] sm:$0xff]
        %v2535 = vld [vmem:[%s2419 + $0xd0] sm:$0xff]
        %v2536 = vld [vmem:[%s2419 + $0xd8] sm:$0xff]
        %v2537 = vld [vmem:[%s2419 + $0xe0] sm:$0xff]
        %v2538 = vld [vmem:[%s2419 + $0xe8] sm:$0xff]
        %v2539 = vld [vmem:[%s2419 + $0xf0] sm:$0xff]
        %v2540 = vld [vmem:[%s2419 + $0xf8] sm:$0xff]
        %v2541 = vld [vmem:[%s2419 + $0x100] sm:$0xff]
        %v2542 = vld [vmem:[%s2419 + $0x108] sm:$0xff]
        %v2543 = vld [vmem:[%s2419 + $0x110] sm:$0xff]
        %v2544 = vld [vmem:[%s2419 + $0x118] sm:$0xff]
        %v2545 = vld [vmem:[%s2419 + $0x120] sm:$0xff]
        %v2546 = vld [vmem:[%s2419 + $0x128] sm:$0xff]
        %v2547 = vld [vmem:[%s2419 + $0x130] sm:$0xff]
        %v2548 = vld [vmem:[%s2419 + $0x138] sm:$0xff]
        %v2549 = vld [vmem:[%s2419 + $0x140] sm:$0xff]
        %v2550 = vld [vmem:[%s2419 + $0x148] sm:$0xff]
        %v2551 = vld [vmem:[%s2419 + $0x150] sm:$0xff]
        %v2552 = vld [vmem:[%s2419 + $0x158] sm:$0xff]
        %v2553 = vld [vmem:[%s2419 + $0x160] sm:$0xff]
        %v2554 = vld [vmem:[%s2419 + $0x168] sm:$0xff]
        %v2555 = vld [vmem:[%s2419 + $0x170] sm:$0xff]
        %v2556 = vld [vmem:[%s2419 + $0x178] sm:$0xff]
        %v2557 = vld [vmem:[%s2419 + $0x180] sm:$0xff]
        %v2558 = vld [vmem:[%s2419 + $0x188] sm:$0xff]
        %v2559 = vld [vmem:[%s2419 + $0x190] sm:$0xff]
        %v2560 = vld [vmem:[%s2419 + $0x198] sm:$0xff]
        %v2561 = vld [vmem:[%s2419 + $0x1a0] sm:$0xff]
        %v2562 = vld [vmem:[%s2419 + $0x1a8] sm:$0xff]
        %v2563 = vld [vmem:[%s2419 + $0x1b0] sm:$0xff]
        %v2564 = vld [vmem:[%s2419 + $0x1b8] sm:$0xff]
        %v2565 = vld [vmem:[%s2419 + $0x1c0] sm:$0xff]
        %v2566 = vld [vmem:[%s2419 + $0x1c8] sm:$0xff]
        %v2567 = vld [vmem:[%s2419 + $0x1d0] sm:$0xff]
        %v2568 = vld [vmem:[%s2419 + $0x1d8] sm:$0xff]
        %v2569 = vld [vmem:[%s2419 + $0x1e0] sm:$0xff]
        %v2570 = vld [vmem:[%s2419 + $0x1e8] sm:$0xff]
        %v2571 = vld [vmem:[%s2419 + $0x1f0] sm:$0xff]
        %v2572 = vld [vmem:[%s2419 + $0x1f8] sm:$0xff]
        %v2573 = vld [vmem:[%s2419 + $0x200] sm:$0xff]
        %v2574 = vld [vmem:[%s2419 + $0x208] sm:$0xff]
        %v2575 = vld [vmem:[%s2419 + $0x210] sm:$0xff]
        %v2576 = vld [vmem:[%s2419 + $0x218] sm:$0xff]
        %v2577 = vld [vmem:[%s2419 + $0x220] sm:$0xff]
        %v2578 = vld [vmem:[%s2419 + $0x228] sm:$0xff]
        %v2579 = vld [vmem:[%s2419 + $0x230] sm:$0xff]
        %v2580 = vld [vmem:[%s2419 + $0x238] sm:$0xff]
        %v2581 = vld [vmem:[%s2419 + $0x240] sm:$0xff]
        %v2582 = vld [vmem:[%s2419 + $0x248] sm:$0xff]
        %v2583 = vld [vmem:[%s2419 + $0x250] sm:$0xff]
        %v2584 = vld [vmem:[%s2419 + $0x258] sm:$0xff]
        %v2585 = vld [vmem:[%s2419 + $0x260] sm:$0xff]
        %v2586 = vld [vmem:[%s2419 + $0x268] sm:$0xff]
        %v2587 = vld [vmem:[%s2419 + $0x270] sm:$0xff]
        %v2588 = vld [vmem:[%s2419 + $0x278] sm:$0xff]
        %v2589 = vld [vmem:[%s2419 + $0x280] sm:$0xff]
        %v2590 = vld [vmem:[%s2419 + $0x288] sm:$0xff]
        %v2591 = vld [vmem:[%s2419 + $0x290] sm:$0xff]
        %v2592 = vld [vmem:[%s2419 + $0x298] sm:$0xff]
        %v2593 = vld [vmem:[%s2419 + $0x2a0] sm:$0xff]
        %v2594 = vld [vmem:[%s2419 + $0x2a8] sm:$0xff]
        %v2595 = vld [vmem:[%s2419 + $0x2b0] sm:$0xff]
        %v2596 = vld [vmem:[%s2419 + $0x2b8] sm:$0xff]
        %v2597 = vld [vmem:[%s2419 + $0x2c0] sm:$0xff]
        %v2598 = vld [vmem:[%s2419 + $0x2c8] sm:$0xff]
        %v2599 = vld [vmem:[%s2419 + $0x2d0] sm:$0xff]
        %v2600 = vld [vmem:[%s2419 + $0x2d8] sm:$0xff]
        %v2601 = vld [vmem:[%s2419 + $0x2e0] sm:$0xff]
        %v2602 = vld [vmem:[%s2419 + $0x2e8] sm:$0xff]
        %v2603 = vld [vmem:[%s2419 + $0x2f0] sm:$0xff]
        %v2604 = vld [vmem:[%s2419 + $0x2f8] sm:$0xff]
        %v2605 = vld [vmem:[%s2419 + $0x300] sm:$0xff]
        %v2606 = vld [vmem:[%s2419 + $0x308] sm:$0xff]
        %v2607 = vld [vmem:[%s2419 + $0x310] sm:$0xff]
        %v2608 = vld [vmem:[%s2419 + $0x318] sm:$0xff]
        %v2609 = vld [vmem:[%s2419 + $0x320] sm:$0xff]
        %v2610 = vld [vmem:[%s2419 + $0x328] sm:$0xff]
        %v2611 = vld [vmem:[%s2419 + $0x330] sm:$0xff]
        %v2612 = vld [vmem:[%s2419 + $0x338] sm:$0xff]
        %v2613 = vld [vmem:[%s2419 + $0x340] sm:$0xff]
        %v2614 = vld [vmem:[%s2419 + $0x348] sm:$0xff]
        %v2615 = vld [vmem:[%s2419 + $0x350] sm:$0xff]
        %v2616 = vld [vmem:[%s2419 + $0x358] sm:$0xff]
        %v2617 = vld [vmem:[%s2419 + $0x360] sm:$0xff]
        %v2618 = vld [vmem:[%s2419 + $0x368] sm:$0xff]
        %v2619 = vld [vmem:[%s2419 + $0x370] sm:$0xff]
        %v2620 = vld [vmem:[%s2419 + $0x378] sm:$0xff]
        %v2621 = vld [vmem:[%s2419 + $0x380] sm:$0xff]
        %v2622 = vld [vmem:[%s2419 + $0x388] sm:$0xff]
        %v2623 = vld [vmem:[%s2419 + $0x390] sm:$0xff]
        %v2624 = vld [vmem:[%s2419 + $0x398] sm:$0xff]
        %v2625 = vld [vmem:[%s2419 + $0x3a0] sm:$0xff]
        %v2626 = vld [vmem:[%s2419 + $0x3a8] sm:$0xff]
        %v2627 = vld [vmem:[%s2419 + $0x3b0] sm:$0xff]
        %v2628 = vld [vmem:[%s2419 + $0x3b8] sm:$0xff]
        %v2629 = vld [vmem:[%s2419 + $0x3c0] sm:$0xff]
        %v2630 = vld [vmem:[%s2419 + $0x3c8] sm:$0xff]
        %v2631 = vld [vmem:[%s2419 + $0x3d0] sm:$0xff]
        %v2632 = vld [vmem:[%s2419 + $0x3d8] sm:$0xff]
        %v2633 = vld [vmem:[%s2419 + $0x3e0] sm:$0xff]
        %v2634 = vld [vmem:[%s2419 + $0x3e8] sm:$0xff]
        %v2635 = vld [vmem:[%s2419 + $0x3f0] sm:$0xff]
        %v2636 = vld [vmem:[%s2419 + $0x3f8] sm:$0xff]
        %v2637 = vld [vmem:[%s2419 + $0x400] sm:$0xff]
        %v2638 = vld [vmem:[%s2419 + $0x408] sm:$0xff]
        %v2639 = vld [vmem:[%s2419 + $0x410] sm:$0xff]
        %v2640 = vld [vmem:[%s2419 + $0x418] sm:$0xff]
        %v2641 = vld [vmem:[%s2419 + $0x420] sm:$0xff]
        %v2642 = vld [vmem:[%s2419 + $0x428] sm:$0xff]
        %v2643 = vld [vmem:[%s2419 + $0x430] sm:$0xff]
        %v2644 = vld [vmem:[%s2419 + $0x438] sm:$0xff]
        %v2645 = vld [vmem:[%s2419 + $0x440] sm:$0xff]
        %v2646 = vld [vmem:[%s2419 + $0x448] sm:$0xff]
        %v2647 = vld [vmem:[%s2419 + $0x450] sm:$0xff]
        %v2648 = vld [vmem:[%s2419 + $0x458] sm:$0xff]
        %v2649 = vld [vmem:[%s2419 + $0x460] sm:$0xff]
        %v2650 = vld [vmem:[%s2419 + $0x468] sm:$0xff]
        %v2651 = vld [vmem:[%s2419 + $0x470] sm:$0xff]
        %v2652 = vld [vmem:[%s2419 + $0x478] sm:$0xff]
        %v2653 = vld [vmem:[%s2419 + $0x480] sm:$0xff]
        %v2654 = vld [vmem:[%s2419 + $0x488] sm:$0xff]
        %v2655 = vld [vmem:[%s2419 + $0x490] sm:$0xff]
        %v2656 = vld [vmem:[%s2419 + $0x498] sm:$0xff]
        %v2657 = vld [vmem:[%s2419 + $0x4a0] sm:$0xff]
        %v2658 = vld [vmem:[%s2419 + $0x4a8] sm:$0xff]
        %v2659 = vld [vmem:[%s2419 + $0x4b0] sm:$0xff]
        %v2660 = vld [vmem:[%s2419 + $0x4b8] sm:$0xff]
        %v2661 = vld [vmem:[%s2419 + $0x4c0] sm:$0xff]
        %v2662 = vld [vmem:[%s2419 + $0x4c8] sm:$0xff]
        %v2663 = vld [vmem:[%s2419 + $0x4d0] sm:$0xff]
        %v2664 = vld [vmem:[%s2419 + $0x4d8] sm:$0xff]
        %v2665 = vld [vmem:[%s2419 + $0x4e0] sm:$0xff]
        %v2666 = vld [vmem:[%s2419 + $0x4e8] sm:$0xff]
        %v2667 = vld [vmem:[%s2419 + $0x4f0] sm:$0xff]
        %v2668 = vld [vmem:[%s2419 + $0x4f8] sm:$0xff]
        %v2669 = vld [vmem:[%s2419 + $0x500] sm:$0xff]
        %v2670 = vld [vmem:[%s2419 + $0x508] sm:$0xff]
        %v2671 = vld [vmem:[%s2419 + $0x510] sm:$0xff]
        %v2672 = vld [vmem:[%s2419 + $0x518] sm:$0xff]
        %v2673 = vld [vmem:[%s2419 + $0x520] sm:$0xff]
        %v2674 = vld [vmem:[%s2419 + $0x528] sm:$0xff]
        %v2675 = vld [vmem:[%s2419 + $0x530] sm:$0xff]
        %v2676 = vld [vmem:[%s2419 + $0x538] sm:$0xff]
        %v2677 = vld [vmem:[%s2419 + $0x540] sm:$0xff]
        %v2678 = vld [vmem:[%s2419 + $0x548] sm:$0xff]
        %v2679 = vld [vmem:[%s2419 + $0x550] sm:$0xff]
        %v2680 = vld [vmem:[%s2419 + $0x558] sm:$0xff]
        %v2681 = vld [vmem:[%s2419 + $0x560] sm:$0xff]
        %v2682 = vld [vmem:[%s2419 + $0x568] sm:$0xff]
        %v2683 = vld [vmem:[%s2419 + $0x570] sm:$0xff]
        %v2684 = vld [vmem:[%s2419 + $0x578] sm:$0xff]
        %v2685 = vld [vmem:[%s2419 + $0x580] sm:$0xff]
        %v2686 = vld [vmem:[%s2419 + $0x588] sm:$0xff]
        %v2687 = vld [vmem:[%s2419 + $0x590] sm:$0xff]
        %v2688 = vld [vmem:[%s2419 + $0x598] sm:$0xff]
        %v2689 = vld [vmem:[%s2419 + $0x5a0] sm:$0xff]
        %v2690 = vld [vmem:[%s2419 + $0x5a8] sm:$0xff]
        %v2691 = vld [vmem:[%s2419 + $0x5b0] sm:$0xff]
        %v2692 = vld [vmem:[%s2419 + $0x5b8] sm:$0xff]
        %v2693 = vld [vmem:[%s2419 + $0x5c0] sm:$0xff]
        %v2694 = vld [vmem:[%s2419 + $0x5c8] sm:$0xff]
        %v2695 = vld [vmem:[%s2419 + $0x5d0] sm:$0xff]
        %v2696 = vld [vmem:[%s2419 + $0x5d8] sm:$0xff]
        %v2697 = vld [vmem:[%s2419 + $0x5e0] sm:$0xff]
        %v2698 = vld [vmem:[%s2419 + $0x5e8] sm:$0xff]
        %v2699 = vld [vmem:[%s2419 + $0x5f0] sm:$0xff]
        %v2700 = vld [vmem:[%s2419 + $0x5f8] sm:$0xff]
        %v2701 = vld [vmem:[%s2419 + $0x600] sm:$0xff]
        %v2702 = vld [vmem:[%s2419 + $0x608] sm:$0xff]
        %v2703 = vld [vmem:[%s2419 + $0x610] sm:$0xff]
        %v2704 = vld [vmem:[%s2419 + $0x618] sm:$0xff]
        %v2705 = vld [vmem:[%s2419 + $0x620] sm:$0xff]
        %v2706 = vld [vmem:[%s2419 + $0x628] sm:$0xff]
        %v2707 = vld [vmem:[%s2419 + $0x630] sm:$0xff]
        %v2708 = vld [vmem:[%s2419 + $0x638] sm:$0xff]
        %v2709 = vld [vmem:[%s2419 + $0x640] sm:$0xff]
        %v2710 = vld [vmem:[%s2419 + $0x648] sm:$0xff]
        %v2711 = vld [vmem:[%s2419 + $0x650] sm:$0xff]
        %v2712 = vld [vmem:[%s2419 + $0x658] sm:$0xff]
        %v2713 = vld [vmem:[%s2419 + $0x660] sm:$0xff]
        %v2714 = vld [vmem:[%s2419 + $0x668] sm:$0xff]
        %v2715 = vld [vmem:[%s2419 + $0x670] sm:$0xff]
        %v2716 = vld [vmem:[%s2419 + $0x678] sm:$0xff]
        %v2717 = vld [vmem:[%s2419 + $0x680] sm:$0xff]
        %v2718 = vld [vmem:[%s2419 + $0x688] sm:$0xff]
        %v2719 = vld [vmem:[%s2419 + $0x690] sm:$0xff]
        %v2720 = vld [vmem:[%s2419 + $0x698] sm:$0xff]
        %v2721 = vld [vmem:[%s2419 + $0x6a0] sm:$0xff]
        %v2722 = vld [vmem:[%s2419 + $0x6a8] sm:$0xff]
        %v2723 = vld [vmem:[%s2419 + $0x6b0] sm:$0xff]
        %v2724 = vld [vmem:[%s2419 + $0x6b8] sm:$0xff]
        %v2725 = vld [vmem:[%s2419 + $0x6c0] sm:$0xff]
        %v2726 = vld [vmem:[%s2419 + $0x6c8] sm:$0xff]
        %v2727 = vld [vmem:[%s2419 + $0x6d0] sm:$0xff]
        %v2728 = vld [vmem:[%s2419 + $0x6d8] sm:$0xff]
        %v2729 = vld [vmem:[%s2419 + $0x6e0] sm:$0xff]
        %v2730 = vld [vmem:[%s2419 + $0x6e8] sm:$0xff]
        %v2731 = vld [vmem:[%s2419 + $0x6f0] sm:$0xff]
        %v2732 = vld [vmem:[%s2419 + $0x6f8] sm:$0xff]
        %v2733 = vld [vmem:[%s2419 + $0x700] sm:$0xff]
        %v2734 = vld [vmem:[%s2419 + $0x708] sm:$0xff]
        %v2735 = vld [vmem:[%s2419 + $0x710] sm:$0xff]
        %v2736 = vld [vmem:[%s2419 + $0x718] sm:$0xff]
        %v2737 = vld [vmem:[%s2419 + $0x720] sm:$0xff]
        %v2738 = vld [vmem:[%s2419 + $0x728] sm:$0xff]
        %v2739 = vld [vmem:[%s2419 + $0x730] sm:$0xff]
        %v2740 = vld [vmem:[%s2419 + $0x738] sm:$0xff]
        %v2741 = vld [vmem:[%s2419 + $0x740] sm:$0xff]
        %v2742 = vld [vmem:[%s2419 + $0x748] sm:$0xff]
        %v2743 = vld [vmem:[%s2419 + $0x750] sm:$0xff]
        %v2744 = vld [vmem:[%s2419 + $0x758] sm:$0xff]
        %v2745 = vld [vmem:[%s2419 + $0x760] sm:$0xff]
        %v2746 = vld [vmem:[%s2419 + $0x768] sm:$0xff]
        %v2747 = vld [vmem:[%s2419 + $0x770] sm:$0xff]
        %v2748 = vld [vmem:[%s2419 + $0x778] sm:$0xff]
        %v2749 = vld [vmem:[%s2419 + $0x780] sm:$0xff]
        %v2750 = vld [vmem:[%s2419 + $0x788] sm:$0xff]
        %v2751 = vld [vmem:[%s2419 + $0x790] sm:$0xff]
        %v2752 = vld [vmem:[%s2419 + $0x798] sm:$0xff]
        %v2753 = vld [vmem:[%s2419 + $0x7a0] sm:$0xff]
        %v2754 = vld [vmem:[%s2419 + $0x7a8] sm:$0xff]
        %v2755 = vld [vmem:[%s2419 + $0x7b0] sm:$0xff]
        %v2756 = vld [vmem:[%s2419 + $0x7b8] sm:$0xff]
        %v2757 = vld [vmem:[%s2419 + $0x7c0] sm:$0xff]
        %v2758 = vld [vmem:[%s2419 + $0x7c8] sm:$0xff]
        %v2759 = vld [vmem:[%s2419 + $0x7d0] sm:$0xff]
        %v2760 = vld [vmem:[%s2419 + $0x7d8] sm:$0xff]
        %v2761 = vld [vmem:[%s2419 + $0x7e0] sm:$0xff]
        %v2762 = vld [vmem:[%s2419 + $0x7e8] sm:$0xff]
        %v2763 = vld [vmem:[%s2419 + $0x7f0] sm:$0xff]
        %v2764 = vld [vmem:[%s2419 + $0x7f8] sm:$0xff]
        %v2789 = vunpack.c.l.b16 %v2485
        %v2790 = vunpack.c.h.b16 %v2485
        %v2791 = vunpack.c.l.b16 %v2486
        %v2792 = vunpack.c.h.b16 %v2486
        %v2793 = vunpack.c.l.b16 %v2487
        %v2794 = vunpack.c.h.b16 %v2487
        %v2795 = vunpack.c.l.b16 %v2488
        %v2796 = vunpack.c.h.b16 %v2488
        %v2797 = vunpack.c.l.b16 %v2489
        %v2798 = vunpack.c.h.b16 %v2489
        %v2799 = vunpack.c.l.b16 %v2490
        %v2800 = vunpack.c.h.b16 %v2490
        %v2801 = vunpack.c.l.b16 %v2491
        %v2802 = vunpack.c.h.b16 %v2491
        %v2803 = vunpack.c.l.b16 %v2492
        %v2804 = vunpack.c.h.b16 %v2492
        %v2805 = vunpack.c.l.b16 %v2493
        %v2806 = vunpack.c.h.b16 %v2493
        %v2807 = vunpack.c.l.b16 %v2494
        %v2808 = vunpack.c.h.b16 %v2494
        %v2809 = vunpack.c.l.b16 %v2495
        %v2810 = vunpack.c.h.b16 %v2495
        %v2811 = vunpack.c.l.b16 %v2496
        %v2812 = vunpack.c.h.b16 %v2496
        %v2813 = vunpack.c.l.b16 %v2497
        %v2814 = vunpack.c.h.b16 %v2497
        %v2815 = vunpack.c.l.b16 %v2498
        %v2816 = vunpack.c.h.b16 %v2498
        %v2817 = vunpack.c.l.b16 %v2499
        %v2818 = vunpack.c.h.b16 %v2499
        %v2819 = vunpack.c.l.b16 %v2500
        %v2820 = vunpack.c.h.b16 %v2500
        %v2821 = vunpack.c.l.b16 %v2501
        %v2822 = vunpack.c.h.b16 %v2501
        %v2823 = vunpack.c.l.b16 %v2502
        %v2824 = vunpack.c.h.b16 %v2502
        %v2825 = vunpack.c.l.b16 %v2503
        %v2826 = vunpack.c.h.b16 %v2503
        %v2827 = vunpack.c.l.b16 %v2504
        %v2828 = vunpack.c.h.b16 %v2504
        %v2829 = vunpack.c.l.b16 %v2505
        %v2830 = vunpack.c.h.b16 %v2505
        %v2831 = vunpack.c.l.b16 %v2506
        %v2832 = vunpack.c.h.b16 %v2506
        %v2833 = vunpack.c.l.b16 %v2507
        %v2834 = vunpack.c.h.b16 %v2507
        %v2835 = vunpack.c.l.b16 %v2508
        %v2836 = vunpack.c.h.b16 %v2508
        %v2837 = vpack.c.b16 %v2805, %v2789
        %v2838 = vpack.c.b16 %v2806, %v2790
        %v2839 = vpack.c.b16 %v2807, %v2791
        %v2840 = vpack.c.b16 %v2808, %v2792
        %v2841 = vpack.c.b16 %v2809, %v2793
        %v2842 = vpack.c.b16 %v2810, %v2794
        %v2843 = vpack.c.b16 %v2811, %v2795
        %v2844 = vpack.c.b16 %v2812, %v2796
        %v2845 = vpack.c.b16 %v2813, %v2797
        %v2846 = vpack.c.b16 %v2814, %v2798
        %v2847 = vpack.c.b16 %v2815, %v2799
        %v2848 = vpack.c.b16 %v2816, %v2800
        %v2849 = vpack.c.b16 %v2817, %v2801
        %v2850 = vpack.c.b16 %v2818, %v2802
        %v2851 = vpack.c.b16 %v2819, %v2803
        %v2852 = vpack.c.b16 %v2820, %v2804
        %v2853 = vpack.c.b16 %v2821, %v2821
        %v2854 = vpack.c.b16 %v2822, %v2822
        %v2855 = vpack.c.b16 %v2823, %v2823
        %v2856 = vpack.c.b16 %v2824, %v2824
        %v2857 = vpack.c.b16 %v2825, %v2825
        %v2858 = vpack.c.b16 %v2826, %v2826
        %v2859 = vpack.c.b16 %v2827, %v2827
        %v2860 = vpack.c.b16 %v2828, %v2828
        %v2861 = vpack.c.b16 %v2829, %v2829
        %v2862 = vpack.c.b16 %v2830, %v2830
        %v2863 = vpack.c.b16 %v2831, %v2831
        %v2864 = vpack.c.b16 %v2832, %v2832
        %v2865 = vpack.c.b16 %v2833, %v2833
        %v2866 = vpack.c.b16 %v2834, %v2834
        %v2867 = vpack.c.b16 %v2835, %v2835
        %v2868 = vpack.c.b16 %v2836, %v2836
        %v3157 = vunpack.c.l.b16 %v2509
        %v3158 = vunpack.c.h.b16 %v2509
        %v3159 = vunpack.c.l.b16 %v2510
        %v3160 = vunpack.c.h.b16 %v2510
        %v3161 = vunpack.c.l.b16 %v2511
        %v3162 = vunpack.c.h.b16 %v2511
        %v3163 = vunpack.c.l.b16 %v2512
        %v3164 = vunpack.c.h.b16 %v2512
        %v3165 = vunpack.c.l.b16 %v2513
        %v3166 = vunpack.c.h.b16 %v2513
        %v3167 = vunpack.c.l.b16 %v2514
        %v3168 = vunpack.c.h.b16 %v2514
        %v3169 = vunpack.c.l.b16 %v2515
        %v3170 = vunpack.c.h.b16 %v2515
        %v3171 = vunpack.c.l.b16 %v2516
        %v3172 = vunpack.c.h.b16 %v2516
        %v3173 = vunpack.c.l.b16 %v2517
        %v3174 = vunpack.c.h.b16 %v2517
        %v3175 = vunpack.c.l.b16 %v2518
        %v3176 = vunpack.c.h.b16 %v2518
        %v3177 = vunpack.c.l.b16 %v2519
        %v3178 = vunpack.c.h.b16 %v2519
        %v3179 = vunpack.c.l.b16 %v2520
        %v3180 = vunpack.c.h.b16 %v2520
        %v3181 = vunpack.c.l.b16 %v2521
        %v3182 = vunpack.c.h.b16 %v2521
        %v3183 = vunpack.c.l.b16 %v2522
        %v3184 = vunpack.c.h.b16 %v2522
        %v3185 = vunpack.c.l.b16 %v2523
        %v3186 = vunpack.c.h.b16 %v2523
        %v3187 = vunpack.c.l.b16 %v2524
        %v3188 = vunpack.c.h.b16 %v2524
        %v3189 = vunpack.c.l.b16 %v2525
        %v3190 = vunpack.c.h.b16 %v2525
        %v3191 = vunpack.c.l.b16 %v2526
        %v3192 = vunpack.c.h.b16 %v2526
        %v3193 = vunpack.c.l.b16 %v2527
        %v3194 = vunpack.c.h.b16 %v2527
        %v3195 = vunpack.c.l.b16 %v2528
        %v3196 = vunpack.c.h.b16 %v2528
        %v3197 = vunpack.c.l.b16 %v2529
        %v3198 = vunpack.c.h.b16 %v2529
        %v3199 = vunpack.c.l.b16 %v2530
        %v3200 = vunpack.c.h.b16 %v2530
        %v3201 = vunpack.c.l.b16 %v2531
        %v3202 = vunpack.c.h.b16 %v2531
        %v3203 = vunpack.c.l.b16 %v2532
        %v3204 = vunpack.c.h.b16 %v2532
        %v3205 = vunpack.c.l.b16 %v2533
        %v3206 = vunpack.c.h.b16 %v2533
        %v3207 = vunpack.c.l.b16 %v2534
        %v3208 = vunpack.c.h.b16 %v2534
        %v3209 = vunpack.c.l.b16 %v2535
        %v3210 = vunpack.c.h.b16 %v2535
        %v3211 = vunpack.c.l.b16 %v2536
        %v3212 = vunpack.c.h.b16 %v2536
        %v3213 = vunpack.c.l.b16 %v2537
        %v3214 = vunpack.c.h.b16 %v2537
        %v3215 = vunpack.c.l.b16 %v2538
        %v3216 = vunpack.c.h.b16 %v2538
        %v3217 = vunpack.c.l.b16 %v2539
        %v3218 = vunpack.c.h.b16 %v2539
        %v3219 = vunpack.c.l.b16 %v2540
        %v3220 = vunpack.c.h.b16 %v2540
        %v3221 = vunpack.c.l.b16 %v2541
        %v3222 = vunpack.c.h.b16 %v2541
        %v3223 = vunpack.c.l.b16 %v2542
        %v3224 = vunpack.c.h.b16 %v2542
        %v3225 = vunpack.c.l.b16 %v2543
        %v3226 = vunpack.c.h.b16 %v2543
        %v3227 = vunpack.c.l.b16 %v2544
        %v3228 = vunpack.c.h.b16 %v2544
        %v3229 = vunpack.c.l.b16 %v2545
        %v3230 = vunpack.c.h.b16 %v2545
        %v3231 = vunpack.c.l.b16 %v2546
        %v3232 = vunpack.c.h.b16 %v2546
        %v3233 = vunpack.c.l.b16 %v2547
        %v3234 = vunpack.c.h.b16 %v2547
        %v3235 = vunpack.c.l.b16 %v2548
        %v3236 = vunpack.c.h.b16 %v2548
        %v3237 = vunpack.c.l.b16 %v2549
        %v3238 = vunpack.c.h.b16 %v2549
        %v3239 = vunpack.c.l.b16 %v2550
        %v3240 = vunpack.c.h.b16 %v2550
        %v3241 = vunpack.c.l.b16 %v2551
        %v3242 = vunpack.c.h.b16 %v2551
        %v3243 = vunpack.c.l.b16 %v2552
        %v3244 = vunpack.c.h.b16 %v2552
        %v3245 = vunpack.c.l.b16 %v2553
        %v3246 = vunpack.c.h.b16 %v2553
        %v3247 = vunpack.c.l.b16 %v2554
        %v3248 = vunpack.c.h.b16 %v2554
        %v3249 = vunpack.c.l.b16 %v2555
        %v3250 = vunpack.c.h.b16 %v2555
        %v3251 = vunpack.c.l.b16 %v2556
        %v3252 = vunpack.c.h.b16 %v2556
        %v3253 = vunpack.c.l.b16 %v2557
        %v3254 = vunpack.c.h.b16 %v2557
        %v3255 = vunpack.c.l.b16 %v2558
        %v3256 = vunpack.c.h.b16 %v2558
        %v3257 = vunpack.c.l.b16 %v2559
        %v3258 = vunpack.c.h.b16 %v2559
        %v3259 = vunpack.c.l.b16 %v2560
        %v3260 = vunpack.c.h.b16 %v2560
        %v3261 = vunpack.c.l.b16 %v2561
        %v3262 = vunpack.c.h.b16 %v2561
        %v3263 = vunpack.c.l.b16 %v2562
        %v3264 = vunpack.c.h.b16 %v2562
        %v3265 = vunpack.c.l.b16 %v2563
        %v3266 = vunpack.c.h.b16 %v2563
        %v3267 = vunpack.c.l.b16 %v2564
        %v3268 = vunpack.c.h.b16 %v2564
        %v3269 = vunpack.c.l.b16 %v2565
        %v3270 = vunpack.c.h.b16 %v2565
        %v3271 = vunpack.c.l.b16 %v2566
        %v3272 = vunpack.c.h.b16 %v2566
        %v3273 = vunpack.c.l.b16 %v2567
        %v3274 = vunpack.c.h.b16 %v2567
        %v3275 = vunpack.c.l.b16 %v2568
        %v3276 = vunpack.c.h.b16 %v2568
        %v3277 = vunpack.c.l.b16 %v2569
        %v3278 = vunpack.c.h.b16 %v2569
        %v3279 = vunpack.c.l.b16 %v2570
        %v3280 = vunpack.c.h.b16 %v2570
        %v3281 = vunpack.c.l.b16 %v2571
        %v3282 = vunpack.c.h.b16 %v2571
        %v3283 = vunpack.c.l.b16 %v2572
        %v3284 = vunpack.c.h.b16 %v2572
        %v3285 = vunpack.c.l.b16 %v2573
        %v3286 = vunpack.c.h.b16 %v2573
        %v3287 = vunpack.c.l.b16 %v2574
        %v3288 = vunpack.c.h.b16 %v2574
        %v3289 = vunpack.c.l.b16 %v2575
        %v3290 = vunpack.c.h.b16 %v2575
        %v3291 = vunpack.c.l.b16 %v2576
        %v3292 = vunpack.c.h.b16 %v2576
        %v3293 = vunpack.c.l.b16 %v2577
        %v3294 = vunpack.c.h.b16 %v2577
        %v3295 = vunpack.c.l.b16 %v2578
        %v3296 = vunpack.c.h.b16 %v2578
        %v3297 = vunpack.c.l.b16 %v2579
        %v3298 = vunpack.c.h.b16 %v2579
        %v3299 = vunpack.c.l.b16 %v2580
        %v3300 = vunpack.c.h.b16 %v2580
        %v3301 = vunpack.c.l.b16 %v2581
        %v3302 = vunpack.c.h.b16 %v2581
        %v3303 = vunpack.c.l.b16 %v2582
        %v3304 = vunpack.c.h.b16 %v2582
        %v3305 = vunpack.c.l.b16 %v2583
        %v3306 = vunpack.c.h.b16 %v2583
        %v3307 = vunpack.c.l.b16 %v2584
        %v3308 = vunpack.c.h.b16 %v2584
        %v3309 = vunpack.c.l.b16 %v2585
        %v3310 = vunpack.c.h.b16 %v2585
        %v3311 = vunpack.c.l.b16 %v2586
        %v3312 = vunpack.c.h.b16 %v2586
        %v3313 = vunpack.c.l.b16 %v2587
        %v3314 = vunpack.c.h.b16 %v2587
        %v3315 = vunpack.c.l.b16 %v2588
        %v3316 = vunpack.c.h.b16 %v2588
        %v3317 = vunpack.c.l.b16 %v2589
        %v3318 = vunpack.c.h.b16 %v2589
        %v3319 = vunpack.c.l.b16 %v2590
        %v3320 = vunpack.c.h.b16 %v2590
        %v3321 = vunpack.c.l.b16 %v2591
        %v3322 = vunpack.c.h.b16 %v2591
        %v3323 = vunpack.c.l.b16 %v2592
        %v3324 = vunpack.c.h.b16 %v2592
        %v3325 = vunpack.c.l.b16 %v2593
        %v3326 = vunpack.c.h.b16 %v2593
        %v3327 = vunpack.c.l.b16 %v2594
        %v3328 = vunpack.c.h.b16 %v2594
        %v3329 = vunpack.c.l.b16 %v2595
        %v3330 = vunpack.c.h.b16 %v2595
        %v3331 = vunpack.c.l.b16 %v2596
        %v3332 = vunpack.c.h.b16 %v2596
        %v3333 = vunpack.c.l.b16 %v2597
        %v3334 = vunpack.c.h.b16 %v2597
        %v3335 = vunpack.c.l.b16 %v2598
        %v3336 = vunpack.c.h.b16 %v2598
        %v3337 = vunpack.c.l.b16 %v2599
        %v3338 = vunpack.c.h.b16 %v2599
        %v3339 = vunpack.c.l.b16 %v2600
        %v3340 = vunpack.c.h.b16 %v2600
        %v3341 = vunpack.c.l.b16 %v2601
        %v3342 = vunpack.c.h.b16 %v2601
        %v3343 = vunpack.c.l.b16 %v2602
        %v3344 = vunpack.c.h.b16 %v2602
        %v3345 = vunpack.c.l.b16 %v2603
        %v3346 = vunpack.c.h.b16 %v2603
        %v3347 = vunpack.c.l.b16 %v2604
        %v3348 = vunpack.c.h.b16 %v2604
        %v3349 = vunpack.c.l.b16 %v2605
        %v3350 = vunpack.c.h.b16 %v2605
        %v3351 = vunpack.c.l.b16 %v2606
        %v3352 = vunpack.c.h.b16 %v2606
        %v3353 = vunpack.c.l.b16 %v2607
        %v3354 = vunpack.c.h.b16 %v2607
        %v3355 = vunpack.c.l.b16 %v2608
        %v3356 = vunpack.c.h.b16 %v2608
        %v3357 = vunpack.c.l.b16 %v2609
        %v3358 = vunpack.c.h.b16 %v2609
        %v3359 = vunpack.c.l.b16 %v2610
        %v3360 = vunpack.c.h.b16 %v2610
        %v3361 = vunpack.c.l.b16 %v2611
        %v3362 = vunpack.c.h.b16 %v2611
        %v3363 = vunpack.c.l.b16 %v2612
        %v3364 = vunpack.c.h.b16 %v2612
        %v3365 = vunpack.c.l.b16 %v2613
        %v3366 = vunpack.c.h.b16 %v2613
        %v3367 = vunpack.c.l.b16 %v2614
        %v3368 = vunpack.c.h.b16 %v2614
        %v3369 = vunpack.c.l.b16 %v2615
        %v3370 = vunpack.c.h.b16 %v2615
        %v3371 = vunpack.c.l.b16 %v2616
        %v3372 = vunpack.c.h.b16 %v2616
        %v3373 = vunpack.c.l.b16 %v2617
        %v3374 = vunpack.c.h.b16 %v2617
        %v3375 = vunpack.c.l.b16 %v2618
        %v3376 = vunpack.c.h.b16 %v2618
        %v3377 = vunpack.c.l.b16 %v2619
        %v3378 = vunpack.c.h.b16 %v2619
        %v3379 = vunpack.c.l.b16 %v2620
        %v3380 = vunpack.c.h.b16 %v2620
        %v3381 = vunpack.c.l.b16 %v2621
        %v3382 = vunpack.c.h.b16 %v2621
        %v3383 = vunpack.c.l.b16 %v2622
        %v3384 = vunpack.c.h.b16 %v2622
        %v3385 = vunpack.c.l.b16 %v2623
        %v3386 = vunpack.c.h.b16 %v2623
        %v3387 = vunpack.c.l.b16 %v2624
        %v3388 = vunpack.c.h.b16 %v2624
        %v3389 = vunpack.c.l.b16 %v2625
        %v3390 = vunpack.c.h.b16 %v2625
        %v3391 = vunpack.c.l.b16 %v2626
        %v3392 = vunpack.c.h.b16 %v2626
        %v3393 = vunpack.c.l.b16 %v2627
        %v3394 = vunpack.c.h.b16 %v2627
        %v3395 = vunpack.c.l.b16 %v2628
        %v3396 = vunpack.c.h.b16 %v2628
        %v3397 = vunpack.c.l.b16 %v2629
        %v3398 = vunpack.c.h.b16 %v2629
        %v3399 = vunpack.c.l.b16 %v2630
        %v3400 = vunpack.c.h.b16 %v2630
        %v3401 = vunpack.c.l.b16 %v2631
        %v3402 = vunpack.c.h.b16 %v2631
        %v3403 = vunpack.c.l.b16 %v2632
        %v3404 = vunpack.c.h.b16 %v2632
        %v3405 = vunpack.c.l.b16 %v2633
        %v3406 = vunpack.c.h.b16 %v2633
        %v3407 = vunpack.c.l.b16 %v2634
        %v3408 = vunpack.c.h.b16 %v2634
        %v3409 = vunpack.c.l.b16 %v2635
        %v3410 = vunpack.c.h.b16 %v2635
        %v3411 = vunpack.c.l.b16 %v2636
        %v3412 = vunpack.c.h.b16 %v2636
        %v3413 = vunpack.c.l.b16 %v2637
        %v3414 = vunpack.c.h.b16 %v2637
        %v3415 = vunpack.c.l.b16 %v2638
        %v3416 = vunpack.c.h.b16 %v2638
        %v3417 = vunpack.c.l.b16 %v2639
        %v3418 = vunpack.c.h.b16 %v2639
        %v3419 = vunpack.c.l.b16 %v2640
        %v3420 = vunpack.c.h.b16 %v2640
        %v3421 = vunpack.c.l.b16 %v2641
        %v3422 = vunpack.c.h.b16 %v2641
        %v3423 = vunpack.c.l.b16 %v2642
        %v3424 = vunpack.c.h.b16 %v2642
        %v3425 = vunpack.c.l.b16 %v2643
        %v3426 = vunpack.c.h.b16 %v2643
        %v3427 = vunpack.c.l.b16 %v2644
        %v3428 = vunpack.c.h.b16 %v2644
        %v3429 = vunpack.c.l.b16 %v2645
        %v3430 = vunpack.c.h.b16 %v2645
        %v3431 = vunpack.c.l.b16 %v2646
        %v3432 = vunpack.c.h.b16 %v2646
        %v3433 = vunpack.c.l.b16 %v2647
        %v3434 = vunpack.c.h.b16 %v2647
        %v3435 = vunpack.c.l.b16 %v2648
        %v3436 = vunpack.c.h.b16 %v2648
        %v3437 = vunpack.c.l.b16 %v2649
        %v3438 = vunpack.c.h.b16 %v2649
        %v3439 = vunpack.c.l.b16 %v2650
        %v3440 = vunpack.c.h.b16 %v2650
        %v3441 = vunpack.c.l.b16 %v2651
        %v3442 = vunpack.c.h.b16 %v2651
        %v3443 = vunpack.c.l.b16 %v2652
        %v3444 = vunpack.c.h.b16 %v2652
        %v3445 = vunpack.c.l.b16 %v2653
        %v3446 = vunpack.c.h.b16 %v2653
        %v3447 = vunpack.c.l.b16 %v2654
        %v3448 = vunpack.c.h.b16 %v2654
        %v3449 = vunpack.c.l.b16 %v2655
        %v3450 = vunpack.c.h.b16 %v2655
        %v3451 = vunpack.c.l.b16 %v2656
        %v3452 = vunpack.c.h.b16 %v2656
        %v3453 = vunpack.c.l.b16 %v2657
        %v3454 = vunpack.c.h.b16 %v2657
        %v3455 = vunpack.c.l.b16 %v2658
        %v3456 = vunpack.c.h.b16 %v2658
        %v3457 = vunpack.c.l.b16 %v2659
        %v3458 = vunpack.c.h.b16 %v2659
        %v3459 = vunpack.c.l.b16 %v2660
        %v3460 = vunpack.c.h.b16 %v2660
        %v3461 = vunpack.c.l.b16 %v2661
        %v3462 = vunpack.c.h.b16 %v2661
        %v3463 = vunpack.c.l.b16 %v2662
        %v3464 = vunpack.c.h.b16 %v2662
        %v3465 = vunpack.c.l.b16 %v2663
        %v3466 = vunpack.c.h.b16 %v2663
        %v3467 = vunpack.c.l.b16 %v2664
        %v3468 = vunpack.c.h.b16 %v2664
        %v3469 = vunpack.c.l.b16 %v2665
        %v3470 = vunpack.c.h.b16 %v2665
        %v3471 = vunpack.c.l.b16 %v2666
        %v3472 = vunpack.c.h.b16 %v2666
        %v3473 = vunpack.c.l.b16 %v2667
        %v3474 = vunpack.c.h.b16 %v2667
        %v3475 = vunpack.c.l.b16 %v2668
        %v3476 = vunpack.c.h.b16 %v2668
        %v3477 = vunpack.c.l.b16 %v2669
        %v3478 = vunpack.c.h.b16 %v2669
        %v3479 = vunpack.c.l.b16 %v2670
        %v3480 = vunpack.c.h.b16 %v2670
        %v3481 = vunpack.c.l.b16 %v2671
        %v3482 = vunpack.c.h.b16 %v2671
        %v3483 = vunpack.c.l.b16 %v2672
        %v3484 = vunpack.c.h.b16 %v2672
        %v3485 = vunpack.c.l.b16 %v2673
        %v3486 = vunpack.c.h.b16 %v2673
        %v3487 = vunpack.c.l.b16 %v2674
        %v3488 = vunpack.c.h.b16 %v2674
        %v3489 = vunpack.c.l.b16 %v2675
        %v3490 = vunpack.c.h.b16 %v2675
        %v3491 = vunpack.c.l.b16 %v2676
        %v3492 = vunpack.c.h.b16 %v2676
        %v3493 = vunpack.c.l.b16 %v2677
        %v3494 = vunpack.c.h.b16 %v2677
        %v3495 = vunpack.c.l.b16 %v2678
        %v3496 = vunpack.c.h.b16 %v2678
        %v3497 = vunpack.c.l.b16 %v2679
        %v3498 = vunpack.c.h.b16 %v2679
        %v3499 = vunpack.c.l.b16 %v2680
        %v3500 = vunpack.c.h.b16 %v2680
        %v3501 = vunpack.c.l.b16 %v2681
        %v3502 = vunpack.c.h.b16 %v2681
        %v3503 = vunpack.c.l.b16 %v2682
        %v3504 = vunpack.c.h.b16 %v2682
        %v3505 = vunpack.c.l.b16 %v2683
        %v3506 = vunpack.c.h.b16 %v2683
        %v3507 = vunpack.c.l.b16 %v2684
        %v3508 = vunpack.c.h.b16 %v2684
        %v3509 = vunpack.c.l.b16 %v2685
        %v3510 = vunpack.c.h.b16 %v2685
        %v3511 = vunpack.c.l.b16 %v2686
        %v3512 = vunpack.c.h.b16 %v2686
        %v3513 = vunpack.c.l.b16 %v2687
        %v3514 = vunpack.c.h.b16 %v2687
        %v3515 = vunpack.c.l.b16 %v2688
        %v3516 = vunpack.c.h.b16 %v2688
        %v3517 = vunpack.c.l.b16 %v2689
        %v3518 = vunpack.c.h.b16 %v2689
        %v3519 = vunpack.c.l.b16 %v2690
        %v3520 = vunpack.c.h.b16 %v2690
        %v3521 = vunpack.c.l.b16 %v2691
        %v3522 = vunpack.c.h.b16 %v2691
        %v3523 = vunpack.c.l.b16 %v2692
        %v3524 = vunpack.c.h.b16 %v2692
        %v3525 = vunpack.c.l.b16 %v2693
        %v3526 = vunpack.c.h.b16 %v2693
        %v3527 = vunpack.c.l.b16 %v2694
        %v3528 = vunpack.c.h.b16 %v2694
        %v3529 = vunpack.c.l.b16 %v2695
        %v3530 = vunpack.c.h.b16 %v2695
        %v3531 = vunpack.c.l.b16 %v2696
        %v3532 = vunpack.c.h.b16 %v2696
        %v3533 = vunpack.c.l.b16 %v2697
        %v3534 = vunpack.c.h.b16 %v2697
        %v3535 = vunpack.c.l.b16 %v2698
        %v3536 = vunpack.c.h.b16 %v2698
        %v3537 = vunpack.c.l.b16 %v2699
        %v3538 = vunpack.c.h.b16 %v2699
        %v3539 = vunpack.c.l.b16 %v2700
        %v3540 = vunpack.c.h.b16 %v2700
        %v3541 = vunpack.c.l.b16 %v2701
        %v3542 = vunpack.c.h.b16 %v2701
        %v3543 = vunpack.c.l.b16 %v2702
        %v3544 = vunpack.c.h.b16 %v2702
        %v3545 = vunpack.c.l.b16 %v2703
        %v3546 = vunpack.c.h.b16 %v2703
        %v3547 = vunpack.c.l.b16 %v2704
        %v3548 = vunpack.c.h.b16 %v2704
        %v3549 = vunpack.c.l.b16 %v2705
        %v3550 = vunpack.c.h.b16 %v2705
        %v3551 = vunpack.c.l.b16 %v2706
        %v3552 = vunpack.c.h.b16 %v2706
        %v3553 = vunpack.c.l.b16 %v2707
        %v3554 = vunpack.c.h.b16 %v2707
        %v3555 = vunpack.c.l.b16 %v2708
        %v3556 = vunpack.c.h.b16 %v2708
        %v3557 = vunpack.c.l.b16 %v2709
        %v3558 = vunpack.c.h.b16 %v2709
        %v3559 = vunpack.c.l.b16 %v2710
        %v3560 = vunpack.c.h.b16 %v2710
        %v3561 = vunpack.c.l.b16 %v2711
        %v3562 = vunpack.c.h.b16 %v2711
        %v3563 = vunpack.c.l.b16 %v2712
        %v3564 = vunpack.c.h.b16 %v2712
        %v3565 = vunpack.c.l.b16 %v2713
        %v3566 = vunpack.c.h.b16 %v2713
        %v3567 = vunpack.c.l.b16 %v2714
        %v3568 = vunpack.c.h.b16 %v2714
        %v3569 = vunpack.c.l.b16 %v2715
        %v3570 = vunpack.c.h.b16 %v2715
        %v3571 = vunpack.c.l.b16 %v2716
        %v3572 = vunpack.c.h.b16 %v2716
        %v3573 = vunpack.c.l.b16 %v2717
        %v3574 = vunpack.c.h.b16 %v2717
        %v3575 = vunpack.c.l.b16 %v2718
        %v3576 = vunpack.c.h.b16 %v2718
        %v3577 = vunpack.c.l.b16 %v2719
        %v3578 = vunpack.c.h.b16 %v2719
        %v3579 = vunpack.c.l.b16 %v2720
        %v3580 = vunpack.c.h.b16 %v2720
        %v3581 = vunpack.c.l.b16 %v2721
        %v3582 = vunpack.c.h.b16 %v2721
        %v3583 = vunpack.c.l.b16 %v2722
        %v3584 = vunpack.c.h.b16 %v2722
        %v3585 = vunpack.c.l.b16 %v2723
        %v3586 = vunpack.c.h.b16 %v2723
        %v3587 = vunpack.c.l.b16 %v2724
        %v3588 = vunpack.c.h.b16 %v2724
        %v3589 = vunpack.c.l.b16 %v2725
        %v3590 = vunpack.c.h.b16 %v2725
        %v3591 = vunpack.c.l.b16 %v2726
        %v3592 = vunpack.c.h.b16 %v2726
        %v3593 = vunpack.c.l.b16 %v2727
        %v3594 = vunpack.c.h.b16 %v2727
        %v3595 = vunpack.c.l.b16 %v2728
        %v3596 = vunpack.c.h.b16 %v2728
        %v3597 = vunpack.c.l.b16 %v2729
        %v3598 = vunpack.c.h.b16 %v2729
        %v3599 = vunpack.c.l.b16 %v2730
        %v3600 = vunpack.c.h.b16 %v2730
        %v3601 = vunpack.c.l.b16 %v2731
        %v3602 = vunpack.c.h.b16 %v2731
        %v3603 = vunpack.c.l.b16 %v2732
        %v3604 = vunpack.c.h.b16 %v2732
        %v3605 = vunpack.c.l.b16 %v2733
        %v3606 = vunpack.c.h.b16 %v2733
        %v3607 = vunpack.c.l.b16 %v2734
        %v3608 = vunpack.c.h.b16 %v2734
        %v3609 = vunpack.c.l.b16 %v2735
        %v3610 = vunpack.c.h.b16 %v2735
        %v3611 = vunpack.c.l.b16 %v2736
        %v3612 = vunpack.c.h.b16 %v2736
        %v3613 = vunpack.c.l.b16 %v2737
        %v3614 = vunpack.c.h.b16 %v2737
        %v3615 = vunpack.c.l.b16 %v2738
        %v3616 = vunpack.c.h.b16 %v2738
        %v3617 = vunpack.c.l.b16 %v2739
        %v3618 = vunpack.c.h.b16 %v2739
        %v3619 = vunpack.c.l.b16 %v2740
        %v3620 = vunpack.c.h.b16 %v2740
        %v3621 = vunpack.c.l.b16 %v2741
        %v3622 = vunpack.c.h.b16 %v2741
        %v3623 = vunpack.c.l.b16 %v2742
        %v3624 = vunpack.c.h.b16 %v2742
        %v3625 = vunpack.c.l.b16 %v2743
        %v3626 = vunpack.c.h.b16 %v2743
        %v3627 = vunpack.c.l.b16 %v2744
        %v3628 = vunpack.c.h.b16 %v2744
        %v3629 = vunpack.c.l.b16 %v2745
        %v3630 = vunpack.c.h.b16 %v2745
        %v3631 = vunpack.c.l.b16 %v2746
        %v3632 = vunpack.c.h.b16 %v2746
        %v3633 = vunpack.c.l.b16 %v2747
        %v3634 = vunpack.c.h.b16 %v2747
        %v3635 = vunpack.c.l.b16 %v2748
        %v3636 = vunpack.c.h.b16 %v2748
        %v3637 = vunpack.c.l.b16 %v2749
        %v3638 = vunpack.c.h.b16 %v2749
        %v3639 = vunpack.c.l.b16 %v2750
        %v3640 = vunpack.c.h.b16 %v2750
        %v3641 = vunpack.c.l.b16 %v2751
        %v3642 = vunpack.c.h.b16 %v2751
        %v3643 = vunpack.c.l.b16 %v2752
        %v3644 = vunpack.c.h.b16 %v2752
        %v3645 = vunpack.c.l.b16 %v2753
        %v3646 = vunpack.c.h.b16 %v2753
        %v3647 = vunpack.c.l.b16 %v2754
        %v3648 = vunpack.c.h.b16 %v2754
        %v3649 = vunpack.c.l.b16 %v2755
        %v3650 = vunpack.c.h.b16 %v2755
        %v3651 = vunpack.c.l.b16 %v2756
        %v3652 = vunpack.c.h.b16 %v2756
        %v3653 = vunpack.c.l.b16 %v2757
        %v3654 = vunpack.c.h.b16 %v2757
        %v3655 = vunpack.c.l.b16 %v2758
        %v3656 = vunpack.c.h.b16 %v2758
        %v3657 = vunpack.c.l.b16 %v2759
        %v3658 = vunpack.c.h.b16 %v2759
        %v3659 = vunpack.c.l.b16 %v2760
        %v3660 = vunpack.c.h.b16 %v2760
        %v3661 = vunpack.c.l.b16 %v2761
        %v3662 = vunpack.c.h.b16 %v2761
        %v3663 = vunpack.c.l.b16 %v2762
        %v3664 = vunpack.c.h.b16 %v2762
        %v3665 = vunpack.c.l.b16 %v2763
        %v3666 = vunpack.c.h.b16 %v2763
        %v3667 = vunpack.c.l.b16 %v2764
        %v3668 = vunpack.c.h.b16 %v2764
        %v3669 = vpack.c.b16 %v3159, %v3157
        %v3670 = vpack.c.b16 %v3160, %v3158
        %v3671 = vpack.c.b16 %v3163, %v3161
        %v3672 = vpack.c.b16 %v3164, %v3162
        %v3673 = vpack.c.b16 %v3167, %v3165
        %v3674 = vpack.c.b16 %v3168, %v3166
        %v3675 = vpack.c.b16 %v3171, %v3169
        %v3676 = vpack.c.b16 %v3172, %v3170
        %v3677 = vpack.c.b16 %v3175, %v3173
        %v3678 = vpack.c.b16 %v3176, %v3174
        %v3679 = vpack.c.b16 %v3179, %v3177
        %v3680 = vpack.c.b16 %v3180, %v3178
        %v3681 = vpack.c.b16 %v3183, %v3181
        %v3682 = vpack.c.b16 %v3184, %v3182
        %v3683 = vpack.c.b16 %v3187, %v3185
        %v3684 = vpack.c.b16 %v3188, %v3186
        %v3685 = vpack.c.b16 %v3191, %v3189
        %v3686 = vpack.c.b16 %v3192, %v3190
        %v3687 = vpack.c.b16 %v3195, %v3193
        %v3688 = vpack.c.b16 %v3196, %v3194
        %v3689 = vpack.c.b16 %v3199, %v3197
        %v3690 = vpack.c.b16 %v3200, %v3198
        %v3691 = vpack.c.b16 %v3203, %v3201
        %v3692 = vpack.c.b16 %v3204, %v3202
        %v3693 = vpack.c.b16 %v3207, %v3205
        %v3694 = vpack.c.b16 %v3208, %v3206
        %v3695 = vpack.c.b16 %v3211, %v3209
        %v3696 = vpack.c.b16 %v3212, %v3210
        %v3697 = vpack.c.b16 %v3215, %v3213
        %v3698 = vpack.c.b16 %v3216, %v3214
        %v3699 = vpack.c.b16 %v3219, %v3217
        %v3700 = vpack.c.b16 %v3220, %v3218
        %v3701 = vpack.c.b16 %v3223, %v3221
        %v3702 = vpack.c.b16 %v3224, %v3222
        %v3703 = vpack.c.b16 %v3227, %v3225
        %v3704 = vpack.c.b16 %v3228, %v3226
        %v3705 = vpack.c.b16 %v3231, %v3229
        %v3706 = vpack.c.b16 %v3232, %v3230
        %v3707 = vpack.c.b16 %v3235, %v3233
        %v3708 = vpack.c.b16 %v3236, %v3234
        %v3709 = vpack.c.b16 %v3239, %v3237
        %v3710 = vpack.c.b16 %v3240, %v3238
        %v3711 = vpack.c.b16 %v3243, %v3241
        %v3712 = vpack.c.b16 %v3244, %v3242
        %v3713 = vpack.c.b16 %v3247, %v3245
        %v3714 = vpack.c.b16 %v3248, %v3246
        %v3715 = vpack.c.b16 %v3251, %v3249
        %v3716 = vpack.c.b16 %v3252, %v3250
        %v3717 = vpack.c.b16 %v3255, %v3253
        %v3718 = vpack.c.b16 %v3256, %v3254
        %v3719 = vpack.c.b16 %v3259, %v3257
        %v3720 = vpack.c.b16 %v3260, %v3258
        %v3721 = vpack.c.b16 %v3263, %v3261
        %v3722 = vpack.c.b16 %v3264, %v3262
        %v3723 = vpack.c.b16 %v3267, %v3265
        %v3724 = vpack.c.b16 %v3268, %v3266
        %v3725 = vpack.c.b16 %v3271, %v3269
        %v3726 = vpack.c.b16 %v3272, %v3270
        %v3727 = vpack.c.b16 %v3275, %v3273
        %v3728 = vpack.c.b16 %v3276, %v3274
        %v3729 = vpack.c.b16 %v3279, %v3277
        %v3730 = vpack.c.b16 %v3280, %v3278
        %v3731 = vpack.c.b16 %v3283, %v3281
        %v3732 = vpack.c.b16 %v3284, %v3282
        %v3733 = vpack.c.b16 %v3287, %v3285
        %v3734 = vpack.c.b16 %v3288, %v3286
        %v3735 = vpack.c.b16 %v3291, %v3289
        %v3736 = vpack.c.b16 %v3292, %v3290
        %v3737 = vpack.c.b16 %v3295, %v3293
        %v3738 = vpack.c.b16 %v3296, %v3294
        %v3739 = vpack.c.b16 %v3299, %v3297
        %v3740 = vpack.c.b16 %v3300, %v3298
        %v3741 = vpack.c.b16 %v3303, %v3301
        %v3742 = vpack.c.b16 %v3304, %v3302
        %v3743 = vpack.c.b16 %v3307, %v3305
        %v3744 = vpack.c.b16 %v3308, %v3306
        %v3745 = vpack.c.b16 %v3311, %v3309
        %v3746 = vpack.c.b16 %v3312, %v3310
        %v3747 = vpack.c.b16 %v3315, %v3313
        %v3748 = vpack.c.b16 %v3316, %v3314
        %v3749 = vpack.c.b16 %v3319, %v3317
        %v3750 = vpack.c.b16 %v3320, %v3318
        %v3751 = vpack.c.b16 %v3323, %v3321
        %v3752 = vpack.c.b16 %v3324, %v3322
        %v3753 = vpack.c.b16 %v3327, %v3325
        %v3754 = vpack.c.b16 %v3328, %v3326
        %v3755 = vpack.c.b16 %v3331, %v3329
        %v3756 = vpack.c.b16 %v3332, %v3330
        %v3757 = vpack.c.b16 %v3335, %v3333
        %v3758 = vpack.c.b16 %v3336, %v3334
        %v3759 = vpack.c.b16 %v3339, %v3337
        %v3760 = vpack.c.b16 %v3340, %v3338
        %v3761 = vpack.c.b16 %v3343, %v3341
        %v3762 = vpack.c.b16 %v3344, %v3342
        %v3763 = vpack.c.b16 %v3347, %v3345
        %v3764 = vpack.c.b16 %v3348, %v3346
        %v3765 = vpack.c.b16 %v3351, %v3349
        %v3766 = vpack.c.b16 %v3352, %v3350
        %v3767 = vpack.c.b16 %v3355, %v3353
        %v3768 = vpack.c.b16 %v3356, %v3354
        %v3769 = vpack.c.b16 %v3359, %v3357
        %v3770 = vpack.c.b16 %v3360, %v3358
        %v3771 = vpack.c.b16 %v3363, %v3361
        %v3772 = vpack.c.b16 %v3364, %v3362
        %v3773 = vpack.c.b16 %v3367, %v3365
        %v3774 = vpack.c.b16 %v3368, %v3366
        %v3775 = vpack.c.b16 %v3371, %v3369
        %v3776 = vpack.c.b16 %v3372, %v3370
        %v3777 = vpack.c.b16 %v3375, %v3373
        %v3778 = vpack.c.b16 %v3376, %v3374
        %v3779 = vpack.c.b16 %v3379, %v3377
        %v3780 = vpack.c.b16 %v3380, %v3378
        %v3781 = vpack.c.b16 %v3383, %v3381
        %v3782 = vpack.c.b16 %v3384, %v3382
        %v3783 = vpack.c.b16 %v3387, %v3385
        %v3784 = vpack.c.b16 %v3388, %v3386
        %v3785 = vpack.c.b16 %v3391, %v3389
        %v3786 = vpack.c.b16 %v3392, %v3390
        %v3787 = vpack.c.b16 %v3395, %v3393
        %v3788 = vpack.c.b16 %v3396, %v3394
        %v3789 = vpack.c.b16 %v3399, %v3397
        %v3790 = vpack.c.b16 %v3400, %v3398
        %v3791 = vpack.c.b16 %v3403, %v3401
        %v3792 = vpack.c.b16 %v3404, %v3402
        %v3793 = vpack.c.b16 %v3407, %v3405
        %v3794 = vpack.c.b16 %v3408, %v3406
        %v3795 = vpack.c.b16 %v3411, %v3409
        %v3796 = vpack.c.b16 %v3412, %v3410
        %v3797 = vpack.c.b16 %v3415, %v3413
        %v3798 = vpack.c.b16 %v3416, %v3414
        %v3799 = vpack.c.b16 %v3419, %v3417
        %v3800 = vpack.c.b16 %v3420, %v3418
        %v3801 = vpack.c.b16 %v3423, %v3421
        %v3802 = vpack.c.b16 %v3424, %v3422
        %v3803 = vpack.c.b16 %v3427, %v3425
        %v3804 = vpack.c.b16 %v3428, %v3426
        %v3805 = vpack.c.b16 %v3431, %v3429
        %v3806 = vpack.c.b16 %v3432, %v3430
        %v3807 = vpack.c.b16 %v3435, %v3433
        %v3808 = vpack.c.b16 %v3436, %v3434
        %v3809 = vpack.c.b16 %v3439, %v3437
        %v3810 = vpack.c.b16 %v3440, %v3438
        %v3811 = vpack.c.b16 %v3443, %v3441
        %v3812 = vpack.c.b16 %v3444, %v3442
        %v3813 = vpack.c.b16 %v3447, %v3445
        %v3814 = vpack.c.b16 %v3448, %v3446
        %v3815 = vpack.c.b16 %v3451, %v3449
        %v3816 = vpack.c.b16 %v3452, %v3450
        %v3817 = vpack.c.b16 %v3455, %v3453
        %v3818 = vpack.c.b16 %v3456, %v3454
        %v3819 = vpack.c.b16 %v3459, %v3457
        %v3820 = vpack.c.b16 %v3460, %v3458
        %v3821 = vpack.c.b16 %v3463, %v3461
        %v3822 = vpack.c.b16 %v3464, %v3462
        %v3823 = vpack.c.b16 %v3467, %v3465
        %v3824 = vpack.c.b16 %v3468, %v3466
        %v3825 = vpack.c.b16 %v3471, %v3469
        %v3826 = vpack.c.b16 %v3472, %v3470
        %v3827 = vpack.c.b16 %v3475, %v3473
        %v3828 = vpack.c.b16 %v3476, %v3474
        %v3829 = vpack.c.b16 %v3479, %v3477
        %v3830 = vpack.c.b16 %v3480, %v3478
        %v3831 = vpack.c.b16 %v3483, %v3481
        %v3832 = vpack.c.b16 %v3484, %v3482
        %v3833 = vpack.c.b16 %v3487, %v3485
        %v3834 = vpack.c.b16 %v3488, %v3486
        %v3835 = vpack.c.b16 %v3491, %v3489
        %v3836 = vpack.c.b16 %v3492, %v3490
        %v3837 = vpack.c.b16 %v3495, %v3493
        %v3838 = vpack.c.b16 %v3496, %v3494
        %v3839 = vpack.c.b16 %v3499, %v3497
        %v3840 = vpack.c.b16 %v3500, %v3498
        %v3841 = vpack.c.b16 %v3503, %v3501
        %v3842 = vpack.c.b16 %v3504, %v3502
        %v3843 = vpack.c.b16 %v3507, %v3505
        %v3844 = vpack.c.b16 %v3508, %v3506
        %v3845 = vpack.c.b16 %v3511, %v3509
        %v3846 = vpack.c.b16 %v3512, %v3510
        %v3847 = vpack.c.b16 %v3515, %v3513
        %v3848 = vpack.c.b16 %v3516, %v3514
        %v3849 = vpack.c.b16 %v3519, %v3517
        %v3850 = vpack.c.b16 %v3520, %v3518
        %v3851 = vpack.c.b16 %v3523, %v3521
        %v3852 = vpack.c.b16 %v3524, %v3522
        %v3853 = vpack.c.b16 %v3527, %v3525
        %v3854 = vpack.c.b16 %v3528, %v3526
        %v3855 = vpack.c.b16 %v3531, %v3529
        %v3856 = vpack.c.b16 %v3532, %v3530
        %v3857 = vpack.c.b16 %v3535, %v3533
        %v3858 = vpack.c.b16 %v3536, %v3534
        %v3859 = vpack.c.b16 %v3539, %v3537
        %v3860 = vpack.c.b16 %v3540, %v3538
        %v3861 = vpack.c.b16 %v3543, %v3541
        %v3862 = vpack.c.b16 %v3544, %v3542
        %v3863 = vpack.c.b16 %v3547, %v3545
        %v3864 = vpack.c.b16 %v3548, %v3546
        %v3865 = vpack.c.b16 %v3551, %v3549
        %v3866 = vpack.c.b16 %v3552, %v3550
        %v3867 = vpack.c.b16 %v3555, %v3553
        %v3868 = vpack.c.b16 %v3556, %v3554
        %v3869 = vpack.c.b16 %v3559, %v3557
        %v3870 = vpack.c.b16 %v3560, %v3558
        %v3871 = vpack.c.b16 %v3563, %v3561
        %v3872 = vpack.c.b16 %v3564, %v3562
        %v3873 = vpack.c.b16 %v3567, %v3565
        %v3874 = vpack.c.b16 %v3568, %v3566
        %v3875 = vpack.c.b16 %v3571, %v3569
        %v3876 = vpack.c.b16 %v3572, %v3570
        %v3877 = vpack.c.b16 %v3575, %v3573
        %v3878 = vpack.c.b16 %v3576, %v3574
        %v3879 = vpack.c.b16 %v3579, %v3577
        %v3880 = vpack.c.b16 %v3580, %v3578
        %v3881 = vpack.c.b16 %v3583, %v3581
        %v3882 = vpack.c.b16 %v3584, %v3582
        %v3883 = vpack.c.b16 %v3587, %v3585
        %v3884 = vpack.c.b16 %v3588, %v3586
        %v3885 = vpack.c.b16 %v3591, %v3589
        %v3886 = vpack.c.b16 %v3592, %v3590
        %v3887 = vpack.c.b16 %v3595, %v3593
        %v3888 = vpack.c.b16 %v3596, %v3594
        %v3889 = vpack.c.b16 %v3599, %v3597
        %v3890 = vpack.c.b16 %v3600, %v3598
        %v3891 = vpack.c.b16 %v3603, %v3601
        %v3892 = vpack.c.b16 %v3604, %v3602
        %v3893 = vpack.c.b16 %v3607, %v3605
        %v3894 = vpack.c.b16 %v3608, %v3606
        %v3895 = vpack.c.b16 %v3611, %v3609
        %v3896 = vpack.c.b16 %v3612, %v3610
        %v3897 = vpack.c.b16 %v3615, %v3613
        %v3898 = vpack.c.b16 %v3616, %v3614
        %v3899 = vpack.c.b16 %v3619, %v3617
        %v3900 = vpack.c.b16 %v3620, %v3618
        %v3901 = vpack.c.b16 %v3623, %v3621
        %v3902 = vpack.c.b16 %v3624, %v3622
        %v3903 = vpack.c.b16 %v3627, %v3625
        %v3904 = vpack.c.b16 %v3628, %v3626
        %v3905 = vpack.c.b16 %v3631, %v3629
        %v3906 = vpack.c.b16 %v3632, %v3630
        %v3907 = vpack.c.b16 %v3635, %v3633
        %v3908 = vpack.c.b16 %v3636, %v3634
        %v3909 = vpack.c.b16 %v3639, %v3637
        %v3910 = vpack.c.b16 %v3640, %v3638
        %v3911 = vpack.c.b16 %v3643, %v3641
        %v3912 = vpack.c.b16 %v3644, %v3642
        %v3913 = vpack.c.b16 %v3647, %v3645
        %v3914 = vpack.c.b16 %v3648, %v3646
        %v3915 = vpack.c.b16 %v3651, %v3649
        %v3916 = vpack.c.b16 %v3652, %v3650
        %v3917 = vpack.c.b16 %v3655, %v3653
        %v3918 = vpack.c.b16 %v3656, %v3654
        %v3919 = vpack.c.b16 %v3659, %v3657
        %v3920 = vpack.c.b16 %v3660, %v3658
        %v3921 = vpack.c.b16 %v3663, %v3661
        %v3922 = vpack.c.b16 %v3664, %v3662
        %v3923 = vpack.c.b16 %v3667, %v3665
        %v3924 = vpack.c.b16 %v3668, %v3666
        %4181 = vmatpush.bf16.msra.mxu0 %v3683
        %4182 = vmatpush.bf16.msra.mxu0 %v3681
        %4183 = vmatpush.bf16.msra.mxu0 %v3679
        %4184 = vmatpush.bf16.msra.mxu0 %v3677
        %4185 = vmatpush.bf16.msra.mxu0 %v3675
        %4186 = vmatpush.bf16.msra.mxu0 %v3673
        %4187 = vmatpush.bf16.msra.mxu0 %v3671
        %4188 = vmatpush.bf16.msra.mxu0 %v3669
        %4189 = vmatmul.bf16.gmra.mxu0 %v2837
        %v4190 = vpop.f32.mrf.mxu0
        %v4191 = vadd.f32 0.0, %v4190
        %v4192 = vpop.f32.mrf.mxu0
        %v4193 = vadd.f32 0.0, %v4192
        %4194 = vmatmul.bf16.gmra.mxu0 %v2853
        %v4195 = vpop.f32.mrf.mxu0
        %v4196 = vadd.f32 0.0, %v4195
        %v4197 = vpop.f32.mrf.mxu0
        %4198 = vdwg.mxu0
        %4199 = vmatpush.bf16.msra.mxu0 %v3699
        %4200 = vmatpush.bf16.msra.mxu0 %v3697
        %4201 = vmatpush.bf16.msra.mxu0 %v3695
        %4202 = vmatpush.bf16.msra.mxu0 %v3693
        %4203 = vmatpush.bf16.msra.mxu0 %v3691
        %4204 = vmatpush.bf16.msra.mxu0 %v3689
        %4205 = vmatpush.bf16.msra.mxu0 %v3687
        %4206 = vmatpush.bf16.msra.mxu0 %v3685
        %4207 = vmatmul.bf16.gmra.mxu0 %v2838
        %v4208 = vpop.f32.mrf.mxu0
        %v4209 = vadd.f32 %v4191, %v4208
        %v4210 = vpop.f32.mrf.mxu0
        %v4211 = vadd.f32 %v4193, %v4210
        %4212 = vmatmul.bf16.gmra.mxu0 %v2854
        %v4213 = vpop.f32.mrf.mxu0
        %v4214 = vadd.f32 %v4196, %v4213
        %v4215 = vpop.f32.mrf.mxu0
        %4216 = vdwg.mxu0
        %4217 = vmatpush.bf16.msra.mxu0 %v3715
        %4218 = vmatpush.bf16.msra.mxu0 %v3713
        %4219 = vmatpush.bf16.msra.mxu0 %v3711
        %4220 = vmatpush.bf16.msra.mxu0 %v3709
        %4221 = vmatpush.bf16.msra.mxu0 %v3707
        %4222 = vmatpush.bf16.msra.mxu0 %v3705
        %4223 = vmatpush.bf16.msra.mxu0 %v3703
        %4224 = vmatpush.bf16.msra.mxu0 %v3701
        %4225 = vmatmul.bf16.gmra.mxu0 %v2839
        %v4226 = vpop.f32.mrf.mxu0
        %v4227 = vadd.f32 %v4209, %v4226
        %v4228 = vpop.f32.mrf.mxu0
        %v4229 = vadd.f32 %v4211, %v4228
        %4230 = vmatmul.bf16.gmra.mxu0 %v2855
        %v4231 = vpop.f32.mrf.mxu0
        %v4232 = vadd.f32 %v4214, %v4231
        %v4233 = vpop.f32.mrf.mxu0
        %4234 = vdwg.mxu0
        %4235 = vmatpush.bf16.msra.mxu0 %v3731
        %4236 = vmatpush.bf16.msra.mxu0 %v3729
        %4237 = vmatpush.bf16.msra.mxu0 %v3727
        %4238 = vmatpush.bf16.msra.mxu0 %v3725
        %4239 = vmatpush.bf16.msra.mxu0 %v3723
        %4240 = vmatpush.bf16.msra.mxu0 %v3721
        %4241 = vmatpush.bf16.msra.mxu0 %v3719
        %4242 = vmatpush.bf16.msra.mxu0 %v3717
        %4243 = vmatmul.bf16.gmra.mxu0 %v2840
        %v4244 = vpop.f32.mrf.mxu0
        %v4245 = vadd.f32 %v4227, %v4244
        %v4246 = vpop.f32.mrf.mxu0
        %v4247 = vadd.f32 %v4229, %v4246
        %4248 = vmatmul.bf16.gmra.mxu0 %v2856
        %v4249 = vpop.f32.mrf.mxu0
        %v4250 = vadd.f32 %v4232, %v4249
        %v4251 = vpop.f32.mrf.mxu0
        %4252 = vdwg.mxu0
        %4253 = vmatpush.bf16.msra.mxu0 %v3747
        %4254 = vmatpush.bf16.msra.mxu0 %v3745
        %4255 = vmatpush.bf16.msra.mxu0 %v3743
        %4256 = vmatpush.bf16.msra.mxu0 %v3741
        %4257 = vmatpush.bf16.msra.mxu0 %v3739
        %4258 = vmatpush.bf16.msra.mxu0 %v3737
        %4259 = vmatpush.bf16.msra.mxu0 %v3735
        %4260 = vmatpush.bf16.msra.mxu0 %v3733
        %4261 = vmatmul.bf16.gmra.mxu0 %v2841
        %v4262 = vpop.f32.mrf.mxu0
        %v4263 = vadd.f32 %v4245, %v4262
        %v4264 = vpop.f32.mrf.mxu0
        %v4265 = vadd.f32 %v4247, %v4264
        %4266 = vmatmul.bf16.gmra.mxu0 %v2857
        %v4267 = vpop.f32.mrf.mxu0
        %v4268 = vadd.f32 %v4250, %v4267
        %v4269 = vpop.f32.mrf.mxu0
        %4270 = vdwg.mxu0
        %4271 = vmatpush.bf16.msra.mxu0 %v3763
        %4272 = vmatpush.bf16.msra.mxu0 %v3761
        %4273 = vmatpush.bf16.msra.mxu0 %v3759
        %4274 = vmatpush.bf16.msra.mxu0 %v3757
        %4275 = vmatpush.bf16.msra.mxu0 %v3755
        %4276 = vmatpush.bf16.msra.mxu0 %v3753
        %4277 = vmatpush.bf16.msra.mxu0 %v3751
        %4278 = vmatpush.bf16.msra.mxu0 %v3749
        %4279 = vmatmul.bf16.gmra.mxu0 %v2842
        %v4280 = vpop.f32.mrf.mxu0
        %v4281 = vadd.f32 %v4263, %v4280
        %v4282 = vpop.f32.mrf.mxu0
        %v4283 = vadd.f32 %v4265, %v4282
        %4284 = vmatmul.bf16.gmra.mxu0 %v2858
        %v4285 = vpop.f32.mrf.mxu0
        %v4286 = vadd.f32 %v4268, %v4285
        %v4287 = vpop.f32.mrf.mxu0
        %4288 = vdwg.mxu0
        %4289 = vmatpush.bf16.msra.mxu0 %v3779
        %4290 = vmatpush.bf16.msra.mxu0 %v3777
        %4291 = vmatpush.bf16.msra.mxu0 %v3775
        %4292 = vmatpush.bf16.msra.mxu0 %v3773
        %4293 = vmatpush.bf16.msra.mxu0 %v3771
        %4294 = vmatpush.bf16.msra.mxu0 %v3769
        %4295 = vmatpush.bf16.msra.mxu0 %v3767
        %4296 = vmatpush.bf16.msra.mxu0 %v3765
        %4297 = vmatmul.bf16.gmra.mxu0 %v2843
        %v4298 = vpop.f32.mrf.mxu0
        %v4299 = vadd.f32 %v4281, %v4298
        %v4300 = vpop.f32.mrf.mxu0
        %v4301 = vadd.f32 %v4283, %v4300
        %4302 = vmatmul.bf16.gmra.mxu0 %v2859
        %v4303 = vpop.f32.mrf.mxu0
        %v4304 = vadd.f32 %v4286, %v4303
        %v4305 = vpop.f32.mrf.mxu0
        %4306 = vdwg.mxu0
        %4307 = vmatpush.bf16.msra.mxu0 %v3795
        %4308 = vmatpush.bf16.msra.mxu0 %v3793
        %4309 = vmatpush.bf16.msra.mxu0 %v3791
        %4310 = vmatpush.bf16.msra.mxu0 %v3789
        %4311 = vmatpush.bf16.msra.mxu0 %v3787
        %4312 = vmatpush.bf16.msra.mxu0 %v3785
        %4313 = vmatpush.bf16.msra.mxu0 %v3783
        %4314 = vmatpush.bf16.msra.mxu0 %v3781
        %4315 = vmatmul.bf16.gmra.mxu0 %v2844
        %v4316 = vpop.f32.mrf.mxu0
        %v4317 = vadd.f32 %v4299, %v4316
        %v4318 = vpop.f32.mrf.mxu0
        %v4319 = vadd.f32 %v4301, %v4318
        %4320 = vmatmul.bf16.gmra.mxu0 %v2860
        %v4321 = vpop.f32.mrf.mxu0
        %v4322 = vadd.f32 %v4304, %v4321
        %v4323 = vpop.f32.mrf.mxu0
        %4324 = vdwg.mxu0
        %4325 = vmatpush.bf16.msra.mxu0 %v3811
        %4326 = vmatpush.bf16.msra.mxu0 %v3809
        %4327 = vmatpush.bf16.msra.mxu0 %v3807
        %4328 = vmatpush.bf16.msra.mxu0 %v3805
        %4329 = vmatpush.bf16.msra.mxu0 %v3803
        %4330 = vmatpush.bf16.msra.mxu0 %v3801
        %4331 = vmatpush.bf16.msra.mxu0 %v3799
        %4332 = vmatpush.bf16.msra.mxu0 %v3797
        %4333 = vmatmul.bf16.gmra.mxu0 %v2845
        %v4334 = vpop.f32.mrf.mxu0
        %v4335 = vadd.f32 %v4317, %v4334
        %v4336 = vpop.f32.mrf.mxu0
        %v4337 = vadd.f32 %v4319, %v4336
        %4338 = vmatmul.bf16.gmra.mxu0 %v2861
        %v4339 = vpop.f32.mrf.mxu0
        %v4340 = vadd.f32 %v4322, %v4339
        %v4341 = vpop.f32.mrf.mxu0
        %4342 = vdwg.mxu0
        %4343 = vmatpush.bf16.msra.mxu0 %v3827
        %4344 = vmatpush.bf16.msra.mxu0 %v3825
        %4345 = vmatpush.bf16.msra.mxu0 %v3823
        %4346 = vmatpush.bf16.msra.mxu0 %v3821
        %4347 = vmatpush.bf16.msra.mxu0 %v3819
        %4348 = vmatpush.bf16.msra.mxu0 %v3817
        %4349 = vmatpush.bf16.msra.mxu0 %v3815
        %4350 = vmatpush.bf16.msra.mxu0 %v3813
        %4351 = vmatmul.bf16.gmra.mxu0 %v2846
        %v4352 = vpop.f32.mrf.mxu0
        %v4353 = vadd.f32 %v4335, %v4352
        %v4354 = vpop.f32.mrf.mxu0
        %v4355 = vadd.f32 %v4337, %v4354
        %4356 = vmatmul.bf16.gmra.mxu0 %v2862
        %v4357 = vpop.f32.mrf.mxu0
        %v4358 = vadd.f32 %v4340, %v4357
        %v4359 = vpop.f32.mrf.mxu0
        %4360 = vdwg.mxu0
        %4361 = vmatpush.bf16.msra.mxu0 %v3843
        %4362 = vmatpush.bf16.msra.mxu0 %v3841
        %4363 = vmatpush.bf16.msra.mxu0 %v3839
        %4364 = vmatpush.bf16.msra.mxu0 %v3837
        %4365 = vmatpush.bf16.msra.mxu0 %v3835
        %4366 = vmatpush.bf16.msra.mxu0 %v3833
        %4367 = vmatpush.bf16.msra.mxu0 %v3831
        %4368 = vmatpush.bf16.msra.mxu0 %v3829
        %4369 = vmatmul.bf16.gmra.mxu0 %v2847
        %v4370 = vpop.f32.mrf.mxu0
        %v4371 = vadd.f32 %v4353, %v4370
        %v4372 = vpop.f32.mrf.mxu0
        %v4373 = vadd.f32 %v4355, %v4372
        %4374 = vmatmul.bf16.gmra.mxu0 %v2863
        %v4375 = vpop.f32.mrf.mxu0
        %v4376 = vadd.f32 %v4358, %v4375
        %v4377 = vpop.f32.mrf.mxu0
        %4378 = vdwg.mxu0
        %4379 = vmatpush.bf16.msra.mxu0 %v3859
        %4380 = vmatpush.bf16.msra.mxu0 %v3857
        %4381 = vmatpush.bf16.msra.mxu0 %v3855
        %4382 = vmatpush.bf16.msra.mxu0 %v3853
        %4383 = vmatpush.bf16.msra.mxu0 %v3851
        %4384 = vmatpush.bf16.msra.mxu0 %v3849
        %4385 = vmatpush.bf16.msra.mxu0 %v3847
        %4386 = vmatpush.bf16.msra.mxu0 %v3845
        %4387 = vmatmul.bf16.gmra.mxu0 %v2848
        %v4388 = vpop.f32.mrf.mxu0
        %v4389 = vadd.f32 %v4371, %v4388
        %v4390 = vpop.f32.mrf.mxu0
        %v4391 = vadd.f32 %v4373, %v4390
        %4392 = vmatmul.bf16.gmra.mxu0 %v2864
        %v4393 = vpop.f32.mrf.mxu0
        %v4394 = vadd.f32 %v4376, %v4393
        %v4395 = vpop.f32.mrf.mxu0
        %4396 = vdwg.mxu0
        %4397 = vmatpush.bf16.msra.mxu0 %v3875
        %4398 = vmatpush.bf16.msra.mxu0 %v3873
        %4399 = vmatpush.bf16.msra.mxu0 %v3871
        %4400 = vmatpush.bf16.msra.mxu0 %v3869
        %4401 = vmatpush.bf16.msra.mxu0 %v3867
        %4402 = vmatpush.bf16.msra.mxu0 %v3865
        %4403 = vmatpush.bf16.msra.mxu0 %v3863
        %4404 = vmatpush.bf16.msra.mxu0 %v3861
        %4405 = vmatmul.bf16.gmra.mxu0 %v2849
        %v4406 = vpop.f32.mrf.mxu0
        %v4407 = vadd.f32 %v4389, %v4406
        %v4408 = vpop.f32.mrf.mxu0
        %v4409 = vadd.f32 %v4391, %v4408
        %4410 = vmatmul.bf16.gmra.mxu0 %v2865
        %v4411 = vpop.f32.mrf.mxu0
        %v4412 = vadd.f32 %v4394, %v4411
        %v4413 = vpop.f32.mrf.mxu0
        %4414 = vdwg.mxu0
        %4415 = vmatpush.bf16.msra.mxu0 %v3891
        %4416 = vmatpush.bf16.msra.mxu0 %v3889
        %4417 = vmatpush.bf16.msra.mxu0 %v3887
        %4418 = vmatpush.bf16.msra.mxu0 %v3885
        %4419 = vmatpush.bf16.msra.mxu0 %v3883
        %4420 = vmatpush.bf16.msra.mxu0 %v3881
        %4421 = vmatpush.bf16.msra.mxu0 %v3879
        %4422 = vmatpush.bf16.msra.mxu0 %v3877
        %4423 = vmatmul.bf16.gmra.mxu0 %v2850
        %v4424 = vpop.f32.mrf.mxu0
        %v4425 = vadd.f32 %v4407, %v4424
        %v4426 = vpop.f32.mrf.mxu0
        %v4427 = vadd.f32 %v4409, %v4426
        %4428 = vmatmul.bf16.gmra.mxu0 %v2866
        %v4429 = vpop.f32.mrf.mxu0
        %v4430 = vadd.f32 %v4412, %v4429
        %v4431 = vpop.f32.mrf.mxu0
        %4432 = vdwg.mxu0
        %4433 = vmatpush.bf16.msra.mxu0 %v3907
        %4434 = vmatpush.bf16.msra.mxu0 %v3905
        %4435 = vmatpush.bf16.msra.mxu0 %v3903
        %4436 = vmatpush.bf16.msra.mxu0 %v3901
        %4437 = vmatpush.bf16.msra.mxu0 %v3899
        %4438 = vmatpush.bf16.msra.mxu0 %v3897
        %4439 = vmatpush.bf16.msra.mxu0 %v3895
        %4440 = vmatpush.bf16.msra.mxu0 %v3893
        %4441 = vmatmul.bf16.gmra.mxu0 %v2851
        %v4442 = vpop.f32.mrf.mxu0
        %v4443 = vadd.f32 %v4425, %v4442
        %v4444 = vpop.f32.mrf.mxu0
        %v4445 = vadd.f32 %v4427, %v4444
        %4446 = vmatmul.bf16.gmra.mxu0 %v2867
        %v4447 = vpop.f32.mrf.mxu0
        %v4448 = vadd.f32 %v4430, %v4447
        %v4449 = vpop.f32.mrf.mxu0
        %4450 = vdwg.mxu0
        %4451 = vmatpush.bf16.msra.mxu0 %v3923
        %4452 = vmatpush.bf16.msra.mxu0 %v3921
        %4453 = vmatpush.bf16.msra.mxu0 %v3919
        %4454 = vmatpush.bf16.msra.mxu0 %v3917
        %4455 = vmatpush.bf16.msra.mxu0 %v3915
        %4456 = vmatpush.bf16.msra.mxu0 %v3913
        %4457 = vmatpush.bf16.msra.mxu0 %v3911
        %4458 = vmatpush.bf16.msra.mxu0 %v3909
        %4459 = vmatmul.bf16.gmra.mxu0 %v2852
        %v4460 = vpop.f32.mrf.mxu0
        %v4461 = vadd.f32 %v4443, %v4460
        %v4462 = vpop.f32.mrf.mxu0
        %v4463 = vadd.f32 %v4445, %v4462
        %4464 = vmatmul.bf16.gmra.mxu0 %v2868
        %v4465 = vpop.f32.mrf.mxu0
        %v4466 = vadd.f32 %v4448, %v4465
        %v4467 = vpop.f32.mrf.mxu0
        %4468 = vdwg.mxu0
        %4469 = vmatpush.bf16.msra.mxu0 %v3684
        %4470 = vmatpush.bf16.msra.mxu0 %v3682
        %4471 = vmatpush.bf16.msra.mxu0 %v3680
        %4472 = vmatpush.bf16.msra.mxu0 %v3678
        %4473 = vmatpush.bf16.msra.mxu0 %v3676
        %4474 = vmatpush.bf16.msra.mxu0 %v3674
        %4475 = vmatpush.bf16.msra.mxu0 %v3672
        %4476 = vmatpush.bf16.msra.mxu0 %v3670
        %4477 = vmatmul.bf16.gmra.mxu0 %v2837
        %v4478 = vpop.f32.mrf.mxu0
        %v4479 = vadd.f32 0.0, %v4478
        %v4480 = vpop.f32.mrf.mxu0
        %v4481 = vadd.f32 0.0, %v4480
        %4482 = vmatmul.bf16.gmra.mxu0 %v2853
        %v4483 = vpop.f32.mrf.mxu0
        %v4484 = vadd.f32 0.0, %v4483
        %v4485 = vpop.f32.mrf.mxu0
        %4486 = vdwg.mxu0
        %4487 = vmatpush.bf16.msra.mxu0 %v3700
        %4488 = vmatpush.bf16.msra.mxu0 %v3698
        %4489 = vmatpush.bf16.msra.mxu0 %v3696
        %4490 = vmatpush.bf16.msra.mxu0 %v3694
        %4491 = vmatpush.bf16.msra.mxu0 %v3692
        %4492 = vmatpush.bf16.msra.mxu0 %v3690
        %4493 = vmatpush.bf16.msra.mxu0 %v3688
        %4494 = vmatpush.bf16.msra.mxu0 %v3686
        %4495 = vmatmul.bf16.gmra.mxu0 %v2838
        %v4496 = vpop.f32.mrf.mxu0
        %v4497 = vadd.f32 %v4479, %v4496
        %v4498 = vpop.f32.mrf.mxu0
        %v4499 = vadd.f32 %v4481, %v4498
        %4500 = vmatmul.bf16.gmra.mxu0 %v2854
        %v4501 = vpop.f32.mrf.mxu0
        %v4502 = vadd.f32 %v4484, %v4501
        %v4503 = vpop.f32.mrf.mxu0
        %4504 = vdwg.mxu0
        %4505 = vmatpush.bf16.msra.mxu0 %v3716
        %4506 = vmatpush.bf16.msra.mxu0 %v3714
        %4507 = vmatpush.bf16.msra.mxu0 %v3712
        %4508 = vmatpush.bf16.msra.mxu0 %v3710
        %4509 = vmatpush.bf16.msra.mxu0 %v3708
        %4510 = vmatpush.bf16.msra.mxu0 %v3706
        %4511 = vmatpush.bf16.msra.mxu0 %v3704
        %4512 = vmatpush.bf16.msra.mxu0 %v3702
        %4513 = vmatmul.bf16.gmra.mxu0 %v2839
        %v4514 = vpop.f32.mrf.mxu0
        %v4515 = vadd.f32 %v4497, %v4514
        %v4516 = vpop.f32.mrf.mxu0
        %v4517 = vadd.f32 %v4499, %v4516
        %4518 = vmatmul.bf16.gmra.mxu0 %v2855
        %v4519 = vpop.f32.mrf.mxu0
        %v4520 = vadd.f32 %v4502, %v4519
        %v4521 = vpop.f32.mrf.mxu0
        %4522 = vdwg.mxu0
        %4523 = vmatpush.bf16.msra.mxu0 %v3732
        %4524 = vmatpush.bf16.msra.mxu0 %v3730
        %4525 = vmatpush.bf16.msra.mxu0 %v3728
        %4526 = vmatpush.bf16.msra.mxu0 %v3726
        %4527 = vmatpush.bf16.msra.mxu0 %v3724
        %4528 = vmatpush.bf16.msra.mxu0 %v3722
        %4529 = vmatpush.bf16.msra.mxu0 %v3720
        %4530 = vmatpush.bf16.msra.mxu0 %v3718
        %4531 = vmatmul.bf16.gmra.mxu0 %v2840
        %v4532 = vpop.f32.mrf.mxu0
        %v4533 = vadd.f32 %v4515, %v4532
        %v4534 = vpop.f32.mrf.mxu0
        %v4535 = vadd.f32 %v4517, %v4534
        %4536 = vmatmul.bf16.gmra.mxu0 %v2856
        %v4537 = vpop.f32.mrf.mxu0
        %v4538 = vadd.f32 %v4520, %v4537
        %v4539 = vpop.f32.mrf.mxu0
        %4540 = vdwg.mxu0
        %4541 = vmatpush.bf16.msra.mxu0 %v3748
        %4542 = vmatpush.bf16.msra.mxu0 %v3746
        %4543 = vmatpush.bf16.msra.mxu0 %v3744
        %4544 = vmatpush.bf16.msra.mxu0 %v3742
        %4545 = vmatpush.bf16.msra.mxu0 %v3740
        %4546 = vmatpush.bf16.msra.mxu0 %v3738
        %4547 = vmatpush.bf16.msra.mxu0 %v3736
        %4548 = vmatpush.bf16.msra.mxu0 %v3734
        %4549 = vmatmul.bf16.gmra.mxu0 %v2841
        %v4550 = vpop.f32.mrf.mxu0
        %v4551 = vadd.f32 %v4533, %v4550
        %v4552 = vpop.f32.mrf.mxu0
        %v4553 = vadd.f32 %v4535, %v4552
        %4554 = vmatmul.bf16.gmra.mxu0 %v2857
        %v4555 = vpop.f32.mrf.mxu0
        %v4556 = vadd.f32 %v4538, %v4555
        %v4557 = vpop.f32.mrf.mxu0
        %4558 = vdwg.mxu0
        %4559 = vmatpush.bf16.msra.mxu0 %v3764
        %4560 = vmatpush.bf16.msra.mxu0 %v3762
        %4561 = vmatpush.bf16.msra.mxu0 %v3760
        %4562 = vmatpush.bf16.msra.mxu0 %v3758
        %4563 = vmatpush.bf16.msra.mxu0 %v3756
        %4564 = vmatpush.bf16.msra.mxu0 %v3754
        %4565 = vmatpush.bf16.msra.mxu0 %v3752
        %4566 = vmatpush.bf16.msra.mxu0 %v3750
        %4567 = vmatmul.bf16.gmra.mxu0 %v2842
        %v4568 = vpop.f32.mrf.mxu0
        %v4569 = vadd.f32 %v4551, %v4568
        %v4570 = vpop.f32.mrf.mxu0
        %v4571 = vadd.f32 %v4553, %v4570
        %4572 = vmatmul.bf16.gmra.mxu0 %v2858
        %v4573 = vpop.f32.mrf.mxu0
        %v4574 = vadd.f32 %v4556, %v4573
        %v4575 = vpop.f32.mrf.mxu0
        %4576 = vdwg.mxu0
        %4577 = vmatpush.bf16.msra.mxu0 %v3780
        %4578 = vmatpush.bf16.msra.mxu0 %v3778
        %4579 = vmatpush.bf16.msra.mxu0 %v3776
        %4580 = vmatpush.bf16.msra.mxu0 %v3774
        %4581 = vmatpush.bf16.msra.mxu0 %v3772
        %4582 = vmatpush.bf16.msra.mxu0 %v3770
        %4583 = vmatpush.bf16.msra.mxu0 %v3768
        %4584 = vmatpush.bf16.msra.mxu0 %v3766
        %4585 = vmatmul.bf16.gmra.mxu0 %v2843
        %v4586 = vpop.f32.mrf.mxu0
        %v4587 = vadd.f32 %v4569, %v4586
        %v4588 = vpop.f32.mrf.mxu0
        %v4589 = vadd.f32 %v4571, %v4588
        %4590 = vmatmul.bf16.gmra.mxu0 %v2859
        %v4591 = vpop.f32.mrf.mxu0
        %v4592 = vadd.f32 %v4574, %v4591
        %v4593 = vpop.f32.mrf.mxu0
        %4594 = vdwg.mxu0
        %4595 = vmatpush.bf16.msra.mxu0 %v3796
        %4596 = vmatpush.bf16.msra.mxu0 %v3794
        %4597 = vmatpush.bf16.msra.mxu0 %v3792
        %4598 = vmatpush.bf16.msra.mxu0 %v3790
        %4599 = vmatpush.bf16.msra.mxu0 %v3788
        %4600 = vmatpush.bf16.msra.mxu0 %v3786
        %4601 = vmatpush.bf16.msra.mxu0 %v3784
        %4602 = vmatpush.bf16.msra.mxu0 %v3782
        %4603 = vmatmul.bf16.gmra.mxu0 %v2844
        %v4604 = vpop.f32.mrf.mxu0
        %v4605 = vadd.f32 %v4587, %v4604
        %v4606 = vpop.f32.mrf.mxu0
        %v4607 = vadd.f32 %v4589, %v4606
        %4608 = vmatmul.bf16.gmra.mxu0 %v2860
        %v4609 = vpop.f32.mrf.mxu0
        %v4610 = vadd.f32 %v4592, %v4609
        %v4611 = vpop.f32.mrf.mxu0
        %4612 = vdwg.mxu0
        %4613 = vmatpush.bf16.msra.mxu0 %v3812
        %4614 = vmatpush.bf16.msra.mxu0 %v3810
        %4615 = vmatpush.bf16.msra.mxu0 %v3808
        %4616 = vmatpush.bf16.msra.mxu0 %v3806
        %4617 = vmatpush.bf16.msra.mxu0 %v3804
        %4618 = vmatpush.bf16.msra.mxu0 %v3802
        %4619 = vmatpush.bf16.msra.mxu0 %v3800
        %4620 = vmatpush.bf16.msra.mxu0 %v3798
        %4621 = vmatmul.bf16.gmra.mxu0 %v2845
        %v4622 = vpop.f32.mrf.mxu0
        %v4623 = vadd.f32 %v4605, %v4622
        %v4624 = vpop.f32.mrf.mxu0
        %v4625 = vadd.f32 %v4607, %v4624
        %4626 = vmatmul.bf16.gmra.mxu0 %v2861
        %v4627 = vpop.f32.mrf.mxu0
        %v4628 = vadd.f32 %v4610, %v4627
        %v4629 = vpop.f32.mrf.mxu0
        %4630 = vdwg.mxu0
        %4631 = vmatpush.bf16.msra.mxu0 %v3828
        %4632 = vmatpush.bf16.msra.mxu0 %v3826
        %4633 = vmatpush.bf16.msra.mxu0 %v3824
        %4634 = vmatpush.bf16.msra.mxu0 %v3822
        %4635 = vmatpush.bf16.msra.mxu0 %v3820
        %4636 = vmatpush.bf16.msra.mxu0 %v3818
        %4637 = vmatpush.bf16.msra.mxu0 %v3816
        %4638 = vmatpush.bf16.msra.mxu0 %v3814
        %4639 = vmatmul.bf16.gmra.mxu0 %v2846
        %v4640 = vpop.f32.mrf.mxu0
        %v4641 = vadd.f32 %v4623, %v4640
        %v4642 = vpop.f32.mrf.mxu0
        %v4643 = vadd.f32 %v4625, %v4642
        %4644 = vmatmul.bf16.gmra.mxu0 %v2862
        %v4645 = vpop.f32.mrf.mxu0
        %v4646 = vadd.f32 %v4628, %v4645
        %v4647 = vpop.f32.mrf.mxu0
        %4648 = vdwg.mxu0
        %4649 = vmatpush.bf16.msra.mxu0 %v3844
        %4650 = vmatpush.bf16.msra.mxu0 %v3842
        %4651 = vmatpush.bf16.msra.mxu0 %v3840
        %4652 = vmatpush.bf16.msra.mxu0 %v3838
        %4653 = vmatpush.bf16.msra.mxu0 %v3836
        %4654 = vmatpush.bf16.msra.mxu0 %v3834
        %4655 = vmatpush.bf16.msra.mxu0 %v3832
        %4656 = vmatpush.bf16.msra.mxu0 %v3830
        %4657 = vmatmul.bf16.gmra.mxu0 %v2847
        %v4658 = vpop.f32.mrf.mxu0
        %v4659 = vadd.f32 %v4641, %v4658
        %v4660 = vpop.f32.mrf.mxu0
        %v4661 = vadd.f32 %v4643, %v4660
        %4662 = vmatmul.bf16.gmra.mxu0 %v2863
        %v4663 = vpop.f32.mrf.mxu0
        %v4664 = vadd.f32 %v4646, %v4663
        %v4665 = vpop.f32.mrf.mxu0
        %4666 = vdwg.mxu0
        %4667 = vmatpush.bf16.msra.mxu0 %v3860
        %4668 = vmatpush.bf16.msra.mxu0 %v3858
        %4669 = vmatpush.bf16.msra.mxu0 %v3856
        %4670 = vmatpush.bf16.msra.mxu0 %v3854
        %4671 = vmatpush.bf16.msra.mxu0 %v3852
        %4672 = vmatpush.bf16.msra.mxu0 %v3850
        %4673 = vmatpush.bf16.msra.mxu0 %v3848
        %4674 = vmatpush.bf16.msra.mxu0 %v3846
        %4675 = vmatmul.bf16.gmra.mxu0 %v2848
        %v4676 = vpop.f32.mrf.mxu0
        %v4677 = vadd.f32 %v4659, %v4676
        %v4678 = vpop.f32.mrf.mxu0
        %v4679 = vadd.f32 %v4661, %v4678
        %4680 = vmatmul.bf16.gmra.mxu0 %v2864
        %v4681 = vpop.f32.mrf.mxu0
        %v4682 = vadd.f32 %v4664, %v4681
        %v4683 = vpop.f32.mrf.mxu0
        %4684 = vdwg.mxu0
        %4685 = vmatpush.bf16.msra.mxu0 %v3876
        %4686 = vmatpush.bf16.msra.mxu0 %v3874
        %4687 = vmatpush.bf16.msra.mxu0 %v3872
        %4688 = vmatpush.bf16.msra.mxu0 %v3870
        %4689 = vmatpush.bf16.msra.mxu0 %v3868
        %4690 = vmatpush.bf16.msra.mxu0 %v3866
        %4691 = vmatpush.bf16.msra.mxu0 %v3864
        %4692 = vmatpush.bf16.msra.mxu0 %v3862
        %4693 = vmatmul.bf16.gmra.mxu0 %v2849
        %v4694 = vpop.f32.mrf.mxu0
        %v4695 = vadd.f32 %v4677, %v4694
        %v4696 = vpop.f32.mrf.mxu0
        %v4697 = vadd.f32 %v4679, %v4696
        %4698 = vmatmul.bf16.gmra.mxu0 %v2865
        %v4699 = vpop.f32.mrf.mxu0
        %v4700 = vadd.f32 %v4682, %v4699
        %v4701 = vpop.f32.mrf.mxu0
        %4702 = vdwg.mxu0
        %4703 = vmatpush.bf16.msra.mxu0 %v3892
        %4704 = vmatpush.bf16.msra.mxu0 %v3890
        %4705 = vmatpush.bf16.msra.mxu0 %v3888
        %4706 = vmatpush.bf16.msra.mxu0 %v3886
        %4707 = vmatpush.bf16.msra.mxu0 %v3884
        %4708 = vmatpush.bf16.msra.mxu0 %v3882
        %4709 = vmatpush.bf16.msra.mxu0 %v3880
        %4710 = vmatpush.bf16.msra.mxu0 %v3878
        %4711 = vmatmul.bf16.gmra.mxu0 %v2850
        %v4712 = vpop.f32.mrf.mxu0
        %v4713 = vadd.f32 %v4695, %v4712
        %v4714 = vpop.f32.mrf.mxu0
        %v4715 = vadd.f32 %v4697, %v4714
        %4716 = vmatmul.bf16.gmra.mxu0 %v2866
        %v4717 = vpop.f32.mrf.mxu0
        %v4718 = vadd.f32 %v4700, %v4717
        %v4719 = vpop.f32.mrf.mxu0
        %4720 = vdwg.mxu0
        %4721 = vmatpush.bf16.msra.mxu0 %v3908
        %4722 = vmatpush.bf16.msra.mxu0 %v3906
        %4723 = vmatpush.bf16.msra.mxu0 %v3904
        %4724 = vmatpush.bf16.msra.mxu0 %v3902
        %4725 = vmatpush.bf16.msra.mxu0 %v3900
        %4726 = vmatpush.bf16.msra.mxu0 %v3898
        %4727 = vmatpush.bf16.msra.mxu0 %v3896
        %4728 = vmatpush.bf16.msra.mxu0 %v3894
        %4729 = vmatmul.bf16.gmra.mxu0 %v2851
        %v4730 = vpop.f32.mrf.mxu0
        %v4731 = vadd.f32 %v4713, %v4730
        %v4732 = vpop.f32.mrf.mxu0
        %v4733 = vadd.f32 %v4715, %v4732
        %4734 = vmatmul.bf16.gmra.mxu0 %v2867
        %v4735 = vpop.f32.mrf.mxu0
        %v4736 = vadd.f32 %v4718, %v4735
        %v4737 = vpop.f32.mrf.mxu0
        %4738 = vdwg.mxu0
        %4739 = vmatpush.bf16.msra.mxu0 %v3924
        %4740 = vmatpush.bf16.msra.mxu0 %v3922
        %4741 = vmatpush.bf16.msra.mxu0 %v3920
        %4742 = vmatpush.bf16.msra.mxu0 %v3918
        %4743 = vmatpush.bf16.msra.mxu0 %v3916
        %4744 = vmatpush.bf16.msra.mxu0 %v3914
        %4745 = vmatpush.bf16.msra.mxu0 %v3912
        %4746 = vmatpush.bf16.msra.mxu0 %v3910
        %4747 = vmatmul.bf16.gmra.mxu0 %v2852
        %v4748 = vpop.f32.mrf.mxu0
        %v4749 = vadd.f32 %v4731, %v4748
        %v4750 = vpop.f32.mrf.mxu0
        %v4751 = vadd.f32 %v4733, %v4750
        %4752 = vmatmul.bf16.gmra.mxu0 %v2868
        %v4753 = vpop.f32.mrf.mxu0
        %v4754 = vadd.f32 %v4736, %v4753
        %v4755 = vpop.f32.mrf.mxu0
        %4756 = vdwg.mxu0
        %v4757 = vadd.f32 %v2479, %v4461
        %v4758 = vadd.f32 %v2480, %v4749
        %v4759 = vadd.f32 %v2481, %v4463
        %v4760 = vadd.f32 %v2482, %v4751
        %v4761 = vadd.f32 %v2483, %v4466
        %v4762 = vadd.f32 %v2484, %v4754
        %4763 = vst [vmem:[#allocation2] sm:$0xff] %v4757
        %4764 = vst [vmem:[#allocation2 + $0x8] sm:$0xff] %v4758
        %4765 = vst [vmem:[#allocation2 + $0x10] sm:$0xff] %v4759
        %4766 = vst [vmem:[#allocation2 + $0x18] sm:$0xff] %v4760
        %4767 = vst [vmem:[#allocation2 + $0x20] sm:$0xff] %v4761
        %4768 = vst [vmem:[#allocation2 + $0x28] sm:$0xff] %v4762
        %p4769 = scmp.eq.s32.totalorder %s22, 1
        // Predicated region
        $region116: #{discriminator_forward.8} parent=102 // pred_check
          %p4770 = pneg %p4769
        $region117: #{discriminator_forward.8} parent=102 // pred_check_branch
          %4772 = sbr.rel (%p4770) target = $region119
        $region118: #{discriminator_forward.8} parent=102 // pred_region
          %v4773 = vld [vmem:[#allocation2] sm:$0xff]
          %v4774 = vld [vmem:[#allocation2 + $0x8] sm:$0xff]
          %v4775 = vld [vmem:[#allocation2 + $0x10] sm:$0xff]
          %v4776 = vld [vmem:[#allocation2 + $0x18] sm:$0xff]
          %v4777 = vld [vmem:[#allocation2 + $0x20] sm:$0xff]
          %v4778 = vld [vmem:[#allocation2 + $0x28] sm:$0xff]
          %v4779 = vld [vmem:[%s2460] sm:$0x3]
          %v4781 = vperm.slane %v4779, 0
          %v4782 = vperm.slane %v4779, 1
          %v4785 = vmul.f32 %v4773, %v4781
          %v4786 = vmul.f32 %v4774, %v4782
          %v4787 = vmul.f32 %v4775, %v4781
          %v4788 = vmul.f32 %v4776, %v4782
          %v4789 = vmul.f32 %v4777, %v4781
          %v4790 = vmul.f32 %v4778, %v4782
          %v4791 = vld [vmem:[%s2465] sm:$0x3]
          %v4793 = vperm.slane %v4791, 0
          %v4794 = vperm.slane %v4791, 1
          %v4797 = vadd.f32 %v4785, %v4793
          %v4798 = vadd.f32 %v4786, %v4794
          %v4799 = vadd.f32 %v4787, %v4793
          %v4800 = vadd.f32 %v4788, %v4794
          %v4801 = vadd.f32 %v4789, %v4793
          %v4802 = vadd.f32 %v4790, %v4794
          %vm4803 = vcmp.ge.f32.partialorder %v4797, 0.0
          %vm4804 = vcmp.ge.f32.partialorder %v4798, 0.0
          %vm4805 = vcmp.ge.f32.partialorder %v4799, 0.0
          %vm4806 = vcmp.ge.f32.partialorder %v4800, 0.0
          %vm4807 = vcmp.ge.f32.partialorder %v4801, 0.0
          %vm4808 = vcmp.ge.f32.partialorder %v4802, 0.0
          %v4809 = vmul.f32 %v4797, 0.2
          %v4810 = vmul.f32 %v4798, 0.2
          %v4811 = vmul.f32 %v4799, 0.2
          %v4812 = vmul.f32 %v4800, 0.2
          %v4813 = vmul.f32 %v4801, 0.2
          %v4814 = vmul.f32 %v4802, 0.2
          %v4815 = vsel %vm4803, %v4797, %v4809
          %v4816 = vsel %vm4804, %v4798, %v4810
          %v4817 = vsel %vm4805, %v4799, %v4811
          %v4818 = vsel %vm4806, %v4800, %v4812
          %v4819 = vsel %vm4807, %v4801, %v4813
          %v4820 = vsel %vm4808, %v4802, %v4814
          %v4821 = vpack.c.bf16 %v4816, %v4815
          %v4822 = vpack.c.bf16 %v4818, %v4817
          %v4823 = vpack.c.bf16 %v4820, %v4819
          %4824 = vst [vmem:[%s2452] sm:$0xff] %v4821
          %4825 = vst [vmem:[%s2452 + $0x8] sm:$0xff] %v4822
          %4826 = vst [vmem:[%s2452 + $0x10] sm:$0xff] %v4823
        $region119: #{discriminator_forward.8} parent=102 // pred_fallthru
          _
        %s4827 = sand.u32 %s152, 1
        %s4828 = sand.u32 %s152, 1
        %s4829 = smul.addr %s4828, 24
        %s4830 = scalar_lea.vmem [#allocation5], %s4829
        // Predicated region
        $region120: #{discriminator_forward.8} parent=102 // pred_check
          %p4831 = pneg %p162
        $region121: #{discriminator_forward.8} parent=102 // pred_check_branch
          %4833 = sbr.rel (%p4831) target = $region123
        $region122: #{discriminator_forward.8} parent=102 // pred_region
          %s4834 = smul.u32 3, %s20
          %s4835 = smul.u32 2, %s21
          %s4836 = smul.addr %s4834, 4
          %s4837 = sadd.s32 %s4835, %s4836
          %s4838 = smul.addr %s4837, 4
          %s4839 = scalar_lea.vmem %s4, %s4838
          // Predicated region
          $region124: #{discriminator_forward.8} parent=122 // pred_check
            _
          $region125: #{discriminator_forward.8} parent=122 // pred_check_branch
            %4841 = sbr.rel (0) target = $region127
          $region126: #{discriminator_forward.8} parent=122 // pred_region
            // Predicated region
            $region128: #{discriminator_forward.8} parent=126 // pred_check
              _
            $region129: #{discriminator_forward.8} parent=126 // pred_check_branch
              %4843 = sbr.rel (0) target = $region131
            $region130: #{discriminator_forward.8} parent=126 // pred_region
              // Predicated region
              $region143: #{discriminator_forward.8} parent=130 // pred_check
                _
              $region144: #{discriminator_forward.8} parent=130 // pred_check_branch
                %4863 = sbr.rel (0) target = $region146
              $region145: #{discriminator_forward.8} parent=130 // pred_region
                loop: start=0, step=1, limit=1
                $region147: #{discriminator_forward.8} parent=145 // loop_pre_header
                  _
                $region148: #{discriminator_forward.8} parent=145 // loop_header
                  %s4865 = sphi 0, %s4869
                  %p4866 = scmp.ge.s32.totalorder %s4865, 1
                  %s4870 = sphi %s4830, %s4830
                  %s4871 = sphi %s4839, %s4839
                $region149: #{discriminator_forward.8} parent=145 // loop_header_branch
                  %4868 = sbr.rel (%p4866) target = $region153
                $region150: #{discriminator_forward.8} parent=145 // loop_body
                  %v4872 = vld [vmem:[%s4870] sm:$0xff]
                  %4873 = vst [vmem:[%s4871] sm:$0xff] %v4872
                  %v4874 = vld [vmem:[%s4870 + $0x8] sm:$0xff]
                  %4875 = vst [vmem:[%s4871 + $0x10] sm:$0xff] %v4874
                  %v4876 = vld [vmem:[%s4870 + $0x10] sm:$0xff]
                  %4877 = vst [vmem:[%s4871 + $0x20] sm:$0xff] %v4876
                $region151: #{discriminator_forward.8} parent=145 // loop_footer
                  %s4869 = sadd.s32 1, %s4865
                $region152: #{discriminator_forward.8} parent=145 // loop_footer_branch
                  %4864 = sbr.rel target = $region148
                $region153: #{discriminator_forward.8} parent=145 // loop_exit
                  _
              $region146: #{discriminator_forward.8} parent=130 // pred_fallthru
                _
              // Predicated region
              $region154: #{discriminator_forward.8} parent=130 // pred_check
                _
              $region155: #{discriminator_forward.8} parent=130 // pred_check_branch
                %4879 = sbr.rel target = $region157
              $region156: #{discriminator_forward.8} parent=130 // pred_region
                _
              $region157: #{discriminator_forward.8} parent=130 // pred_fallthru
                _
            $region131: #{discriminator_forward.8} parent=126 // pred_fallthru
              _
            // Predicated region
            $region132: #{discriminator_forward.8} parent=126 // pred_check
              _
            $region133: #{discriminator_forward.8} parent=126 // pred_check_branch
              %4845 = sbr.rel target = $region135
            $region134: #{discriminator_forward.8} parent=126 // pred_region
              %s4847 = ssub.s32 256, 1
              loop: start=0, step=1, limit=1
              $region136: #{discriminator_forward.8} parent=134 // loop_pre_header
                _
              $region137: #{discriminator_forward.8} parent=134 // loop_header
                %s4849 = sphi 0, %s4853
                %p4850 = scmp.ge.s32.totalorder %s4849, 1
                %s4854 = sphi %s4830, %s4830
                %s4855 = sphi %s4839, %s4839
              $region138: #{discriminator_forward.8} parent=134 // loop_header_branch
                %4852 = sbr.rel (%p4850) target = $region142
              $region139: #{discriminator_forward.8} parent=134 // loop_body
                %v4856 = vld [vmem:[%s4854] sm:%s4847]
                %4857 = vst [vmem:[%s4855] sm:%s4847] %v4856
                %v4858 = vld [vmem:[%s4854 + $0x8] sm:%s4847]
                %4859 = vst [vmem:[%s4855 + $0x10] sm:%s4847] %v4858
                %v4860 = vld [vmem:[%s4854 + $0x10] sm:%s4847]
                %4861 = vst [vmem:[%s4855 + $0x20] sm:%s4847] %v4860
              $region140: #{discriminator_forward.8} parent=134 // loop_footer
                %s4853 = sadd.s32 1, %s4849
              $region141: #{discriminator_forward.8} parent=134 // loop_footer_branch
                %4848 = sbr.rel target = $region137
              $region142: #{discriminator_forward.8} parent=134 // loop_exit
                _
            $region135: #{discriminator_forward.8} parent=126 // pred_fallthru
              _
          $region127: #{discriminator_forward.8} parent=122 // pred_fallthru
            _
          %4880 = vnop
        $region123: #{discriminator_forward.8} parent=102 // pred_fallthru
          _
      $region103: #{discriminator_forward.8} parent=5 // pred_fallthru
        _
      %p4881 = scmp.le.s32.totalorder 2, %s10
      // Predicated region
      $region158: #{discriminator_forward.8} parent=5 // pred_check
        %p4882 = pneg %p4881
      $region159: #{discriminator_forward.8} parent=5 // pred_check_branch
        %4884 = sbr.rel (%p4882) target = $region161
      $region160: #{discriminator_forward.8} parent=5 // pred_region
        %s4885 = ssub.s32 %s10, 2
        // Predicated region
        $region162: #{discriminator_forward.8} parent=160 // pred_check
          %p4886 = pneg %p168
        $region163: #{discriminator_forward.8} parent=160 // pred_check_branch
          %4888 = sbr.rel (%p4886) target = $region165
        $region164: #{discriminator_forward.8} parent=160 // pred_region
          %s4889 = sand.u32 %s153, 1
          %s4890 = sand.u32 %s153, 1
          %s4891 = smul.addr %s4890, 24
          %s4892 = scalar_lea.vmem [#allocation5], %s4891
        $region165: #{discriminator_forward.8} parent=160 // pred_fallthru
          _
      $region161: #{discriminator_forward.8} parent=5 // pred_fallthru
        _
    $region6: #{discriminator_forward.8} parent=1 // loop_footer
      %s14 = sadd.s32 1, %s10
    $region7: #{discriminator_forward.8} parent=1 // loop_footer_branch
      %9 = sbr.rel target = $region3
    $region8: #{discriminator_forward.8} parent=1 // loop_exit
      _

// kernel: discriminator_forward.9
$region0: #{discriminator_forward.9}
  #allocation0 [shape = 'u32[]', space=smem, size = 0x4, offset = 0x4, fixed_abs, tag = 'smem constant byte address 0x4 - core index']
  #allocation1 [shape = 'u32[72,128]{1,0:T(1,128)}', space=vmem, size = 0x9000, scoped, tag = 'internal scratch']
  #allocation2 [shape = 'f32[8,1]{1,0:T(8,128)}', space=vmem, size = 0x1000, scoped, tag = 'scratch operand']
  #allocation3 [shape = 'f32[1,1]{1,0:T(1,128)S(1)}', space=vmem, size = 0x200, scoped, tag = 'scoped memory for discriminator_forward.9']
  %s0 = inlined_call_operand.vmem [shape: bf16[8,8192], index: 0, kind: input, shape index: {}]
  %s1 = inlined_call_operand.vmem [shape: bf16[1,8192], index: 1, kind: input, shape index: {}]
  %s2 = inlined_call_operand.<no memory space> [shape: f32[1,1], index: 2, kind: input, shape index: {}]
  %s3 = inlined_call_operand.vmem [shape: f32[8,1], index: 3, kind: output, shape index: {}]
  %s4 = sld [smem:[#allocation0]]
  $region53: #{discriminator_forward.9} parent=0
    _
  %s6 = ssub.s32 1, %s4
  %s7 = scalar_select 0, %s6, %s4
  %v8 = vstv %s2
  %9 = vst [vmem:[#allocation3] sm:$0x1] %v8
  loop: start=0, step=1, limit=6
  $region2: #{discriminator_forward.9} parent=0 // loop_pre_header
    _
  $region3: #{discriminator_forward.9} parent=0 // loop_header
    %s11 = sphi 0, %s15
    %p12 = scmp.ge.s32.totalorder %s11, 6
    %s18 = sphi 0, %s30
    %s19 = sphi 0, %s26
    %s20 = sphi 0, %s18
    %s21 = sphi 0, %s19
    %s22 = sphi 0, %s20
    %s23 = sphi 0, %s21
    %s35 = sphi 0, %s37
    %s38 = sphi 0, %s35
    %s39 = sphi 0, %s38
    %s55 = sphi 0, %s39
    %s61 = sphi 0, %s63
    %s64 = sphi 0, %s61
    %s65 = sphi 0, %s64
    %s81 = sphi 0, %s65
    %s85 = sphi 0, %s85
    %s87 = sphi 0, %s85
    %s88 = sphi 0, %s87
    %s102 = sphi 0, %s88
    %s108 = sphi 0, %s110
    %s111 = sphi 0, %s108
    %s112 = sphi 0, %s111
    %s128 = sphi 0, %s112
  $region4: #{discriminator_forward.9} parent=0 // loop_header_branch
    %14 = sbr.rel (%p12) target = $region8
  $region5: #{discriminator_forward.9} parent=0 // loop_body
    %s16 = ssub.s32 %s11, 1
    %s17 = ssub.s32 %s11, 2
    %s24 = sadd.s32 1, %s19
    %p25 = scmp.ge.s32.totalorder %s24, 4
    %s26 = scalar_select %p25, 0, %s24
    %s27 = sadd.s32 1, %s18
    %s28 = scalar_select %p25, %s27, %s18
    %p29 = scmp.ge.s32.totalorder %s28, 1
    %s30 = scalar_select %p29, 0, %s28
    %s31 = ssub.s32 %s18, %s30
    %s32 = ssub.s32 %s19, %s26
    %s33 = sor.u32 %s31, %s32
    %p34 = scmp.eq.s32.totalorder %s33, 0
    %s36 = sadd.s32 %s35, 1
    %s37 = scalar_select %p34, %s35, %s36
    %p40 = pneg %p34
    %p41 = scmp.eq.s32.totalorder %s11, 3
    %p42 = por %p40, %p41
    %p43 = scmp.ne.s32.totalorder %s35, %s38
    %p44 = scmp.eq.s32.totalorder %s11, 0
    %p45 = por %p43, %p44
    %p46 = scmp.ne.s32.totalorder %s35, %s38
    %p47 = scmp.eq.s32.totalorder %s16, 3
    %p48 = por %p46, %p47
    %p49 = scmp.ne.s32.totalorder %s38, %s39
    %p50 = scmp.eq.s32.totalorder %s16, 0
    %p51 = por %p49, %p50
    %p52 = scmp.ne.s32.totalorder %s38, %s39
    %p53 = scmp.eq.s32.totalorder %s17, 3
    %p54 = por %p52, %p53
    %p56 = scmp.ne.s32.totalorder %s39, %s55
    %p57 = scmp.eq.s32.totalorder %s17, 0
    %p58 = por %p56, %p57
    %s59 = ssub.s32 %s19, %s26
    %p60 = scmp.eq.s32.totalorder %s59, 0
    %s62 = sadd.s32 %s61, 1
    %s63 = scalar_select %p60, %s61, %s62
    %p66 = pneg %p60
    %p67 = scmp.eq.s32.totalorder %s11, 3
    %p68 = por %p66, %p67
    %p69 = scmp.ne.s32.totalorder %s61, %s64
    %p70 = scmp.eq.s32.totalorder %s11, 0
    %p71 = por %p69, %p70
    %p72 = scmp.ne.s32.totalorder %s61, %s64
    %p73 = scmp.eq.s32.totalorder %s16, 3
    %p74 = por %p72, %p73
    %p75 = scmp.ne.s32.totalorder %s64, %s65
    %p76 = scmp.eq.s32.totalorder %s16, 0
    %p77 = por %p75, %p76
    %p78 = scmp.ne.s32.totalorder %s64, %s65
    %p79 = scmp.eq.s32.totalorder %s17, 3
    %p80 = por %p78, %p79
    %p82 = scmp.ne.s32.totalorder %s65, %s81
    %p83 = scmp.eq.s32.totalorder %s17, 0
    %p84 = por %p82, %p83
    %s86 = sadd.s32 %s85, 1
    %p89 = scmp.eq.s32.totalorder %s11, 3
    %p90 = scmp.ne.s32.totalorder %s85, %s87
    %p91 = scmp.eq.s32.totalorder %s11, 0
    %p92 = por %p90, %p91
    %p93 = scmp.ne.s32.totalorder %s85, %s87
    %p94 = scmp.eq.s32.totalorder %s16, 3
    %p95 = por %p93, %p94
    %p96 = scmp.ne.s32.totalorder %s87, %s88
    %p97 = scmp.eq.s32.totalorder %s16, 0
    %p98 = por %p96, %p97
    %p99 = scmp.ne.s32.totalorder %s87, %s88
    %p100 = scmp.eq.s32.totalorder %s17, 3
    %p101 = por %p99, %p100
    %p103 = scmp.ne.s32.totalorder %s88, %s102
    %p104 = scmp.eq.s32.totalorder %s17, 0
    %p105 = por %p103, %p104
    %s106 = ssub.s32 %s18, %s30
    %p107 = scmp.eq.s32.totalorder %s106, 0
    %s109 = sadd.s32 %s108, 1
    %s110 = scalar_select %p107, %s108, %s109
    %p113 = pneg %p107
    %p114 = scmp.eq.s32.totalorder %s11, 3
    %p115 = por %p113, %p114
    %p116 = scmp.ne.s32.totalorder %s108, %s111
    %p117 = scmp.eq.s32.totalorder %s11, 0
    %p118 = por %p116, %p117
    %p119 = scmp.ne.s32.totalorder %s108, %s111
    %p120 = scmp.eq.s32.totalorder %s16, 3
    %p121 = por %p119, %p120
    %p122 = scmp.ne.s32.totalorder %s111, %s112
    %p123 = scmp.eq.s32.totalorder %s16, 0
    %p124 = por %p122, %p123
    %p125 = scmp.ne.s32.totalorder %s111, %s112
    %p126 = scmp.eq.s32.totalorder %s17, 3
    %p127 = por %p125, %p126
    %p129 = scmp.ne.s32.totalorder %s112, %s128
    %p130 = scmp.eq.s32.totalorder %s17, 0
    %p131 = por %p129, %p130
    %p132 = scmp.le.s32.totalorder 1, %s11
    %p133 = scmp.lt.s32.totalorder %s11, 5
    %p134 = pnand %p132, %p133
    %p135 = pneg %p134
    // Predicated region
    $region9: #{discriminator_forward.9} parent=5 // pred_check
      _
    $region10: #{discriminator_forward.9} parent=5 // pred_check_branch
      %137 = sbr.rel (%p134) target = $region12
    $region11: #{discriminator_forward.9} parent=5 // pred_region
      %s138 = ssub.s32 %s11, 1
      // Predicated region
      $region13: #{discriminator_forward.9} parent=11 // pred_check
        %p139 = pneg %p98
      $region14: #{discriminator_forward.9} parent=11 // pred_check_branch
        %141 = sbr.rel (%p139) target = $region16
      $region15: #{discriminator_forward.9} parent=11 // pred_region
        _
      $region16: #{discriminator_forward.9} parent=11 // pred_fallthru
        _
    $region12: #{discriminator_forward.9} parent=5 // pred_fallthru
      _
    %p142 = scmp.lt.s32.totalorder %s11, 4
    // Predicated region
    $region17: #{discriminator_forward.9} parent=5 // pred_check
      %p143 = pneg %p142
    $region18: #{discriminator_forward.9} parent=5 // pred_check_branch
      %145 = sbr.rel (%p143) target = $region20
    $region19: #{discriminator_forward.9} parent=5 // pred_region
      // Predicated region
      $region21: #{discriminator_forward.9} parent=19 // pred_check
        %p146 = pneg %p45
      $region22: #{discriminator_forward.9} parent=19 // pred_check_branch
        %148 = sbr.rel (%p146) target = $region24
      $region23: #{discriminator_forward.9} parent=19 // pred_region
        %s149 = smul.u32 16, %s19
        %p150 = scmp.lt.s32.totalorder %s18, 0
        %s151 = scalar_select %p150, %s18, 0
        %p152 = scmp.lt.s32.totalorder %s149, 63
        %s153 = scalar_select %p152, %s149, 63
        %s154 = smul.addr %s151, 64
        %s155 = sadd.s32 %s153, %s154
        %s156 = smul.addr %s155, 4
        %s157 = scalar_lea.vmem %s0, %s156
        %s158 = smul.u32 16, %s19
      $region24: #{discriminator_forward.9} parent=19 // pred_fallthru
        _
      // Predicated region
      $region25: #{discriminator_forward.9} parent=19 // pred_check
        %p159 = pneg %p71
      $region26: #{discriminator_forward.9} parent=19 // pred_check_branch
        %161 = sbr.rel (%p159) target = $region28
      $region27: #{discriminator_forward.9} parent=19 // pred_region
        %s162 = smul.u32 16, %s19
        %p163 = scmp.lt.s32.totalorder %s162, 63
        %s164 = scalar_select %p163, %s162, 63
        %s165 = scalar_lea.vmem %s1, %s164
        %s166 = smul.u32 16, %s19
      $region28: #{discriminator_forward.9} parent=19 // pred_fallthru
        _
    $region20: #{discriminator_forward.9} parent=5 // pred_fallthru
      _
    %p167 = scmp.le.s32.totalorder 1, %s11
    %p168 = scmp.lt.s32.totalorder %s11, 5
    %p169 = pnand %p167, %p168
    %p170 = pneg %p169
    // Predicated region
    $region29: #{discriminator_forward.9} parent=5 // pred_check
      _
    $region30: #{discriminator_forward.9} parent=5 // pred_check_branch
      %172 = sbr.rel (%p169) target = $region32
    $region31: #{discriminator_forward.9} parent=5 // pred_region
      %s173 = ssub.s32 %s11, 1
      %s174 = smul.u32 16, %s21
      %p175 = scmp.lt.s32.totalorder %s20, 0
      %s176 = scalar_select %p175, %s20, 0
      %p177 = scmp.lt.s32.totalorder %s174, 63
      %s178 = scalar_select %p177, %s174, 63
      %s179 = smul.addr %s176, 64
      %s180 = sadd.s32 %s178, %s179
      %s181 = smul.addr %s180, 4
      %s182 = scalar_lea.vmem %s0, %s181
      %p183 = pneg %p51
      %p184 = pneg %p48
      %s185 = smul.u32 16, %s21
      %p186 = scmp.lt.s32.totalorder %s185, 63
      %s187 = scalar_select %p186, %s185, 63
      %s188 = scalar_lea.vmem %s1, %s187
      %p189 = pneg %p77
      %p190 = pneg %p74
      %p191 = pneg %p98
      %p192 = pneg %p95
      %p193 = pneg %p124
      %p194 = pneg %p121
      %p195 = scmp.lt.s32.totalorder %s20, 0
      %s196 = scalar_select %p195, %s20, 0
      %s197 = smul.addr %s196, 8
      %s198 = scalar_lea.vmem %s3, %s197
      %s199 = smul.u32 16, %s21
      %p200 = scmp.lt.s32.totalorder %s20, 0
      %s201 = scalar_select %p200, %s20, 0
      %p202 = scmp.lt.s32.totalorder %s199, 63
      %s203 = scalar_select %p202, %s199, 63
      %s204 = smul.addr %s201, 64
      %s205 = sadd.s32 %s203, %s204
      %s206 = smul.addr %s205, 4
      %s207 = scalar_lea.vmem %s0, %s206
      %s208 = smul.u32 16, %s21
      %s209 = smul.u32 16, %s21
      %p210 = scmp.lt.s32.totalorder %s209, 63
      %s211 = scalar_select %p210, %s209, 63
      %s212 = scalar_lea.vmem %s1, %s211
      %s213 = smul.u32 16, %s21
      %p214 = scmp.lt.s32.totalorder %s20, 0
      %s215 = scalar_select %p214, %s20, 0
      %s216 = smul.addr %s215, 8
      %s217 = scalar_lea.vmem %s3, %s216
      %p218 = scmp.eq.s32.totalorder %s21, 0
      // Predicated region
      $region33: #{discriminator_forward.9} parent=31 // pred_check
        %p219 = pneg %p218
      $region34: #{discriminator_forward.9} parent=31 // pred_check_branch
        %221 = sbr.rel (%p219) target = $region36
      $region35: #{discriminator_forward.9} parent=31 // pred_region
        %vm222 = vcmask 7168
        %223 = vst.msk [vmem:[#allocation2] sm:$0xff] %vm222, 0.0
      $region36: #{discriminator_forward.9} parent=31 // pred_fallthru
        _
      %v224 = vld [vmem:[%s207] sm:$0xff]
      %v225 = vld [vmem:[%s207 + $0x8] sm:$0xff]
      %v226 = vld [vmem:[%s207 + $0x10] sm:$0xff]
      %v227 = vld [vmem:[%s207 + $0x18] sm:$0xff]
      %v228 = vld [vmem:[%s207 + $0x20] sm:$0xff]
      %v229 = vld [vmem:[%s207 + $0x28] sm:$0xff]
      %v230 = vld [vmem:[%s207 + $0x30] sm:$0xff]
      %v231 = vld [vmem:[%s207 + $0x38] sm:$0xff]
      %v232 = vunpack.c.l.bf16 %v224
      %v233 = vunpack.c.h.bf16 %v224
      %v234 = vunpack.c.l.bf16 %v225
      %v235 = vunpack.c.h.bf16 %v225
      %v236 = vunpack.c.l.bf16 %v226
      %v237 = vunpack.c.h.bf16 %v226
      %v238 = vunpack.c.l.bf16 %v227
      %v239 = vunpack.c.h.bf16 %v227
      %v240 = vunpack.c.l.bf16 %v228
      %v241 = vunpack.c.h.bf16 %v228
      %v242 = vunpack.c.l.bf16 %v229
      %v243 = vunpack.c.h.bf16 %v229
      %v244 = vunpack.c.l.bf16 %v230
      %v245 = vunpack.c.h.bf16 %v230
      %v246 = vunpack.c.l.bf16 %v231
      %v247 = vunpack.c.h.bf16 %v231
      %v248 = vld [vmem:[%s212] sm:$0xff]
      %v249 = vld [vmem:[%s212 + $0x8] sm:$0xff]
      %v250 = vunpack.c.l.bf16 %v248
      %v251 = vunpack.c.h.bf16 %v248
      %v252 = vunpack.c.l.bf16 %v249
      %v253 = vunpack.c.h.bf16 %v249
      %v258 = vperm.slane %v250, 0
      %v259 = vperm.slane %v250, 2
      %v260 = vperm.slane %v250, 4
      %v261 = vperm.slane %v250, 6
      %v262 = vperm.slane %v251, 0
      %v263 = vperm.slane %v251, 2
      %v264 = vperm.slane %v251, 4
      %v265 = vperm.slane %v251, 6
      %v266 = vperm.slane %v252, 0
      %v267 = vperm.slane %v252, 2
      %v268 = vperm.slane %v252, 4
      %v269 = vperm.slane %v252, 6
      %v270 = vperm.slane %v253, 0
      %v271 = vperm.slane %v253, 2
      %v272 = vperm.slane %v253, 4
      %v273 = vperm.slane %v253, 6
      %v290 = vperm.slane %v258, 0
      %v291 = vperm.slane %v259, 0
      %v292 = vperm.slane %v260, 0
      %v293 = vperm.slane %v261, 0
      %v294 = vperm.slane %v262, 0
      %v295 = vperm.slane %v263, 0
      %v296 = vperm.slane %v264, 0
      %v297 = vperm.slane %v265, 0
      %v298 = vperm.slane %v266, 0
      %v299 = vperm.slane %v267, 0
      %v300 = vperm.slane %v268, 0
      %v301 = vperm.slane %v269, 0
      %v302 = vperm.slane %v270, 0
      %v303 = vperm.slane %v271, 0
      %v304 = vperm.slane %v272, 0
      %v305 = vperm.slane %v273, 0
      %v306 = vmul.f32 %v232, %v290
      %v307 = vmul.f32 %v233, %v291
      %v308 = vmul.f32 %v234, %v292
      %v309 = vmul.f32 %v235, %v293
      %v310 = vmul.f32 %v236, %v294
      %v311 = vmul.f32 %v237, %v295
      %v312 = vmul.f32 %v238, %v296
      %v313 = vmul.f32 %v239, %v297
      %v314 = vmul.f32 %v240, %v298
      %v315 = vmul.f32 %v241, %v299
      %v316 = vmul.f32 %v242, %v300
      %v317 = vmul.f32 %v243, %v301
      %v318 = vmul.f32 %v244, %v302
      %v319 = vmul.f32 %v245, %v303
      %v320 = vmul.f32 %v246, %v304
      %v321 = vmul.f32 %v247, %v305
      %v322 = vld [vmem:[#allocation2] sm:$0xff]
      %v323 = vadd.f32 %v306, %v307
      %v324 = vadd.f32 %v323, %v308
      %v325 = vadd.f32 %v324, %v309
      %v326 = vadd.f32 %v325, %v310
      %v327 = vadd.f32 %v326, %v311
      %v328 = vadd.f32 %v327, %v312
      %v329 = vadd.f32 %v328, %v313
      %v330 = vadd.f32 %v329, %v314
      %v331 = vadd.f32 %v330, %v315
      %v332 = vadd.f32 %v331, %v316
      %v333 = vadd.f32 %v332, %v317
      %v334 = vadd.f32 %v333, %v318
      %v335 = vadd.f32 %v334, %v319
      %v336 = vadd.f32 %v335, %v320
      %v337 = vadd.f32 %v336, %v321
      %338 = vadd.xlane.f32.xlu0 %v337
      %v339 = vpop.xlane.xlu0 %338
      %v340 = vadd.f32 %v322, %v339
      %vm341 = vcmask 7168
      %342 = vst.msk [vmem:[#allocation2] sm:$0xff] %vm341, %v340
      %p343 = scmp.eq.s32.totalorder %s21, 3
      // Predicated region
      $region37: #{discriminator_forward.9} parent=31 // pred_check
        %p344 = pneg %p343
      $region38: #{discriminator_forward.9} parent=31 // pred_check_branch
        %346 = sbr.rel (%p344) target = $region40
      $region39: #{discriminator_forward.9} parent=31 // pred_region
        %v347 = vld [vmem:[#allocation2] sm:$0xff]
        %v348 = vld [vmem:[#allocation3] sm:$0x1]
        %v350 = vperm.slane %v348, 0
        %v352 = vadd.f32 %v347, %v350
        %v353 = vsub.f32 0.0, %v352
        %v354 = vmul.f32 %v353, 1.442695
        %v355 = vpow.pop %v354
        %v356 = vadd.f32 %v355, 1.0
        %v357 = vrcp.pop %v356
        %v358 = vmul.f32 %v356, %v357
        %v359 = vsub.f32 1.0, %v358
        %v360 = vmul.f32 %v357, %v359
        %v361 = vadd.f32 %v357, %v360
        %vm362 = vweird.f32 %v356
        %vm363 = vweird.f32 %v357
        %vm364 = vmor %vm362, %vm363
        %v365 = vsel %vm364, %v357, %v361
        %v366 = vand.u32 2147483647, %v356
        %vm367 = vcmp.eq.f32.partialorder %v366, 8.507059e+37
        %v368 = vand.u32 %v356, 2147483648
        %v369 = vor.u32 1.1754944e-38, %v368
        %v370 = vsel %vm367, %v369, %v365
        %v371 = vmul.f32 1.0, %v370
        %372 = vst.msk [vmem:[%s217] sm:$0xff] %vm341, %v371
      $region40: #{discriminator_forward.9} parent=31 // pred_fallthru
        _
      %p373 = scmp.lt.s32.totalorder %s20, 0
      %s374 = scalar_select %p373, %s20, 0
      %s375 = smul.addr %s374, 8
      %s376 = scalar_lea.vmem %s3, %s375
      // Predicated region
      $region41: #{discriminator_forward.9} parent=31 // pred_check
        %p377 = pneg %p121
      $region42: #{discriminator_forward.9} parent=31 // pred_check_branch
        %379 = sbr.rel (%p377) target = $region44
      $region43: #{discriminator_forward.9} parent=31 // pred_region
        _
      $region44: #{discriminator_forward.9} parent=31 // pred_fallthru
        _
      // Predicated region
      $region45: #{discriminator_forward.9} parent=31 // pred_check
        %p380 = pneg %p121
      $region46: #{discriminator_forward.9} parent=31 // pred_check_branch
        %382 = sbr.rel (%p380) target = $region48
      $region47: #{discriminator_forward.9} parent=31 // pred_region
        %p383 = scmp.lt.s32.totalorder %s20, 0
        %s384 = scalar_select %p383, %s20, 0
        %s385 = smul.addr %s384, 8
        %s386 = scalar_lea.vmem %s3, %s385
      $region48: #{discriminator_forward.9} parent=31 // pred_fallthru
        _
    $region32: #{discriminator_forward.9} parent=5 // pred_fallthru
      _
    %p387 = scmp.le.s32.totalorder 2, %s11
    // Predicated region
    $region49: #{discriminator_forward.9} parent=5 // pred_check
      %p388 = pneg %p387
    $region50: #{discriminator_forward.9} parent=5 // pred_check_branch
      %390 = sbr.rel (%p388) target = $region52
    $region51: #{discriminator_forward.9} parent=5 // pred_region
      %s391 = ssub.s32 %s11, 2
    $region52: #{discriminator_forward.9} parent=5 // pred_fallthru
      _
  $region6: #{discriminator_forward.9} parent=0 // loop_footer
    %s15 = sadd.s32 1, %s11
  $region7: #{discriminator_forward.9} parent=0 // loop_footer_branch
    %10 = sbr.rel target = $region3
  $region8: #{discriminator_forward.9} parent=0 // loop_exit
    _

</llo_original>
